<compile_context>
chip_gen: v7x
topology: tpu7x:2x2x1
jax: 0.10.0
libtpu: 0.0.40
codegen_flags: <defaults>
</compile_context>

<pallas_src>
import jax
import jax.numpy as jnp
from jax.experimental import pallas as pl
from jax.experimental.pallas import tpu as pltpu


def _make_gru_kernel(n_layers, h_dim, b_blk, t_blk, seq_len):
    H = h_dim
    needs_mask = (seq_len % t_blk) != 0  # only if S was padded to a T_BLK multiple

    def kernel(x0p_ref, h0_ref, whzr_ref, wgh_ref, wxzrg_ref, bzr_ref, bgh_ref,
               yh_ref, h_ref):
        tb = pl.program_id(1)  # time-block index (axis 0 is the batch blocks)

        @pl.when(tb == 0)
        def _init():
            h_ref[...] = h0_ref[...]

        # Hoist weight loads and bias broadcasts out of the per-timestep loop.
        whzr = [whzr_ref[l] for l in range(n_layers)]                 # (H, 2H)
        wgh = [wgh_ref[l] for l in range(n_layers)]                   # (H, H)
        wxzrg = [wxzrg_ref[l - 1] for l in range(1, n_layers)]        # (H, 3H)
        bzr = [jnp.broadcast_to(bzr_ref[l], (b_blk, 2 * H))
               for l in range(n_layers)]
        bgh = [jnp.broadcast_to(bgh_ref[l], (b_blk, H))
               for l in range(n_layers)]

        h_init = tuple(h_ref[l] for l in range(n_layers))

        def step(i, hs):
            x_pre = x0p_ref[i]  # (B_BLK, 3H): precomputed layer-0 x-side terms
            if needs_mask:
                valid = (tb * t_blk + i) < seq_len
            new_hs = []
            x = None
            for l in range(n_layers):
                h = hs[l]
                if l == 0:
                    xp = x_pre
                else:
                    xp = jnp.dot(x, wxzrg[l - 1],
                                 preferred_element_type=jnp.float32)
                zr = jax.nn.sigmoid(
                    xp[:, :2 * H]
                    + jnp.dot(h, whzr[l], preferred_element_type=jnp.float32)
                    + bzr[l])
                z = zr[:, :H]
                r = zr[:, H:]
                g = jnp.tanh(
                    xp[:, 2 * H:]
                    + jnp.dot(r * h, wgh[l], preferred_element_type=jnp.float32)
                    + bgh[l])
                new_h = z * h + (1.0 - z) * g
                if needs_mask:
                    new_h = jnp.where(valid, new_h, h)
                new_hs.append(new_h)
                # Next layer consumes the freshly-updated previous-layer state,
                # exactly as in the PyTorch forward.  The inter-layer Dropout
                # never affects the computation there (overwritten before use).
                # TODO(synk): inter-layer dropout (dead code in the reference).
                x = new_h
            yh_ref[i] = new_hs[-1].astype(yh_ref.dtype)
            return tuple(new_hs)

        hs = jax.lax.fori_loop(0, t_blk, step, h_init, unroll=True)
        for l in range(n_layers):
            h_ref[l] = hs[l]

    return kernel


def multilayer_gru_forward(x, layer_params, out_params, h0=None,
                           *, t_blk=16, b_blk=None):
    """x: (B, S, I); layer_params: per-layer dicts with PyTorch-layout weights
    (out, in); out_params: (Wo (O,H), bo (O,)); h0: (B, L, H) or None.
    Returns (y (B, S, O), h (B, L, H))."""
    B, S, I = x.shape
    L = len(layer_params)
    H = layer_params[0]["Wzh"].shape[0]
    Wo, bo = out_params
    f32 = jnp.float32

    if h0 is None:
        h0 = jnp.zeros((B, L, H), f32)

    t_blk = max(1, min(t_blk, S))
    n_tb = pl.cdiv(S, t_blk)
    s_pad = n_tb * t_blk

    # Batch grid axis (megacore on v7x).  Fall back to a single block unless a
    # clean, (8,128)-friendly split was requested.
    if b_blk is None or b_blk <= 0 or B % b_blk != 0 or b_blk % 8 != 0:
        b_blk = B
    n_bb = B // b_blk

    # ---- Precompute layer-0 x-side projections for the whole sequence ----
    p0 = layer_params[0]
    wx0 = jnp.concatenate([p0["Wzx"].T, p0["Wrx"].T, p0["Wgx"].T],
                          axis=1).astype(f32)                  # (I, 3H)
    x0p = jnp.einsum("bsi,ij->sbj", x.astype(f32), wx0)        # (S, B, 3H)
    if s_pad != S:
        x0p = jnp.pad(x0p, ((0, s_pad - S), (0, 0), (0, 0)))

    h0_lbh = jnp.transpose(h0.astype(f32), (1, 0, 2))          # (L, B, H)

    # ---- Pack recurrent weights into a few stacked slabs ----
    whzr = jnp.stack([jnp.concatenate([p["Wzh"].T, p["Wrh"].T], axis=1)
                      for p in layer_params]).astype(f32)       # (L, H, 2H)
    wgh = jnp.stack([p["Wgh"].T for p in layer_params]).astype(f32)  # (L, H, H)
    if L > 1:
        wxzrg = jnp.stack(
            [jnp.concatenate([p["Wzx"].T, p["Wrx"].T, p["Wgx"].T], axis=1)
             for p in layer_params[1:]]).astype(f32)            # (L-1, H, 3H)
    else:
        wxzrg = jnp.zeros((1, H, 3 * H), f32)                   # dummy, unused
    bzr = jnp.stack([jnp.concatenate([p["bzh"], p["brh"]]).reshape(1, 2 * H)
                     for p in layer_params]).astype(f32)        # (L, 1, 2H)
    bgh = jnp.stack([p["bgh"].reshape(1, H)
                     for p in layer_params]).astype(f32)        # (L, 1, H)

    def const_spec(a):
        return pl.BlockSpec(a.shape, lambda b, t, _nd=a.ndim: (0,) * _nd)

    in_specs = [
        pl.BlockSpec((t_blk, b_blk, 3 * H), lambda b, t: (t, b, 0)),  # x0p
        pl.BlockSpec((L, b_blk, H), lambda b, t: (0, b, 0)),          # h0
        const_spec(whzr), const_spec(wgh), const_spec(wxzrg),
        const_spec(bzr), const_spec(bgh),
    ]
    out_specs = [
        pl.BlockSpec((t_blk, b_blk, H), lambda b, t: (t, b, 0)),  # last-layer h / step
        pl.BlockSpec((L, b_blk, H), lambda b, t: (0, b, 0)),      # final hidden (resident)
    ]
    out_shape = (jax.ShapeDtypeStruct((s_pad, B, H), f32),
                 jax.ShapeDtypeStruct((L, B, H), f32))

    yh_sbh, h_lbh = pl.pallas_call(
        _make_gru_kernel(L, H, b_blk, t_blk, S),
        out_shape=out_shape,
        grid_spec=pltpu.PrefetchScalarGridSpec(
            num_scalar_prefetch=0,
            grid=(n_bb, n_tb),
            in_specs=in_specs,
            out_specs=out_specs),
        compiler_params=pltpu.CompilerParams(
            dimension_semantics=("parallel", "arbitrary")),
    )(x0p, h0_lbh, whzr, wgh, wxzrg, bzr, bgh)

    # ---- Output projection hoisted out of the recurrence: one big matmul ----
    yh_bsh = jnp.transpose(yh_sbh[:S], (1, 0, 2))                # (B, S, H)
    y = jnp.einsum("bsh,oh->bso", yh_bsh, Wo.astype(f32)) + bo.astype(f32)
    h_out = jnp.transpose(h_lbh, (1, 0, 2))                      # (B, L, H)
    return y, h_out


def gru_reference(x, layer_params, out_params, h0=None):
    """Pure-JAX re-statement of the PyTorch forward (for verification)."""
    B, S, _ = x.shape
    L = len(layer_params)
    H = layer_params[0]["Wzh"].shape[0]
    Wo, bo = out_params
    if h0 is None:
        h0 = jnp.zeros((B, L, H), jnp.float32)
    states = [h0[:, l] for l in range(L)]
    outs = []
    for t in range(S):
        xt = x[:, t]
        for l, p in enumerate(layer_params):
            if l > 0:
                xt = states[l - 1]
            h = states[l]
            z = jax.nn.sigmoid(xt @ p["Wzx"].T + h @ p["Wzh"].T + p["bzh"])
            r = jax.nn.sigmoid(xt @ p["Wrx"].T + h @ p["Wrh"].T + p["brh"])
            g = jnp.tanh(xt @ p["Wgx"].T + (r * h) @ p["Wgh"].T + p["bgh"])
            states[l] = z * h + (1.0 - z) * g
        outs.append(states[-1] @ Wo.T + bo)
    return jnp.stack(outs, axis=1), jnp.stack(states, axis=1)


def init_params(key, in_dim, h_dim, out_dim, n_layers):
    """Deterministic nn.Linear-style init: U(-1/sqrt(fan_in), 1/sqrt(fan_in))."""
    def linear(key, out_f, in_f, bias):
        bound = 1.0 / jnp.sqrt(in_f)
        kw, kb = jax.random.split(key)
        w = jax.random.uniform(kw, (out_f, in_f), jnp.float32, -bound, bound)
        b = (jax.random.uniform(kb, (out_f,), jnp.float32, -bound, bound)
             if bias else None)
        return w, b

    layer_params = []
    for i in range(n_layers):
        input_size = in_dim if i == 0 else h_dim
        key, *ks = jax.random.split(key, 7)
        wzx, _ = linear(ks[0], h_dim, input_size, bias=False)
        wzh, bzh = linear(ks[1], h_dim, h_dim, bias=True)
        wrx, _ = linear(ks[2], h_dim, input_size, bias=False)
        wrh, brh = linear(ks[3], h_dim, h_dim, bias=True)
        wgx, _ = linear(ks[4], h_dim, input_size, bias=False)
        wgh, bgh = linear(ks[5], h_dim, h_dim, bias=True)
        layer_params.append(dict(Wzx=wzx, Wzh=wzh, bzh=bzh,
                                 Wrx=wrx, Wrh=wrh, brh=brh,
                                 Wgx=wgx, Wgh=wgh, bgh=bgh))
    key, ko = jax.random.split(key)
    Wo, bo = linear(ko, out_dim, h_dim, bias=True)
    return layer_params, (Wo, bo)


if __name__ == "__main__":
    B, S = 8, 24                      # S % t_blk != 0 exercises the masked tail
    in_dim, h_dim, out_dim, n_layers = 16, 32, 16, 2

    key = jax.random.PRNGKey(0)
    kx, kp = jax.random.split(key)
    x = jax.random.normal(kx, (B, S, in_dim), jnp.float32)
    layer_params, out_params = init_params(kp, in_dim, h_dim, out_dim, n_layers)

    y, h = multilayer_gru_forward(x, layer_params, out_params, h0=None, t_blk=16)
    y = jax.block_until_ready(y)
    h = jax.block_until_ready(h)

    y_ref, h_ref = gru_reference(x, layer_params, out_params, h0=None)
    assert y.shape == (B, S, out_dim) and h.shape == (B, n_layers, h_dim)
    assert jnp.allclose(y, y_ref, atol=1e-4, rtol=1e-4)
    assert jnp.allclose(h, h_ref, atol=1e-4, rtol=1e-4)

    print("KERNEL_OK")
</pallas_src>

<mosaic_0001>
module attributes {stable_mosaic.version = 11 : i64} {
  func.func @kernel(%arg0: i32, %arg1: i32, %arg2: memref<16x8x96xf32, #tpu.memory_space<vmem>>, %arg3: memref<2x8x32xf32, #tpu.memory_space<vmem>>, %arg4: memref<2x32x64xf32, #tpu.memory_space<vmem>>, %arg5: memref<2x32x32xf32, #tpu.memory_space<vmem>>, %arg6: memref<1x32x96xf32, #tpu.memory_space<vmem>>, %arg7: memref<2x1x64xf32, #tpu.memory_space<vmem>>, %arg8: memref<2x1x32xf32, #tpu.memory_space<vmem>>, %arg9: memref<16x8x32xf32, #tpu.memory_space<vmem>>, %arg10: memref<2x8x32xf32, #tpu.memory_space<vmem>>) attributes {dimension_semantics = [#tpu.dimension_semantics<parallel>, #tpu.dimension_semantics<arbitrary>], iteration_bounds = array<i64: 1, 2>, scalar_prefetch = 0 : i64, scratch_operands = 0 : i64, tpu.core_type = #tpu.core_type<tc>, window_params = [{transform_indices = @transform_0, window_bounds = array<i64: 16, 8, 96>}, {transform_indices = @transform_1, window_bounds = array<i64: 2, 8, 32>}, {pipeline_mode = #tpu.pipeline_mode<synchronous>, transform_indices = @transform_2, window_bounds = array<i64: 2, 32, 64>}, {pipeline_mode = #tpu.pipeline_mode<synchronous>, transform_indices = @transform_3, window_bounds = array<i64: 2, 32, 32>}, {pipeline_mode = #tpu.pipeline_mode<synchronous>, transform_indices = @transform_4, window_bounds = array<i64: 1, 32, 96>}, {pipeline_mode = #tpu.pipeline_mode<synchronous>, transform_indices = @transform_5, window_bounds = array<i64: 2, 1, 64>}, {pipeline_mode = #tpu.pipeline_mode<synchronous>, transform_indices = @transform_6, window_bounds = array<i64: 2, 1, 32>}, {transform_indices = @transform_7, window_bounds = array<i64: 16, 8, 32>}, {transform_indices = @transform_8, window_bounds = array<i64: 2, 8, 32>}]} {
    %c0_i32 = arith.constant 0 : i32
    %0 = arith.cmpi eq, %arg1, %c0_i32 : i32
    %1 = arith.extui %0 : i1 to i32
    %c0_i32_0 = arith.constant 0 : i32
    %2 = arith.cmpi ne, %1, %c0_i32_0 : i32
    scf.if %2 {
      %c0_277 = arith.constant 0 : index
      %c0_278 = arith.constant 0 : index
      %c0_279 = arith.constant 0 : index
      %951 = vector.load %arg3[%c0_277, %c0_278, %c0_279] : memref<2x8x32xf32, #tpu.memory_space<vmem>>, vector<2x8x32xf32>
      %c0_280 = arith.constant 0 : index
      %c0_281 = arith.constant 0 : index
      %c0_282 = arith.constant 0 : index
      %952 = vector.load %arg10[%c0_280, %c0_281, %c0_282] : memref<2x8x32xf32, #tpu.memory_space<vmem>>, vector<2x8x32xf32>
      tpu.vector_store %arg10[%c0_280, %c0_281, %c0_282], %951 {strides = array<i32>} : memref<2x8x32xf32, #tpu.memory_space<vmem>>, vector<2x8x32xf32>,
    } else {
    }
    %c0 = arith.constant 0 : index
    %c0_1 = arith.constant 0 : index
    %c0_2 = arith.constant 0 : index
    %3 = vector.load %arg4[%c0, %c0_1, %c0_2] : memref<2x32x64xf32, #tpu.memory_space<vmem>>, vector<1x32x64xf32>
    %4 = vector.shape_cast %3 : vector<1x32x64xf32> to vector<32x64xf32>
    %c1 = arith.constant 1 : index
    %c0_3 = arith.constant 0 : index
    %c0_4 = arith.constant 0 : index
    %5 = vector.load %arg4[%c1, %c0_3, %c0_4] : memref<2x32x64xf32, #tpu.memory_space<vmem>>, vector<1x32x64xf32>
    %6 = vector.shape_cast %5 : vector<1x32x64xf32> to vector<32x64xf32>
    %c0_5 = arith.constant 0 : index
    %c0_6 = arith.constant 0 : index
    %c0_7 = arith.constant 0 : index
    %7 = vector.load %arg5[%c0_5, %c0_6, %c0_7] : memref<2x32x32xf32, #tpu.memory_space<vmem>>, vector<1x32x32xf32>
    %8 = vector.shape_cast %7 : vector<1x32x32xf32> to vector<32x32xf32>
    %c1_8 = arith.constant 1 : index
    %c0_9 = arith.constant 0 : index
    %c0_10 = arith.constant 0 : index
    %9 = vector.load %arg5[%c1_8, %c0_9, %c0_10] : memref<2x32x32xf32, #tpu.memory_space<vmem>>, vector<1x32x32xf32>
    %10 = vector.shape_cast %9 : vector<1x32x32xf32> to vector<32x32xf32>
    %c0_11 = arith.constant 0 : index
    %c0_12 = arith.constant 0 : index
    %c0_13 = arith.constant 0 : index
    %11 = vector.load %arg6[%c0_11, %c0_12, %c0_13] : memref<1x32x96xf32, #tpu.memory_space<vmem>>, vector<1x32x96xf32>
    %12 = vector.shape_cast %11 : vector<1x32x96xf32> to vector<32x96xf32>
    %c0_14 = arith.constant 0 : index
    %c0_15 = arith.constant 0 : index
    %c0_16 = arith.constant 0 : index
    %13 = vector.load %arg7[%c0_14, %c0_15, %c0_16] : memref<2x1x64xf32, #tpu.memory_space<vmem>>, vector<1x1x64xf32>
    %14 = vector.shape_cast %13 : vector<1x1x64xf32> to vector<1x64xf32>
    %15 = vector.shape_cast %14 : vector<1x64xf32> to vector<1x64xf32>
    %16 = vector.broadcast %15 : vector<1x64xf32> to vector<8x64xf32>
    %c1_17 = arith.constant 1 : index
    %c0_18 = arith.constant 0 : index
    %c0_19 = arith.constant 0 : index
    %17 = vector.load %arg7[%c1_17, %c0_18, %c0_19] : memref<2x1x64xf32, #tpu.memory_space<vmem>>, vector<1x1x64xf32>
    %18 = vector.shape_cast %17 : vector<1x1x64xf32> to vector<1x64xf32>
    %19 = vector.shape_cast %18 : vector<1x64xf32> to vector<1x64xf32>
    %20 = vector.broadcast %19 : vector<1x64xf32> to vector<8x64xf32>
    %c0_20 = arith.constant 0 : index
    %c0_21 = arith.constant 0 : index
    %c0_22 = arith.constant 0 : index
    %21 = vector.load %arg8[%c0_20, %c0_21, %c0_22] : memref<2x1x32xf32, #tpu.memory_space<vmem>>, vector<1x1x32xf32>
    %22 = vector.shape_cast %21 : vector<1x1x32xf32> to vector<1x32xf32>
    %23 = vector.shape_cast %22 : vector<1x32xf32> to vector<1x32xf32>
    %24 = vector.broadcast %23 : vector<1x32xf32> to vector<8x32xf32>
    %c1_23 = arith.constant 1 : index
    %c0_24 = arith.constant 0 : index
    %c0_25 = arith.constant 0 : index
    %25 = vector.load %arg8[%c1_23, %c0_24, %c0_25] : memref<2x1x32xf32, #tpu.memory_space<vmem>>, vector<1x1x32xf32>
    %26 = vector.shape_cast %25 : vector<1x1x32xf32> to vector<1x32xf32>
    %27 = vector.shape_cast %26 : vector<1x32xf32> to vector<1x32xf32>
    %28 = vector.broadcast %27 : vector<1x32xf32> to vector<8x32xf32>
    %c0_26 = arith.constant 0 : index
    %c0_27 = arith.constant 0 : index
    %c0_28 = arith.constant 0 : index
    %29 = vector.load %arg10[%c0_26, %c0_27, %c0_28] : memref<2x8x32xf32, #tpu.memory_space<vmem>>, vector<1x8x32xf32>
    %30 = vector.shape_cast %29 : vector<1x8x32xf32> to vector<8x32xf32>
    %c1_29 = arith.constant 1 : index
    %c0_30 = arith.constant 0 : index
    %c0_31 = arith.constant 0 : index
    %31 = vector.load %arg10[%c1_29, %c0_30, %c0_31] : memref<2x8x32xf32, #tpu.memory_space<vmem>>, vector<1x8x32xf32>
    %32 = vector.shape_cast %31 : vector<1x8x32xf32> to vector<8x32xf32>
    %c0_i32_32 = arith.constant 0 : i32
    %33 = arith.index_cast %c0_i32_32 : i32 to index
    %c0_33 = arith.constant 0 : index
    %c0_34 = arith.constant 0 : index
    %34 = vector.load %arg2[%33, %c0_33, %c0_34] : memref<16x8x96xf32, #tpu.memory_space<vmem>>, vector<1x8x96xf32>
    %35 = vector.shape_cast %34 : vector<1x8x96xf32> to vector<8x96xf32>
    %c16_i32 = arith.constant 16 : i32
    %36 = arith.muli %arg1, %c16_i32 : i32
    %37 = arith.addi %36, %c0_i32_32 : i32
    %c24_i32 = arith.constant 24 : i32
    %38 = arith.cmpi slt, %37, %c24_i32 : i32
    %39 = vector.extract_strided_slice %35 {offsets = [0, 0], sizes = [8, 64], strides = [1, 1]} : vector<8x96xf32> to vector<8x64xf32>
    %cst = arith.constant dense<0.000000e+00> : vector<8x64xf32>
    %40 = tpu.matmul %30, %4, %cst {dimension_numbers = #tpu.dot_dimension_numbers<[1], [0], [0], [1], [0, 0, 1, 1], [], []>} : vector<8x32xf32>, vector<32x64xf32>, vector<8x64xf32> -> vector<8x64xf32>
    %41 = arith.addf %39, %40 : vector<8x64xf32>
    %42 = arith.addf %41, %16 : vector<8x64xf32>
    %43 = arith.negf %42 : vector<8x64xf32>
    %44 = math.exp %43 : vector<8x64xf32>
    %cst_35 = arith.constant 1.000000e+00 : f32
    %45 = vector.broadcast %cst_35 : f32 to vector<8x64xf32>
    %46 = arith.addf %45, %44 : vector<8x64xf32>
    %47 = arith.divf %45, %46 : vector<8x64xf32>
    %48 = vector.extract_strided_slice %47 {offsets = [0, 0], sizes = [8, 32], strides = [1, 1]} : vector<8x64xf32> to vector<8x32xf32>
    %49 = vector.extract_strided_slice %47 {offsets = [0, 32], sizes = [8, 32], strides = [1, 1]} : vector<8x64xf32> to vector<8x32xf32>
    %50 = vector.extract_strided_slice %35 {offsets = [0, 64], sizes = [8, 32], strides = [1, 1]} : vector<8x96xf32> to vector<8x32xf32>
    %51 = arith.mulf %49, %30 : vector<8x32xf32>
    %cst_36 = arith.constant dense<0.000000e+00> : vector<8x32xf32>
    %52 = tpu.matmul %51, %8, %cst_36 {dimension_numbers = #tpu.dot_dimension_numbers<[1], [0], [0], [1], [0, 0, 1, 1], [], []>} : vector<8x32xf32>, vector<32x32xf32>, vector<8x32xf32> -> vector<8x32xf32>
    %53 = arith.addf %50, %52 : vector<8x32xf32>
    %54 = arith.addf %53, %24 : vector<8x32xf32>
    %55 = math.tanh %54 : vector<8x32xf32>
    %56 = arith.mulf %48, %30 : vector<8x32xf32>
    %cst_37 = arith.constant 1.000000e+00 : f32
    %57 = vector.broadcast %cst_37 : f32 to vector<8x32xf32>
    %58 = arith.subf %57, %48 : vector<8x32xf32>
    %59 = arith.mulf %58, %55 : vector<8x32xf32>
    %60 = arith.addf %56, %59 : vector<8x32xf32>
    %61 = arith.select %38, %60, %30 : vector<8x32xf32>
    %cst_38 = arith.constant dense<0.000000e+00> : vector<8x96xf32>
    %62 = tpu.matmul %61, %12, %cst_38 {dimension_numbers = #tpu.dot_dimension_numbers<[1], [0], [0], [1], [0, 0, 1, 1], [], []>} : vector<8x32xf32>, vector<32x96xf32>, vector<8x96xf32> -> vector<8x96xf32>
    %63 = vector.extract_strided_slice %62 {offsets = [0, 0], sizes = [8, 64], strides = [1, 1]} : vector<8x96xf32> to vector<8x64xf32>
    %cst_39 = arith.constant dense<0.000000e+00> : vector<8x64xf32>
    %64 = tpu.matmul %32, %6, %cst_39 {dimension_numbers = #tpu.dot_dimension_numbers<[1], [0], [0], [1], [0, 0, 1, 1], [], []>} : vector<8x32xf32>, vector<32x64xf32>, vector<8x64xf32> -> vector<8x64xf32>
    %65 = arith.addf %63, %64 : vector<8x64xf32>
    %66 = arith.addf %65, %20 : vector<8x64xf32>
    %67 = arith.negf %66 : vector<8x64xf32>
    %68 = math.exp %67 : vector<8x64xf32>
    %cst_40 = arith.constant 1.000000e+00 : f32
    %69 = vector.broadcast %cst_40 : f32 to vector<8x64xf32>
    %70 = arith.addf %69, %68 : vector<8x64xf32>
    %71 = arith.divf %69, %70 : vector<8x64xf32>
    %72 = vector.extract_strided_slice %71 {offsets = [0, 0], sizes = [8, 32], strides = [1, 1]} : vector<8x64xf32> to vector<8x32xf32>
    %73 = vector.extract_strided_slice %71 {offsets = [0, 32], sizes = [8, 32], strides = [1, 1]} : vector<8x64xf32> to vector<8x32xf32>
    %74 = vector.extract_strided_slice %62 {offsets = [0, 64], sizes = [8, 32], strides = [1, 1]} : vector<8x96xf32> to vector<8x32xf32>
    %75 = arith.mulf %73, %32 : vector<8x32xf32>
    %cst_41 = arith.constant dense<0.000000e+00> : vector<8x32xf32>
    %76 = tpu.matmul %75, %10, %cst_41 {dimension_numbers = #tpu.dot_dimension_numbers<[1], [0], [0], [1], [0, 0, 1, 1], [], []>} : vector<8x32xf32>, vector<32x32xf32>, vector<8x32xf32> -> vector<8x32xf32>
    %77 = arith.addf %74, %76 : vector<8x32xf32>
    %78 = arith.addf %77, %28 : vector<8x32xf32>
    %79 = math.tanh %78 : vector<8x32xf32>
    %80 = arith.mulf %72, %32 : vector<8x32xf32>
    %cst_42 = arith.constant 1.000000e+00 : f32
    %81 = vector.broadcast %cst_42 : f32 to vector<8x32xf32>
    %82 = arith.subf %81, %72 : vector<8x32xf32>
    %83 = arith.mulf %82, %79 : vector<8x32xf32>
    %84 = arith.addf %80, %83 : vector<8x32xf32>
    %85 = arith.select %38, %84, %32 : vector<8x32xf32>
    %86 = arith.index_cast %c0_i32_32 : i32 to index
    %c0_43 = arith.constant 0 : index
    %c0_44 = arith.constant 0 : index
    %87 = vector.load %arg9[%86, %c0_43, %c0_44] : memref<16x8x32xf32, #tpu.memory_space<vmem>>, vector<1x8x32xf32>
    %88 = vector.shape_cast %87 : vector<1x8x32xf32> to vector<8x32xf32>
    %89 = vector.shape_cast %85 : vector<8x32xf32> to vector<1x8x32xf32>
    tpu.vector_store %arg9[%86, %c0_43, %c0_44], %89 {strides = array<i32>} : memref<16x8x32xf32, #tpu.memory_space<vmem>>, vector<1x8x32xf32>,
    %c1_i32 = arith.constant 1 : i32
    %90 = arith.index_cast %c1_i32 : i32 to index
    %c0_45 = arith.constant 0 : index
    %c0_46 = arith.constant 0 : index
    %91 = vector.load %arg2[%90, %c0_45, %c0_46] : memref<16x8x96xf32, #tpu.memory_space<vmem>>, vector<1x8x96xf32>
    %92 = vector.shape_cast %91 : vector<1x8x96xf32> to vector<8x96xf32>
    %c16_i32_47 = arith.constant 16 : i32
    %93 = arith.muli %arg1, %c16_i32_47 : i32
    %94 = arith.addi %93, %c1_i32 : i32
    %c24_i32_48 = arith.constant 24 : i32
    %95 = arith.cmpi slt, %94, %c24_i32_48 : i32
    %96 = vector.extract_strided_slice %92 {offsets = [0, 0], sizes = [8, 64], strides = [1, 1]} : vector<8x96xf32> to vector<8x64xf32>
    %cst_49 = arith.constant dense<0.000000e+00> : vector<8x64xf32>
    %97 = tpu.matmul %61, %4, %cst_49 {dimension_numbers = #tpu.dot_dimension_numbers<[1], [0], [0], [1], [0, 0, 1, 1], [], []>} : vector<8x32xf32>, vector<32x64xf32>, vector<8x64xf32> -> vector<8x64xf32>
    %98 = arith.addf %96, %97 : vector<8x64xf32>
    %99 = arith.addf %98, %16 : vector<8x64xf32>
    %100 = arith.negf %99 : vector<8x64xf32>
    %101 = math.exp %100 : vector<8x64xf32>
    %cst_50 = arith.constant 1.000000e+00 : f32
    %102 = vector.broadcast %cst_50 : f32 to vector<8x64xf32>
    %103 = arith.addf %102, %101 : vector<8x64xf32>
    %104 = arith.divf %102, %103 : vector<8x64xf32>
    %105 = vector.extract_strided_slice %104 {offsets = [0, 0], sizes = [8, 32], strides = [1, 1]} : vector<8x64xf32> to vector<8x32xf32>
    %106 = vector.extract_strided_slice %104 {offsets = [0, 32], sizes = [8, 32], strides = [1, 1]} : vector<8x64xf32> to vector<8x32xf32>
    %107 = vector.extract_strided_slice %92 {offsets = [0, 64], sizes = [8, 32], strides = [1, 1]} : vector<8x96xf32> to vector<8x32xf32>
    %108 = arith.mulf %106, %61 : vector<8x32xf32>
    %cst_51 = arith.constant dense<0.000000e+00> : vector<8x32xf32>
    %109 = tpu.matmul %108, %8, %cst_51 {dimension_numbers = #tpu.dot_dimension_numbers<[1], [0], [0], [1], [0, 0, 1, 1], [], []>} : vector<8x32xf32>, vector<32x32xf32>, vector<8x32xf32> -> vector<8x32xf32>
    %110 = arith.addf %107, %109 : vector<8x32xf32>
    %111 = arith.addf %110, %24 : vector<8x32xf32>
    %112 = math.tanh %111 : vector<8x32xf32>
    %113 = arith.mulf %105, %61 : vector<8x32xf32>
    %cst_52 = arith.constant 1.000000e+00 : f32
    %114 = vector.broadcast %cst_52 : f32 to vector<8x32xf32>
    %115 = arith.subf %114, %105 : vector<8x32xf32>
    %116 = arith.mulf %115, %112 : vector<8x32xf32>
    %117 = arith.addf %113, %116 : vector<8x32xf32>
    %118 = arith.select %95, %117, %61 : vector<8x32xf32>
    %cst_53 = arith.constant dense<0.000000e+00> : vector<8x96xf32>
    %119 = tpu.matmul %118, %12, %cst_53 {dimension_numbers = #tpu.dot_dimension_numbers<[1], [0], [0], [1], [0, 0, 1, 1], [], []>} : vector<8x32xf32>, vector<32x96xf32>, vector<8x96xf32> -> vector<8x96xf32>
    %120 = vector.extract_strided_slice %119 {offsets = [0, 0], sizes = [8, 64], strides = [1, 1]} : vector<8x96xf32> to vector<8x64xf32>
    %cst_54 = arith.constant dense<0.000000e+00> : vector<8x64xf32>
    %121 = tpu.matmul %85, %6, %cst_54 {dimension_numbers = #tpu.dot_dimension_numbers<[1], [0], [0], [1], [0, 0, 1, 1], [], []>} : vector<8x32xf32>, vector<32x64xf32>, vector<8x64xf32> -> vector<8x64xf32>
    %122 = arith.addf %120, %121 : vector<8x64xf32>
    %123 = arith.addf %122, %20 : vector<8x64xf32>
    %124 = arith.negf %123 : vector<8x64xf32>
    %125 = math.exp %124 : vector<8x64xf32>
    %cst_55 = arith.constant 1.000000e+00 : f32
    %126 = vector.broadcast %cst_55 : f32 to vector<8x64xf32>
    %127 = arith.addf %126, %125 : vector<8x64xf32>
    %128 = arith.divf %126, %127 : vector<8x64xf32>
    %129 = vector.extract_strided_slice %128 {offsets = [0, 0], sizes = [8, 32], strides = [1, 1]} : vector<8x64xf32> to vector<8x32xf32>
    %130 = vector.extract_strided_slice %128 {offsets = [0, 32], sizes = [8, 32], strides = [1, 1]} : vector<8x64xf32> to vector<8x32xf32>
    %131 = vector.extract_strided_slice %119 {offsets = [0, 64], sizes = [8, 32], strides = [1, 1]} : vector<8x96xf32> to vector<8x32xf32>
    %132 = arith.mulf %130, %85 : vector<8x32xf32>
    %cst_56 = arith.constant dense<0.000000e+00> : vector<8x32xf32>
    %133 = tpu.matmul %132, %10, %cst_56 {dimension_numbers = #tpu.dot_dimension_numbers<[1], [0], [0], [1], [0, 0, 1, 1], [], []>} : vector<8x32xf32>, vector<32x32xf32>, vector<8x32xf32> -> vector<8x32xf32>
    %134 = arith.addf %131, %133 : vector<8x32xf32>
    %135 = arith.addf %134, %28 : vector<8x32xf32>
    %136 = math.tanh %135 : vector<8x32xf32>
    %137 = arith.mulf %129, %85 : vector<8x32xf32>
    %cst_57 = arith.constant 1.000000e+00 : f32
    %138 = vector.broadcast %cst_57 : f32 to vector<8x32xf32>
    %139 = arith.subf %138, %129 : vector<8x32xf32>
    %140 = arith.mulf %139, %136 : vector<8x32xf32>
    %141 = arith.addf %137, %140 : vector<8x32xf32>
    %142 = arith.select %95, %141, %85 : vector<8x32xf32>
    %143 = arith.index_cast %c1_i32 : i32 to index
    %c0_58 = arith.constant 0 : index
    %c0_59 = arith.constant 0 : index
    %144 = vector.load %arg9[%143, %c0_58, %c0_59] : memref<16x8x32xf32, #tpu.memory_space<vmem>>, vector<1x8x32xf32>
    %145 = vector.shape_cast %144 : vector<1x8x32xf32> to vector<8x32xf32>
    %146 = vector.shape_cast %142 : vector<8x32xf32> to vector<1x8x32xf32>
    tpu.vector_store %arg9[%143, %c0_58, %c0_59], %146 {strides = array<i32>} : memref<16x8x32xf32, #tpu.memory_space<vmem>>, vector<1x8x32xf32>,
    %c2_i32 = arith.constant 2 : i32
    %147 = arith.index_cast %c2_i32 : i32 to index
    %c0_60 = arith.constant 0 : index
    %c0_61 = arith.constant 0 : index
    %148 = vector.load %arg2[%147, %c0_60, %c0_61] : memref<16x8x96xf32, #tpu.memory_space<vmem>>, vector<1x8x96xf32>
    %149 = vector.shape_cast %148 : vector<1x8x96xf32> to vector<8x96xf32>
    %c16_i32_62 = arith.constant 16 : i32
    %150 = arith.muli %arg1, %c16_i32_62 : i32
    %151 = arith.addi %150, %c2_i32 : i32
    %c24_i32_63 = arith.constant 24 : i32
    %152 = arith.cmpi slt, %151, %c24_i32_63 : i32
    %153 = vector.extract_strided_slice %149 {offsets = [0, 0], sizes = [8, 64], strides = [1, 1]} : vector<8x96xf32> to vector<8x64xf32>
    %cst_64 = arith.constant dense<0.000000e+00> : vector<8x64xf32>
    %154 = tpu.matmul %118, %4, %cst_64 {dimension_numbers = #tpu.dot_dimension_numbers<[1], [0], [0], [1], [0, 0, 1, 1], [], []>} : vector<8x32xf32>, vector<32x64xf32>, vector<8x64xf32> -> vector<8x64xf32>
    %155 = arith.addf %153, %154 : vector<8x64xf32>
    %156 = arith.addf %155, %16 : vector<8x64xf32>
    %157 = arith.negf %156 : vector<8x64xf32>
    %158 = math.exp %157 : vector<8x64xf32>
    %cst_65 = arith.constant 1.000000e+00 : f32
    %159 = vector.broadcast %cst_65 : f32 to vector<8x64xf32>
    %160 = arith.addf %159, %158 : vector<8x64xf32>
    %161 = arith.divf %159, %160 : vector<8x64xf32>
    %162 = vector.extract_strided_slice %161 {offsets = [0, 0], sizes = [8, 32], strides = [1, 1]} : vector<8x64xf32> to vector<8x32xf32>
    %163 = vector.extract_strided_slice %161 {offsets = [0, 32], sizes = [8, 32], strides = [1, 1]} : vector<8x64xf32> to vector<8x32xf32>
    %164 = vector.extract_strided_slice %149 {offsets = [0, 64], sizes = [8, 32], strides = [1, 1]} : vector<8x96xf32> to vector<8x32xf32>
    %165 = arith.mulf %163, %118 : vector<8x32xf32>
    %cst_66 = arith.constant dense<0.000000e+00> : vector<8x32xf32>
    %166 = tpu.matmul %165, %8, %cst_66 {dimension_numbers = #tpu.dot_dimension_numbers<[1], [0], [0], [1], [0, 0, 1, 1], [], []>} : vector<8x32xf32>, vector<32x32xf32>, vector<8x32xf32> -> vector<8x32xf32>
    %167 = arith.addf %164, %166 : vector<8x32xf32>
    %168 = arith.addf %167, %24 : vector<8x32xf32>
    %169 = math.tanh %168 : vector<8x32xf32>
    %170 = arith.mulf %162, %118 : vector<8x32xf32>
    %cst_67 = arith.constant 1.000000e+00 : f32
    %171 = vector.broadcast %cst_67 : f32 to vector<8x32xf32>
    %172 = arith.subf %171, %162 : vector<8x32xf32>
    %173 = arith.mulf %172, %169 : vector<8x32xf32>
    %174 = arith.addf %170, %173 : vector<8x32xf32>
    %175 = arith.select %152, %174, %118 : vector<8x32xf32>
    %cst_68 = arith.constant dense<0.000000e+00> : vector<8x96xf32>
    %176 = tpu.matmul %175, %12, %cst_68 {dimension_numbers = #tpu.dot_dimension_numbers<[1], [0], [0], [1], [0, 0, 1, 1], [], []>} : vector<8x32xf32>, vector<32x96xf32>, vector<8x96xf32> -> vector<8x96xf32>
    %177 = vector.extract_strided_slice %176 {offsets = [0, 0], sizes = [8, 64], strides = [1, 1]} : vector<8x96xf32> to vector<8x64xf32>
    %cst_69 = arith.constant dense<0.000000e+00> : vector<8x64xf32>
    %178 = tpu.matmul %142, %6, %cst_69 {dimension_numbers = #tpu.dot_dimension_numbers<[1], [0], [0], [1], [0, 0, 1, 1], [], []>} : vector<8x32xf32>, vector<32x64xf32>, vector<8x64xf32> -> vector<8x64xf32>
    %179 = arith.addf %177, %178 : vector<8x64xf32>
    %180 = arith.addf %179, %20 : vector<8x64xf32>
    %181 = arith.negf %180 : vector<8x64xf32>
    %182 = math.exp %181 : vector<8x64xf32>
    %cst_70 = arith.constant 1.000000e+00 : f32
    %183 = vector.broadcast %cst_70 : f32 to vector<8x64xf32>
    %184 = arith.addf %183, %182 : vector<8x64xf32>
    %185 = arith.divf %183, %184 : vector<8x64xf32>
    %186 = vector.extract_strided_slice %185 {offsets = [0, 0], sizes = [8, 32], strides = [1, 1]} : vector<8x64xf32> to vector<8x32xf32>
    %187 = vector.extract_strided_slice %185 {offsets = [0, 32], sizes = [8, 32], strides = [1, 1]} : vector<8x64xf32> to vector<8x32xf32>
    %188 = vector.extract_strided_slice %176 {offsets = [0, 64], sizes = [8, 32], strides = [1, 1]} : vector<8x96xf32> to vector<8x32xf32>
    %189 = arith.mulf %187, %142 : vector<8x32xf32>
    %cst_71 = arith.constant dense<0.000000e+00> : vector<8x32xf32>
    %190 = tpu.matmul %189, %10, %cst_71 {dimension_numbers = #tpu.dot_dimension_numbers<[1], [0], [0], [1], [0, 0, 1, 1], [], []>} : vector<8x32xf32>, vector<32x32xf32>, vector<8x32xf32> -> vector<8x32xf32>
    %191 = arith.addf %188, %190 : vector<8x32xf32>
    %192 = arith.addf %191, %28 : vector<8x32xf32>
    %193 = math.tanh %192 : vector<8x32xf32>
    %194 = arith.mulf %186, %142 : vector<8x32xf32>
    %cst_72 = arith.constant 1.000000e+00 : f32
    %195 = vector.broadcast %cst_72 : f32 to vector<8x32xf32>
    %196 = arith.subf %195, %186 : vector<8x32xf32>
    %197 = arith.mulf %196, %193 : vector<8x32xf32>
    %198 = arith.addf %194, %197 : vector<8x32xf32>
    %199 = arith.select %152, %198, %142 : vector<8x32xf32>
    %200 = arith.index_cast %c2_i32 : i32 to index
    %c0_73 = arith.constant 0 : index
    %c0_74 = arith.constant 0 : index
    %201 = vector.load %arg9[%200, %c0_73, %c0_74] : memref<16x8x32xf32, #tpu.memory_space<vmem>>, vector<1x8x32xf32>
    %202 = vector.shape_cast %201 : vector<1x8x32xf32> to vector<8x32xf32>
    %203 = vector.shape_cast %199 : vector<8x32xf32> to vector<1x8x32xf32>
    tpu.vector_store %arg9[%200, %c0_73, %c0_74], %203 {strides = array<i32>} : memref<16x8x32xf32, #tpu.memory_space<vmem>>, vector<1x8x32xf32>,
    %c3_i32 = arith.constant 3 : i32
    %204 = arith.index_cast %c3_i32 : i32 to index
    %c0_75 = arith.constant 0 : index
    %c0_76 = arith.constant 0 : index
    %205 = vector.load %arg2[%204, %c0_75, %c0_76] : memref<16x8x96xf32, #tpu.memory_space<vmem>>, vector<1x8x96xf32>
    %206 = vector.shape_cast %205 : vector<1x8x96xf32> to vector<8x96xf32>
    %c16_i32_77 = arith.constant 16 : i32
    %207 = arith.muli %arg1, %c16_i32_77 : i32
    %208 = arith.addi %207, %c3_i32 : i32
    %c24_i32_78 = arith.constant 24 : i32
    %209 = arith.cmpi slt, %208, %c24_i32_78 : i32
    %210 = vector.extract_strided_slice %206 {offsets = [0, 0], sizes = [8, 64], strides = [1, 1]} : vector<8x96xf32> to vector<8x64xf32>
    %cst_79 = arith.constant dense<0.000000e+00> : vector<8x64xf32>
    %211 = tpu.matmul %175, %4, %cst_79 {dimension_numbers = #tpu.dot_dimension_numbers<[1], [0], [0], [1], [0, 0, 1, 1], [], []>} : vector<8x32xf32>, vector<32x64xf32>, vector<8x64xf32> -> vector<8x64xf32>
    %212 = arith.addf %210, %211 : vector<8x64xf32>
    %213 = arith.addf %212, %16 : vector<8x64xf32>
    %214 = arith.negf %213 : vector<8x64xf32>
    %215 = math.exp %214 : vector<8x64xf32>
    %cst_80 = arith.constant 1.000000e+00 : f32
    %216 = vector.broadcast %cst_80 : f32 to vector<8x64xf32>
    %217 = arith.addf %216, %215 : vector<8x64xf32>
    %218 = arith.divf %216, %217 : vector<8x64xf32>
    %219 = vector.extract_strided_slice %218 {offsets = [0, 0], sizes = [8, 32], strides = [1, 1]} : vector<8x64xf32> to vector<8x32xf32>
    %220 = vector.extract_strided_slice %218 {offsets = [0, 32], sizes = [8, 32], strides = [1, 1]} : vector<8x64xf32> to vector<8x32xf32>
    %221 = vector.extract_strided_slice %206 {offsets = [0, 64], sizes = [8, 32], strides = [1, 1]} : vector<8x96xf32> to vector<8x32xf32>
    %222 = arith.mulf %220, %175 : vector<8x32xf32>
    %cst_81 = arith.constant dense<0.000000e+00> : vector<8x32xf32>
    %223 = tpu.matmul %222, %8, %cst_81 {dimension_numbers = #tpu.dot_dimension_numbers<[1], [0], [0], [1], [0, 0, 1, 1], [], []>} : vector<8x32xf32>, vector<32x32xf32>, vector<8x32xf32> -> vector<8x32xf32>
    %224 = arith.addf %221, %223 : vector<8x32xf32>
    %225 = arith.addf %224, %24 : vector<8x32xf32>
    %226 = math.tanh %225 : vector<8x32xf32>
    %227 = arith.mulf %219, %175 : vector<8x32xf32>
    %cst_82 = arith.constant 1.000000e+00 : f32
    %228 = vector.broadcast %cst_82 : f32 to vector<8x32xf32>
    %229 = arith.subf %228, %219 : vector<8x32xf32>
    %230 = arith.mulf %229, %226 : vector<8x32xf32>
    %231 = arith.addf %227, %230 : vector<8x32xf32>
    %232 = arith.select %209, %231, %175 : vector<8x32xf32>
    %cst_83 = arith.constant dense<0.000000e+00> : vector<8x96xf32>
    %233 = tpu.matmul %232, %12, %cst_83 {dimension_numbers = #tpu.dot_dimension_numbers<[1], [0], [0], [1], [0, 0, 1, 1], [], []>} : vector<8x32xf32>, vector<32x96xf32>, vector<8x96xf32> -> vector<8x96xf32>
    %234 = vector.extract_strided_slice %233 {offsets = [0, 0], sizes = [8, 64], strides = [1, 1]} : vector<8x96xf32> to vector<8x64xf32>
    %cst_84 = arith.constant dense<0.000000e+00> : vector<8x64xf32>
    %235 = tpu.matmul %199, %6, %cst_84 {dimension_numbers = #tpu.dot_dimension_numbers<[1], [0], [0], [1], [0, 0, 1, 1], [], []>} : vector<8x32xf32>, vector<32x64xf32>, vector<8x64xf32> -> vector<8x64xf32>
    %236 = arith.addf %234, %235 : vector<8x64xf32>
    %237 = arith.addf %236, %20 : vector<8x64xf32>
    %238 = arith.negf %237 : vector<8x64xf32>
    %239 = math.exp %238 : vector<8x64xf32>
    %cst_85 = arith.constant 1.000000e+00 : f32
    %240 = vector.broadcast %cst_85 : f32 to vector<8x64xf32>
    %241 = arith.addf %240, %239 : vector<8x64xf32>
    %242 = arith.divf %240, %241 : vector<8x64xf32>
    %243 = vector.extract_strided_slice %242 {offsets = [0, 0], sizes = [8, 32], strides = [1, 1]} : vector<8x64xf32> to vector<8x32xf32>
    %244 = vector.extract_strided_slice %242 {offsets = [0, 32], sizes = [8, 32], strides = [1, 1]} : vector<8x64xf32> to vector<8x32xf32>
    %245 = vector.extract_strided_slice %233 {offsets = [0, 64], sizes = [8, 32], strides = [1, 1]} : vector<8x96xf32> to vector<8x32xf32>
    %246 = arith.mulf %244, %199 : vector<8x32xf32>
    %cst_86 = arith.constant dense<0.000000e+00> : vector<8x32xf32>
    %247 = tpu.matmul %246, %10, %cst_86 {dimension_numbers = #tpu.dot_dimension_numbers<[1], [0], [0], [1], [0, 0, 1, 1], [], []>} : vector<8x32xf32>, vector<32x32xf32>, vector<8x32xf32> -> vector<8x32xf32>
    %248 = arith.addf %245, %247 : vector<8x32xf32>
    %249 = arith.addf %248, %28 : vector<8x32xf32>
    %250 = math.tanh %249 : vector<8x32xf32>
    %251 = arith.mulf %243, %199 : vector<8x32xf32>
    %cst_87 = arith.constant 1.000000e+00 : f32
    %252 = vector.broadcast %cst_87 : f32 to vector<8x32xf32>
    %253 = arith.subf %252, %243 : vector<8x32xf32>
    %254 = arith.mulf %253, %250 : vector<8x32xf32>
    %255 = arith.addf %251, %254 : vector<8x32xf32>
    %256 = arith.select %209, %255, %199 : vector<8x32xf32>
    %257 = arith.index_cast %c3_i32 : i32 to index
    %c0_88 = arith.constant 0 : index
    %c0_89 = arith.constant 0 : index
    %258 = vector.load %arg9[%257, %c0_88, %c0_89] : memref<16x8x32xf32, #tpu.memory_space<vmem>>, vector<1x8x32xf32>
    %259 = vector.shape_cast %258 : vector<1x8x32xf32> to vector<8x32xf32>
    %260 = vector.shape_cast %256 : vector<8x32xf32> to vector<1x8x32xf32>
    tpu.vector_store %arg9[%257, %c0_88, %c0_89], %260 {strides = array<i32>} : memref<16x8x32xf32, #tpu.memory_space<vmem>>, vector<1x8x32xf32>,
    %c4_i32 = arith.constant 4 : i32
    %261 = arith.index_cast %c4_i32 : i32 to index
    %c0_90 = arith.constant 0 : index
    %c0_91 = arith.constant 0 : index
    %262 = vector.load %arg2[%261, %c0_90, %c0_91] : memref<16x8x96xf32, #tpu.memory_space<vmem>>, vector<1x8x96xf32>
    %263 = vector.shape_cast %262 : vector<1x8x96xf32> to vector<8x96xf32>
    %c16_i32_92 = arith.constant 16 : i32
    %264 = arith.muli %arg1, %c16_i32_92 : i32
    %265 = arith.addi %264, %c4_i32 : i32
    %c24_i32_93 = arith.constant 24 : i32
    %266 = arith.cmpi slt, %265, %c24_i32_93 : i32
    %267 = vector.extract_strided_slice %263 {offsets = [0, 0], sizes = [8, 64], strides = [1, 1]} : vector<8x96xf32> to vector<8x64xf32>
    %cst_94 = arith.constant dense<0.000000e+00> : vector<8x64xf32>
    %268 = tpu.matmul %232, %4, %cst_94 {dimension_numbers = #tpu.dot_dimension_numbers<[1], [0], [0], [1], [0, 0, 1, 1], [], []>} : vector<8x32xf32>, vector<32x64xf32>, vector<8x64xf32> -> vector<8x64xf32>
    %269 = arith.addf %267, %268 : vector<8x64xf32>
    %270 = arith.addf %269, %16 : vector<8x64xf32>
    %271 = arith.negf %270 : vector<8x64xf32>
    %272 = math.exp %271 : vector<8x64xf32>
    %cst_95 = arith.constant 1.000000e+00 : f32
    %273 = vector.broadcast %cst_95 : f32 to vector<8x64xf32>
    %274 = arith.addf %273, %272 : vector<8x64xf32>
    %275 = arith.divf %273, %274 : vector<8x64xf32>
    %276 = vector.extract_strided_slice %275 {offsets = [0, 0], sizes = [8, 32], strides = [1, 1]} : vector<8x64xf32> to vector<8x32xf32>
    %277 = vector.extract_strided_slice %275 {offsets = [0, 32], sizes = [8, 32], strides = [1, 1]} : vector<8x64xf32> to vector<8x32xf32>
    %278 = vector.extract_strided_slice %263 {offsets = [0, 64], sizes = [8, 32], strides = [1, 1]} : vector<8x96xf32> to vector<8x32xf32>
    %279 = arith.mulf %277, %232 : vector<8x32xf32>
    %cst_96 = arith.constant dense<0.000000e+00> : vector<8x32xf32>
    %280 = tpu.matmul %279, %8, %cst_96 {dimension_numbers = #tpu.dot_dimension_numbers<[1], [0], [0], [1], [0, 0, 1, 1], [], []>} : vector<8x32xf32>, vector<32x32xf32>, vector<8x32xf32> -> vector<8x32xf32>
    %281 = arith.addf %278, %280 : vector<8x32xf32>
    %282 = arith.addf %281, %24 : vector<8x32xf32>
    %283 = math.tanh %282 : vector<8x32xf32>
    %284 = arith.mulf %276, %232 : vector<8x32xf32>
    %cst_97 = arith.constant 1.000000e+00 : f32
    %285 = vector.broadcast %cst_97 : f32 to vector<8x32xf32>
    %286 = arith.subf %285, %276 : vector<8x32xf32>
    %287 = arith.mulf %286, %283 : vector<8x32xf32>
    %288 = arith.addf %284, %287 : vector<8x32xf32>
    %289 = arith.select %266, %288, %232 : vector<8x32xf32>
    %cst_98 = arith.constant dense<0.000000e+00> : vector<8x96xf32>
    %290 = tpu.matmul %289, %12, %cst_98 {dimension_numbers = #tpu.dot_dimension_numbers<[1], [0], [0], [1], [0, 0, 1, 1], [], []>} : vector<8x32xf32>, vector<32x96xf32>, vector<8x96xf32> -> vector<8x96xf32>
    %291 = vector.extract_strided_slice %290 {offsets = [0, 0], sizes = [8, 64], strides = [1, 1]} : vector<8x96xf32> to vector<8x64xf32>
    %cst_99 = arith.constant dense<0.000000e+00> : vector<8x64xf32>
    %292 = tpu.matmul %256, %6, %cst_99 {dimension_numbers = #tpu.dot_dimension_numbers<[1], [0], [0], [1], [0, 0, 1, 1], [], []>} : vector<8x32xf32>, vector<32x64xf32>, vector<8x64xf32> -> vector<8x64xf32>
    %293 = arith.addf %291, %292 : vector<8x64xf32>
    %294 = arith.addf %293, %20 : vector<8x64xf32>
    %295 = arith.negf %294 : vector<8x64xf32>
    %296 = math.exp %295 : vector<8x64xf32>
    %cst_100 = arith.constant 1.000000e+00 : f32
    %297 = vector.broadcast %cst_100 : f32 to vector<8x64xf32>
    %298 = arith.addf %297, %296 : vector<8x64xf32>
    %299 = arith.divf %297, %298 : vector<8x64xf32>
    %300 = vector.extract_strided_slice %299 {offsets = [0, 0], sizes = [8, 32], strides = [1, 1]} : vector<8x64xf32> to vector<8x32xf32>
    %301 = vector.extract_strided_slice %299 {offsets = [0, 32], sizes = [8, 32], strides = [1, 1]} : vector<8x64xf32> to vector<8x32xf32>
    %302 = vector.extract_strided_slice %290 {offsets = [0, 64], sizes = [8, 32], strides = [1, 1]} : vector<8x96xf32> to vector<8x32xf32>
    %303 = arith.mulf %301, %256 : vector<8x32xf32>
    %cst_101 = arith.constant dense<0.000000e+00> : vector<8x32xf32>
    %304 = tpu.matmul %303, %10, %cst_101 {dimension_numbers = #tpu.dot_dimension_numbers<[1], [0], [0], [1], [0, 0, 1, 1], [], []>} : vector<8x32xf32>, vector<32x32xf32>, vector<8x32xf32> -> vector<8x32xf32>
    %305 = arith.addf %302, %304 : vector<8x32xf32>
    %306 = arith.addf %305, %28 : vector<8x32xf32>
    %307 = math.tanh %306 : vector<8x32xf32>
    %308 = arith.mulf %300, %256 : vector<8x32xf32>
    %cst_102 = arith.constant 1.000000e+00 : f32
    %309 = vector.broadcast %cst_102 : f32 to vector<8x32xf32>
    %310 = arith.subf %309, %300 : vector<8x32xf32>
    %311 = arith.mulf %310, %307 : vector<8x32xf32>
    %312 = arith.addf %308, %311 : vector<8x32xf32>
    %313 = arith.select %266, %312, %256 : vector<8x32xf32>
    %314 = arith.index_cast %c4_i32 : i32 to index
    %c0_103 = arith.constant 0 : index
    %c0_104 = arith.constant 0 : index
    %315 = vector.load %arg9[%314, %c0_103, %c0_104] : memref<16x8x32xf32, #tpu.memory_space<vmem>>, vector<1x8x32xf32>
    %316 = vector.shape_cast %315 : vector<1x8x32xf32> to vector<8x32xf32>
    %317 = vector.shape_cast %313 : vector<8x32xf32> to vector<1x8x32xf32>
    tpu.vector_store %arg9[%314, %c0_103, %c0_104], %317 {strides = array<i32>} : memref<16x8x32xf32, #tpu.memory_space<vmem>>, vector<1x8x32xf32>,
    %c5_i32 = arith.constant 5 : i32
    %318 = arith.index_cast %c5_i32 : i32 to index
    %c0_105 = arith.constant 0 : index
    %c0_106 = arith.constant 0 : index
    %319 = vector.load %arg2[%318, %c0_105, %c0_106] : memref<16x8x96xf32, #tpu.memory_space<vmem>>, vector<1x8x96xf32>
    %320 = vector.shape_cast %319 : vector<1x8x96xf32> to vector<8x96xf32>
    %c16_i32_107 = arith.constant 16 : i32
    %321 = arith.muli %arg1, %c16_i32_107 : i32
    %322 = arith.addi %321, %c5_i32 : i32
    %c24_i32_108 = arith.constant 24 : i32
    %323 = arith.cmpi slt, %322, %c24_i32_108 : i32
    %324 = vector.extract_strided_slice %320 {offsets = [0, 0], sizes = [8, 64], strides = [1, 1]} : vector<8x96xf32> to vector<8x64xf32>
    %cst_109 = arith.constant dense<0.000000e+00> : vector<8x64xf32>
    %325 = tpu.matmul %289, %4, %cst_109 {dimension_numbers = #tpu.dot_dimension_numbers<[1], [0], [0], [1], [0, 0, 1, 1], [], []>} : vector<8x32xf32>, vector<32x64xf32>, vector<8x64xf32> -> vector<8x64xf32>
    %326 = arith.addf %324, %325 : vector<8x64xf32>
    %327 = arith.addf %326, %16 : vector<8x64xf32>
    %328 = arith.negf %327 : vector<8x64xf32>
    %329 = math.exp %328 : vector<8x64xf32>
    %cst_110 = arith.constant 1.000000e+00 : f32
    %330 = vector.broadcast %cst_110 : f32 to vector<8x64xf32>
    %331 = arith.addf %330, %329 : vector<8x64xf32>
    %332 = arith.divf %330, %331 : vector<8x64xf32>
    %333 = vector.extract_strided_slice %332 {offsets = [0, 0], sizes = [8, 32], strides = [1, 1]} : vector<8x64xf32> to vector<8x32xf32>
    %334 = vector.extract_strided_slice %332 {offsets = [0, 32], sizes = [8, 32], strides = [1, 1]} : vector<8x64xf32> to vector<8x32xf32>
    %335 = vector.extract_strided_slice %320 {offsets = [0, 64], sizes = [8, 32], strides = [1, 1]} : vector<8x96xf32> to vector<8x32xf32>
    %336 = arith.mulf %334, %289 : vector<8x32xf32>
    %cst_111 = arith.constant dense<0.000000e+00> : vector<8x32xf32>
    %337 = tpu.matmul %336, %8, %cst_111 {dimension_numbers = #tpu.dot_dimension_numbers<[1], [0], [0], [1], [0, 0, 1, 1], [], []>} : vector<8x32xf32>, vector<32x32xf32>, vector<8x32xf32> -> vector<8x32xf32>
    %338 = arith.addf %335, %337 : vector<8x32xf32>
    %339 = arith.addf %338, %24 : vector<8x32xf32>
    %340 = math.tanh %339 : vector<8x32xf32>
    %341 = arith.mulf %333, %289 : vector<8x32xf32>
    %cst_112 = arith.constant 1.000000e+00 : f32
    %342 = vector.broadcast %cst_112 : f32 to vector<8x32xf32>
    %343 = arith.subf %342, %333 : vector<8x32xf32>
    %344 = arith.mulf %343, %340 : vector<8x32xf32>
    %345 = arith.addf %341, %344 : vector<8x32xf32>
    %346 = arith.select %323, %345, %289 : vector<8x32xf32>
    %cst_113 = arith.constant dense<0.000000e+00> : vector<8x96xf32>
    %347 = tpu.matmul %346, %12, %cst_113 {dimension_numbers = #tpu.dot_dimension_numbers<[1], [0], [0], [1], [0, 0, 1, 1], [], []>} : vector<8x32xf32>, vector<32x96xf32>, vector<8x96xf32> -> vector<8x96xf32>
    %348 = vector.extract_strided_slice %347 {offsets = [0, 0], sizes = [8, 64], strides = [1, 1]} : vector<8x96xf32> to vector<8x64xf32>
    %cst_114 = arith.constant dense<0.000000e+00> : vector<8x64xf32>
    %349 = tpu.matmul %313, %6, %cst_114 {dimension_numbers = #tpu.dot_dimension_numbers<[1], [0], [0], [1], [0, 0, 1, 1], [], []>} : vector<8x32xf32>, vector<32x64xf32>, vector<8x64xf32> -> vector<8x64xf32>
    %350 = arith.addf %348, %349 : vector<8x64xf32>
    %351 = arith.addf %350, %20 : vector<8x64xf32>
    %352 = arith.negf %351 : vector<8x64xf32>
    %353 = math.exp %352 : vector<8x64xf32>
    %cst_115 = arith.constant 1.000000e+00 : f32
    %354 = vector.broadcast %cst_115 : f32 to vector<8x64xf32>
    %355 = arith.addf %354, %353 : vector<8x64xf32>
    %356 = arith.divf %354, %355 : vector<8x64xf32>
    %357 = vector.extract_strided_slice %356 {offsets = [0, 0], sizes = [8, 32], strides = [1, 1]} : vector<8x64xf32> to vector<8x32xf32>
    %358 = vector.extract_strided_slice %356 {offsets = [0, 32], sizes = [8, 32], strides = [1, 1]} : vector<8x64xf32> to vector<8x32xf32>
    %359 = vector.extract_strided_slice %347 {offsets = [0, 64], sizes = [8, 32], strides = [1, 1]} : vector<8x96xf32> to vector<8x32xf32>
    %360 = arith.mulf %358, %313 : vector<8x32xf32>
    %cst_116 = arith.constant dense<0.000000e+00> : vector<8x32xf32>
    %361 = tpu.matmul %360, %10, %cst_116 {dimension_numbers = #tpu.dot_dimension_numbers<[1], [0], [0], [1], [0, 0, 1, 1], [], []>} : vector<8x32xf32>, vector<32x32xf32>, vector<8x32xf32> -> vector<8x32xf32>
    %362 = arith.addf %359, %361 : vector<8x32xf32>
    %363 = arith.addf %362, %28 : vector<8x32xf32>
    %364 = math.tanh %363 : vector<8x32xf32>
    %365 = arith.mulf %357, %313 : vector<8x32xf32>
    %cst_117 = arith.constant 1.000000e+00 : f32
    %366 = vector.broadcast %cst_117 : f32 to vector<8x32xf32>
    %367 = arith.subf %366, %357 : vector<8x32xf32>
    %368 = arith.mulf %367, %364 : vector<8x32xf32>
    %369 = arith.addf %365, %368 : vector<8x32xf32>
    %370 = arith.select %323, %369, %313 : vector<8x32xf32>
    %371 = arith.index_cast %c5_i32 : i32 to index
    %c0_118 = arith.constant 0 : index
    %c0_119 = arith.constant 0 : index
    %372 = vector.load %arg9[%371, %c0_118, %c0_119] : memref<16x8x32xf32, #tpu.memory_space<vmem>>, vector<1x8x32xf32>
    %373 = vector.shape_cast %372 : vector<1x8x32xf32> to vector<8x32xf32>
    %374 = vector.shape_cast %370 : vector<8x32xf32> to vector<1x8x32xf32>
    tpu.vector_store %arg9[%371, %c0_118, %c0_119], %374 {strides = array<i32>} : memref<16x8x32xf32, #tpu.memory_space<vmem>>, vector<1x8x32xf32>,
    %c6_i32 = arith.constant 6 : i32
    %375 = arith.index_cast %c6_i32 : i32 to index
    %c0_120 = arith.constant 0 : index
    %c0_121 = arith.constant 0 : index
    %376 = vector.load %arg2[%375, %c0_120, %c0_121] : memref<16x8x96xf32, #tpu.memory_space<vmem>>, vector<1x8x96xf32>
    %377 = vector.shape_cast %376 : vector<1x8x96xf32> to vector<8x96xf32>
    %c16_i32_122 = arith.constant 16 : i32
    %378 = arith.muli %arg1, %c16_i32_122 : i32
    %379 = arith.addi %378, %c6_i32 : i32
    %c24_i32_123 = arith.constant 24 : i32
    %380 = arith.cmpi slt, %379, %c24_i32_123 : i32
    %381 = vector.extract_strided_slice %377 {offsets = [0, 0], sizes = [8, 64], strides = [1, 1]} : vector<8x96xf32> to vector<8x64xf32>
    %cst_124 = arith.constant dense<0.000000e+00> : vector<8x64xf32>
    %382 = tpu.matmul %346, %4, %cst_124 {dimension_numbers = #tpu.dot_dimension_numbers<[1], [0], [0], [1], [0, 0, 1, 1], [], []>} : vector<8x32xf32>, vector<32x64xf32>, vector<8x64xf32> -> vector<8x64xf32>
    %383 = arith.addf %381, %382 : vector<8x64xf32>
    %384 = arith.addf %383, %16 : vector<8x64xf32>
    %385 = arith.negf %384 : vector<8x64xf32>
    %386 = math.exp %385 : vector<8x64xf32>
    %cst_125 = arith.constant 1.000000e+00 : f32
    %387 = vector.broadcast %cst_125 : f32 to vector<8x64xf32>
    %388 = arith.addf %387, %386 : vector<8x64xf32>
    %389 = arith.divf %387, %388 : vector<8x64xf32>
    %390 = vector.extract_strided_slice %389 {offsets = [0, 0], sizes = [8, 32], strides = [1, 1]} : vector<8x64xf32> to vector<8x32xf32>
    %391 = vector.extract_strided_slice %389 {offsets = [0, 32], sizes = [8, 32], strides = [1, 1]} : vector<8x64xf32> to vector<8x32xf32>
    %392 = vector.extract_strided_slice %377 {offsets = [0, 64], sizes = [8, 32], strides = [1, 1]} : vector<8x96xf32> to vector<8x32xf32>
    %393 = arith.mulf %391, %346 : vector<8x32xf32>
    %cst_126 = arith.constant dense<0.000000e+00> : vector<8x32xf32>
    %394 = tpu.matmul %393, %8, %cst_126 {dimension_numbers = #tpu.dot_dimension_numbers<[1], [0], [0], [1], [0, 0, 1, 1], [], []>} : vector<8x32xf32>, vector<32x32xf32>, vector<8x32xf32> -> vector<8x32xf32>
    %395 = arith.addf %392, %394 : vector<8x32xf32>
    %396 = arith.addf %395, %24 : vector<8x32xf32>
    %397 = math.tanh %396 : vector<8x32xf32>
    %398 = arith.mulf %390, %346 : vector<8x32xf32>
    %cst_127 = arith.constant 1.000000e+00 : f32
    %399 = vector.broadcast %cst_127 : f32 to vector<8x32xf32>
    %400 = arith.subf %399, %390 : vector<8x32xf32>
    %401 = arith.mulf %400, %397 : vector<8x32xf32>
    %402 = arith.addf %398, %401 : vector<8x32xf32>
    %403 = arith.select %380, %402, %346 : vector<8x32xf32>
    %cst_128 = arith.constant dense<0.000000e+00> : vector<8x96xf32>
    %404 = tpu.matmul %403, %12, %cst_128 {dimension_numbers = #tpu.dot_dimension_numbers<[1], [0], [0], [1], [0, 0, 1, 1], [], []>} : vector<8x32xf32>, vector<32x96xf32>, vector<8x96xf32> -> vector<8x96xf32>
    %405 = vector.extract_strided_slice %404 {offsets = [0, 0], sizes = [8, 64], strides = [1, 1]} : vector<8x96xf32> to vector<8x64xf32>
    %cst_129 = arith.constant dense<0.000000e+00> : vector<8x64xf32>
    %406 = tpu.matmul %370, %6, %cst_129 {dimension_numbers = #tpu.dot_dimension_numbers<[1], [0], [0], [1], [0, 0, 1, 1], [], []>} : vector<8x32xf32>, vector<32x64xf32>, vector<8x64xf32> -> vector<8x64xf32>
    %407 = arith.addf %405, %406 : vector<8x64xf32>
    %408 = arith.addf %407, %20 : vector<8x64xf32>
    %409 = arith.negf %408 : vector<8x64xf32>
    %410 = math.exp %409 : vector<8x64xf32>
    %cst_130 = arith.constant 1.000000e+00 : f32
    %411 = vector.broadcast %cst_130 : f32 to vector<8x64xf32>
    %412 = arith.addf %411, %410 : vector<8x64xf32>
    %413 = arith.divf %411, %412 : vector<8x64xf32>
    %414 = vector.extract_strided_slice %413 {offsets = [0, 0], sizes = [8, 32], strides = [1, 1]} : vector<8x64xf32> to vector<8x32xf32>
    %415 = vector.extract_strided_slice %413 {offsets = [0, 32], sizes = [8, 32], strides = [1, 1]} : vector<8x64xf32> to vector<8x32xf32>
    %416 = vector.extract_strided_slice %404 {offsets = [0, 64], sizes = [8, 32], strides = [1, 1]} : vector<8x96xf32> to vector<8x32xf32>
    %417 = arith.mulf %415, %370 : vector<8x32xf32>
    %cst_131 = arith.constant dense<0.000000e+00> : vector<8x32xf32>
    %418 = tpu.matmul %417, %10, %cst_131 {dimension_numbers = #tpu.dot_dimension_numbers<[1], [0], [0], [1], [0, 0, 1, 1], [], []>} : vector<8x32xf32>, vector<32x32xf32>, vector<8x32xf32> -> vector<8x32xf32>
    %419 = arith.addf %416, %418 : vector<8x32xf32>
    %420 = arith.addf %419, %28 : vector<8x32xf32>
    %421 = math.tanh %420 : vector<8x32xf32>
    %422 = arith.mulf %414, %370 : vector<8x32xf32>
    %cst_132 = arith.constant 1.000000e+00 : f32
    %423 = vector.broadcast %cst_132 : f32 to vector<8x32xf32>
    %424 = arith.subf %423, %414 : vector<8x32xf32>
    %425 = arith.mulf %424, %421 : vector<8x32xf32>
    %426 = arith.addf %422, %425 : vector<8x32xf32>
    %427 = arith.select %380, %426, %370 : vector<8x32xf32>
    %428 = arith.index_cast %c6_i32 : i32 to index
    %c0_133 = arith.constant 0 : index
    %c0_134 = arith.constant 0 : index
    %429 = vector.load %arg9[%428, %c0_133, %c0_134] : memref<16x8x32xf32, #tpu.memory_space<vmem>>, vector<1x8x32xf32>
    %430 = vector.shape_cast %429 : vector<1x8x32xf32> to vector<8x32xf32>
    %431 = vector.shape_cast %427 : vector<8x32xf32> to vector<1x8x32xf32>
    tpu.vector_store %arg9[%428, %c0_133, %c0_134], %431 {strides = array<i32>} : memref<16x8x32xf32, #tpu.memory_space<vmem>>, vector<1x8x32xf32>,
    %c7_i32 = arith.constant 7 : i32
    %432 = arith.index_cast %c7_i32 : i32 to index
    %c0_135 = arith.constant 0 : index
    %c0_136 = arith.constant 0 : index
    %433 = vector.load %arg2[%432, %c0_135, %c0_136] : memref<16x8x96xf32, #tpu.memory_space<vmem>>, vector<1x8x96xf32>
    %434 = vector.shape_cast %433 : vector<1x8x96xf32> to vector<8x96xf32>
    %c16_i32_137 = arith.constant 16 : i32
    %435 = arith.muli %arg1, %c16_i32_137 : i32
    %436 = arith.addi %435, %c7_i32 : i32
    %c24_i32_138 = arith.constant 24 : i32
    %437 = arith.cmpi slt, %436, %c24_i32_138 : i32
    %438 = vector.extract_strided_slice %434 {offsets = [0, 0], sizes = [8, 64], strides = [1, 1]} : vector<8x96xf32> to vector<8x64xf32>
    %cst_139 = arith.constant dense<0.000000e+00> : vector<8x64xf32>
    %439 = tpu.matmul %403, %4, %cst_139 {dimension_numbers = #tpu.dot_dimension_numbers<[1], [0], [0], [1], [0, 0, 1, 1], [], []>} : vector<8x32xf32>, vector<32x64xf32>, vector<8x64xf32> -> vector<8x64xf32>
    %440 = arith.addf %438, %439 : vector<8x64xf32>
    %441 = arith.addf %440, %16 : vector<8x64xf32>
    %442 = arith.negf %441 : vector<8x64xf32>
    %443 = math.exp %442 : vector<8x64xf32>
    %cst_140 = arith.constant 1.000000e+00 : f32
    %444 = vector.broadcast %cst_140 : f32 to vector<8x64xf32>
    %445 = arith.addf %444, %443 : vector<8x64xf32>
    %446 = arith.divf %444, %445 : vector<8x64xf32>
    %447 = vector.extract_strided_slice %446 {offsets = [0, 0], sizes = [8, 32], strides = [1, 1]} : vector<8x64xf32> to vector<8x32xf32>
    %448 = vector.extract_strided_slice %446 {offsets = [0, 32], sizes = [8, 32], strides = [1, 1]} : vector<8x64xf32> to vector<8x32xf32>
    %449 = vector.extract_strided_slice %434 {offsets = [0, 64], sizes = [8, 32], strides = [1, 1]} : vector<8x96xf32> to vector<8x32xf32>
    %450 = arith.mulf %448, %403 : vector<8x32xf32>
    %cst_141 = arith.constant dense<0.000000e+00> : vector<8x32xf32>
    %451 = tpu.matmul %450, %8, %cst_141 {dimension_numbers = #tpu.dot_dimension_numbers<[1], [0], [0], [1], [0, 0, 1, 1], [], []>} : vector<8x32xf32>, vector<32x32xf32>, vector<8x32xf32> -> vector<8x32xf32>
    %452 = arith.addf %449, %451 : vector<8x32xf32>
    %453 = arith.addf %452, %24 : vector<8x32xf32>
    %454 = math.tanh %453 : vector<8x32xf32>
    %455 = arith.mulf %447, %403 : vector<8x32xf32>
    %cst_142 = arith.constant 1.000000e+00 : f32
    %456 = vector.broadcast %cst_142 : f32 to vector<8x32xf32>
    %457 = arith.subf %456, %447 : vector<8x32xf32>
    %458 = arith.mulf %457, %454 : vector<8x32xf32>
    %459 = arith.addf %455, %458 : vector<8x32xf32>
    %460 = arith.select %437, %459, %403 : vector<8x32xf32>
    %cst_143 = arith.constant dense<0.000000e+00> : vector<8x96xf32>
    %461 = tpu.matmul %460, %12, %cst_143 {dimension_numbers = #tpu.dot_dimension_numbers<[1], [0], [0], [1], [0, 0, 1, 1], [], []>} : vector<8x32xf32>, vector<32x96xf32>, vector<8x96xf32> -> vector<8x96xf32>
    %462 = vector.extract_strided_slice %461 {offsets = [0, 0], sizes = [8, 64], strides = [1, 1]} : vector<8x96xf32> to vector<8x64xf32>
    %cst_144 = arith.constant dense<0.000000e+00> : vector<8x64xf32>
    %463 = tpu.matmul %427, %6, %cst_144 {dimension_numbers = #tpu.dot_dimension_numbers<[1], [0], [0], [1], [0, 0, 1, 1], [], []>} : vector<8x32xf32>, vector<32x64xf32>, vector<8x64xf32> -> vector<8x64xf32>
    %464 = arith.addf %462, %463 : vector<8x64xf32>
    %465 = arith.addf %464, %20 : vector<8x64xf32>
    %466 = arith.negf %465 : vector<8x64xf32>
    %467 = math.exp %466 : vector<8x64xf32>
    %cst_145 = arith.constant 1.000000e+00 : f32
    %468 = vector.broadcast %cst_145 : f32 to vector<8x64xf32>
    %469 = arith.addf %468, %467 : vector<8x64xf32>
    %470 = arith.divf %468, %469 : vector<8x64xf32>
    %471 = vector.extract_strided_slice %470 {offsets = [0, 0], sizes = [8, 32], strides = [1, 1]} : vector<8x64xf32> to vector<8x32xf32>
    %472 = vector.extract_strided_slice %470 {offsets = [0, 32], sizes = [8, 32], strides = [1, 1]} : vector<8x64xf32> to vector<8x32xf32>
    %473 = vector.extract_strided_slice %461 {offsets = [0, 64], sizes = [8, 32], strides = [1, 1]} : vector<8x96xf32> to vector<8x32xf32>
    %474 = arith.mulf %472, %427 : vector<8x32xf32>
    %cst_146 = arith.constant dense<0.000000e+00> : vector<8x32xf32>
    %475 = tpu.matmul %474, %10, %cst_146 {dimension_numbers = #tpu.dot_dimension_numbers<[1], [0], [0], [1], [0, 0, 1, 1], [], []>} : vector<8x32xf32>, vector<32x32xf32>, vector<8x32xf32> -> vector<8x32xf32>
    %476 = arith.addf %473, %475 : vector<8x32xf32>
    %477 = arith.addf %476, %28 : vector<8x32xf32>
    %478 = math.tanh %477 : vector<8x32xf32>
    %479 = arith.mulf %471, %427 : vector<8x32xf32>
    %cst_147 = arith.constant 1.000000e+00 : f32
    %480 = vector.broadcast %cst_147 : f32 to vector<8x32xf32>
    %481 = arith.subf %480, %471 : vector<8x32xf32>
    %482 = arith.mulf %481, %478 : vector<8x32xf32>
    %483 = arith.addf %479, %482 : vector<8x32xf32>
    %484 = arith.select %437, %483, %427 : vector<8x32xf32>
    %485 = arith.index_cast %c7_i32 : i32 to index
    %c0_148 = arith.constant 0 : index
    %c0_149 = arith.constant 0 : index
    %486 = vector.load %arg9[%485, %c0_148, %c0_149] : memref<16x8x32xf32, #tpu.memory_space<vmem>>, vector<1x8x32xf32>
    %487 = vector.shape_cast %486 : vector<1x8x32xf32> to vector<8x32xf32>
    %488 = vector.shape_cast %484 : vector<8x32xf32> to vector<1x8x32xf32>
    tpu.vector_store %arg9[%485, %c0_148, %c0_149], %488 {strides = array<i32>} : memref<16x8x32xf32, #tpu.memory_space<vmem>>, vector<1x8x32xf32>,
    %c8_i32 = arith.constant 8 : i32
    %489 = arith.index_cast %c8_i32 : i32 to index
    %c0_150 = arith.constant 0 : index
    %c0_151 = arith.constant 0 : index
    %490 = vector.load %arg2[%489, %c0_150, %c0_151] : memref<16x8x96xf32, #tpu.memory_space<vmem>>, vector<1x8x96xf32>
    %491 = vector.shape_cast %490 : vector<1x8x96xf32> to vector<8x96xf32>
    %c16_i32_152 = arith.constant 16 : i32
    %492 = arith.muli %arg1, %c16_i32_152 : i32
    %493 = arith.addi %492, %c8_i32 : i32
    %c24_i32_153 = arith.constant 24 : i32
    %494 = arith.cmpi slt, %493, %c24_i32_153 : i32
    %495 = vector.extract_strided_slice %491 {offsets = [0, 0], sizes = [8, 64], strides = [1, 1]} : vector<8x96xf32> to vector<8x64xf32>
    %cst_154 = arith.constant dense<0.000000e+00> : vector<8x64xf32>
    %496 = tpu.matmul %460, %4, %cst_154 {dimension_numbers = #tpu.dot_dimension_numbers<[1], [0], [0], [1], [0, 0, 1, 1], [], []>} : vector<8x32xf32>, vector<32x64xf32>, vector<8x64xf32> -> vector<8x64xf32>
    %497 = arith.addf %495, %496 : vector<8x64xf32>
    %498 = arith.addf %497, %16 : vector<8x64xf32>
    %499 = arith.negf %498 : vector<8x64xf32>
    %500 = math.exp %499 : vector<8x64xf32>
    %cst_155 = arith.constant 1.000000e+00 : f32
    %501 = vector.broadcast %cst_155 : f32 to vector<8x64xf32>
    %502 = arith.addf %501, %500 : vector<8x64xf32>
    %503 = arith.divf %501, %502 : vector<8x64xf32>
    %504 = vector.extract_strided_slice %503 {offsets = [0, 0], sizes = [8, 32], strides = [1, 1]} : vector<8x64xf32> to vector<8x32xf32>
    %505 = vector.extract_strided_slice %503 {offsets = [0, 32], sizes = [8, 32], strides = [1, 1]} : vector<8x64xf32> to vector<8x32xf32>
    %506 = vector.extract_strided_slice %491 {offsets = [0, 64], sizes = [8, 32], strides = [1, 1]} : vector<8x96xf32> to vector<8x32xf32>
    %507 = arith.mulf %505, %460 : vector<8x32xf32>
    %cst_156 = arith.constant dense<0.000000e+00> : vector<8x32xf32>
    %508 = tpu.matmul %507, %8, %cst_156 {dimension_numbers = #tpu.dot_dimension_numbers<[1], [0], [0], [1], [0, 0, 1, 1], [], []>} : vector<8x32xf32>, vector<32x32xf32>, vector<8x32xf32> -> vector<8x32xf32>
    %509 = arith.addf %506, %508 : vector<8x32xf32>
    %510 = arith.addf %509, %24 : vector<8x32xf32>
    %511 = math.tanh %510 : vector<8x32xf32>
    %512 = arith.mulf %504, %460 : vector<8x32xf32>
    %cst_157 = arith.constant 1.000000e+00 : f32
    %513 = vector.broadcast %cst_157 : f32 to vector<8x32xf32>
    %514 = arith.subf %513, %504 : vector<8x32xf32>
    %515 = arith.mulf %514, %511 : vector<8x32xf32>
    %516 = arith.addf %512, %515 : vector<8x32xf32>
    %517 = arith.select %494, %516, %460 : vector<8x32xf32>
    %cst_158 = arith.constant dense<0.000000e+00> : vector<8x96xf32>
    %518 = tpu.matmul %517, %12, %cst_158 {dimension_numbers = #tpu.dot_dimension_numbers<[1], [0], [0], [1], [0, 0, 1, 1], [], []>} : vector<8x32xf32>, vector<32x96xf32>, vector<8x96xf32> -> vector<8x96xf32>
    %519 = vector.extract_strided_slice %518 {offsets = [0, 0], sizes = [8, 64], strides = [1, 1]} : vector<8x96xf32> to vector<8x64xf32>
    %cst_159 = arith.constant dense<0.000000e+00> : vector<8x64xf32>
    %520 = tpu.matmul %484, %6, %cst_159 {dimension_numbers = #tpu.dot_dimension_numbers<[1], [0], [0], [1], [0, 0, 1, 1], [], []>} : vector<8x32xf32>, vector<32x64xf32>, vector<8x64xf32> -> vector<8x64xf32>
    %521 = arith.addf %519, %520 : vector<8x64xf32>
    %522 = arith.addf %521, %20 : vector<8x64xf32>
    %523 = arith.negf %522 : vector<8x64xf32>
    %524 = math.exp %523 : vector<8x64xf32>
    %cst_160 = arith.constant 1.000000e+00 : f32
    %525 = vector.broadcast %cst_160 : f32 to vector<8x64xf32>
    %526 = arith.addf %525, %524 : vector<8x64xf32>
    %527 = arith.divf %525, %526 : vector<8x64xf32>
    %528 = vector.extract_strided_slice %527 {offsets = [0, 0], sizes = [8, 32], strides = [1, 1]} : vector<8x64xf32> to vector<8x32xf32>
    %529 = vector.extract_strided_slice %527 {offsets = [0, 32], sizes = [8, 32], strides = [1, 1]} : vector<8x64xf32> to vector<8x32xf32>
    %530 = vector.extract_strided_slice %518 {offsets = [0, 64], sizes = [8, 32], strides = [1, 1]} : vector<8x96xf32> to vector<8x32xf32>
    %531 = arith.mulf %529, %484 : vector<8x32xf32>
    %cst_161 = arith.constant dense<0.000000e+00> : vector<8x32xf32>
    %532 = tpu.matmul %531, %10, %cst_161 {dimension_numbers = #tpu.dot_dimension_numbers<[1], [0], [0], [1], [0, 0, 1, 1], [], []>} : vector<8x32xf32>, vector<32x32xf32>, vector<8x32xf32> -> vector<8x32xf32>
    %533 = arith.addf %530, %532 : vector<8x32xf32>
    %534 = arith.addf %533, %28 : vector<8x32xf32>
    %535 = math.tanh %534 : vector<8x32xf32>
    %536 = arith.mulf %528, %484 : vector<8x32xf32>
    %cst_162 = arith.constant 1.000000e+00 : f32
    %537 = vector.broadcast %cst_162 : f32 to vector<8x32xf32>
    %538 = arith.subf %537, %528 : vector<8x32xf32>
    %539 = arith.mulf %538, %535 : vector<8x32xf32>
    %540 = arith.addf %536, %539 : vector<8x32xf32>
    %541 = arith.select %494, %540, %484 : vector<8x32xf32>
    %542 = arith.index_cast %c8_i32 : i32 to index
    %c0_163 = arith.constant 0 : index
    %c0_164 = arith.constant 0 : index
    %543 = vector.load %arg9[%542, %c0_163, %c0_164] : memref<16x8x32xf32, #tpu.memory_space<vmem>>, vector<1x8x32xf32>
    %544 = vector.shape_cast %543 : vector<1x8x32xf32> to vector<8x32xf32>
    %545 = vector.shape_cast %541 : vector<8x32xf32> to vector<1x8x32xf32>
    tpu.vector_store %arg9[%542, %c0_163, %c0_164], %545 {strides = array<i32>} : memref<16x8x32xf32, #tpu.memory_space<vmem>>, vector<1x8x32xf32>,
    %c9_i32 = arith.constant 9 : i32
    %546 = arith.index_cast %c9_i32 : i32 to index
    %c0_165 = arith.constant 0 : index
    %c0_166 = arith.constant 0 : index
    %547 = vector.load %arg2[%546, %c0_165, %c0_166] : memref<16x8x96xf32, #tpu.memory_space<vmem>>, vector<1x8x96xf32>
    %548 = vector.shape_cast %547 : vector<1x8x96xf32> to vector<8x96xf32>
    %c16_i32_167 = arith.constant 16 : i32
    %549 = arith.muli %arg1, %c16_i32_167 : i32
    %550 = arith.addi %549, %c9_i32 : i32
    %c24_i32_168 = arith.constant 24 : i32
    %551 = arith.cmpi slt, %550, %c24_i32_168 : i32
    %552 = vector.extract_strided_slice %548 {offsets = [0, 0], sizes = [8, 64], strides = [1, 1]} : vector<8x96xf32> to vector<8x64xf32>
    %cst_169 = arith.constant dense<0.000000e+00> : vector<8x64xf32>
    %553 = tpu.matmul %517, %4, %cst_169 {dimension_numbers = #tpu.dot_dimension_numbers<[1], [0], [0], [1], [0, 0, 1, 1], [], []>} : vector<8x32xf32>, vector<32x64xf32>, vector<8x64xf32> -> vector<8x64xf32>
    %554 = arith.addf %552, %553 : vector<8x64xf32>
    %555 = arith.addf %554, %16 : vector<8x64xf32>
    %556 = arith.negf %555 : vector<8x64xf32>
    %557 = math.exp %556 : vector<8x64xf32>
    %cst_170 = arith.constant 1.000000e+00 : f32
    %558 = vector.broadcast %cst_170 : f32 to vector<8x64xf32>
    %559 = arith.addf %558, %557 : vector<8x64xf32>
    %560 = arith.divf %558, %559 : vector<8x64xf32>
    %561 = vector.extract_strided_slice %560 {offsets = [0, 0], sizes = [8, 32], strides = [1, 1]} : vector<8x64xf32> to vector<8x32xf32>
    %562 = vector.extract_strided_slice %560 {offsets = [0, 32], sizes = [8, 32], strides = [1, 1]} : vector<8x64xf32> to vector<8x32xf32>
    %563 = vector.extract_strided_slice %548 {offsets = [0, 64], sizes = [8, 32], strides = [1, 1]} : vector<8x96xf32> to vector<8x32xf32>
    %564 = arith.mulf %562, %517 : vector<8x32xf32>
    %cst_171 = arith.constant dense<0.000000e+00> : vector<8x32xf32>
    %565 = tpu.matmul %564, %8, %cst_171 {dimension_numbers = #tpu.dot_dimension_numbers<[1], [0], [0], [1], [0, 0, 1, 1], [], []>} : vector<8x32xf32>, vector<32x32xf32>, vector<8x32xf32> -> vector<8x32xf32>
    %566 = arith.addf %563, %565 : vector<8x32xf32>
    %567 = arith.addf %566, %24 : vector<8x32xf32>
    %568 = math.tanh %567 : vector<8x32xf32>
    %569 = arith.mulf %561, %517 : vector<8x32xf32>
    %cst_172 = arith.constant 1.000000e+00 : f32
    %570 = vector.broadcast %cst_172 : f32 to vector<8x32xf32>
    %571 = arith.subf %570, %561 : vector<8x32xf32>
    %572 = arith.mulf %571, %568 : vector<8x32xf32>
    %573 = arith.addf %569, %572 : vector<8x32xf32>
    %574 = arith.select %551, %573, %517 : vector<8x32xf32>
    %cst_173 = arith.constant dense<0.000000e+00> : vector<8x96xf32>
    %575 = tpu.matmul %574, %12, %cst_173 {dimension_numbers = #tpu.dot_dimension_numbers<[1], [0], [0], [1], [0, 0, 1, 1], [], []>} : vector<8x32xf32>, vector<32x96xf32>, vector<8x96xf32> -> vector<8x96xf32>
    %576 = vector.extract_strided_slice %575 {offsets = [0, 0], sizes = [8, 64], strides = [1, 1]} : vector<8x96xf32> to vector<8x64xf32>
    %cst_174 = arith.constant dense<0.000000e+00> : vector<8x64xf32>
    %577 = tpu.matmul %541, %6, %cst_174 {dimension_numbers = #tpu.dot_dimension_numbers<[1], [0], [0], [1], [0, 0, 1, 1], [], []>} : vector<8x32xf32>, vector<32x64xf32>, vector<8x64xf32> -> vector<8x64xf32>
    %578 = arith.addf %576, %577 : vector<8x64xf32>
    %579 = arith.addf %578, %20 : vector<8x64xf32>
    %580 = arith.negf %579 : vector<8x64xf32>
    %581 = math.exp %580 : vector<8x64xf32>
    %cst_175 = arith.constant 1.000000e+00 : f32
    %582 = vector.broadcast %cst_175 : f32 to vector<8x64xf32>
    %583 = arith.addf %582, %581 : vector<8x64xf32>
    %584 = arith.divf %582, %583 : vector<8x64xf32>
    %585 = vector.extract_strided_slice %584 {offsets = [0, 0], sizes = [8, 32], strides = [1, 1]} : vector<8x64xf32> to vector<8x32xf32>
    %586 = vector.extract_strided_slice %584 {offsets = [0, 32], sizes = [8, 32], strides = [1, 1]} : vector<8x64xf32> to vector<8x32xf32>
    %587 = vector.extract_strided_slice %575 {offsets = [0, 64], sizes = [8, 32], strides = [1, 1]} : vector<8x96xf32> to vector<8x32xf32>
    %588 = arith.mulf %586, %541 : vector<8x32xf32>
    %cst_176 = arith.constant dense<0.000000e+00> : vector<8x32xf32>
    %589 = tpu.matmul %588, %10, %cst_176 {dimension_numbers = #tpu.dot_dimension_numbers<[1], [0], [0], [1], [0, 0, 1, 1], [], []>} : vector<8x32xf32>, vector<32x32xf32>, vector<8x32xf32> -> vector<8x32xf32>
    %590 = arith.addf %587, %589 : vector<8x32xf32>
    %591 = arith.addf %590, %28 : vector<8x32xf32>
    %592 = math.tanh %591 : vector<8x32xf32>
    %593 = arith.mulf %585, %541 : vector<8x32xf32>
    %cst_177 = arith.constant 1.000000e+00 : f32
    %594 = vector.broadcast %cst_177 : f32 to vector<8x32xf32>
    %595 = arith.subf %594, %585 : vector<8x32xf32>
    %596 = arith.mulf %595, %592 : vector<8x32xf32>
    %597 = arith.addf %593, %596 : vector<8x32xf32>
    %598 = arith.select %551, %597, %541 : vector<8x32xf32>
    %599 = arith.index_cast %c9_i32 : i32 to index
    %c0_178 = arith.constant 0 : index
    %c0_179 = arith.constant 0 : index
    %600 = vector.load %arg9[%599, %c0_178, %c0_179] : memref<16x8x32xf32, #tpu.memory_space<vmem>>, vector<1x8x32xf32>
    %601 = vector.shape_cast %600 : vector<1x8x32xf32> to vector<8x32xf32>
    %602 = vector.shape_cast %598 : vector<8x32xf32> to vector<1x8x32xf32>
    tpu.vector_store %arg9[%599, %c0_178, %c0_179], %602 {strides = array<i32>} : memref<16x8x32xf32, #tpu.memory_space<vmem>>, vector<1x8x32xf32>,
    %c10_i32 = arith.constant 10 : i32
    %603 = arith.index_cast %c10_i32 : i32 to index
    %c0_180 = arith.constant 0 : index
    %c0_181 = arith.constant 0 : index
    %604 = vector.load %arg2[%603, %c0_180, %c0_181] : memref<16x8x96xf32, #tpu.memory_space<vmem>>, vector<1x8x96xf32>
    %605 = vector.shape_cast %604 : vector<1x8x96xf32> to vector<8x96xf32>
    %c16_i32_182 = arith.constant 16 : i32
    %606 = arith.muli %arg1, %c16_i32_182 : i32
    %607 = arith.addi %606, %c10_i32 : i32
    %c24_i32_183 = arith.constant 24 : i32
    %608 = arith.cmpi slt, %607, %c24_i32_183 : i32
    %609 = vector.extract_strided_slice %605 {offsets = [0, 0], sizes = [8, 64], strides = [1, 1]} : vector<8x96xf32> to vector<8x64xf32>
    %cst_184 = arith.constant dense<0.000000e+00> : vector<8x64xf32>
    %610 = tpu.matmul %574, %4, %cst_184 {dimension_numbers = #tpu.dot_dimension_numbers<[1], [0], [0], [1], [0, 0, 1, 1], [], []>} : vector<8x32xf32>, vector<32x64xf32>, vector<8x64xf32> -> vector<8x64xf32>
    %611 = arith.addf %609, %610 : vector<8x64xf32>
    %612 = arith.addf %611, %16 : vector<8x64xf32>
    %613 = arith.negf %612 : vector<8x64xf32>
    %614 = math.exp %613 : vector<8x64xf32>
    %cst_185 = arith.constant 1.000000e+00 : f32
    %615 = vector.broadcast %cst_185 : f32 to vector<8x64xf32>
    %616 = arith.addf %615, %614 : vector<8x64xf32>
    %617 = arith.divf %615, %616 : vector<8x64xf32>
    %618 = vector.extract_strided_slice %617 {offsets = [0, 0], sizes = [8, 32], strides = [1, 1]} : vector<8x64xf32> to vector<8x32xf32>
    %619 = vector.extract_strided_slice %617 {offsets = [0, 32], sizes = [8, 32], strides = [1, 1]} : vector<8x64xf32> to vector<8x32xf32>
    %620 = vector.extract_strided_slice %605 {offsets = [0, 64], sizes = [8, 32], strides = [1, 1]} : vector<8x96xf32> to vector<8x32xf32>
    %621 = arith.mulf %619, %574 : vector<8x32xf32>
    %cst_186 = arith.constant dense<0.000000e+00> : vector<8x32xf32>
    %622 = tpu.matmul %621, %8, %cst_186 {dimension_numbers = #tpu.dot_dimension_numbers<[1], [0], [0], [1], [0, 0, 1, 1], [], []>} : vector<8x32xf32>, vector<32x32xf32>, vector<8x32xf32> -> vector<8x32xf32>
    %623 = arith.addf %620, %622 : vector<8x32xf32>
    %624 = arith.addf %623, %24 : vector<8x32xf32>
    %625 = math.tanh %624 : vector<8x32xf32>
    %626 = arith.mulf %618, %574 : vector<8x32xf32>
    %cst_187 = arith.constant 1.000000e+00 : f32
    %627 = vector.broadcast %cst_187 : f32 to vector<8x32xf32>
    %628 = arith.subf %627, %618 : vector<8x32xf32>
    %629 = arith.mulf %628, %625 : vector<8x32xf32>
    %630 = arith.addf %626, %629 : vector<8x32xf32>
    %631 = arith.select %608, %630, %574 : vector<8x32xf32>
    %cst_188 = arith.constant dense<0.000000e+00> : vector<8x96xf32>
    %632 = tpu.matmul %631, %12, %cst_188 {dimension_numbers = #tpu.dot_dimension_numbers<[1], [0], [0], [1], [0, 0, 1, 1], [], []>} : vector<8x32xf32>, vector<32x96xf32>, vector<8x96xf32> -> vector<8x96xf32>
    %633 = vector.extract_strided_slice %632 {offsets = [0, 0], sizes = [8, 64], strides = [1, 1]} : vector<8x96xf32> to vector<8x64xf32>
    %cst_189 = arith.constant dense<0.000000e+00> : vector<8x64xf32>
    %634 = tpu.matmul %598, %6, %cst_189 {dimension_numbers = #tpu.dot_dimension_numbers<[1], [0], [0], [1], [0, 0, 1, 1], [], []>} : vector<8x32xf32>, vector<32x64xf32>, vector<8x64xf32> -> vector<8x64xf32>
    %635 = arith.addf %633, %634 : vector<8x64xf32>
    %636 = arith.addf %635, %20 : vector<8x64xf32>
    %637 = arith.negf %636 : vector<8x64xf32>
    %638 = math.exp %637 : vector<8x64xf32>
    %cst_190 = arith.constant 1.000000e+00 : f32
    %639 = vector.broadcast %cst_190 : f32 to vector<8x64xf32>
    %640 = arith.addf %639, %638 : vector<8x64xf32>
    %641 = arith.divf %639, %640 : vector<8x64xf32>
    %642 = vector.extract_strided_slice %641 {offsets = [0, 0], sizes = [8, 32], strides = [1, 1]} : vector<8x64xf32> to vector<8x32xf32>
    %643 = vector.extract_strided_slice %641 {offsets = [0, 32], sizes = [8, 32], strides = [1, 1]} : vector<8x64xf32> to vector<8x32xf32>
    %644 = vector.extract_strided_slice %632 {offsets = [0, 64], sizes = [8, 32], strides = [1, 1]} : vector<8x96xf32> to vector<8x32xf32>
    %645 = arith.mulf %643, %598 : vector<8x32xf32>
    %cst_191 = arith.constant dense<0.000000e+00> : vector<8x32xf32>
    %646 = tpu.matmul %645, %10, %cst_191 {dimension_numbers = #tpu.dot_dimension_numbers<[1], [0], [0], [1], [0, 0, 1, 1], [], []>} : vector<8x32xf32>, vector<32x32xf32>, vector<8x32xf32> -> vector<8x32xf32>
    %647 = arith.addf %644, %646 : vector<8x32xf32>
    %648 = arith.addf %647, %28 : vector<8x32xf32>
    %649 = math.tanh %648 : vector<8x32xf32>
    %650 = arith.mulf %642, %598 : vector<8x32xf32>
    %cst_192 = arith.constant 1.000000e+00 : f32
    %651 = vector.broadcast %cst_192 : f32 to vector<8x32xf32>
    %652 = arith.subf %651, %642 : vector<8x32xf32>
    %653 = arith.mulf %652, %649 : vector<8x32xf32>
    %654 = arith.addf %650, %653 : vector<8x32xf32>
    %655 = arith.select %608, %654, %598 : vector<8x32xf32>
    %656 = arith.index_cast %c10_i32 : i32 to index
    %c0_193 = arith.constant 0 : index
    %c0_194 = arith.constant 0 : index
    %657 = vector.load %arg9[%656, %c0_193, %c0_194] : memref<16x8x32xf32, #tpu.memory_space<vmem>>, vector<1x8x32xf32>
    %658 = vector.shape_cast %657 : vector<1x8x32xf32> to vector<8x32xf32>
    %659 = vector.shape_cast %655 : vector<8x32xf32> to vector<1x8x32xf32>
    tpu.vector_store %arg9[%656, %c0_193, %c0_194], %659 {strides = array<i32>} : memref<16x8x32xf32, #tpu.memory_space<vmem>>, vector<1x8x32xf32>,
    %c11_i32 = arith.constant 11 : i32
    %660 = arith.index_cast %c11_i32 : i32 to index
    %c0_195 = arith.constant 0 : index
    %c0_196 = arith.constant 0 : index
    %661 = vector.load %arg2[%660, %c0_195, %c0_196] : memref<16x8x96xf32, #tpu.memory_space<vmem>>, vector<1x8x96xf32>
    %662 = vector.shape_cast %661 : vector<1x8x96xf32> to vector<8x96xf32>
    %c16_i32_197 = arith.constant 16 : i32
    %663 = arith.muli %arg1, %c16_i32_197 : i32
    %664 = arith.addi %663, %c11_i32 : i32
    %c24_i32_198 = arith.constant 24 : i32
    %665 = arith.cmpi slt, %664, %c24_i32_198 : i32
    %666 = vector.extract_strided_slice %662 {offsets = [0, 0], sizes = [8, 64], strides = [1, 1]} : vector<8x96xf32> to vector<8x64xf32>
    %cst_199 = arith.constant dense<0.000000e+00> : vector<8x64xf32>
    %667 = tpu.matmul %631, %4, %cst_199 {dimension_numbers = #tpu.dot_dimension_numbers<[1], [0], [0], [1], [0, 0, 1, 1], [], []>} : vector<8x32xf32>, vector<32x64xf32>, vector<8x64xf32> -> vector<8x64xf32>
    %668 = arith.addf %666, %667 : vector<8x64xf32>
    %669 = arith.addf %668, %16 : vector<8x64xf32>
    %670 = arith.negf %669 : vector<8x64xf32>
    %671 = math.exp %670 : vector<8x64xf32>
    %cst_200 = arith.constant 1.000000e+00 : f32
    %672 = vector.broadcast %cst_200 : f32 to vector<8x64xf32>
    %673 = arith.addf %672, %671 : vector<8x64xf32>
    %674 = arith.divf %672, %673 : vector<8x64xf32>
    %675 = vector.extract_strided_slice %674 {offsets = [0, 0], sizes = [8, 32], strides = [1, 1]} : vector<8x64xf32> to vector<8x32xf32>
    %676 = vector.extract_strided_slice %674 {offsets = [0, 32], sizes = [8, 32], strides = [1, 1]} : vector<8x64xf32> to vector<8x32xf32>
    %677 = vector.extract_strided_slice %662 {offsets = [0, 64], sizes = [8, 32], strides = [1, 1]} : vector<8x96xf32> to vector<8x32xf32>
    %678 = arith.mulf %676, %631 : vector<8x32xf32>
    %cst_201 = arith.constant dense<0.000000e+00> : vector<8x32xf32>
    %679 = tpu.matmul %678, %8, %cst_201 {dimension_numbers = #tpu.dot_dimension_numbers<[1], [0], [0], [1], [0, 0, 1, 1], [], []>} : vector<8x32xf32>, vector<32x32xf32>, vector<8x32xf32> -> vector<8x32xf32>
    %680 = arith.addf %677, %679 : vector<8x32xf32>
    %681 = arith.addf %680, %24 : vector<8x32xf32>
    %682 = math.tanh %681 : vector<8x32xf32>
    %683 = arith.mulf %675, %631 : vector<8x32xf32>
    %cst_202 = arith.constant 1.000000e+00 : f32
    %684 = vector.broadcast %cst_202 : f32 to vector<8x32xf32>
    %685 = arith.subf %684, %675 : vector<8x32xf32>
    %686 = arith.mulf %685, %682 : vector<8x32xf32>
    %687 = arith.addf %683, %686 : vector<8x32xf32>
    %688 = arith.select %665, %687, %631 : vector<8x32xf32>
    %cst_203 = arith.constant dense<0.000000e+00> : vector<8x96xf32>
    %689 = tpu.matmul %688, %12, %cst_203 {dimension_numbers = #tpu.dot_dimension_numbers<[1], [0], [0], [1], [0, 0, 1, 1], [], []>} : vector<8x32xf32>, vector<32x96xf32>, vector<8x96xf32> -> vector<8x96xf32>
    %690 = vector.extract_strided_slice %689 {offsets = [0, 0], sizes = [8, 64], strides = [1, 1]} : vector<8x96xf32> to vector<8x64xf32>
    %cst_204 = arith.constant dense<0.000000e+00> : vector<8x64xf32>
    %691 = tpu.matmul %655, %6, %cst_204 {dimension_numbers = #tpu.dot_dimension_numbers<[1], [0], [0], [1], [0, 0, 1, 1], [], []>} : vector<8x32xf32>, vector<32x64xf32>, vector<8x64xf32> -> vector<8x64xf32>
    %692 = arith.addf %690, %691 : vector<8x64xf32>
    %693 = arith.addf %692, %20 : vector<8x64xf32>
    %694 = arith.negf %693 : vector<8x64xf32>
    %695 = math.exp %694 : vector<8x64xf32>
    %cst_205 = arith.constant 1.000000e+00 : f32
    %696 = vector.broadcast %cst_205 : f32 to vector<8x64xf32>
    %697 = arith.addf %696, %695 : vector<8x64xf32>
    %698 = arith.divf %696, %697 : vector<8x64xf32>
    %699 = vector.extract_strided_slice %698 {offsets = [0, 0], sizes = [8, 32], strides = [1, 1]} : vector<8x64xf32> to vector<8x32xf32>
    %700 = vector.extract_strided_slice %698 {offsets = [0, 32], sizes = [8, 32], strides = [1, 1]} : vector<8x64xf32> to vector<8x32xf32>
    %701 = vector.extract_strided_slice %689 {offsets = [0, 64], sizes = [8, 32], strides = [1, 1]} : vector<8x96xf32> to vector<8x32xf32>
    %702 = arith.mulf %700, %655 : vector<8x32xf32>
    %cst_206 = arith.constant dense<0.000000e+00> : vector<8x32xf32>
    %703 = tpu.matmul %702, %10, %cst_206 {dimension_numbers = #tpu.dot_dimension_numbers<[1], [0], [0], [1], [0, 0, 1, 1], [], []>} : vector<8x32xf32>, vector<32x32xf32>, vector<8x32xf32> -> vector<8x32xf32>
    %704 = arith.addf %701, %703 : vector<8x32xf32>
    %705 = arith.addf %704, %28 : vector<8x32xf32>
    %706 = math.tanh %705 : vector<8x32xf32>
    %707 = arith.mulf %699, %655 : vector<8x32xf32>
    %cst_207 = arith.constant 1.000000e+00 : f32
    %708 = vector.broadcast %cst_207 : f32 to vector<8x32xf32>
    %709 = arith.subf %708, %699 : vector<8x32xf32>
    %710 = arith.mulf %709, %706 : vector<8x32xf32>
    %711 = arith.addf %707, %710 : vector<8x32xf32>
    %712 = arith.select %665, %711, %655 : vector<8x32xf32>
    %713 = arith.index_cast %c11_i32 : i32 to index
    %c0_208 = arith.constant 0 : index
    %c0_209 = arith.constant 0 : index
    %714 = vector.load %arg9[%713, %c0_208, %c0_209] : memref<16x8x32xf32, #tpu.memory_space<vmem>>, vector<1x8x32xf32>
    %715 = vector.shape_cast %714 : vector<1x8x32xf32> to vector<8x32xf32>
    %716 = vector.shape_cast %712 : vector<8x32xf32> to vector<1x8x32xf32>
    tpu.vector_store %arg9[%713, %c0_208, %c0_209], %716 {strides = array<i32>} : memref<16x8x32xf32, #tpu.memory_space<vmem>>, vector<1x8x32xf32>,
    %c12_i32 = arith.constant 12 : i32
    %717 = arith.index_cast %c12_i32 : i32 to index
    %c0_210 = arith.constant 0 : index
    %c0_211 = arith.constant 0 : index
    %718 = vector.load %arg2[%717, %c0_210, %c0_211] : memref<16x8x96xf32, #tpu.memory_space<vmem>>, vector<1x8x96xf32>
    %719 = vector.shape_cast %718 : vector<1x8x96xf32> to vector<8x96xf32>
    %c16_i32_212 = arith.constant 16 : i32
    %720 = arith.muli %arg1, %c16_i32_212 : i32
    %721 = arith.addi %720, %c12_i32 : i32
    %c24_i32_213 = arith.constant 24 : i32
    %722 = arith.cmpi slt, %721, %c24_i32_213 : i32
    %723 = vector.extract_strided_slice %719 {offsets = [0, 0], sizes = [8, 64], strides = [1, 1]} : vector<8x96xf32> to vector<8x64xf32>
    %cst_214 = arith.constant dense<0.000000e+00> : vector<8x64xf32>
    %724 = tpu.matmul %688, %4, %cst_214 {dimension_numbers = #tpu.dot_dimension_numbers<[1], [0], [0], [1], [0, 0, 1, 1], [], []>} : vector<8x32xf32>, vector<32x64xf32>, vector<8x64xf32> -> vector<8x64xf32>
    %725 = arith.addf %723, %724 : vector<8x64xf32>
    %726 = arith.addf %725, %16 : vector<8x64xf32>
    %727 = arith.negf %726 : vector<8x64xf32>
    %728 = math.exp %727 : vector<8x64xf32>
    %cst_215 = arith.constant 1.000000e+00 : f32
    %729 = vector.broadcast %cst_215 : f32 to vector<8x64xf32>
    %730 = arith.addf %729, %728 : vector<8x64xf32>
    %731 = arith.divf %729, %730 : vector<8x64xf32>
    %732 = vector.extract_strided_slice %731 {offsets = [0, 0], sizes = [8, 32], strides = [1, 1]} : vector<8x64xf32> to vector<8x32xf32>
    %733 = vector.extract_strided_slice %731 {offsets = [0, 32], sizes = [8, 32], strides = [1, 1]} : vector<8x64xf32> to vector<8x32xf32>
    %734 = vector.extract_strided_slice %719 {offsets = [0, 64], sizes = [8, 32], strides = [1, 1]} : vector<8x96xf32> to vector<8x32xf32>
    %735 = arith.mulf %733, %688 : vector<8x32xf32>
    %cst_216 = arith.constant dense<0.000000e+00> : vector<8x32xf32>
    %736 = tpu.matmul %735, %8, %cst_216 {dimension_numbers = #tpu.dot_dimension_numbers<[1], [0], [0], [1], [0, 0, 1, 1], [], []>} : vector<8x32xf32>, vector<32x32xf32>, vector<8x32xf32> -> vector<8x32xf32>
    %737 = arith.addf %734, %736 : vector<8x32xf32>
    %738 = arith.addf %737, %24 : vector<8x32xf32>
    %739 = math.tanh %738 : vector<8x32xf32>
    %740 = arith.mulf %732, %688 : vector<8x32xf32>
    %cst_217 = arith.constant 1.000000e+00 : f32
    %741 = vector.broadcast %cst_217 : f32 to vector<8x32xf32>
    %742 = arith.subf %741, %732 : vector<8x32xf32>
    %743 = arith.mulf %742, %739 : vector<8x32xf32>
    %744 = arith.addf %740, %743 : vector<8x32xf32>
    %745 = arith.select %722, %744, %688 : vector<8x32xf32>
    %cst_218 = arith.constant dense<0.000000e+00> : vector<8x96xf32>
    %746 = tpu.matmul %745, %12, %cst_218 {dimension_numbers = #tpu.dot_dimension_numbers<[1], [0], [0], [1], [0, 0, 1, 1], [], []>} : vector<8x32xf32>, vector<32x96xf32>, vector<8x96xf32> -> vector<8x96xf32>
    %747 = vector.extract_strided_slice %746 {offsets = [0, 0], sizes = [8, 64], strides = [1, 1]} : vector<8x96xf32> to vector<8x64xf32>
    %cst_219 = arith.constant dense<0.000000e+00> : vector<8x64xf32>
    %748 = tpu.matmul %712, %6, %cst_219 {dimension_numbers = #tpu.dot_dimension_numbers<[1], [0], [0], [1], [0, 0, 1, 1], [], []>} : vector<8x32xf32>, vector<32x64xf32>, vector<8x64xf32> -> vector<8x64xf32>
    %749 = arith.addf %747, %748 : vector<8x64xf32>
    %750 = arith.addf %749, %20 : vector<8x64xf32>
    %751 = arith.negf %750 : vector<8x64xf32>
    %752 = math.exp %751 : vector<8x64xf32>
    %cst_220 = arith.constant 1.000000e+00 : f32
    %753 = vector.broadcast %cst_220 : f32 to vector<8x64xf32>
    %754 = arith.addf %753, %752 : vector<8x64xf32>
    %755 = arith.divf %753, %754 : vector<8x64xf32>
    %756 = vector.extract_strided_slice %755 {offsets = [0, 0], sizes = [8, 32], strides = [1, 1]} : vector<8x64xf32> to vector<8x32xf32>
    %757 = vector.extract_strided_slice %755 {offsets = [0, 32], sizes = [8, 32], strides = [1, 1]} : vector<8x64xf32> to vector<8x32xf32>
    %758 = vector.extract_strided_slice %746 {offsets = [0, 64], sizes = [8, 32], strides = [1, 1]} : vector<8x96xf32> to vector<8x32xf32>
    %759 = arith.mulf %757, %712 : vector<8x32xf32>
    %cst_221 = arith.constant dense<0.000000e+00> : vector<8x32xf32>
    %760 = tpu.matmul %759, %10, %cst_221 {dimension_numbers = #tpu.dot_dimension_numbers<[1], [0], [0], [1], [0, 0, 1, 1], [], []>} : vector<8x32xf32>, vector<32x32xf32>, vector<8x32xf32> -> vector<8x32xf32>
    %761 = arith.addf %758, %760 : vector<8x32xf32>
    %762 = arith.addf %761, %28 : vector<8x32xf32>
    %763 = math.tanh %762 : vector<8x32xf32>
    %764 = arith.mulf %756, %712 : vector<8x32xf32>
    %cst_222 = arith.constant 1.000000e+00 : f32
    %765 = vector.broadcast %cst_222 : f32 to vector<8x32xf32>
    %766 = arith.subf %765, %756 : vector<8x32xf32>
    %767 = arith.mulf %766, %763 : vector<8x32xf32>
    %768 = arith.addf %764, %767 : vector<8x32xf32>
    %769 = arith.select %722, %768, %712 : vector<8x32xf32>
    %770 = arith.index_cast %c12_i32 : i32 to index
    %c0_223 = arith.constant 0 : index
    %c0_224 = arith.constant 0 : index
    %771 = vector.load %arg9[%770, %c0_223, %c0_224] : memref<16x8x32xf32, #tpu.memory_space<vmem>>, vector<1x8x32xf32>
    %772 = vector.shape_cast %771 : vector<1x8x32xf32> to vector<8x32xf32>
    %773 = vector.shape_cast %769 : vector<8x32xf32> to vector<1x8x32xf32>
    tpu.vector_store %arg9[%770, %c0_223, %c0_224], %773 {strides = array<i32>} : memref<16x8x32xf32, #tpu.memory_space<vmem>>, vector<1x8x32xf32>,
    %c13_i32 = arith.constant 13 : i32
    %774 = arith.index_cast %c13_i32 : i32 to index
    %c0_225 = arith.constant 0 : index
    %c0_226 = arith.constant 0 : index
    %775 = vector.load %arg2[%774, %c0_225, %c0_226] : memref<16x8x96xf32, #tpu.memory_space<vmem>>, vector<1x8x96xf32>
    %776 = vector.shape_cast %775 : vector<1x8x96xf32> to vector<8x96xf32>
    %c16_i32_227 = arith.constant 16 : i32
    %777 = arith.muli %arg1, %c16_i32_227 : i32
    %778 = arith.addi %777, %c13_i32 : i32
    %c24_i32_228 = arith.constant 24 : i32
    %779 = arith.cmpi slt, %778, %c24_i32_228 : i32
    %780 = vector.extract_strided_slice %776 {offsets = [0, 0], sizes = [8, 64], strides = [1, 1]} : vector<8x96xf32> to vector<8x64xf32>
    %cst_229 = arith.constant dense<0.000000e+00> : vector<8x64xf32>
    %781 = tpu.matmul %745, %4, %cst_229 {dimension_numbers = #tpu.dot_dimension_numbers<[1], [0], [0], [1], [0, 0, 1, 1], [], []>} : vector<8x32xf32>, vector<32x64xf32>, vector<8x64xf32> -> vector<8x64xf32>
    %782 = arith.addf %780, %781 : vector<8x64xf32>
    %783 = arith.addf %782, %16 : vector<8x64xf32>
    %784 = arith.negf %783 : vector<8x64xf32>
    %785 = math.exp %784 : vector<8x64xf32>
    %cst_230 = arith.constant 1.000000e+00 : f32
    %786 = vector.broadcast %cst_230 : f32 to vector<8x64xf32>
    %787 = arith.addf %786, %785 : vector<8x64xf32>
    %788 = arith.divf %786, %787 : vector<8x64xf32>
    %789 = vector.extract_strided_slice %788 {offsets = [0, 0], sizes = [8, 32], strides = [1, 1]} : vector<8x64xf32> to vector<8x32xf32>
    %790 = vector.extract_strided_slice %788 {offsets = [0, 32], sizes = [8, 32], strides = [1, 1]} : vector<8x64xf32> to vector<8x32xf32>
    %791 = vector.extract_strided_slice %776 {offsets = [0, 64], sizes = [8, 32], strides = [1, 1]} : vector<8x96xf32> to vector<8x32xf32>
    %792 = arith.mulf %790, %745 : vector<8x32xf32>
    %cst_231 = arith.constant dense<0.000000e+00> : vector<8x32xf32>
    %793 = tpu.matmul %792, %8, %cst_231 {dimension_numbers = #tpu.dot_dimension_numbers<[1], [0], [0], [1], [0, 0, 1, 1], [], []>} : vector<8x32xf32>, vector<32x32xf32>, vector<8x32xf32> -> vector<8x32xf32>
    %794 = arith.addf %791, %793 : vector<8x32xf32>
    %795 = arith.addf %794, %24 : vector<8x32xf32>
    %796 = math.tanh %795 : vector<8x32xf32>
    %797 = arith.mulf %789, %745 : vector<8x32xf32>
    %cst_232 = arith.constant 1.000000e+00 : f32
    %798 = vector.broadcast %cst_232 : f32 to vector<8x32xf32>
    %799 = arith.subf %798, %789 : vector<8x32xf32>
    %800 = arith.mulf %799, %796 : vector<8x32xf32>
    %801 = arith.addf %797, %800 : vector<8x32xf32>
    %802 = arith.select %779, %801, %745 : vector<8x32xf32>
    %cst_233 = arith.constant dense<0.000000e+00> : vector<8x96xf32>
    %803 = tpu.matmul %802, %12, %cst_233 {dimension_numbers = #tpu.dot_dimension_numbers<[1], [0], [0], [1], [0, 0, 1, 1], [], []>} : vector<8x32xf32>, vector<32x96xf32>, vector<8x96xf32> -> vector<8x96xf32>
    %804 = vector.extract_strided_slice %803 {offsets = [0, 0], sizes = [8, 64], strides = [1, 1]} : vector<8x96xf32> to vector<8x64xf32>
    %cst_234 = arith.constant dense<0.000000e+00> : vector<8x64xf32>
    %805 = tpu.matmul %769, %6, %cst_234 {dimension_numbers = #tpu.dot_dimension_numbers<[1], [0], [0], [1], [0, 0, 1, 1], [], []>} : vector<8x32xf32>, vector<32x64xf32>, vector<8x64xf32> -> vector<8x64xf32>
    %806 = arith.addf %804, %805 : vector<8x64xf32>
    %807 = arith.addf %806, %20 : vector<8x64xf32>
    %808 = arith.negf %807 : vector<8x64xf32>
    %809 = math.exp %808 : vector<8x64xf32>
    %cst_235 = arith.constant 1.000000e+00 : f32
    %810 = vector.broadcast %cst_235 : f32 to vector<8x64xf32>
    %811 = arith.addf %810, %809 : vector<8x64xf32>
    %812 = arith.divf %810, %811 : vector<8x64xf32>
    %813 = vector.extract_strided_slice %812 {offsets = [0, 0], sizes = [8, 32], strides = [1, 1]} : vector<8x64xf32> to vector<8x32xf32>
    %814 = vector.extract_strided_slice %812 {offsets = [0, 32], sizes = [8, 32], strides = [1, 1]} : vector<8x64xf32> to vector<8x32xf32>
    %815 = vector.extract_strided_slice %803 {offsets = [0, 64], sizes = [8, 32], strides = [1, 1]} : vector<8x96xf32> to vector<8x32xf32>
    %816 = arith.mulf %814, %769 : vector<8x32xf32>
    %cst_236 = arith.constant dense<0.000000e+00> : vector<8x32xf32>
    %817 = tpu.matmul %816, %10, %cst_236 {dimension_numbers = #tpu.dot_dimension_numbers<[1], [0], [0], [1], [0, 0, 1, 1], [], []>} : vector<8x32xf32>, vector<32x32xf32>, vector<8x32xf32> -> vector<8x32xf32>
    %818 = arith.addf %815, %817 : vector<8x32xf32>
    %819 = arith.addf %818, %28 : vector<8x32xf32>
    %820 = math.tanh %819 : vector<8x32xf32>
    %821 = arith.mulf %813, %769 : vector<8x32xf32>
    %cst_237 = arith.constant 1.000000e+00 : f32
    %822 = vector.broadcast %cst_237 : f32 to vector<8x32xf32>
    %823 = arith.subf %822, %813 : vector<8x32xf32>
    %824 = arith.mulf %823, %820 : vector<8x32xf32>
    %825 = arith.addf %821, %824 : vector<8x32xf32>
    %826 = arith.select %779, %825, %769 : vector<8x32xf32>
    %827 = arith.index_cast %c13_i32 : i32 to index
    %c0_238 = arith.constant 0 : index
    %c0_239 = arith.constant 0 : index
    %828 = vector.load %arg9[%827, %c0_238, %c0_239] : memref<16x8x32xf32, #tpu.memory_space<vmem>>, vector<1x8x32xf32>
    %829 = vector.shape_cast %828 : vector<1x8x32xf32> to vector<8x32xf32>
    %830 = vector.shape_cast %826 : vector<8x32xf32> to vector<1x8x32xf32>
    tpu.vector_store %arg9[%827, %c0_238, %c0_239], %830 {strides = array<i32>} : memref<16x8x32xf32, #tpu.memory_space<vmem>>, vector<1x8x32xf32>,
    %c14_i32 = arith.constant 14 : i32
    %831 = arith.index_cast %c14_i32 : i32 to index
    %c0_240 = arith.constant 0 : index
    %c0_241 = arith.constant 0 : index
    %832 = vector.load %arg2[%831, %c0_240, %c0_241] : memref<16x8x96xf32, #tpu.memory_space<vmem>>, vector<1x8x96xf32>
    %833 = vector.shape_cast %832 : vector<1x8x96xf32> to vector<8x96xf32>
    %c16_i32_242 = arith.constant 16 : i32
    %834 = arith.muli %arg1, %c16_i32_242 : i32
    %835 = arith.addi %834, %c14_i32 : i32
    %c24_i32_243 = arith.constant 24 : i32
    %836 = arith.cmpi slt, %835, %c24_i32_243 : i32
    %837 = vector.extract_strided_slice %833 {offsets = [0, 0], sizes = [8, 64], strides = [1, 1]} : vector<8x96xf32> to vector<8x64xf32>
    %cst_244 = arith.constant dense<0.000000e+00> : vector<8x64xf32>
    %838 = tpu.matmul %802, %4, %cst_244 {dimension_numbers = #tpu.dot_dimension_numbers<[1], [0], [0], [1], [0, 0, 1, 1], [], []>} : vector<8x32xf32>, vector<32x64xf32>, vector<8x64xf32> -> vector<8x64xf32>
    %839 = arith.addf %837, %838 : vector<8x64xf32>
    %840 = arith.addf %839, %16 : vector<8x64xf32>
    %841 = arith.negf %840 : vector<8x64xf32>
    %842 = math.exp %841 : vector<8x64xf32>
    %cst_245 = arith.constant 1.000000e+00 : f32
    %843 = vector.broadcast %cst_245 : f32 to vector<8x64xf32>
    %844 = arith.addf %843, %842 : vector<8x64xf32>
    %845 = arith.divf %843, %844 : vector<8x64xf32>
    %846 = vector.extract_strided_slice %845 {offsets = [0, 0], sizes = [8, 32], strides = [1, 1]} : vector<8x64xf32> to vector<8x32xf32>
    %847 = vector.extract_strided_slice %845 {offsets = [0, 32], sizes = [8, 32], strides = [1, 1]} : vector<8x64xf32> to vector<8x32xf32>
    %848 = vector.extract_strided_slice %833 {offsets = [0, 64], sizes = [8, 32], strides = [1, 1]} : vector<8x96xf32> to vector<8x32xf32>
    %849 = arith.mulf %847, %802 : vector<8x32xf32>
    %cst_246 = arith.constant dense<0.000000e+00> : vector<8x32xf32>
    %850 = tpu.matmul %849, %8, %cst_246 {dimension_numbers = #tpu.dot_dimension_numbers<[1], [0], [0], [1], [0, 0, 1, 1], [], []>} : vector<8x32xf32>, vector<32x32xf32>, vector<8x32xf32> -> vector<8x32xf32>
    %851 = arith.addf %848, %850 : vector<8x32xf32>
    %852 = arith.addf %851, %24 : vector<8x32xf32>
    %853 = math.tanh %852 : vector<8x32xf32>
    %854 = arith.mulf %846, %802 : vector<8x32xf32>
    %cst_247 = arith.constant 1.000000e+00 : f32
    %855 = vector.broadcast %cst_247 : f32 to vector<8x32xf32>
    %856 = arith.subf %855, %846 : vector<8x32xf32>
    %857 = arith.mulf %856, %853 : vector<8x32xf32>
    %858 = arith.addf %854, %857 : vector<8x32xf32>
    %859 = arith.select %836, %858, %802 : vector<8x32xf32>
    %cst_248 = arith.constant dense<0.000000e+00> : vector<8x96xf32>
    %860 = tpu.matmul %859, %12, %cst_248 {dimension_numbers = #tpu.dot_dimension_numbers<[1], [0], [0], [1], [0, 0, 1, 1], [], []>} : vector<8x32xf32>, vector<32x96xf32>, vector<8x96xf32> -> vector<8x96xf32>
    %861 = vector.extract_strided_slice %860 {offsets = [0, 0], sizes = [8, 64], strides = [1, 1]} : vector<8x96xf32> to vector<8x64xf32>
    %cst_249 = arith.constant dense<0.000000e+00> : vector<8x64xf32>
    %862 = tpu.matmul %826, %6, %cst_249 {dimension_numbers = #tpu.dot_dimension_numbers<[1], [0], [0], [1], [0, 0, 1, 1], [], []>} : vector<8x32xf32>, vector<32x64xf32>, vector<8x64xf32> -> vector<8x64xf32>
    %863 = arith.addf %861, %862 : vector<8x64xf32>
    %864 = arith.addf %863, %20 : vector<8x64xf32>
    %865 = arith.negf %864 : vector<8x64xf32>
    %866 = math.exp %865 : vector<8x64xf32>
    %cst_250 = arith.constant 1.000000e+00 : f32
    %867 = vector.broadcast %cst_250 : f32 to vector<8x64xf32>
    %868 = arith.addf %867, %866 : vector<8x64xf32>
    %869 = arith.divf %867, %868 : vector<8x64xf32>
    %870 = vector.extract_strided_slice %869 {offsets = [0, 0], sizes = [8, 32], strides = [1, 1]} : vector<8x64xf32> to vector<8x32xf32>
    %871 = vector.extract_strided_slice %869 {offsets = [0, 32], sizes = [8, 32], strides = [1, 1]} : vector<8x64xf32> to vector<8x32xf32>
    %872 = vector.extract_strided_slice %860 {offsets = [0, 64], sizes = [8, 32], strides = [1, 1]} : vector<8x96xf32> to vector<8x32xf32>
    %873 = arith.mulf %871, %826 : vector<8x32xf32>
    %cst_251 = arith.constant dense<0.000000e+00> : vector<8x32xf32>
    %874 = tpu.matmul %873, %10, %cst_251 {dimension_numbers = #tpu.dot_dimension_numbers<[1], [0], [0], [1], [0, 0, 1, 1], [], []>} : vector<8x32xf32>, vector<32x32xf32>, vector<8x32xf32> -> vector<8x32xf32>
    %875 = arith.addf %872, %874 : vector<8x32xf32>
    %876 = arith.addf %875, %28 : vector<8x32xf32>
    %877 = math.tanh %876 : vector<8x32xf32>
    %878 = arith.mulf %870, %826 : vector<8x32xf32>
    %cst_252 = arith.constant 1.000000e+00 : f32
    %879 = vector.broadcast %cst_252 : f32 to vector<8x32xf32>
    %880 = arith.subf %879, %870 : vector<8x32xf32>
    %881 = arith.mulf %880, %877 : vector<8x32xf32>
    %882 = arith.addf %878, %881 : vector<8x32xf32>
    %883 = arith.select %836, %882, %826 : vector<8x32xf32>
    %884 = arith.index_cast %c14_i32 : i32 to index
    %c0_253 = arith.constant 0 : index
    %c0_254 = arith.constant 0 : index
    %885 = vector.load %arg9[%884, %c0_253, %c0_254] : memref<16x8x32xf32, #tpu.memory_space<vmem>>, vector<1x8x32xf32>
    %886 = vector.shape_cast %885 : vector<1x8x32xf32> to vector<8x32xf32>
    %887 = vector.shape_cast %883 : vector<8x32xf32> to vector<1x8x32xf32>
    tpu.vector_store %arg9[%884, %c0_253, %c0_254], %887 {strides = array<i32>} : memref<16x8x32xf32, #tpu.memory_space<vmem>>, vector<1x8x32xf32>,
    %c15_i32 = arith.constant 15 : i32
    %888 = arith.index_cast %c15_i32 : i32 to index
    %c0_255 = arith.constant 0 : index
    %c0_256 = arith.constant 0 : index
    %889 = vector.load %arg2[%888, %c0_255, %c0_256] : memref<16x8x96xf32, #tpu.memory_space<vmem>>, vector<1x8x96xf32>
    %890 = vector.shape_cast %889 : vector<1x8x96xf32> to vector<8x96xf32>
    %c16_i32_257 = arith.constant 16 : i32
    %891 = arith.muli %arg1, %c16_i32_257 : i32
    %892 = arith.addi %891, %c15_i32 : i32
    %c24_i32_258 = arith.constant 24 : i32
    %893 = arith.cmpi slt, %892, %c24_i32_258 : i32
    %894 = vector.extract_strided_slice %890 {offsets = [0, 0], sizes = [8, 64], strides = [1, 1]} : vector<8x96xf32> to vector<8x64xf32>
    %cst_259 = arith.constant dense<0.000000e+00> : vector<8x64xf32>
    %895 = tpu.matmul %859, %4, %cst_259 {dimension_numbers = #tpu.dot_dimension_numbers<[1], [0], [0], [1], [0, 0, 1, 1], [], []>} : vector<8x32xf32>, vector<32x64xf32>, vector<8x64xf32> -> vector<8x64xf32>
    %896 = arith.addf %894, %895 : vector<8x64xf32>
    %897 = arith.addf %896, %16 : vector<8x64xf32>
    %898 = arith.negf %897 : vector<8x64xf32>
    %899 = math.exp %898 : vector<8x64xf32>
    %cst_260 = arith.constant 1.000000e+00 : f32
    %900 = vector.broadcast %cst_260 : f32 to vector<8x64xf32>
    %901 = arith.addf %900, %899 : vector<8x64xf32>
    %902 = arith.divf %900, %901 : vector<8x64xf32>
    %903 = vector.extract_strided_slice %902 {offsets = [0, 0], sizes = [8, 32], strides = [1, 1]} : vector<8x64xf32> to vector<8x32xf32>
    %904 = vector.extract_strided_slice %902 {offsets = [0, 32], sizes = [8, 32], strides = [1, 1]} : vector<8x64xf32> to vector<8x32xf32>
    %905 = vector.extract_strided_slice %890 {offsets = [0, 64], sizes = [8, 32], strides = [1, 1]} : vector<8x96xf32> to vector<8x32xf32>
    %906 = arith.mulf %904, %859 : vector<8x32xf32>
    %cst_261 = arith.constant dense<0.000000e+00> : vector<8x32xf32>
    %907 = tpu.matmul %906, %8, %cst_261 {dimension_numbers = #tpu.dot_dimension_numbers<[1], [0], [0], [1], [0, 0, 1, 1], [], []>} : vector<8x32xf32>, vector<32x32xf32>, vector<8x32xf32> -> vector<8x32xf32>
    %908 = arith.addf %905, %907 : vector<8x32xf32>
    %909 = arith.addf %908, %24 : vector<8x32xf32>
    %910 = math.tanh %909 : vector<8x32xf32>
    %911 = arith.mulf %903, %859 : vector<8x32xf32>
    %cst_262 = arith.constant 1.000000e+00 : f32
    %912 = vector.broadcast %cst_262 : f32 to vector<8x32xf32>
    %913 = arith.subf %912, %903 : vector<8x32xf32>
    %914 = arith.mulf %913, %910 : vector<8x32xf32>
    %915 = arith.addf %911, %914 : vector<8x32xf32>
    %916 = arith.select %893, %915, %859 : vector<8x32xf32>
    %cst_263 = arith.constant dense<0.000000e+00> : vector<8x96xf32>
    %917 = tpu.matmul %916, %12, %cst_263 {dimension_numbers = #tpu.dot_dimension_numbers<[1], [0], [0], [1], [0, 0, 1, 1], [], []>} : vector<8x32xf32>, vector<32x96xf32>, vector<8x96xf32> -> vector<8x96xf32>
    %918 = vector.extract_strided_slice %917 {offsets = [0, 0], sizes = [8, 64], strides = [1, 1]} : vector<8x96xf32> to vector<8x64xf32>
    %cst_264 = arith.constant dense<0.000000e+00> : vector<8x64xf32>
    %919 = tpu.matmul %883, %6, %cst_264 {dimension_numbers = #tpu.dot_dimension_numbers<[1], [0], [0], [1], [0, 0, 1, 1], [], []>} : vector<8x32xf32>, vector<32x64xf32>, vector<8x64xf32> -> vector<8x64xf32>
    %920 = arith.addf %918, %919 : vector<8x64xf32>
    %921 = arith.addf %920, %20 : vector<8x64xf32>
    %922 = arith.negf %921 : vector<8x64xf32>
    %923 = math.exp %922 : vector<8x64xf32>
    %cst_265 = arith.constant 1.000000e+00 : f32
    %924 = vector.broadcast %cst_265 : f32 to vector<8x64xf32>
    %925 = arith.addf %924, %923 : vector<8x64xf32>
    %926 = arith.divf %924, %925 : vector<8x64xf32>
    %927 = vector.extract_strided_slice %926 {offsets = [0, 0], sizes = [8, 32], strides = [1, 1]} : vector<8x64xf32> to vector<8x32xf32>
    %928 = vector.extract_strided_slice %926 {offsets = [0, 32], sizes = [8, 32], strides = [1, 1]} : vector<8x64xf32> to vector<8x32xf32>
    %929 = vector.extract_strided_slice %917 {offsets = [0, 64], sizes = [8, 32], strides = [1, 1]} : vector<8x96xf32> to vector<8x32xf32>
    %930 = arith.mulf %928, %883 : vector<8x32xf32>
    %cst_266 = arith.constant dense<0.000000e+00> : vector<8x32xf32>
    %931 = tpu.matmul %930, %10, %cst_266 {dimension_numbers = #tpu.dot_dimension_numbers<[1], [0], [0], [1], [0, 0, 1, 1], [], []>} : vector<8x32xf32>, vector<32x32xf32>, vector<8x32xf32> -> vector<8x32xf32>
    %932 = arith.addf %929, %931 : vector<8x32xf32>
    %933 = arith.addf %932, %28 : vector<8x32xf32>
    %934 = math.tanh %933 : vector<8x32xf32>
    %935 = arith.mulf %927, %883 : vector<8x32xf32>
    %cst_267 = arith.constant 1.000000e+00 : f32
    %936 = vector.broadcast %cst_267 : f32 to vector<8x32xf32>
    %937 = arith.subf %936, %927 : vector<8x32xf32>
    %938 = arith.mulf %937, %934 : vector<8x32xf32>
    %939 = arith.addf %935, %938 : vector<8x32xf32>
    %940 = arith.select %893, %939, %883 : vector<8x32xf32>
    %941 = arith.index_cast %c15_i32 : i32 to index
    %c0_268 = arith.constant 0 : index
    %c0_269 = arith.constant 0 : index
    %942 = vector.load %arg9[%941, %c0_268, %c0_269] : memref<16x8x32xf32, #tpu.memory_space<vmem>>, vector<1x8x32xf32>
    %943 = vector.shape_cast %942 : vector<1x8x32xf32> to vector<8x32xf32>
    %944 = vector.shape_cast %940 : vector<8x32xf32> to vector<1x8x32xf32>
    tpu.vector_store %arg9[%941, %c0_268, %c0_269], %944 {strides = array<i32>} : memref<16x8x32xf32, #tpu.memory_space<vmem>>, vector<1x8x32xf32>,
    %c16_i32_270 = arith.constant 16 : i32
    %c0_271 = arith.constant 0 : index
    %c0_272 = arith.constant 0 : index
    %c0_273 = arith.constant 0 : index
    %945 = vector.load %arg10[%c0_271, %c0_272, %c0_273] : memref<2x8x32xf32, #tpu.memory_space<vmem>>, vector<1x8x32xf32>
    %946 = vector.shape_cast %945 : vector<1x8x32xf32> to vector<8x32xf32>
    %947 = vector.shape_cast %916 : vector<8x32xf32> to vector<1x8x32xf32>
    tpu.vector_store %arg10[%c0_271, %c0_272, %c0_273], %947 {strides = array<i32>} : memref<2x8x32xf32, #tpu.memory_space<vmem>>, vector<1x8x32xf32>,
    %c1_274 = arith.constant 1 : index
    %c0_275 = arith.constant 0 : index
    %c0_276 = arith.constant 0 : index
    %948 = vector.load %arg10[%c1_274, %c0_275, %c0_276] : memref<2x8x32xf32, #tpu.memory_space<vmem>>, vector<1x8x32xf32>
    %949 = vector.shape_cast %948 : vector<1x8x32xf32> to vector<8x32xf32>
    %950 = vector.shape_cast %940 : vector<8x32xf32> to vector<1x8x32xf32>
    tpu.vector_store %arg10[%c1_274, %c0_275, %c0_276], %950 {strides = array<i32>} : memref<2x8x32xf32, #tpu.memory_space<vmem>>, vector<1x8x32xf32>,
    return
  }
  func.func @transform_0(%arg0: i32, %arg1: i32) -> (i32, i32, i32) {
    %c0_i32 = arith.constant 0 : i32
    %c0_i32_0 = arith.constant 0 : i32
    return %arg1, %arg0, %c0_i32 : i32, i32, i32
  }
  func.func @transform_1(%arg0: i32, %arg1: i32) -> (i32, i32, i32) {
    %c0_i32 = arith.constant 0 : i32
    %c0_i32_0 = arith.constant 0 : i32
    %c0_i32_1 = arith.constant 0 : i32
    return %c0_i32, %arg0, %c0_i32_0 : i32, i32, i32
  }
  func.func @transform_2(%arg0: i32, %arg1: i32) -> (i32, i32, i32) {
    %c0_i32 = arith.constant 0 : i32
    %c0_i32_0 = arith.constant 0 : i32
    %c0_i32_1 = arith.constant 0 : i32
    %c0_i32_2 = arith.constant 0 : i32
    return %c0_i32, %c0_i32_0, %c0_i32_1 : i32, i32, i32
  }
  func.func @transform_3(%arg0: i32, %arg1: i32) -> (i32, i32, i32) {
    %c0_i32 = arith.constant 0 : i32
    %c0_i32_0 = arith.constant 0 : i32
    %c0_i32_1 = arith.constant 0 : i32
    %c0_i32_2 = arith.constant 0 : i32
    return %c0_i32, %c0_i32_0, %c0_i32_1 : i32, i32, i32
  }
  func.func @transform_4(%arg0: i32, %arg1: i32) -> (i32, i32, i32) {
    %c0_i32 = arith.constant 0 : i32
    %c0_i32_0 = arith.constant 0 : i32
    %c0_i32_1 = arith.constant 0 : i32
    %c0_i32_2 = arith.constant 0 : i32
    return %c0_i32, %c0_i32_0, %c0_i32_1 : i32, i32, i32
  }
  func.func @transform_5(%arg0: i32, %arg1: i32) -> (i32, i32, i32) {
    %c0_i32 = arith.constant 0 : i32
    %c0_i32_0 = arith.constant 0 : i32
    %c0_i32_1 = arith.constant 0 : i32
    %c0_i32_2 = arith.constant 0 : i32
    return %c0_i32, %c0_i32_0, %c0_i32_1 : i32, i32, i32
  }
  func.func @transform_6(%arg0: i32, %arg1: i32) -> (i32, i32, i32) {
    %c0_i32 = arith.constant 0 : i32
    %c0_i32_0 = arith.constant 0 : i32
    %c0_i32_1 = arith.constant 0 : i32
    %c0_i32_2 = arith.constant 0 : i32
    return %c0_i32, %c0_i32_0, %c0_i32_1 : i32, i32, i32
  }
  func.func @transform_7(%arg0: i32, %arg1: i32) -> (i32, i32, i32) {
    %c0_i32 = arith.constant 0 : i32
    %c0_i32_0 = arith.constant 0 : i32
    return %arg1, %arg0, %c0_i32 : i32, i32, i32
  }
  func.func @transform_8(%arg0: i32, %arg1: i32) -> (i32, i32, i32) {
    %c0_i32 = arith.constant 0 : i32
    %c0_i32_0 = arith.constant 0 : i32
    %c0_i32_1 = arith.constant 0 : i32
    return %c0_i32, %arg0, %c0_i32_0 : i32, i32, i32
  }
}

</mosaic_0001>

<llo_original>
// kernel: tpu_custom_call.1
$region0: #{tpu_custom_call.1}
  #allocation0 [shape = 'u32[]', space=smem, size = 0x4, offset = 0x4, fixed_abs, tag = 'smem constant byte address 0x4 - core index']
  #allocation1 [shape = 'u32[144,128]{1,0:T(1,128)}', space=vmem, size = 0x12000, scoped, tag = 'internal scratch']
  %s0 = inlined_call_operand.hbm [shape: f32[32,8,96], index: 0, kind: input, shape index: {}]
  %s1 = inlined_call_operand.hbm [shape: f32[2,8,32], index: 1, kind: input, shape index: {}]
  %s2 = inlined_call_operand.hbm [shape: f32[2,32,64], index: 2, kind: input, shape index: {}]
  %s3 = inlined_call_operand.hbm [shape: f32[2,32,32], index: 3, kind: input, shape index: {}]
  %s4 = inlined_call_operand.hbm [shape: f32[1,32,96], index: 4, kind: input, shape index: {}]
  %s5 = inlined_call_operand.vmem [shape: f32[2,1,64], index: 5, kind: input, shape index: {}]
  %s6 = inlined_call_operand.vmem [shape: f32[2,1,32], index: 6, kind: input, shape index: {}]
  %s7 = inlined_call_operand.hbm [shape: f32[32,8,32], index: 7, kind: output, shape index: {0}]
  %s8 = inlined_call_operand.hbm [shape: f32[2,8,32], index: 8, kind: output, shape index: {1}]
  %9 = xla_tuple %s7, %s8
  %s10 = sld [smem:[#allocation0]]
  $region93: #{tpu_custom_call.1} parent=0
    _
  %s12 = ssub.s32 1, %s10
  %s13 = scalar_select 0, %s12, %s10
  $region1: #{tpu_custom_call.1} parent=0
    #allocation2 [shape = 'u8[131072]{0}', space=vmem, size = 0x20000, scoped, tag = 'input window, operand 0']
    #allocation3 [shape = 's32[2]{0}', space=sflag, size = 0x8, scoped, tag = 'scoped memory for tpu_custom_call.1']
    #allocation4 [shape = 's32[2]{0}', space=sflag, size = 0x8, scoped, tag = 'scoped memory for tpu_custom_call.1']
    #allocation5 [shape = 'u8[8192]{0}', space=vmem, size = 0x2000, scoped, tag = 'input window, operand 1, single buffered']
    #allocation6 [shape = 's32[1]{0}', space=sflag, size = 0x4, scoped, tag = 'scoped memory for tpu_custom_call.1']
    #allocation7 [shape = 'u8[32768]{0}', space=vmem, size = 0x8000, scoped, tag = 'input window, operand 2, single buffered']
    #allocation8 [shape = 'u8[32768]{0}', space=vmem, size = 0x8000, scoped, tag = 'input window, operand 3, single buffered']
    #allocation9 [shape = 's32[1]{0}', space=sflag, size = 0x4, scoped, tag = 'scoped memory for tpu_custom_call.1']
    #allocation10 [shape = 'u8[16384]{0}', space=vmem, size = 0x4000, scoped, tag = 'input window, operand 4, single buffered']
    #allocation11 [shape = 'u8[131072]{0}', space=vmem, size = 0x20000, scoped, tag = 'output window, operand 0']
    #allocation12 [shape = 'u8[8192]{0}', space=vmem, size = 0x2000, scoped, tag = 'output window, operand 1, single buffered']
    #allocation13 [shape = 's32[1]{0}', space=sflag, size = 0x4, scoped, tag = 'scoped memory for tpu_custom_call.1']
    %14 = vsyncpa [#allocation3], 0
    %s15 = scalar_lea.sflag [#allocation3], 1
    %16 = vsyncpa %s15, 0
    %17 = vsyncpa [#allocation6], 0
    %18 = vsyncpa [#allocation9], 0
    %19 = vsyncpa [#allocation4], 0
    %s20 = scalar_lea.sflag [#allocation4], 1
    %21 = vsyncpa %s20, 0
    %22 = vsyncpa [#allocation13], 0
    loop: start=0, step=1, limit=4
    $region2: #{tpu_custom_call.1} parent=1 // loop_pre_header
      _
    $region3: #{tpu_custom_call.1} parent=1 // loop_header
      %s24 = sphi 0, %s28
      %p25 = scmp.ge.s32.totalorder %s24, 4
      %s31 = sphi 0, %s43
      %s32 = sphi 0, %s39
      %s33 = sphi 0, %s31
      %s34 = sphi 0, %s32
      %s35 = sphi 0, %s33
      %s36 = sphi 0, %s34
      %s48 = sphi 0, %s50
      %s51 = sphi 0, %s48
      %s52 = sphi 0, %s51
      %s68 = sphi 0, %s52
      %s74 = sphi 0, %s76
      %s77 = sphi 0, %s74
      %s78 = sphi 0, %s77
      %s94 = sphi 0, %s78
      %s98 = sphi 0, %s98
      %s100 = sphi 0, %s98
      %s101 = sphi 0, %s100
      %s115 = sphi 0, %s101
      %s119 = sphi 0, %s119
      %s121 = sphi 0, %s119
      %s122 = sphi 0, %s121
      %s136 = sphi 0, %s122
      %s140 = sphi 0, %s140
      %s142 = sphi 0, %s140
      %s143 = sphi 0, %s142
      %s157 = sphi 0, %s143
      %s161 = sphi 0, %s161
      %s163 = sphi 0, %s161
      %s164 = sphi 0, %s163
      %s178 = sphi 0, %s164
      %s182 = sphi 0, %s182
      %s184 = sphi 0, %s182
      %s185 = sphi 0, %s184
      %s199 = sphi 0, %s185
      %s207 = sphi 0, %s209
      %s210 = sphi 0, %s207
      %s211 = sphi 0, %s210
      %s227 = sphi 0, %s211
      %s233 = sphi 0, %s235
      %s236 = sphi 0, %s233
      %s237 = sphi 0, %s236
      %s253 = sphi 0, %s237
    $region4: #{tpu_custom_call.1} parent=1 // loop_header_branch
      %27 = sbr.rel (%p25) target = $region8
    $region5: #{tpu_custom_call.1} parent=1 // loop_body
      %s29 = ssub.s32 %s24, 1
      %s30 = ssub.s32 %s24, 2
      %s37 = sadd.s32 1, %s32
      %p38 = scmp.ge.s32.totalorder %s37, 2
      %s39 = scalar_select %p38, 0, %s37
      %s40 = sadd.s32 1, %s31
      %s41 = scalar_select %p38, %s40, %s31
      %p42 = scmp.ge.s32.totalorder %s41, 1
      %s43 = scalar_select %p42, 0, %s41
      %s44 = ssub.s32 %s32, %s39
      %s45 = ssub.s32 %s31, %s43
      %s46 = sor.u32 %s44, %s45
      %p47 = scmp.eq.s32.totalorder %s46, 0
      %s49 = sadd.s32 %s48, 1
      %s50 = scalar_select %p47, %s48, %s49
      %p53 = pneg %p47
      %p54 = scmp.eq.s32.totalorder %s24, 1
      %p55 = por %p53, %p54
      %p56 = scmp.ne.s32.totalorder %s48, %s51
      %p57 = scmp.eq.s32.totalorder %s24, 0
      %p58 = por %p56, %p57
      %p59 = scmp.ne.s32.totalorder %s48, %s51
      %p60 = scmp.eq.s32.totalorder %s29, 1
      %p61 = por %p59, %p60
      %p62 = scmp.ne.s32.totalorder %s51, %s52
      %p63 = scmp.eq.s32.totalorder %s29, 0
      %p64 = por %p62, %p63
      %p65 = scmp.ne.s32.totalorder %s51, %s52
      %p66 = scmp.eq.s32.totalorder %s30, 1
      %p67 = por %p65, %p66
      %p69 = scmp.ne.s32.totalorder %s52, %s68
      %p70 = scmp.eq.s32.totalorder %s30, 0
      %p71 = por %p69, %p70
      %s72 = ssub.s32 %s31, %s43
      %p73 = scmp.eq.s32.totalorder %s72, 0
      %s75 = sadd.s32 %s74, 1
      %s76 = scalar_select %p73, %s74, %s75
      %p79 = pneg %p73
      %p80 = scmp.eq.s32.totalorder %s24, 1
      %p81 = por %p79, %p80
      %p82 = scmp.ne.s32.totalorder %s74, %s77
      %p83 = scmp.eq.s32.totalorder %s24, 0
      %p84 = por %p82, %p83
      %p85 = scmp.ne.s32.totalorder %s74, %s77
      %p86 = scmp.eq.s32.totalorder %s29, 1
      %p87 = por %p85, %p86
      %p88 = scmp.ne.s32.totalorder %s77, %s78
      %p89 = scmp.eq.s32.totalorder %s29, 0
      %p90 = por %p88, %p89
      %p91 = scmp.ne.s32.totalorder %s77, %s78
      %p92 = scmp.eq.s32.totalorder %s30, 1
      %p93 = por %p91, %p92
      %p95 = scmp.ne.s32.totalorder %s78, %s94
      %p96 = scmp.eq.s32.totalorder %s30, 0
      %p97 = por %p95, %p96
      %s99 = sadd.s32 %s98, 1
      %p102 = scmp.eq.s32.totalorder %s24, 1
      %p103 = scmp.ne.s32.totalorder %s98, %s100
      %p104 = scmp.eq.s32.totalorder %s24, 0
      %p105 = por %p103, %p104
      %p106 = scmp.ne.s32.totalorder %s98, %s100
      %p107 = scmp.eq.s32.totalorder %s29, 1
      %p108 = por %p106, %p107
      %p109 = scmp.ne.s32.totalorder %s100, %s101
      %p110 = scmp.eq.s32.totalorder %s29, 0
      %p111 = por %p109, %p110
      %p112 = scmp.ne.s32.totalorder %s100, %s101
      %p113 = scmp.eq.s32.totalorder %s30, 1
      %p114 = por %p112, %p113
      %p116 = scmp.ne.s32.totalorder %s101, %s115
      %p117 = scmp.eq.s32.totalorder %s30, 0
      %p118 = por %p116, %p117
      %s120 = sadd.s32 %s119, 1
      %p123 = scmp.eq.s32.totalorder %s24, 1
      %p124 = scmp.ne.s32.totalorder %s119, %s121
      %p125 = scmp.eq.s32.totalorder %s24, 0
      %p126 = por %p124, %p125
      %p127 = scmp.ne.s32.totalorder %s119, %s121
      %p128 = scmp.eq.s32.totalorder %s29, 1
      %p129 = por %p127, %p128
      %p130 = scmp.ne.s32.totalorder %s121, %s122
      %p131 = scmp.eq.s32.totalorder %s29, 0
      %p132 = por %p130, %p131
      %p133 = scmp.ne.s32.totalorder %s121, %s122
      %p134 = scmp.eq.s32.totalorder %s30, 1
      %p135 = por %p133, %p134
      %p137 = scmp.ne.s32.totalorder %s122, %s136
      %p138 = scmp.eq.s32.totalorder %s30, 0
      %p139 = por %p137, %p138
      %s141 = sadd.s32 %s140, 1
      %p144 = scmp.eq.s32.totalorder %s24, 1
      %p145 = scmp.ne.s32.totalorder %s140, %s142
      %p146 = scmp.eq.s32.totalorder %s24, 0
      %p147 = por %p145, %p146
      %p148 = scmp.ne.s32.totalorder %s140, %s142
      %p149 = scmp.eq.s32.totalorder %s29, 1
      %p150 = por %p148, %p149
      %p151 = scmp.ne.s32.totalorder %s142, %s143
      %p152 = scmp.eq.s32.totalorder %s29, 0
      %p153 = por %p151, %p152
      %p154 = scmp.ne.s32.totalorder %s142, %s143
      %p155 = scmp.eq.s32.totalorder %s30, 1
      %p156 = por %p154, %p155
      %p158 = scmp.ne.s32.totalorder %s143, %s157
      %p159 = scmp.eq.s32.totalorder %s30, 0
      %p160 = por %p158, %p159
      %s162 = sadd.s32 %s161, 1
      %p165 = scmp.eq.s32.totalorder %s24, 1
      %p166 = scmp.ne.s32.totalorder %s161, %s163
      %p167 = scmp.eq.s32.totalorder %s24, 0
      %p168 = por %p166, %p167
      %p169 = scmp.ne.s32.totalorder %s161, %s163
      %p170 = scmp.eq.s32.totalorder %s29, 1
      %p171 = por %p169, %p170
      %p172 = scmp.ne.s32.totalorder %s163, %s164
      %p173 = scmp.eq.s32.totalorder %s29, 0
      %p174 = por %p172, %p173
      %p175 = scmp.ne.s32.totalorder %s163, %s164
      %p176 = scmp.eq.s32.totalorder %s30, 1
      %p177 = por %p175, %p176
      %p179 = scmp.ne.s32.totalorder %s164, %s178
      %p180 = scmp.eq.s32.totalorder %s30, 0
      %p181 = por %p179, %p180
      %s183 = sadd.s32 %s182, 1
      %p186 = scmp.eq.s32.totalorder %s24, 1
      %p187 = scmp.ne.s32.totalorder %s182, %s184
      %p188 = scmp.eq.s32.totalorder %s24, 0
      %p189 = por %p187, %p188
      %p190 = scmp.ne.s32.totalorder %s182, %s184
      %p191 = scmp.eq.s32.totalorder %s29, 1
      %p192 = por %p190, %p191
      %p193 = scmp.ne.s32.totalorder %s184, %s185
      %p194 = scmp.eq.s32.totalorder %s29, 0
      %p195 = por %p193, %p194
      %p196 = scmp.ne.s32.totalorder %s184, %s185
      %p197 = scmp.eq.s32.totalorder %s30, 1
      %p198 = por %p196, %p197
      %p200 = scmp.ne.s32.totalorder %s185, %s199
      %p201 = scmp.eq.s32.totalorder %s30, 0
      %p202 = por %p200, %p201
      %s203 = ssub.s32 %s32, %s39
      %s204 = ssub.s32 %s31, %s43
      %s205 = sor.u32 %s203, %s204
      %p206 = scmp.eq.s32.totalorder %s205, 0
      %s208 = sadd.s32 %s207, 1
      %s209 = scalar_select %p206, %s207, %s208
      %p212 = pneg %p206
      %p213 = scmp.eq.s32.totalorder %s24, 1
      %p214 = por %p212, %p213
      %p215 = scmp.ne.s32.totalorder %s207, %s210
      %p216 = scmp.eq.s32.totalorder %s24, 0
      %p217 = por %p215, %p216
      %p218 = scmp.ne.s32.totalorder %s207, %s210
      %p219 = scmp.eq.s32.totalorder %s29, 1
      %p220 = por %p218, %p219
      %p221 = scmp.ne.s32.totalorder %s210, %s211
      %p222 = scmp.eq.s32.totalorder %s29, 0
      %p223 = por %p221, %p222
      %p224 = scmp.ne.s32.totalorder %s210, %s211
      %p225 = scmp.eq.s32.totalorder %s30, 1
      %p226 = por %p224, %p225
      %p228 = scmp.ne.s32.totalorder %s211, %s227
      %p229 = scmp.eq.s32.totalorder %s30, 0
      %p230 = por %p228, %p229
      %s231 = ssub.s32 %s31, %s43
      %p232 = scmp.eq.s32.totalorder %s231, 0
      %s234 = sadd.s32 %s233, 1
      %s235 = scalar_select %p232, %s233, %s234
      %p238 = pneg %p232
      %p239 = scmp.eq.s32.totalorder %s24, 1
      %p240 = por %p238, %p239
      %p241 = scmp.ne.s32.totalorder %s233, %s236
      %p242 = scmp.eq.s32.totalorder %s24, 0
      %p243 = por %p241, %p242
      %p244 = scmp.ne.s32.totalorder %s233, %s236
      %p245 = scmp.eq.s32.totalorder %s29, 1
      %p246 = por %p244, %p245
      %p247 = scmp.ne.s32.totalorder %s236, %s237
      %p248 = scmp.eq.s32.totalorder %s29, 0
      %p249 = por %p247, %p248
      %p250 = scmp.ne.s32.totalorder %s236, %s237
      %p251 = scmp.eq.s32.totalorder %s30, 1
      %p252 = por %p250, %p251
      %p254 = scmp.ne.s32.totalorder %s237, %s253
      %p255 = scmp.eq.s32.totalorder %s30, 0
      %p256 = por %p254, %p255
      %p257 = scmp.le.s32.totalorder 1, %s24
      %p258 = scmp.lt.s32.totalorder %s24, 3
      %p259 = pnand %p257, %p258
      %p260 = pneg %p259
      // Predicated region
      $region9: #{tpu_custom_call.1} parent=5 // pred_check
        _
      $region10: #{tpu_custom_call.1} parent=5 // pred_check_branch
        %262 = sbr.rel (%p259) target = $region12
      $region11: #{tpu_custom_call.1} parent=5 // pred_region
        %s263 = ssub.s32 %s24, 1
        // Predicated region
        $region13: #{tpu_custom_call.1} parent=11 // pred_check
          %p264 = pneg %p90
        $region14: #{tpu_custom_call.1} parent=11 // pred_check_branch
          %266 = sbr.rel (%p264) target = $region16
        $region15: #{tpu_custom_call.1} parent=11 // pred_region
          %s268 = ssub.s32 256, 256
          %269 = vsyncadd [#allocation6], %s268
          %s270 = smul.addr %s33, 128
          %s271 = scalar_lea.hbm %s1, %s270
          %s272 = sshll.u32 [#allocation5], 4
          %s273 = int_to_ptr.vmem [resolvable:$true] %s272
          %278 = dma.hbm_to_vmem [thread:$0]  %s271, 256, %s273, [#allocation6], 128, 128, 8
        $region16: #{tpu_custom_call.1} parent=11 // pred_fallthru
          _
        // Predicated region
        $region17: #{tpu_custom_call.1} parent=11 // pred_check
          %p279 = pneg %p111
        $region18: #{tpu_custom_call.1} parent=11 // pred_check_branch
          %281 = sbr.rel (%p279) target = $region20
        $region19: #{tpu_custom_call.1} parent=11 // pred_region
          %s283 = ssub.s32 1024, 1024
          %284 = vsyncadd [#allocation6], %s283
          %s285 = sshll.u32 [#allocation7], 4
          %s286 = int_to_ptr.vmem [resolvable:$true] %s285
          %291 = dma.hbm_to_vmem [thread:$0]  %s2, 1024, %s286, [#allocation6], 128, 128, 8
        $region20: #{tpu_custom_call.1} parent=11 // pred_fallthru
          _
        // Predicated region
        $region21: #{tpu_custom_call.1} parent=11 // pred_check
          %p292 = pneg %p132
        $region22: #{tpu_custom_call.1} parent=11 // pred_check_branch
          %294 = sbr.rel (%p292) target = $region24
        $region23: #{tpu_custom_call.1} parent=11 // pred_region
          %s296 = ssub.s32 1024, 1024
          %297 = vsyncadd [#allocation9], %s296
          %s298 = sshll.u32 [#allocation8], 4
          %s299 = int_to_ptr.vmem [resolvable:$true] %s298
          %304 = dma.hbm_to_vmem [thread:$0]  %s3, 1024, %s299, [#allocation9], 128, 128, 8
        $region24: #{tpu_custom_call.1} parent=11 // pred_fallthru
          _
        // Predicated region
        $region25: #{tpu_custom_call.1} parent=11 // pred_check
          %p305 = pneg %p153
        $region26: #{tpu_custom_call.1} parent=11 // pred_check_branch
          %307 = sbr.rel (%p305) target = $region28
        $region27: #{tpu_custom_call.1} parent=11 // pred_region
          %s309 = ssub.s32 512, 512
          %310 = vsyncadd [#allocation9], %s309
          %s311 = sshll.u32 [#allocation10], 4
          %s312 = int_to_ptr.vmem [resolvable:$true] %s311
          %317 = dma.hbm_to_vmem [thread:$0]  %s4, 512, %s312, [#allocation9], 128, 128, 8
        $region28: #{tpu_custom_call.1} parent=11 // pred_fallthru
          _
        // Predicated region
        $region29: #{tpu_custom_call.1} parent=11 // pred_check
          %p318 = pneg %p174
        $region30: #{tpu_custom_call.1} parent=11 // pred_check_branch
          %320 = sbr.rel (%p318) target = $region32
        $region31: #{tpu_custom_call.1} parent=11 // pred_region
          _
        $region32: #{tpu_custom_call.1} parent=11 // pred_fallthru
          _
        // Predicated region
        $region33: #{tpu_custom_call.1} parent=11 // pred_check
          %p321 = pneg %p195
        $region34: #{tpu_custom_call.1} parent=11 // pred_check_branch
          %323 = sbr.rel (%p321) target = $region36
        $region35: #{tpu_custom_call.1} parent=11 // pred_region
          _
        $region36: #{tpu_custom_call.1} parent=11 // pred_fallthru
          _
      $region12: #{tpu_custom_call.1} parent=5 // pred_fallthru
        _
      %p324 = scmp.lt.s32.totalorder %s24, 2
      // Predicated region
      $region37: #{tpu_custom_call.1} parent=5 // pred_check
        %p325 = pneg %p324
      $region38: #{tpu_custom_call.1} parent=5 // pred_check_branch
        %327 = sbr.rel (%p325) target = $region40
      $region39: #{tpu_custom_call.1} parent=5 // pred_region
        // Predicated region
        $region41: #{tpu_custom_call.1} parent=39 // pred_check
          %p328 = pneg %p58
        $region42: #{tpu_custom_call.1} parent=39 // pred_check_branch
          %330 = sbr.rel (%p328) target = $region44
        $region43: #{tpu_custom_call.1} parent=39 // pred_region
          %s331 = sand.u32 %s48, 1
          %s332 = scalar_lea.sflag [#allocation3], %s331
          %s333 = sand.u32 %s48, 1
          %s334 = smul.addr %s333, 128
          %s335 = scalar_lea.vmem [#allocation2], %s334
          %s336 = smul.u32 16, %s32
          %s338 = ssub.s32 2048, 2048
          %339 = vsyncadd %s332, %s338
          %s340 = sadd.s32 %s31, %s336
          %s341 = smul.addr %s340, 128
          %s342 = scalar_lea.hbm %s0, %s341
          %s343 = sshll.u32 %s335, 4
          %s344 = int_to_ptr.vmem [resolvable:$true] %s343
          %349 = dma.hbm_to_vmem [thread:$0]  %s342, 2048, %s344, %s332, 128, 128, 8
        $region44: #{tpu_custom_call.1} parent=39 // pred_fallthru
          _
      $region40: #{tpu_custom_call.1} parent=5 // pred_fallthru
        _
      %p350 = scmp.le.s32.totalorder 1, %s24
      %p351 = scmp.lt.s32.totalorder %s24, 3
      %p352 = pnand %p350, %p351
      %p353 = pneg %p352
      // Predicated region
      $region45: #{tpu_custom_call.1} parent=5 // pred_check
        _
      $region46: #{tpu_custom_call.1} parent=5 // pred_check_branch
        %355 = sbr.rel (%p352) target = $region48
      $region47: #{tpu_custom_call.1} parent=5 // pred_region
        %s356 = ssub.s32 %s24, 1
        %s357 = sand.u32 %s51, 1
        %s358 = scalar_lea.sflag [#allocation3], %s357
        %s359 = sand.u32 %s51, 1
        %s360 = smul.addr %s359, 128
        %s361 = scalar_lea.vmem [#allocation2], %s360
        // Predicated region
        $region49: #{tpu_custom_call.1} parent=47 // pred_check
          %p362 = pneg %p64
        $region50: #{tpu_custom_call.1} parent=47 // pred_check_branch
          %364 = sbr.rel (%p362) target = $region52
        $region51: #{tpu_custom_call.1} parent=47 // pred_region
          %365 = dma.done %s358, 2048
        $region52: #{tpu_custom_call.1} parent=47 // pred_fallthru
          _
        // Predicated region
        $region53: #{tpu_custom_call.1} parent=47 // pred_check
          %p366 = pneg %p90
        $region54: #{tpu_custom_call.1} parent=47 // pred_check_branch
          %368 = sbr.rel (%p366) target = $region56
        $region55: #{tpu_custom_call.1} parent=47 // pred_region
          %369 = dma.done [#allocation6], 256
        $region56: #{tpu_custom_call.1} parent=47 // pred_fallthru
          _
        // Predicated region
        $region57: #{tpu_custom_call.1} parent=47 // pred_check
          %p370 = pneg %p111
        $region58: #{tpu_custom_call.1} parent=47 // pred_check_branch
          %372 = sbr.rel (%p370) target = $region60
        $region59: #{tpu_custom_call.1} parent=47 // pred_region
          %373 = dma.done [#allocation6], 1024
        $region60: #{tpu_custom_call.1} parent=47 // pred_fallthru
          _
        // Predicated region
        $region61: #{tpu_custom_call.1} parent=47 // pred_check
          %p374 = pneg %p132
        $region62: #{tpu_custom_call.1} parent=47 // pred_check_branch
          %376 = sbr.rel (%p374) target = $region64
        $region63: #{tpu_custom_call.1} parent=47 // pred_region
          %377 = dma.done [#allocation9], 1024
        $region64: #{tpu_custom_call.1} parent=47 // pred_fallthru
          _
        // Predicated region
        $region65: #{tpu_custom_call.1} parent=47 // pred_check
          %p378 = pneg %p153
        $region66: #{tpu_custom_call.1} parent=47 // pred_check_branch
          %380 = sbr.rel (%p378) target = $region68
        $region67: #{tpu_custom_call.1} parent=47 // pred_region
          %381 = dma.done [#allocation9], 512
        $region68: #{tpu_custom_call.1} parent=47 // pred_fallthru
          _
        %s382 = sand.u32 %s51, 1
        %s383 = scalar_lea.sflag [#allocation3], %s382
        %s384 = sand.u32 %s51, 1
        %s385 = smul.addr %s384, 128
        %s386 = scalar_lea.vmem [#allocation2], %s385
        %p387 = pneg %p64
        %p388 = pneg %p61
        %p389 = pneg %p90
        %p390 = pneg %p87
        %p391 = pneg %p111
        %p392 = pneg %p108
        %p393 = pneg %p132
        %p394 = pneg %p129
        %p395 = pneg %p153
        %p396 = pneg %p150
        %p397 = pneg %p174
        %p398 = pneg %p171
        %p399 = pneg %p195
        %p400 = pneg %p192
        %p401 = pneg %p223
        %p402 = pneg %p220
        %s403 = sand.u32 %s210, 1
        %s404 = scalar_lea.sflag [#allocation4], %s403
        %s405 = sand.u32 %s210, 1
        %s406 = smul.addr %s405, 128
        %s407 = scalar_lea.vmem [#allocation11], %s406
        %p408 = pneg %p249
        %p409 = pneg %p246
        %s410 = smul.u32 16, %s34
        %s411 = smul.u32 16, %s34
        %p412 = scmp.eq.s32.totalorder %s34, 0
        // Predicated region
        $region69: #{tpu_custom_call.1} parent=47 // pred_check
          %p413 = pneg %p412
        $region70: #{tpu_custom_call.1} parent=47 // pred_check_branch
          %415 = sbr.rel (%p413) target = $region72
        $region71: #{tpu_custom_call.1} parent=47 // pred_region
          %v416 = vld [vmem:[#allocation5] sm:$0xff]
          %v417 = vld [vmem:[#allocation5 + $0x8] sm:$0xff]
          %vm418 = vcmask 261120
          %419 = vst.msk [vmem:[#allocation12] sm:$0xff] %vm418, %v416
          %420 = vst.msk [vmem:[#allocation12 + $0x8] sm:$0xff] %vm418, %v417
        $region72: #{tpu_custom_call.1} parent=47 // pred_fallthru
          _
        %v421 = vld [vmem:[#allocation7] sm:$0xff]
        %v422 = vld [vmem:[#allocation7 + $0x8] sm:$0xff]
        %v423 = vld [vmem:[#allocation7 + $0x10] sm:$0xff]
        %v424 = vld [vmem:[#allocation7 + $0x18] sm:$0xff]
        %s425 = scalar_lea.vmem [#allocation7], 32
        %v426 = vld [vmem:[%s425] sm:$0xff]
        %v427 = vld [vmem:[%s425 + $0x8] sm:$0xff]
        %v428 = vld [vmem:[%s425 + $0x10] sm:$0xff]
        %v429 = vld [vmem:[%s425 + $0x18] sm:$0xff]
        %v430 = vld [vmem:[#allocation8] sm:$0xff]
        %v431 = vld [vmem:[#allocation8 + $0x8] sm:$0xff]
        %v432 = vld [vmem:[#allocation8 + $0x10] sm:$0xff]
        %v433 = vld [vmem:[#allocation8 + $0x18] sm:$0xff]
        %s434 = scalar_lea.vmem [#allocation8], 32
        %v435 = vld [vmem:[%s434] sm:$0xff]
        %v436 = vld [vmem:[%s434 + $0x8] sm:$0xff]
        %v437 = vld [vmem:[%s434 + $0x10] sm:$0xff]
        %v438 = vld [vmem:[%s434 + $0x18] sm:$0xff]
        %v439 = vld [vmem:[#allocation10] sm:$0xff]
        %v440 = vld [vmem:[#allocation10 + $0x8] sm:$0xff]
        %v441 = vld [vmem:[#allocation10 + $0x10] sm:$0xff]
        %v442 = vld [vmem:[#allocation10 + $0x18] sm:$0xff]
        %v443 = vld [vmem:[%s5] sm:$0x1]
        %v445 = vlaneseq
        %v446 = vshrl.u32 %v445, 7
        %v447 = vsub.s32 0, %v446
        %v448 = vrot.slane %v443, %v447
        %s450 = scalar_lea.vmem %s5, 1
        %v451 = vld [vmem:[%s450] sm:$0x1]
        %v453 = vlaneseq
        %v454 = vshrl.u32 %v453, 7
        %v455 = vsub.s32 0, %v454
        %v456 = vrot.slane %v451, %v455
        %v458 = vld [vmem:[%s6] sm:$0x1]
        %v460 = vlaneseq
        %v461 = vshrl.u32 %v460, 7
        %v462 = vsub.s32 0, %v461
        %v463 = vrot.slane %v458, %v462
        %s464 = scalar_lea.vmem %s6, 1
        %v465 = vld [vmem:[%s464] sm:$0x1]
        %v467 = vlaneseq
        %v468 = vshrl.u32 %v467, 7
        %v469 = vsub.s32 0, %v468
        %v470 = vrot.slane %v465, %v469
        %v471 = vld [vmem:[#allocation12] sm:$0xff]
        %s472 = scalar_lea.vmem [#allocation12], 8
        %v473 = vld [vmem:[%s472] sm:$0xff]
        %v474 = vld [vmem:[%s361] sm:$0xff]
        %s475 = smul.u32 %s34, 16
        %p476 = scmp.lt.s32.totalorder %s475, 24
        %vm477 = vcmask 261120
        %v479 = vsel %vm477, %v471, 0
        %481 = vmatprep.subr.mxu0 0.0
        %482 = vmatpush1.msra.mxu0 %v421
        %483 = vmatprep.subr.mxu0 0.0
        %484 = vmatpush1.msra.mxu0 %v422
        %485 = vmatprep.subr.mxu0 0.0
        %486 = vmatpush1.msra.mxu0 %v423
        %487 = vmatprep.subr.mxu0 0.0
        %488 = vmatpush1.msra.mxu0 %v424
        %489 = vmatprep.subr.mxu0 0.0
        %490 = vmatpush1.msra.mxu0 0.0
        %491 = vmatprep.subr.mxu0 0.0
        %492 = vmatpush1.msra.mxu0 0.0
        %493 = vmatprep.subr.mxu0 0.0
        %494 = vmatpush1.msra.mxu0 0.0
        %495 = vmatprep.subr.mxu0 0.0
        %496 = vmatpush1.msra.mxu0 0.0
        %497 = vmatprep.subr.mxu0 0.0
        %498 = vmatpush1.msra.mxu0 0.0
        %499 = vmatprep.subr.mxu0 0.0
        %500 = vmatpush1.msra.mxu0 0.0
        %501 = vmatprep.subr.mxu0 0.0
        %502 = vmatpush1.msra.mxu0 0.0
        %503 = vmatprep.subr.mxu0 0.0
        %504 = vmatpush1.msra.mxu0 0.0
        %505 = vmatprep.subr.mxu0 0.0
        %506 = vmatpush1.msra.mxu0 0.0
        %507 = vmatprep.subr.mxu0 0.0
        %508 = vmatpush1.msra.mxu0 0.0
        %509 = vmatprep.subr.mxu0 0.0
        %510 = vmatpush1.msra.mxu0 0.0
        %511 = vmatprep.subr.mxu0 0.0
        %512 = vmatpush1.msra.mxu0 0.0
        %513 = vmatprep.subr.mxu0 0.0
        %514 = vmatpush1.msra.mxu0 0.0
        %515 = vmatprep.subr.mxu0 0.0
        %516 = vmatpush1.msra.mxu0 0.0
        %517 = vmatprep.subr.mxu0 0.0
        %518 = vmatpush1.msra.mxu0 0.0
        %519 = vmatprep.subr.mxu0 0.0
        %520 = vmatpush1.msra.mxu0 0.0
        %521 = vmatprep.subr.mxu0 0.0
        %522 = vmatpush1.msra.mxu0 0.0
        %523 = vmatprep.subr.mxu0 0.0
        %524 = vmatpush1.msra.mxu0 0.0
        %525 = vmatprep.subr.mxu0 0.0
        %526 = vmatpush1.msra.mxu0 0.0
        %527 = vmatprep.subr.mxu0 0.0
        %528 = vmatpush1.msra.mxu0 0.0
        %529 = vmatprep.subr.mxu0 0.0
        %530 = vmatpush1.msra.mxu0 0.0
        %531 = vmatprep.subr.mxu0 0.0
        %532 = vmatpush1.msra.mxu0 0.0
        %533 = vmatprep.subr.mxu0 0.0
        %534 = vmatpush1.msra.mxu0 0.0
        %535 = vmatprep.subr.mxu0 0.0
        %536 = vmatpush1.msra.mxu0 0.0
        %537 = vmatprep.subr.mxu0 0.0
        %538 = vmatpush1.msra.mxu0 0.0
        %539 = vmatprep.subr.mxu0 0.0
        %540 = vmatpush1.msra.mxu0 0.0
        %541 = vmatprep.subr.mxu0 0.0
        %542 = vmatpush1.msra.mxu0 0.0
        %543 = vmatprep.subr.mxu0 0.0
        %544 = vmatpush1.msra.mxu0 0.0
        %545 = vmatprep.mubr.f32.mxu0 0.0
        %546 = vmatmul.mubr.f32.gmra.mrb[0].mxu0 %v479
        %v547 = vpop.f32.mrb[0].mxu0
        %v548 = vadd.f32 0.0, %v547
        %v549 = vpop.f32.mrb[0].mxu0
        %550 = vdwg.mxu0
        %v551 = vadd.f32 %v474, %v548
        %v552 = vadd.f32 %v551, %v448
        %v553 = vxor.u32 %v552, 2147483648
        %v554 = vmul.f32 %v553, 1.442695
        %v555 = vpow.pop %v554
        %v556 = vadd.f32 %v555, 1.0
        %v557 = vrcp.pop %v556
        %v558 = vmul.f32 1.0, %v557
        %559 = vrot.lane.b32.xlu0 %v471, 32
        %v560 = vpop.permute.xlu0 %559
        %v562 = vmul.f32 %v558, %v560
        %564 = vrot.lane.b32.xlu0 %v562, 96
        %v565 = vpop.permute.xlu0 %564
        %v566 = vsel %vm477, %v565, 0
        %568 = vmatprep.subr.mxu0 0.0
        %569 = vmatpush1.msra.mxu0 %v430
        %570 = vmatprep.subr.mxu0 0.0
        %571 = vmatpush1.msra.mxu0 %v431
        %572 = vmatprep.subr.mxu0 0.0
        %573 = vmatpush1.msra.mxu0 %v432
        %574 = vmatprep.subr.mxu0 0.0
        %575 = vmatpush1.msra.mxu0 %v433
        %576 = vmatprep.subr.mxu0 0.0
        %577 = vmatpush1.msra.mxu0 0.0
        %578 = vmatprep.subr.mxu0 0.0
        %579 = vmatpush1.msra.mxu0 0.0
        %580 = vmatprep.subr.mxu0 0.0
        %581 = vmatpush1.msra.mxu0 0.0
        %582 = vmatprep.subr.mxu0 0.0
        %583 = vmatpush1.msra.mxu0 0.0
        %584 = vmatprep.subr.mxu0 0.0
        %585 = vmatpush1.msra.mxu0 0.0
        %586 = vmatprep.subr.mxu0 0.0
        %587 = vmatpush1.msra.mxu0 0.0
        %588 = vmatprep.subr.mxu0 0.0
        %589 = vmatpush1.msra.mxu0 0.0
        %590 = vmatprep.subr.mxu0 0.0
        %591 = vmatpush1.msra.mxu0 0.0
        %592 = vmatprep.subr.mxu0 0.0
        %593 = vmatpush1.msra.mxu0 0.0
        %594 = vmatprep.subr.mxu0 0.0
        %595 = vmatpush1.msra.mxu0 0.0
        %596 = vmatprep.subr.mxu0 0.0
        %597 = vmatpush1.msra.mxu0 0.0
        %598 = vmatprep.subr.mxu0 0.0
        %599 = vmatpush1.msra.mxu0 0.0
        %600 = vmatprep.subr.mxu0 0.0
        %601 = vmatpush1.msra.mxu0 0.0
        %602 = vmatprep.subr.mxu0 0.0
        %603 = vmatpush1.msra.mxu0 0.0
        %604 = vmatprep.subr.mxu0 0.0
        %605 = vmatpush1.msra.mxu0 0.0
        %606 = vmatprep.subr.mxu0 0.0
        %607 = vmatpush1.msra.mxu0 0.0
        %608 = vmatprep.subr.mxu0 0.0
        %609 = vmatpush1.msra.mxu0 0.0
        %610 = vmatprep.subr.mxu0 0.0
        %611 = vmatpush1.msra.mxu0 0.0
        %612 = vmatprep.subr.mxu0 0.0
        %613 = vmatpush1.msra.mxu0 0.0
        %614 = vmatprep.subr.mxu0 0.0
        %615 = vmatpush1.msra.mxu0 0.0
        %616 = vmatprep.subr.mxu0 0.0
        %617 = vmatpush1.msra.mxu0 0.0
        %618 = vmatprep.subr.mxu0 0.0
        %619 = vmatpush1.msra.mxu0 0.0
        %620 = vmatprep.subr.mxu0 0.0
        %621 = vmatpush1.msra.mxu0 0.0
        %622 = vmatprep.subr.mxu0 0.0
        %623 = vmatpush1.msra.mxu0 0.0
        %624 = vmatprep.subr.mxu0 0.0
        %625 = vmatpush1.msra.mxu0 0.0
        %626 = vmatprep.subr.mxu0 0.0
        %627 = vmatpush1.msra.mxu0 0.0
        %628 = vmatprep.subr.mxu0 0.0
        %629 = vmatpush1.msra.mxu0 0.0
        %630 = vmatprep.subr.mxu0 0.0
        %631 = vmatpush1.msra.mxu0 0.0
        %632 = vmatprep.mubr.f32.mxu0 0.0
        %633 = vmatmul.mubr.f32.gmra.mrb[0].mxu0 %v566
        %v634 = vpop.f32.mrb[0].mxu0
        %v635 = vadd.f32 0.0, %v634
        %v636 = vpop.f32.mrb[0].mxu0
        %637 = vdwg.mxu0
        %639 = vrot.lane.b32.xlu0 %v635, 64
        %v640 = vpop.permute.xlu0 %639
        %v642 = vadd.f32 %v474, %v640
        %643 = vrot.lane.b32.xlu0 %v463, 64
        %v644 = vpop.permute.xlu0 %643
        %v646 = vadd.f32 %v642, %v644
        %v647 = vtanh.pop %v646
        %v648 = vmul.f32 %v558, %v471
        %v649 = vsub.f32 1.0, %v558
        %651 = vrot.lane.b32.xlu0 %v647, 64
        %v652 = vpop.permute.xlu0 %651
        %v654 = vmul.f32 %v649, %v652
        %v655 = vadd.f32 %v648, %v654
        %s656 = scalar_select %p476, 1, 0
        %v657 = vstv %s656
        %vm658 = vcmp.eq.s32.totalorder %v657, 1
        %v659 = vsel %vm658, %v655, %v471
        %v661 = vsel %vm477, %v659, 0
        %663 = vmatprep.subr.mxu0 0.0
        %664 = vmatpush1.msra.mxu0 %v439
        %665 = vmatprep.subr.mxu0 0.0
        %666 = vmatpush1.msra.mxu0 %v440
        %667 = vmatprep.subr.mxu0 0.0
        %668 = vmatpush1.msra.mxu0 %v441
        %669 = vmatprep.subr.mxu0 0.0
        %670 = vmatpush1.msra.mxu0 %v442
        %671 = vmatprep.subr.mxu0 0.0
        %672 = vmatpush1.msra.mxu0 0.0
        %673 = vmatprep.subr.mxu0 0.0
        %674 = vmatpush1.msra.mxu0 0.0
        %675 = vmatprep.subr.mxu0 0.0
        %676 = vmatpush1.msra.mxu0 0.0
        %677 = vmatprep.subr.mxu0 0.0
        %678 = vmatpush1.msra.mxu0 0.0
        %679 = vmatprep.subr.mxu0 0.0
        %680 = vmatpush1.msra.mxu0 0.0
        %681 = vmatprep.subr.mxu0 0.0
        %682 = vmatpush1.msra.mxu0 0.0
        %683 = vmatprep.subr.mxu0 0.0
        %684 = vmatpush1.msra.mxu0 0.0
        %685 = vmatprep.subr.mxu0 0.0
        %686 = vmatpush1.msra.mxu0 0.0
        %687 = vmatprep.subr.mxu0 0.0
        %688 = vmatpush1.msra.mxu0 0.0
        %689 = vmatprep.subr.mxu0 0.0
        %690 = vmatpush1.msra.mxu0 0.0
        %691 = vmatprep.subr.mxu0 0.0
        %692 = vmatpush1.msra.mxu0 0.0
        %693 = vmatprep.subr.mxu0 0.0
        %694 = vmatpush1.msra.mxu0 0.0
        %695 = vmatprep.subr.mxu0 0.0
        %696 = vmatpush1.msra.mxu0 0.0
        %697 = vmatprep.subr.mxu0 0.0
        %698 = vmatpush1.msra.mxu0 0.0
        %699 = vmatprep.subr.mxu0 0.0
        %700 = vmatpush1.msra.mxu0 0.0
        %701 = vmatprep.subr.mxu0 0.0
        %702 = vmatpush1.msra.mxu0 0.0
        %703 = vmatprep.subr.mxu0 0.0
        %704 = vmatpush1.msra.mxu0 0.0
        %705 = vmatprep.subr.mxu0 0.0
        %706 = vmatpush1.msra.mxu0 0.0
        %707 = vmatprep.subr.mxu0 0.0
        %708 = vmatpush1.msra.mxu0 0.0
        %709 = vmatprep.subr.mxu0 0.0
        %710 = vmatpush1.msra.mxu0 0.0
        %711 = vmatprep.subr.mxu0 0.0
        %712 = vmatpush1.msra.mxu0 0.0
        %713 = vmatprep.subr.mxu0 0.0
        %714 = vmatpush1.msra.mxu0 0.0
        %715 = vmatprep.subr.mxu0 0.0
        %716 = vmatpush1.msra.mxu0 0.0
        %717 = vmatprep.subr.mxu0 0.0
        %718 = vmatpush1.msra.mxu0 0.0
        %719 = vmatprep.subr.mxu0 0.0
        %720 = vmatpush1.msra.mxu0 0.0
        %721 = vmatprep.subr.mxu0 0.0
        %722 = vmatpush1.msra.mxu0 0.0
        %723 = vmatprep.subr.mxu0 0.0
        %724 = vmatpush1.msra.mxu0 0.0
        %725 = vmatprep.subr.mxu0 0.0
        %726 = vmatpush1.msra.mxu0 0.0
        %727 = vmatprep.mubr.f32.mxu0 0.0
        %728 = vmatmul.mubr.f32.gmra.mrb[0].mxu0 %v661
        %v729 = vpop.f32.mrb[0].mxu0
        %v730 = vadd.f32 0.0, %v729
        %v731 = vpop.f32.mrb[0].mxu0
        %732 = vdwg.mxu0
        %v734 = vsel %vm477, %v473, 0
        %736 = vmatprep.subr.mxu0 0.0
        %737 = vmatpush1.msra.mxu0 %v426
        %738 = vmatprep.subr.mxu0 0.0
        %739 = vmatpush1.msra.mxu0 %v427
        %740 = vmatprep.subr.mxu0 0.0
        %741 = vmatpush1.msra.mxu0 %v428
        %742 = vmatprep.subr.mxu0 0.0
        %743 = vmatpush1.msra.mxu0 %v429
        %744 = vmatprep.subr.mxu0 0.0
        %745 = vmatpush1.msra.mxu0 0.0
        %746 = vmatprep.subr.mxu0 0.0
        %747 = vmatpush1.msra.mxu0 0.0
        %748 = vmatprep.subr.mxu0 0.0
        %749 = vmatpush1.msra.mxu0 0.0
        %750 = vmatprep.subr.mxu0 0.0
        %751 = vmatpush1.msra.mxu0 0.0
        %752 = vmatprep.subr.mxu0 0.0
        %753 = vmatpush1.msra.mxu0 0.0
        %754 = vmatprep.subr.mxu0 0.0
        %755 = vmatpush1.msra.mxu0 0.0
        %756 = vmatprep.subr.mxu0 0.0
        %757 = vmatpush1.msra.mxu0 0.0
        %758 = vmatprep.subr.mxu0 0.0
        %759 = vmatpush1.msra.mxu0 0.0
        %760 = vmatprep.subr.mxu0 0.0
        %761 = vmatpush1.msra.mxu0 0.0
        %762 = vmatprep.subr.mxu0 0.0
        %763 = vmatpush1.msra.mxu0 0.0
        %764 = vmatprep.subr.mxu0 0.0
        %765 = vmatpush1.msra.mxu0 0.0
        %766 = vmatprep.subr.mxu0 0.0
        %767 = vmatpush1.msra.mxu0 0.0
        %768 = vmatprep.subr.mxu0 0.0
        %769 = vmatpush1.msra.mxu0 0.0
        %770 = vmatprep.subr.mxu0 0.0
        %771 = vmatpush1.msra.mxu0 0.0
        %772 = vmatprep.subr.mxu0 0.0
        %773 = vmatpush1.msra.mxu0 0.0
        %774 = vmatprep.subr.mxu0 0.0
        %775 = vmatpush1.msra.mxu0 0.0
        %776 = vmatprep.subr.mxu0 0.0
        %777 = vmatpush1.msra.mxu0 0.0
        %778 = vmatprep.subr.mxu0 0.0
        %779 = vmatpush1.msra.mxu0 0.0
        %780 = vmatprep.subr.mxu0 0.0
        %781 = vmatpush1.msra.mxu0 0.0
        %782 = vmatprep.subr.mxu0 0.0
        %783 = vmatpush1.msra.mxu0 0.0
        %784 = vmatprep.subr.mxu0 0.0
        %785 = vmatpush1.msra.mxu0 0.0
        %786 = vmatprep.subr.mxu0 0.0
        %787 = vmatpush1.msra.mxu0 0.0
        %788 = vmatprep.subr.mxu0 0.0
        %789 = vmatpush1.msra.mxu0 0.0
        %790 = vmatprep.subr.mxu0 0.0
        %791 = vmatpush1.msra.mxu0 0.0
        %792 = vmatprep.subr.mxu0 0.0
        %793 = vmatpush1.msra.mxu0 0.0
        %794 = vmatprep.subr.mxu0 0.0
        %795 = vmatpush1.msra.mxu0 0.0
        %796 = vmatprep.subr.mxu0 0.0
        %797 = vmatpush1.msra.mxu0 0.0
        %798 = vmatprep.subr.mxu0 0.0
        %799 = vmatpush1.msra.mxu0 0.0
        %800 = vmatprep.mubr.f32.mxu0 0.0
        %801 = vmatmul.mubr.f32.gmra.mrb[0].mxu0 %v734
        %v802 = vpop.f32.mrb[0].mxu0
        %v803 = vadd.f32 0.0, %v802
        %v804 = vpop.f32.mrb[0].mxu0
        %805 = vdwg.mxu0
        %v806 = vadd.f32 %v730, %v803
        %v807 = vadd.f32 %v806, %v456
        %v808 = vxor.u32 %v807, 2147483648
        %v809 = vmul.f32 %v808, 1.442695
        %v810 = vpow.pop %v809
        %v811 = vadd.f32 %v810, 1.0
        %v812 = vrcp.pop %v811
        %v813 = vmul.f32 1.0, %v812
        %814 = vrot.lane.b32.xlu0 %v473, 32
        %v815 = vpop.permute.xlu0 %814
        %v817 = vmul.f32 %v813, %v815
        %819 = vrot.lane.b32.xlu0 %v817, 96
        %v820 = vpop.permute.xlu0 %819
        %v821 = vsel %vm477, %v820, 0
        %823 = vmatprep.subr.mxu0 0.0
        %824 = vmatpush1.msra.mxu0 %v435
        %825 = vmatprep.subr.mxu0 0.0
        %826 = vmatpush1.msra.mxu0 %v436
        %827 = vmatprep.subr.mxu0 0.0
        %828 = vmatpush1.msra.mxu0 %v437
        %829 = vmatprep.subr.mxu0 0.0
        %830 = vmatpush1.msra.mxu0 %v438
        %831 = vmatprep.subr.mxu0 0.0
        %832 = vmatpush1.msra.mxu0 0.0
        %833 = vmatprep.subr.mxu0 0.0
        %834 = vmatpush1.msra.mxu0 0.0
        %835 = vmatprep.subr.mxu0 0.0
        %836 = vmatpush1.msra.mxu0 0.0
        %837 = vmatprep.subr.mxu0 0.0
        %838 = vmatpush1.msra.mxu0 0.0
        %839 = vmatprep.subr.mxu0 0.0
        %840 = vmatpush1.msra.mxu0 0.0
        %841 = vmatprep.subr.mxu0 0.0
        %842 = vmatpush1.msra.mxu0 0.0
        %843 = vmatprep.subr.mxu0 0.0
        %844 = vmatpush1.msra.mxu0 0.0
        %845 = vmatprep.subr.mxu0 0.0
        %846 = vmatpush1.msra.mxu0 0.0
        %847 = vmatprep.subr.mxu0 0.0
        %848 = vmatpush1.msra.mxu0 0.0
        %849 = vmatprep.subr.mxu0 0.0
        %850 = vmatpush1.msra.mxu0 0.0
        %851 = vmatprep.subr.mxu0 0.0
        %852 = vmatpush1.msra.mxu0 0.0
        %853 = vmatprep.subr.mxu0 0.0
        %854 = vmatpush1.msra.mxu0 0.0
        %855 = vmatprep.subr.mxu0 0.0
        %856 = vmatpush1.msra.mxu0 0.0
        %857 = vmatprep.subr.mxu0 0.0
        %858 = vmatpush1.msra.mxu0 0.0
        %859 = vmatprep.subr.mxu0 0.0
        %860 = vmatpush1.msra.mxu0 0.0
        %861 = vmatprep.subr.mxu0 0.0
        %862 = vmatpush1.msra.mxu0 0.0
        %863 = vmatprep.subr.mxu0 0.0
        %864 = vmatpush1.msra.mxu0 0.0
        %865 = vmatprep.subr.mxu0 0.0
        %866 = vmatpush1.msra.mxu0 0.0
        %867 = vmatprep.subr.mxu0 0.0
        %868 = vmatpush1.msra.mxu0 0.0
        %869 = vmatprep.subr.mxu0 0.0
        %870 = vmatpush1.msra.mxu0 0.0
        %871 = vmatprep.subr.mxu0 0.0
        %872 = vmatpush1.msra.mxu0 0.0
        %873 = vmatprep.subr.mxu0 0.0
        %874 = vmatpush1.msra.mxu0 0.0
        %875 = vmatprep.subr.mxu0 0.0
        %876 = vmatpush1.msra.mxu0 0.0
        %877 = vmatprep.subr.mxu0 0.0
        %878 = vmatpush1.msra.mxu0 0.0
        %879 = vmatprep.subr.mxu0 0.0
        %880 = vmatpush1.msra.mxu0 0.0
        %881 = vmatprep.subr.mxu0 0.0
        %882 = vmatpush1.msra.mxu0 0.0
        %883 = vmatprep.subr.mxu0 0.0
        %884 = vmatpush1.msra.mxu0 0.0
        %885 = vmatprep.subr.mxu0 0.0
        %886 = vmatpush1.msra.mxu0 0.0
        %887 = vmatprep.mubr.f32.mxu0 0.0
        %888 = vmatmul.mubr.f32.gmra.mrb[0].mxu0 %v821
        %v889 = vpop.f32.mrb[0].mxu0
        %v890 = vadd.f32 0.0, %v889
        %v891 = vpop.f32.mrb[0].mxu0
        %892 = vdwg.mxu0
        %894 = vrot.lane.b32.xlu0 %v890, 64
        %v895 = vpop.permute.xlu0 %894
        %v897 = vadd.f32 %v730, %v895
        %898 = vrot.lane.b32.xlu0 %v470, 64
        %v899 = vpop.permute.xlu0 %898
        %v901 = vadd.f32 %v897, %v899
        %v902 = vtanh.pop %v901
        %v903 = vmul.f32 %v813, %v473
        %v904 = vsub.f32 1.0, %v813
        %906 = vrot.lane.b32.xlu0 %v902, 64
        %v907 = vpop.permute.xlu0 %906
        %v909 = vmul.f32 %v904, %v907
        %v910 = vadd.f32 %v903, %v909
        %v911 = vsel %vm658, %v910, %v473
        %912 = vst.msk [vmem:[%s407] sm:$0xff] %vm477, %v911
        %s913 = scalar_lea.vmem %s361, 8 [#allocation2]
        %v914 = vld [vmem:[%s913] sm:$0xff]
        %s915 = sadd.s32 %s475, 1
        %p916 = scmp.lt.s32.totalorder %s915, 24
        %917 = vmatprep.subr.mxu0 0.0
        %918 = vmatpush1.msra.mxu0 %v421
        %919 = vmatprep.subr.mxu0 0.0
        %920 = vmatpush1.msra.mxu0 %v422
        %921 = vmatprep.subr.mxu0 0.0
        %922 = vmatpush1.msra.mxu0 %v423
        %923 = vmatprep.subr.mxu0 0.0
        %924 = vmatpush1.msra.mxu0 %v424
        %925 = vmatprep.subr.mxu0 0.0
        %926 = vmatpush1.msra.mxu0 0.0
        %927 = vmatprep.subr.mxu0 0.0
        %928 = vmatpush1.msra.mxu0 0.0
        %929 = vmatprep.subr.mxu0 0.0
        %930 = vmatpush1.msra.mxu0 0.0
        %931 = vmatprep.subr.mxu0 0.0
        %932 = vmatpush1.msra.mxu0 0.0
        %933 = vmatprep.subr.mxu0 0.0
        %934 = vmatpush1.msra.mxu0 0.0
        %935 = vmatprep.subr.mxu0 0.0
        %936 = vmatpush1.msra.mxu0 0.0
        %937 = vmatprep.subr.mxu0 0.0
        %938 = vmatpush1.msra.mxu0 0.0
        %939 = vmatprep.subr.mxu0 0.0
        %940 = vmatpush1.msra.mxu0 0.0
        %941 = vmatprep.subr.mxu0 0.0
        %942 = vmatpush1.msra.mxu0 0.0
        %943 = vmatprep.subr.mxu0 0.0
        %944 = vmatpush1.msra.mxu0 0.0
        %945 = vmatprep.subr.mxu0 0.0
        %946 = vmatpush1.msra.mxu0 0.0
        %947 = vmatprep.subr.mxu0 0.0
        %948 = vmatpush1.msra.mxu0 0.0
        %949 = vmatprep.subr.mxu0 0.0
        %950 = vmatpush1.msra.mxu0 0.0
        %951 = vmatprep.subr.mxu0 0.0
        %952 = vmatpush1.msra.mxu0 0.0
        %953 = vmatprep.subr.mxu0 0.0
        %954 = vmatpush1.msra.mxu0 0.0
        %955 = vmatprep.subr.mxu0 0.0
        %956 = vmatpush1.msra.mxu0 0.0
        %957 = vmatprep.subr.mxu0 0.0
        %958 = vmatpush1.msra.mxu0 0.0
        %959 = vmatprep.subr.mxu0 0.0
        %960 = vmatpush1.msra.mxu0 0.0
        %961 = vmatprep.subr.mxu0 0.0
        %962 = vmatpush1.msra.mxu0 0.0
        %963 = vmatprep.subr.mxu0 0.0
        %964 = vmatpush1.msra.mxu0 0.0
        %965 = vmatprep.subr.mxu0 0.0
        %966 = vmatpush1.msra.mxu0 0.0
        %967 = vmatprep.subr.mxu0 0.0
        %968 = vmatpush1.msra.mxu0 0.0
        %969 = vmatprep.subr.mxu0 0.0
        %970 = vmatpush1.msra.mxu0 0.0
        %971 = vmatprep.subr.mxu0 0.0
        %972 = vmatpush1.msra.mxu0 0.0
        %973 = vmatprep.subr.mxu0 0.0
        %974 = vmatpush1.msra.mxu0 0.0
        %975 = vmatprep.subr.mxu0 0.0
        %976 = vmatpush1.msra.mxu0 0.0
        %977 = vmatprep.subr.mxu0 0.0
        %978 = vmatpush1.msra.mxu0 0.0
        %979 = vmatprep.subr.mxu0 0.0
        %980 = vmatpush1.msra.mxu0 0.0
        %981 = vmatprep.mubr.f32.mxu0 0.0
        %982 = vmatmul.mubr.f32.gmra.mrb[0].mxu0 %v661
        %v983 = vpop.f32.mrb[0].mxu0
        %v984 = vadd.f32 0.0, %v983
        %v985 = vpop.f32.mrb[0].mxu0
        %986 = vdwg.mxu0
        %v987 = vadd.f32 %v914, %v984
        %v988 = vadd.f32 %v987, %v448
        %v989 = vxor.u32 %v988, 2147483648
        %v990 = vmul.f32 %v989, 1.442695
        %v991 = vpow.pop %v990
        %v992 = vadd.f32 %v991, 1.0
        %v993 = vrcp.pop %v992
        %v994 = vmul.f32 1.0, %v993
        %995 = vrot.lane.b32.xlu0 %v659, 32
        %v996 = vpop.permute.xlu0 %995
        %v998 = vmul.f32 %v994, %v996
        %1000 = vrot.lane.b32.xlu0 %v998, 96
        %v1001 = vpop.permute.xlu0 %1000
        %v1002 = vsel %vm477, %v1001, 0
        %1004 = vmatprep.subr.mxu0 0.0
        %1005 = vmatpush1.msra.mxu0 %v430
        %1006 = vmatprep.subr.mxu0 0.0
        %1007 = vmatpush1.msra.mxu0 %v431
        %1008 = vmatprep.subr.mxu0 0.0
        %1009 = vmatpush1.msra.mxu0 %v432
        %1010 = vmatprep.subr.mxu0 0.0
        %1011 = vmatpush1.msra.mxu0 %v433
        %1012 = vmatprep.subr.mxu0 0.0
        %1013 = vmatpush1.msra.mxu0 0.0
        %1014 = vmatprep.subr.mxu0 0.0
        %1015 = vmatpush1.msra.mxu0 0.0
        %1016 = vmatprep.subr.mxu0 0.0
        %1017 = vmatpush1.msra.mxu0 0.0
        %1018 = vmatprep.subr.mxu0 0.0
        %1019 = vmatpush1.msra.mxu0 0.0
        %1020 = vmatprep.subr.mxu0 0.0
        %1021 = vmatpush1.msra.mxu0 0.0
        %1022 = vmatprep.subr.mxu0 0.0
        %1023 = vmatpush1.msra.mxu0 0.0
        %1024 = vmatprep.subr.mxu0 0.0
        %1025 = vmatpush1.msra.mxu0 0.0
        %1026 = vmatprep.subr.mxu0 0.0
        %1027 = vmatpush1.msra.mxu0 0.0
        %1028 = vmatprep.subr.mxu0 0.0
        %1029 = vmatpush1.msra.mxu0 0.0
        %1030 = vmatprep.subr.mxu0 0.0
        %1031 = vmatpush1.msra.mxu0 0.0
        %1032 = vmatprep.subr.mxu0 0.0
        %1033 = vmatpush1.msra.mxu0 0.0
        %1034 = vmatprep.subr.mxu0 0.0
        %1035 = vmatpush1.msra.mxu0 0.0
        %1036 = vmatprep.subr.mxu0 0.0
        %1037 = vmatpush1.msra.mxu0 0.0
        %1038 = vmatprep.subr.mxu0 0.0
        %1039 = vmatpush1.msra.mxu0 0.0
        %1040 = vmatprep.subr.mxu0 0.0
        %1041 = vmatpush1.msra.mxu0 0.0
        %1042 = vmatprep.subr.mxu0 0.0
        %1043 = vmatpush1.msra.mxu0 0.0
        %1044 = vmatprep.subr.mxu0 0.0
        %1045 = vmatpush1.msra.mxu0 0.0
        %1046 = vmatprep.subr.mxu0 0.0
        %1047 = vmatpush1.msra.mxu0 0.0
        %1048 = vmatprep.subr.mxu0 0.0
        %1049 = vmatpush1.msra.mxu0 0.0
        %1050 = vmatprep.subr.mxu0 0.0
        %1051 = vmatpush1.msra.mxu0 0.0
        %1052 = vmatprep.subr.mxu0 0.0
        %1053 = vmatpush1.msra.mxu0 0.0
        %1054 = vmatprep.subr.mxu0 0.0
        %1055 = vmatpush1.msra.mxu0 0.0
        %1056 = vmatprep.subr.mxu0 0.0
        %1057 = vmatpush1.msra.mxu0 0.0
        %1058 = vmatprep.subr.mxu0 0.0
        %1059 = vmatpush1.msra.mxu0 0.0
        %1060 = vmatprep.subr.mxu0 0.0
        %1061 = vmatpush1.msra.mxu0 0.0
        %1062 = vmatprep.subr.mxu0 0.0
        %1063 = vmatpush1.msra.mxu0 0.0
        %1064 = vmatprep.subr.mxu0 0.0
        %1065 = vmatpush1.msra.mxu0 0.0
        %1066 = vmatprep.subr.mxu0 0.0
        %1067 = vmatpush1.msra.mxu0 0.0
        %1068 = vmatprep.mubr.f32.mxu0 0.0
        %1069 = vmatmul.mubr.f32.gmra.mrb[0].mxu0 %v1002
        %v1070 = vpop.f32.mrb[0].mxu0
        %v1071 = vadd.f32 0.0, %v1070
        %v1072 = vpop.f32.mrb[0].mxu0
        %1073 = vdwg.mxu0
        %1075 = vrot.lane.b32.xlu0 %v1071, 64
        %v1076 = vpop.permute.xlu0 %1075
        %v1078 = vadd.f32 %v914, %v1076
        %v1079 = vadd.f32 %v1078, %v644
        %v1080 = vtanh.pop %v1079
        %v1081 = vmul.f32 %v994, %v659
        %v1082 = vsub.f32 1.0, %v994
        %1084 = vrot.lane.b32.xlu0 %v1080, 64
        %v1085 = vpop.permute.xlu0 %1084
        %v1087 = vmul.f32 %v1082, %v1085
        %v1088 = vadd.f32 %v1081, %v1087
        %s1089 = scalar_select %p916, 1, 0
        %v1090 = vstv %s1089
        %vm1091 = vcmp.eq.s32.totalorder %v1090, 1
        %v1092 = vsel %vm1091, %v1088, %v659
        %v1094 = vsel %vm477, %v1092, 0
        %1096 = vmatprep.subr.mxu0 0.0
        %1097 = vmatpush1.msra.mxu0 %v439
        %1098 = vmatprep.subr.mxu0 0.0
        %1099 = vmatpush1.msra.mxu0 %v440
        %1100 = vmatprep.subr.mxu0 0.0
        %1101 = vmatpush1.msra.mxu0 %v441
        %1102 = vmatprep.subr.mxu0 0.0
        %1103 = vmatpush1.msra.mxu0 %v442
        %1104 = vmatprep.subr.mxu0 0.0
        %1105 = vmatpush1.msra.mxu0 0.0
        %1106 = vmatprep.subr.mxu0 0.0
        %1107 = vmatpush1.msra.mxu0 0.0
        %1108 = vmatprep.subr.mxu0 0.0
        %1109 = vmatpush1.msra.mxu0 0.0
        %1110 = vmatprep.subr.mxu0 0.0
        %1111 = vmatpush1.msra.mxu0 0.0
        %1112 = vmatprep.subr.mxu0 0.0
        %1113 = vmatpush1.msra.mxu0 0.0
        %1114 = vmatprep.subr.mxu0 0.0
        %1115 = vmatpush1.msra.mxu0 0.0
        %1116 = vmatprep.subr.mxu0 0.0
        %1117 = vmatpush1.msra.mxu0 0.0
        %1118 = vmatprep.subr.mxu0 0.0
        %1119 = vmatpush1.msra.mxu0 0.0
        %1120 = vmatprep.subr.mxu0 0.0
        %1121 = vmatpush1.msra.mxu0 0.0
        %1122 = vmatprep.subr.mxu0 0.0
        %1123 = vmatpush1.msra.mxu0 0.0
        %1124 = vmatprep.subr.mxu0 0.0
        %1125 = vmatpush1.msra.mxu0 0.0
        %1126 = vmatprep.subr.mxu0 0.0
        %1127 = vmatpush1.msra.mxu0 0.0
        %1128 = vmatprep.subr.mxu0 0.0
        %1129 = vmatpush1.msra.mxu0 0.0
        %1130 = vmatprep.subr.mxu0 0.0
        %1131 = vmatpush1.msra.mxu0 0.0
        %1132 = vmatprep.subr.mxu0 0.0
        %1133 = vmatpush1.msra.mxu0 0.0
        %1134 = vmatprep.subr.mxu0 0.0
        %1135 = vmatpush1.msra.mxu0 0.0
        %1136 = vmatprep.subr.mxu0 0.0
        %1137 = vmatpush1.msra.mxu0 0.0
        %1138 = vmatprep.subr.mxu0 0.0
        %1139 = vmatpush1.msra.mxu0 0.0
        %1140 = vmatprep.subr.mxu0 0.0
        %1141 = vmatpush1.msra.mxu0 0.0
        %1142 = vmatprep.subr.mxu0 0.0
        %1143 = vmatpush1.msra.mxu0 0.0
        %1144 = vmatprep.subr.mxu0 0.0
        %1145 = vmatpush1.msra.mxu0 0.0
        %1146 = vmatprep.subr.mxu0 0.0
        %1147 = vmatpush1.msra.mxu0 0.0
        %1148 = vmatprep.subr.mxu0 0.0
        %1149 = vmatpush1.msra.mxu0 0.0
        %1150 = vmatprep.subr.mxu0 0.0
        %1151 = vmatpush1.msra.mxu0 0.0
        %1152 = vmatprep.subr.mxu0 0.0
        %1153 = vmatpush1.msra.mxu0 0.0
        %1154 = vmatprep.subr.mxu0 0.0
        %1155 = vmatpush1.msra.mxu0 0.0
        %1156 = vmatprep.subr.mxu0 0.0
        %1157 = vmatpush1.msra.mxu0 0.0
        %1158 = vmatprep.subr.mxu0 0.0
        %1159 = vmatpush1.msra.mxu0 0.0
        %1160 = vmatprep.mubr.f32.mxu0 0.0
        %1161 = vmatmul.mubr.f32.gmra.mrb[0].mxu0 %v1094
        %v1162 = vpop.f32.mrb[0].mxu0
        %v1163 = vadd.f32 0.0, %v1162
        %v1164 = vpop.f32.mrb[0].mxu0
        %1165 = vdwg.mxu0
        %v1167 = vsel %vm477, %v911, 0
        %1169 = vmatprep.subr.mxu0 0.0
        %1170 = vmatpush1.msra.mxu0 %v426
        %1171 = vmatprep.subr.mxu0 0.0
        %1172 = vmatpush1.msra.mxu0 %v427
        %1173 = vmatprep.subr.mxu0 0.0
        %1174 = vmatpush1.msra.mxu0 %v428
        %1175 = vmatprep.subr.mxu0 0.0
        %1176 = vmatpush1.msra.mxu0 %v429
        %1177 = vmatprep.subr.mxu0 0.0
        %1178 = vmatpush1.msra.mxu0 0.0
        %1179 = vmatprep.subr.mxu0 0.0
        %1180 = vmatpush1.msra.mxu0 0.0
        %1181 = vmatprep.subr.mxu0 0.0
        %1182 = vmatpush1.msra.mxu0 0.0
        %1183 = vmatprep.subr.mxu0 0.0
        %1184 = vmatpush1.msra.mxu0 0.0
        %1185 = vmatprep.subr.mxu0 0.0
        %1186 = vmatpush1.msra.mxu0 0.0
        %1187 = vmatprep.subr.mxu0 0.0
        %1188 = vmatpush1.msra.mxu0 0.0
        %1189 = vmatprep.subr.mxu0 0.0
        %1190 = vmatpush1.msra.mxu0 0.0
        %1191 = vmatprep.subr.mxu0 0.0
        %1192 = vmatpush1.msra.mxu0 0.0
        %1193 = vmatprep.subr.mxu0 0.0
        %1194 = vmatpush1.msra.mxu0 0.0
        %1195 = vmatprep.subr.mxu0 0.0
        %1196 = vmatpush1.msra.mxu0 0.0
        %1197 = vmatprep.subr.mxu0 0.0
        %1198 = vmatpush1.msra.mxu0 0.0
        %1199 = vmatprep.subr.mxu0 0.0
        %1200 = vmatpush1.msra.mxu0 0.0
        %1201 = vmatprep.subr.mxu0 0.0
        %1202 = vmatpush1.msra.mxu0 0.0
        %1203 = vmatprep.subr.mxu0 0.0
        %1204 = vmatpush1.msra.mxu0 0.0
        %1205 = vmatprep.subr.mxu0 0.0
        %1206 = vmatpush1.msra.mxu0 0.0
        %1207 = vmatprep.subr.mxu0 0.0
        %1208 = vmatpush1.msra.mxu0 0.0
        %1209 = vmatprep.subr.mxu0 0.0
        %1210 = vmatpush1.msra.mxu0 0.0
        %1211 = vmatprep.subr.mxu0 0.0
        %1212 = vmatpush1.msra.mxu0 0.0
        %1213 = vmatprep.subr.mxu0 0.0
        %1214 = vmatpush1.msra.mxu0 0.0
        %1215 = vmatprep.subr.mxu0 0.0
        %1216 = vmatpush1.msra.mxu0 0.0
        %1217 = vmatprep.subr.mxu0 0.0
        %1218 = vmatpush1.msra.mxu0 0.0
        %1219 = vmatprep.subr.mxu0 0.0
        %1220 = vmatpush1.msra.mxu0 0.0
        %1221 = vmatprep.subr.mxu0 0.0
        %1222 = vmatpush1.msra.mxu0 0.0
        %1223 = vmatprep.subr.mxu0 0.0
        %1224 = vmatpush1.msra.mxu0 0.0
        %1225 = vmatprep.subr.mxu0 0.0
        %1226 = vmatpush1.msra.mxu0 0.0
        %1227 = vmatprep.subr.mxu0 0.0
        %1228 = vmatpush1.msra.mxu0 0.0
        %1229 = vmatprep.subr.mxu0 0.0
        %1230 = vmatpush1.msra.mxu0 0.0
        %1231 = vmatprep.subr.mxu0 0.0
        %1232 = vmatpush1.msra.mxu0 0.0
        %1233 = vmatprep.mubr.f32.mxu0 0.0
        %1234 = vmatmul.mubr.f32.gmra.mrb[0].mxu0 %v1167
        %v1235 = vpop.f32.mrb[0].mxu0
        %v1236 = vadd.f32 0.0, %v1235
        %v1237 = vpop.f32.mrb[0].mxu0
        %1238 = vdwg.mxu0
        %v1239 = vadd.f32 %v1163, %v1236
        %v1240 = vadd.f32 %v1239, %v456
        %v1241 = vxor.u32 %v1240, 2147483648
        %v1242 = vmul.f32 %v1241, 1.442695
        %v1243 = vpow.pop %v1242
        %v1244 = vadd.f32 %v1243, 1.0
        %v1245 = vrcp.pop %v1244
        %v1246 = vmul.f32 1.0, %v1245
        %1247 = vrot.lane.b32.xlu0 %v911, 32
        %v1248 = vpop.permute.xlu0 %1247
        %v1250 = vmul.f32 %v1246, %v1248
        %1252 = vrot.lane.b32.xlu0 %v1250, 96
        %v1253 = vpop.permute.xlu0 %1252
        %v1254 = vsel %vm477, %v1253, 0
        %1256 = vmatprep.subr.mxu0 0.0
        %1257 = vmatpush1.msra.mxu0 %v435
        %1258 = vmatprep.subr.mxu0 0.0
        %1259 = vmatpush1.msra.mxu0 %v436
        %1260 = vmatprep.subr.mxu0 0.0
        %1261 = vmatpush1.msra.mxu0 %v437
        %1262 = vmatprep.subr.mxu0 0.0
        %1263 = vmatpush1.msra.mxu0 %v438
        %1264 = vmatprep.subr.mxu0 0.0
        %1265 = vmatpush1.msra.mxu0 0.0
        %1266 = vmatprep.subr.mxu0 0.0
        %1267 = vmatpush1.msra.mxu0 0.0
        %1268 = vmatprep.subr.mxu0 0.0
        %1269 = vmatpush1.msra.mxu0 0.0
        %1270 = vmatprep.subr.mxu0 0.0
        %1271 = vmatpush1.msra.mxu0 0.0
        %1272 = vmatprep.subr.mxu0 0.0
        %1273 = vmatpush1.msra.mxu0 0.0
        %1274 = vmatprep.subr.mxu0 0.0
        %1275 = vmatpush1.msra.mxu0 0.0
        %1276 = vmatprep.subr.mxu0 0.0
        %1277 = vmatpush1.msra.mxu0 0.0
        %1278 = vmatprep.subr.mxu0 0.0
        %1279 = vmatpush1.msra.mxu0 0.0
        %1280 = vmatprep.subr.mxu0 0.0
        %1281 = vmatpush1.msra.mxu0 0.0
        %1282 = vmatprep.subr.mxu0 0.0
        %1283 = vmatpush1.msra.mxu0 0.0
        %1284 = vmatprep.subr.mxu0 0.0
        %1285 = vmatpush1.msra.mxu0 0.0
        %1286 = vmatprep.subr.mxu0 0.0
        %1287 = vmatpush1.msra.mxu0 0.0
        %1288 = vmatprep.subr.mxu0 0.0
        %1289 = vmatpush1.msra.mxu0 0.0
        %1290 = vmatprep.subr.mxu0 0.0
        %1291 = vmatpush1.msra.mxu0 0.0
        %1292 = vmatprep.subr.mxu0 0.0
        %1293 = vmatpush1.msra.mxu0 0.0
        %1294 = vmatprep.subr.mxu0 0.0
        %1295 = vmatpush1.msra.mxu0 0.0
        %1296 = vmatprep.subr.mxu0 0.0
        %1297 = vmatpush1.msra.mxu0 0.0
        %1298 = vmatprep.subr.mxu0 0.0
        %1299 = vmatpush1.msra.mxu0 0.0
        %1300 = vmatprep.subr.mxu0 0.0
        %1301 = vmatpush1.msra.mxu0 0.0
        %1302 = vmatprep.subr.mxu0 0.0
        %1303 = vmatpush1.msra.mxu0 0.0
        %1304 = vmatprep.subr.mxu0 0.0
        %1305 = vmatpush1.msra.mxu0 0.0
        %1306 = vmatprep.subr.mxu0 0.0
        %1307 = vmatpush1.msra.mxu0 0.0
        %1308 = vmatprep.subr.mxu0 0.0
        %1309 = vmatpush1.msra.mxu0 0.0
        %1310 = vmatprep.subr.mxu0 0.0
        %1311 = vmatpush1.msra.mxu0 0.0
        %1312 = vmatprep.subr.mxu0 0.0
        %1313 = vmatpush1.msra.mxu0 0.0
        %1314 = vmatprep.subr.mxu0 0.0
        %1315 = vmatpush1.msra.mxu0 0.0
        %1316 = vmatprep.subr.mxu0 0.0
        %1317 = vmatpush1.msra.mxu0 0.0
        %1318 = vmatprep.subr.mxu0 0.0
        %1319 = vmatpush1.msra.mxu0 0.0
        %1320 = vmatprep.mubr.f32.mxu0 0.0
        %1321 = vmatmul.mubr.f32.gmra.mrb[0].mxu0 %v1254
        %v1322 = vpop.f32.mrb[0].mxu0
        %v1323 = vadd.f32 0.0, %v1322
        %v1324 = vpop.f32.mrb[0].mxu0
        %1325 = vdwg.mxu0
        %1327 = vrot.lane.b32.xlu0 %v1323, 64
        %v1328 = vpop.permute.xlu0 %1327
        %v1330 = vadd.f32 %v1163, %v1328
        %v1331 = vadd.f32 %v1330, %v899
        %v1332 = vtanh.pop %v1331
        %v1333 = vmul.f32 %v1246, %v911
        %v1334 = vsub.f32 1.0, %v1246
        %1336 = vrot.lane.b32.xlu0 %v1332, 64
        %v1337 = vpop.permute.xlu0 %1336
        %v1339 = vmul.f32 %v1334, %v1337
        %v1340 = vadd.f32 %v1333, %v1339
        %v1341 = vsel %vm1091, %v1340, %v911
        %s1342 = scalar_lea.vmem %s407, 8 [#allocation11]
        %1343 = vst.msk [vmem:[%s1342] sm:$0xff] %vm477, %v1341
        %s1344 = scalar_lea.vmem %s361, 16 [#allocation2]
        %v1345 = vld [vmem:[%s1344] sm:$0xff]
        %s1346 = sadd.s32 %s475, 2
        %p1347 = scmp.lt.s32.totalorder %s1346, 24
        %1348 = vmatprep.subr.mxu0 0.0
        %1349 = vmatpush1.msra.mxu0 %v421
        %1350 = vmatprep.subr.mxu0 0.0
        %1351 = vmatpush1.msra.mxu0 %v422
        %1352 = vmatprep.subr.mxu0 0.0
        %1353 = vmatpush1.msra.mxu0 %v423
        %1354 = vmatprep.subr.mxu0 0.0
        %1355 = vmatpush1.msra.mxu0 %v424
        %1356 = vmatprep.subr.mxu0 0.0
        %1357 = vmatpush1.msra.mxu0 0.0
        %1358 = vmatprep.subr.mxu0 0.0
        %1359 = vmatpush1.msra.mxu0 0.0
        %1360 = vmatprep.subr.mxu0 0.0
        %1361 = vmatpush1.msra.mxu0 0.0
        %1362 = vmatprep.subr.mxu0 0.0
        %1363 = vmatpush1.msra.mxu0 0.0
        %1364 = vmatprep.subr.mxu0 0.0
        %1365 = vmatpush1.msra.mxu0 0.0
        %1366 = vmatprep.subr.mxu0 0.0
        %1367 = vmatpush1.msra.mxu0 0.0
        %1368 = vmatprep.subr.mxu0 0.0
        %1369 = vmatpush1.msra.mxu0 0.0
        %1370 = vmatprep.subr.mxu0 0.0
        %1371 = vmatpush1.msra.mxu0 0.0
        %1372 = vmatprep.subr.mxu0 0.0
        %1373 = vmatpush1.msra.mxu0 0.0
        %1374 = vmatprep.subr.mxu0 0.0
        %1375 = vmatpush1.msra.mxu0 0.0
        %1376 = vmatprep.subr.mxu0 0.0
        %1377 = vmatpush1.msra.mxu0 0.0
        %1378 = vmatprep.subr.mxu0 0.0
        %1379 = vmatpush1.msra.mxu0 0.0
        %1380 = vmatprep.subr.mxu0 0.0
        %1381 = vmatpush1.msra.mxu0 0.0
        %1382 = vmatprep.subr.mxu0 0.0
        %1383 = vmatpush1.msra.mxu0 0.0
        %1384 = vmatprep.subr.mxu0 0.0
        %1385 = vmatpush1.msra.mxu0 0.0
        %1386 = vmatprep.subr.mxu0 0.0
        %1387 = vmatpush1.msra.mxu0 0.0
        %1388 = vmatprep.subr.mxu0 0.0
        %1389 = vmatpush1.msra.mxu0 0.0
        %1390 = vmatprep.subr.mxu0 0.0
        %1391 = vmatpush1.msra.mxu0 0.0
        %1392 = vmatprep.subr.mxu0 0.0
        %1393 = vmatpush1.msra.mxu0 0.0
        %1394 = vmatprep.subr.mxu0 0.0
        %1395 = vmatpush1.msra.mxu0 0.0
        %1396 = vmatprep.subr.mxu0 0.0
        %1397 = vmatpush1.msra.mxu0 0.0
        %1398 = vmatprep.subr.mxu0 0.0
        %1399 = vmatpush1.msra.mxu0 0.0
        %1400 = vmatprep.subr.mxu0 0.0
        %1401 = vmatpush1.msra.mxu0 0.0
        %1402 = vmatprep.subr.mxu0 0.0
        %1403 = vmatpush1.msra.mxu0 0.0
        %1404 = vmatprep.subr.mxu0 0.0
        %1405 = vmatpush1.msra.mxu0 0.0
        %1406 = vmatprep.subr.mxu0 0.0
        %1407 = vmatpush1.msra.mxu0 0.0
        %1408 = vmatprep.subr.mxu0 0.0
        %1409 = vmatpush1.msra.mxu0 0.0
        %1410 = vmatprep.subr.mxu0 0.0
        %1411 = vmatpush1.msra.mxu0 0.0
        %1412 = vmatprep.mubr.f32.mxu0 0.0
        %1413 = vmatmul.mubr.f32.gmra.mrb[0].mxu0 %v1094
        %v1414 = vpop.f32.mrb[0].mxu0
        %v1415 = vadd.f32 0.0, %v1414
        %v1416 = vpop.f32.mrb[0].mxu0
        %1417 = vdwg.mxu0
        %v1418 = vadd.f32 %v1345, %v1415
        %v1419 = vadd.f32 %v1418, %v448
        %v1420 = vxor.u32 %v1419, 2147483648
        %v1421 = vmul.f32 %v1420, 1.442695
        %v1422 = vpow.pop %v1421
        %v1423 = vadd.f32 %v1422, 1.0
        %v1424 = vrcp.pop %v1423
        %v1425 = vmul.f32 1.0, %v1424
        %1426 = vrot.lane.b32.xlu0 %v1092, 32
        %v1427 = vpop.permute.xlu0 %1426
        %v1429 = vmul.f32 %v1425, %v1427
        %1431 = vrot.lane.b32.xlu0 %v1429, 96
        %v1432 = vpop.permute.xlu0 %1431
        %v1433 = vsel %vm477, %v1432, 0
        %1435 = vmatprep.subr.mxu0 0.0
        %1436 = vmatpush1.msra.mxu0 %v430
        %1437 = vmatprep.subr.mxu0 0.0
        %1438 = vmatpush1.msra.mxu0 %v431
        %1439 = vmatprep.subr.mxu0 0.0
        %1440 = vmatpush1.msra.mxu0 %v432
        %1441 = vmatprep.subr.mxu0 0.0
        %1442 = vmatpush1.msra.mxu0 %v433
        %1443 = vmatprep.subr.mxu0 0.0
        %1444 = vmatpush1.msra.mxu0 0.0
        %1445 = vmatprep.subr.mxu0 0.0
        %1446 = vmatpush1.msra.mxu0 0.0
        %1447 = vmatprep.subr.mxu0 0.0
        %1448 = vmatpush1.msra.mxu0 0.0
        %1449 = vmatprep.subr.mxu0 0.0
        %1450 = vmatpush1.msra.mxu0 0.0
        %1451 = vmatprep.subr.mxu0 0.0
        %1452 = vmatpush1.msra.mxu0 0.0
        %1453 = vmatprep.subr.mxu0 0.0
        %1454 = vmatpush1.msra.mxu0 0.0
        %1455 = vmatprep.subr.mxu0 0.0
        %1456 = vmatpush1.msra.mxu0 0.0
        %1457 = vmatprep.subr.mxu0 0.0
        %1458 = vmatpush1.msra.mxu0 0.0
        %1459 = vmatprep.subr.mxu0 0.0
        %1460 = vmatpush1.msra.mxu0 0.0
        %1461 = vmatprep.subr.mxu0 0.0
        %1462 = vmatpush1.msra.mxu0 0.0
        %1463 = vmatprep.subr.mxu0 0.0
        %1464 = vmatpush1.msra.mxu0 0.0
        %1465 = vmatprep.subr.mxu0 0.0
        %1466 = vmatpush1.msra.mxu0 0.0
        %1467 = vmatprep.subr.mxu0 0.0
        %1468 = vmatpush1.msra.mxu0 0.0
        %1469 = vmatprep.subr.mxu0 0.0
        %1470 = vmatpush1.msra.mxu0 0.0
        %1471 = vmatprep.subr.mxu0 0.0
        %1472 = vmatpush1.msra.mxu0 0.0
        %1473 = vmatprep.subr.mxu0 0.0
        %1474 = vmatpush1.msra.mxu0 0.0
        %1475 = vmatprep.subr.mxu0 0.0
        %1476 = vmatpush1.msra.mxu0 0.0
        %1477 = vmatprep.subr.mxu0 0.0
        %1478 = vmatpush1.msra.mxu0 0.0
        %1479 = vmatprep.subr.mxu0 0.0
        %1480 = vmatpush1.msra.mxu0 0.0
        %1481 = vmatprep.subr.mxu0 0.0
        %1482 = vmatpush1.msra.mxu0 0.0
        %1483 = vmatprep.subr.mxu0 0.0
        %1484 = vmatpush1.msra.mxu0 0.0
        %1485 = vmatprep.subr.mxu0 0.0
        %1486 = vmatpush1.msra.mxu0 0.0
        %1487 = vmatprep.subr.mxu0 0.0
        %1488 = vmatpush1.msra.mxu0 0.0
        %1489 = vmatprep.subr.mxu0 0.0
        %1490 = vmatpush1.msra.mxu0 0.0
        %1491 = vmatprep.subr.mxu0 0.0
        %1492 = vmatpush1.msra.mxu0 0.0
        %1493 = vmatprep.subr.mxu0 0.0
        %1494 = vmatpush1.msra.mxu0 0.0
        %1495 = vmatprep.subr.mxu0 0.0
        %1496 = vmatpush1.msra.mxu0 0.0
        %1497 = vmatprep.subr.mxu0 0.0
        %1498 = vmatpush1.msra.mxu0 0.0
        %1499 = vmatprep.mubr.f32.mxu0 0.0
        %1500 = vmatmul.mubr.f32.gmra.mrb[0].mxu0 %v1433
        %v1501 = vpop.f32.mrb[0].mxu0
        %v1502 = vadd.f32 0.0, %v1501
        %v1503 = vpop.f32.mrb[0].mxu0
        %1504 = vdwg.mxu0
        %1506 = vrot.lane.b32.xlu0 %v1502, 64
        %v1507 = vpop.permute.xlu0 %1506
        %v1509 = vadd.f32 %v1345, %v1507
        %v1510 = vadd.f32 %v1509, %v644
        %v1511 = vtanh.pop %v1510
        %v1512 = vmul.f32 %v1425, %v1092
        %v1513 = vsub.f32 1.0, %v1425
        %1515 = vrot.lane.b32.xlu0 %v1511, 64
        %v1516 = vpop.permute.xlu0 %1515
        %v1518 = vmul.f32 %v1513, %v1516
        %v1519 = vadd.f32 %v1512, %v1518
        %s1520 = scalar_select %p1347, 1, 0
        %v1521 = vstv %s1520
        %vm1522 = vcmp.eq.s32.totalorder %v1521, 1
        %v1523 = vsel %vm1522, %v1519, %v1092
        %v1525 = vsel %vm477, %v1523, 0
        %1527 = vmatprep.subr.mxu0 0.0
        %1528 = vmatpush1.msra.mxu0 %v439
        %1529 = vmatprep.subr.mxu0 0.0
        %1530 = vmatpush1.msra.mxu0 %v440
        %1531 = vmatprep.subr.mxu0 0.0
        %1532 = vmatpush1.msra.mxu0 %v441
        %1533 = vmatprep.subr.mxu0 0.0
        %1534 = vmatpush1.msra.mxu0 %v442
        %1535 = vmatprep.subr.mxu0 0.0
        %1536 = vmatpush1.msra.mxu0 0.0
        %1537 = vmatprep.subr.mxu0 0.0
        %1538 = vmatpush1.msra.mxu0 0.0
        %1539 = vmatprep.subr.mxu0 0.0
        %1540 = vmatpush1.msra.mxu0 0.0
        %1541 = vmatprep.subr.mxu0 0.0
        %1542 = vmatpush1.msra.mxu0 0.0
        %1543 = vmatprep.subr.mxu0 0.0
        %1544 = vmatpush1.msra.mxu0 0.0
        %1545 = vmatprep.subr.mxu0 0.0
        %1546 = vmatpush1.msra.mxu0 0.0
        %1547 = vmatprep.subr.mxu0 0.0
        %1548 = vmatpush1.msra.mxu0 0.0
        %1549 = vmatprep.subr.mxu0 0.0
        %1550 = vmatpush1.msra.mxu0 0.0
        %1551 = vmatprep.subr.mxu0 0.0
        %1552 = vmatpush1.msra.mxu0 0.0
        %1553 = vmatprep.subr.mxu0 0.0
        %1554 = vmatpush1.msra.mxu0 0.0
        %1555 = vmatprep.subr.mxu0 0.0
        %1556 = vmatpush1.msra.mxu0 0.0
        %1557 = vmatprep.subr.mxu0 0.0
        %1558 = vmatpush1.msra.mxu0 0.0
        %1559 = vmatprep.subr.mxu0 0.0
        %1560 = vmatpush1.msra.mxu0 0.0
        %1561 = vmatprep.subr.mxu0 0.0
        %1562 = vmatpush1.msra.mxu0 0.0
        %1563 = vmatprep.subr.mxu0 0.0
        %1564 = vmatpush1.msra.mxu0 0.0
        %1565 = vmatprep.subr.mxu0 0.0
        %1566 = vmatpush1.msra.mxu0 0.0
        %1567 = vmatprep.subr.mxu0 0.0
        %1568 = vmatpush1.msra.mxu0 0.0
        %1569 = vmatprep.subr.mxu0 0.0
        %1570 = vmatpush1.msra.mxu0 0.0
        %1571 = vmatprep.subr.mxu0 0.0
        %1572 = vmatpush1.msra.mxu0 0.0
        %1573 = vmatprep.subr.mxu0 0.0
        %1574 = vmatpush1.msra.mxu0 0.0
        %1575 = vmatprep.subr.mxu0 0.0
        %1576 = vmatpush1.msra.mxu0 0.0
        %1577 = vmatprep.subr.mxu0 0.0
        %1578 = vmatpush1.msra.mxu0 0.0
        %1579 = vmatprep.subr.mxu0 0.0
        %1580 = vmatpush1.msra.mxu0 0.0
        %1581 = vmatprep.subr.mxu0 0.0
        %1582 = vmatpush1.msra.mxu0 0.0
        %1583 = vmatprep.subr.mxu0 0.0
        %1584 = vmatpush1.msra.mxu0 0.0
        %1585 = vmatprep.subr.mxu0 0.0
        %1586 = vmatpush1.msra.mxu0 0.0
        %1587 = vmatprep.subr.mxu0 0.0
        %1588 = vmatpush1.msra.mxu0 0.0
        %1589 = vmatprep.subr.mxu0 0.0
        %1590 = vmatpush1.msra.mxu0 0.0
        %1591 = vmatprep.mubr.f32.mxu0 0.0
        %1592 = vmatmul.mubr.f32.gmra.mrb[0].mxu0 %v1525
        %v1593 = vpop.f32.mrb[0].mxu0
        %v1594 = vadd.f32 0.0, %v1593
        %v1595 = vpop.f32.mrb[0].mxu0
        %1596 = vdwg.mxu0
        %v1598 = vsel %vm477, %v1341, 0
        %1600 = vmatprep.subr.mxu0 0.0
        %1601 = vmatpush1.msra.mxu0 %v426
        %1602 = vmatprep.subr.mxu0 0.0
        %1603 = vmatpush1.msra.mxu0 %v427
        %1604 = vmatprep.subr.mxu0 0.0
        %1605 = vmatpush1.msra.mxu0 %v428
        %1606 = vmatprep.subr.mxu0 0.0
        %1607 = vmatpush1.msra.mxu0 %v429
        %1608 = vmatprep.subr.mxu0 0.0
        %1609 = vmatpush1.msra.mxu0 0.0
        %1610 = vmatprep.subr.mxu0 0.0
        %1611 = vmatpush1.msra.mxu0 0.0
        %1612 = vmatprep.subr.mxu0 0.0
        %1613 = vmatpush1.msra.mxu0 0.0
        %1614 = vmatprep.subr.mxu0 0.0
        %1615 = vmatpush1.msra.mxu0 0.0
        %1616 = vmatprep.subr.mxu0 0.0
        %1617 = vmatpush1.msra.mxu0 0.0
        %1618 = vmatprep.subr.mxu0 0.0
        %1619 = vmatpush1.msra.mxu0 0.0
        %1620 = vmatprep.subr.mxu0 0.0
        %1621 = vmatpush1.msra.mxu0 0.0
        %1622 = vmatprep.subr.mxu0 0.0
        %1623 = vmatpush1.msra.mxu0 0.0
        %1624 = vmatprep.subr.mxu0 0.0
        %1625 = vmatpush1.msra.mxu0 0.0
        %1626 = vmatprep.subr.mxu0 0.0
        %1627 = vmatpush1.msra.mxu0 0.0
        %1628 = vmatprep.subr.mxu0 0.0
        %1629 = vmatpush1.msra.mxu0 0.0
        %1630 = vmatprep.subr.mxu0 0.0
        %1631 = vmatpush1.msra.mxu0 0.0
        %1632 = vmatprep.subr.mxu0 0.0
        %1633 = vmatpush1.msra.mxu0 0.0
        %1634 = vmatprep.subr.mxu0 0.0
        %1635 = vmatpush1.msra.mxu0 0.0
        %1636 = vmatprep.subr.mxu0 0.0
        %1637 = vmatpush1.msra.mxu0 0.0
        %1638 = vmatprep.subr.mxu0 0.0
        %1639 = vmatpush1.msra.mxu0 0.0
        %1640 = vmatprep.subr.mxu0 0.0
        %1641 = vmatpush1.msra.mxu0 0.0
        %1642 = vmatprep.subr.mxu0 0.0
        %1643 = vmatpush1.msra.mxu0 0.0
        %1644 = vmatprep.subr.mxu0 0.0
        %1645 = vmatpush1.msra.mxu0 0.0
        %1646 = vmatprep.subr.mxu0 0.0
        %1647 = vmatpush1.msra.mxu0 0.0
        %1648 = vmatprep.subr.mxu0 0.0
        %1649 = vmatpush1.msra.mxu0 0.0
        %1650 = vmatprep.subr.mxu0 0.0
        %1651 = vmatpush1.msra.mxu0 0.0
        %1652 = vmatprep.subr.mxu0 0.0
        %1653 = vmatpush1.msra.mxu0 0.0
        %1654 = vmatprep.subr.mxu0 0.0
        %1655 = vmatpush1.msra.mxu0 0.0
        %1656 = vmatprep.subr.mxu0 0.0
        %1657 = vmatpush1.msra.mxu0 0.0
        %1658 = vmatprep.subr.mxu0 0.0
        %1659 = vmatpush1.msra.mxu0 0.0
        %1660 = vmatprep.subr.mxu0 0.0
        %1661 = vmatpush1.msra.mxu0 0.0
        %1662 = vmatprep.subr.mxu0 0.0
        %1663 = vmatpush1.msra.mxu0 0.0
        %1664 = vmatprep.mubr.f32.mxu0 0.0
        %1665 = vmatmul.mubr.f32.gmra.mrb[0].mxu0 %v1598
        %v1666 = vpop.f32.mrb[0].mxu0
        %v1667 = vadd.f32 0.0, %v1666
        %v1668 = vpop.f32.mrb[0].mxu0
        %1669 = vdwg.mxu0
        %v1670 = vadd.f32 %v1594, %v1667
        %v1671 = vadd.f32 %v1670, %v456
        %v1672 = vxor.u32 %v1671, 2147483648
        %v1673 = vmul.f32 %v1672, 1.442695
        %v1674 = vpow.pop %v1673
        %v1675 = vadd.f32 %v1674, 1.0
        %v1676 = vrcp.pop %v1675
        %v1677 = vmul.f32 1.0, %v1676
        %1678 = vrot.lane.b32.xlu0 %v1341, 32
        %v1679 = vpop.permute.xlu0 %1678
        %v1681 = vmul.f32 %v1677, %v1679
        %1683 = vrot.lane.b32.xlu0 %v1681, 96
        %v1684 = vpop.permute.xlu0 %1683
        %v1685 = vsel %vm477, %v1684, 0
        %1687 = vmatprep.subr.mxu0 0.0
        %1688 = vmatpush1.msra.mxu0 %v435
        %1689 = vmatprep.subr.mxu0 0.0
        %1690 = vmatpush1.msra.mxu0 %v436
        %1691 = vmatprep.subr.mxu0 0.0
        %1692 = vmatpush1.msra.mxu0 %v437
        %1693 = vmatprep.subr.mxu0 0.0
        %1694 = vmatpush1.msra.mxu0 %v438
        %1695 = vmatprep.subr.mxu0 0.0
        %1696 = vmatpush1.msra.mxu0 0.0
        %1697 = vmatprep.subr.mxu0 0.0
        %1698 = vmatpush1.msra.mxu0 0.0
        %1699 = vmatprep.subr.mxu0 0.0
        %1700 = vmatpush1.msra.mxu0 0.0
        %1701 = vmatprep.subr.mxu0 0.0
        %1702 = vmatpush1.msra.mxu0 0.0
        %1703 = vmatprep.subr.mxu0 0.0
        %1704 = vmatpush1.msra.mxu0 0.0
        %1705 = vmatprep.subr.mxu0 0.0
        %1706 = vmatpush1.msra.mxu0 0.0
        %1707 = vmatprep.subr.mxu0 0.0
        %1708 = vmatpush1.msra.mxu0 0.0
        %1709 = vmatprep.subr.mxu0 0.0
        %1710 = vmatpush1.msra.mxu0 0.0
        %1711 = vmatprep.subr.mxu0 0.0
        %1712 = vmatpush1.msra.mxu0 0.0
        %1713 = vmatprep.subr.mxu0 0.0
        %1714 = vmatpush1.msra.mxu0 0.0
        %1715 = vmatprep.subr.mxu0 0.0
        %1716 = vmatpush1.msra.mxu0 0.0
        %1717 = vmatprep.subr.mxu0 0.0
        %1718 = vmatpush1.msra.mxu0 0.0
        %1719 = vmatprep.subr.mxu0 0.0
        %1720 = vmatpush1.msra.mxu0 0.0
        %1721 = vmatprep.subr.mxu0 0.0
        %1722 = vmatpush1.msra.mxu0 0.0
        %1723 = vmatprep.subr.mxu0 0.0
        %1724 = vmatpush1.msra.mxu0 0.0
        %1725 = vmatprep.subr.mxu0 0.0
        %1726 = vmatpush1.msra.mxu0 0.0
        %1727 = vmatprep.subr.mxu0 0.0
        %1728 = vmatpush1.msra.mxu0 0.0
        %1729 = vmatprep.subr.mxu0 0.0
        %1730 = vmatpush1.msra.mxu0 0.0
        %1731 = vmatprep.subr.mxu0 0.0
        %1732 = vmatpush1.msra.mxu0 0.0
        %1733 = vmatprep.subr.mxu0 0.0
        %1734 = vmatpush1.msra.mxu0 0.0
        %1735 = vmatprep.subr.mxu0 0.0
        %1736 = vmatpush1.msra.mxu0 0.0
        %1737 = vmatprep.subr.mxu0 0.0
        %1738 = vmatpush1.msra.mxu0 0.0
        %1739 = vmatprep.subr.mxu0 0.0
        %1740 = vmatpush1.msra.mxu0 0.0
        %1741 = vmatprep.subr.mxu0 0.0
        %1742 = vmatpush1.msra.mxu0 0.0
        %1743 = vmatprep.subr.mxu0 0.0
        %1744 = vmatpush1.msra.mxu0 0.0
        %1745 = vmatprep.subr.mxu0 0.0
        %1746 = vmatpush1.msra.mxu0 0.0
        %1747 = vmatprep.subr.mxu0 0.0
        %1748 = vmatpush1.msra.mxu0 0.0
        %1749 = vmatprep.subr.mxu0 0.0
        %1750 = vmatpush1.msra.mxu0 0.0
        %1751 = vmatprep.mubr.f32.mxu0 0.0
        %1752 = vmatmul.mubr.f32.gmra.mrb[0].mxu0 %v1685
        %v1753 = vpop.f32.mrb[0].mxu0
        %v1754 = vadd.f32 0.0, %v1753
        %v1755 = vpop.f32.mrb[0].mxu0
        %1756 = vdwg.mxu0
        %1758 = vrot.lane.b32.xlu0 %v1754, 64
        %v1759 = vpop.permute.xlu0 %1758
        %v1761 = vadd.f32 %v1594, %v1759
        %v1762 = vadd.f32 %v1761, %v899
        %v1763 = vtanh.pop %v1762
        %v1764 = vmul.f32 %v1677, %v1341
        %v1765 = vsub.f32 1.0, %v1677
        %1767 = vrot.lane.b32.xlu0 %v1763, 64
        %v1768 = vpop.permute.xlu0 %1767
        %v1770 = vmul.f32 %v1765, %v1768
        %v1771 = vadd.f32 %v1764, %v1770
        %v1772 = vsel %vm1522, %v1771, %v1341
        %s1773 = scalar_lea.vmem %s407, 16 [#allocation11]
        %1774 = vst.msk [vmem:[%s1773] sm:$0xff] %vm477, %v1772
        %s1775 = scalar_lea.vmem %s361, 24 [#allocation2]
        %v1776 = vld [vmem:[%s1775] sm:$0xff]
        %s1777 = sadd.s32 %s475, 3
        %p1778 = scmp.lt.s32.totalorder %s1777, 24
        %1779 = vmatprep.subr.mxu0 0.0
        %1780 = vmatpush1.msra.mxu0 %v421
        %1781 = vmatprep.subr.mxu0 0.0
        %1782 = vmatpush1.msra.mxu0 %v422
        %1783 = vmatprep.subr.mxu0 0.0
        %1784 = vmatpush1.msra.mxu0 %v423
        %1785 = vmatprep.subr.mxu0 0.0
        %1786 = vmatpush1.msra.mxu0 %v424
        %1787 = vmatprep.subr.mxu0 0.0
        %1788 = vmatpush1.msra.mxu0 0.0
        %1789 = vmatprep.subr.mxu0 0.0
        %1790 = vmatpush1.msra.mxu0 0.0
        %1791 = vmatprep.subr.mxu0 0.0
        %1792 = vmatpush1.msra.mxu0 0.0
        %1793 = vmatprep.subr.mxu0 0.0
        %1794 = vmatpush1.msra.mxu0 0.0
        %1795 = vmatprep.subr.mxu0 0.0
        %1796 = vmatpush1.msra.mxu0 0.0
        %1797 = vmatprep.subr.mxu0 0.0
        %1798 = vmatpush1.msra.mxu0 0.0
        %1799 = vmatprep.subr.mxu0 0.0
        %1800 = vmatpush1.msra.mxu0 0.0
        %1801 = vmatprep.subr.mxu0 0.0
        %1802 = vmatpush1.msra.mxu0 0.0
        %1803 = vmatprep.subr.mxu0 0.0
        %1804 = vmatpush1.msra.mxu0 0.0
        %1805 = vmatprep.subr.mxu0 0.0
        %1806 = vmatpush1.msra.mxu0 0.0
        %1807 = vmatprep.subr.mxu0 0.0
        %1808 = vmatpush1.msra.mxu0 0.0
        %1809 = vmatprep.subr.mxu0 0.0
        %1810 = vmatpush1.msra.mxu0 0.0
        %1811 = vmatprep.subr.mxu0 0.0
        %1812 = vmatpush1.msra.mxu0 0.0
        %1813 = vmatprep.subr.mxu0 0.0
        %1814 = vmatpush1.msra.mxu0 0.0
        %1815 = vmatprep.subr.mxu0 0.0
        %1816 = vmatpush1.msra.mxu0 0.0
        %1817 = vmatprep.subr.mxu0 0.0
        %1818 = vmatpush1.msra.mxu0 0.0
        %1819 = vmatprep.subr.mxu0 0.0
        %1820 = vmatpush1.msra.mxu0 0.0
        %1821 = vmatprep.subr.mxu0 0.0
        %1822 = vmatpush1.msra.mxu0 0.0
        %1823 = vmatprep.subr.mxu0 0.0
        %1824 = vmatpush1.msra.mxu0 0.0
        %1825 = vmatprep.subr.mxu0 0.0
        %1826 = vmatpush1.msra.mxu0 0.0
        %1827 = vmatprep.subr.mxu0 0.0
        %1828 = vmatpush1.msra.mxu0 0.0
        %1829 = vmatprep.subr.mxu0 0.0
        %1830 = vmatpush1.msra.mxu0 0.0
        %1831 = vmatprep.subr.mxu0 0.0
        %1832 = vmatpush1.msra.mxu0 0.0
        %1833 = vmatprep.subr.mxu0 0.0
        %1834 = vmatpush1.msra.mxu0 0.0
        %1835 = vmatprep.subr.mxu0 0.0
        %1836 = vmatpush1.msra.mxu0 0.0
        %1837 = vmatprep.subr.mxu0 0.0
        %1838 = vmatpush1.msra.mxu0 0.0
        %1839 = vmatprep.subr.mxu0 0.0
        %1840 = vmatpush1.msra.mxu0 0.0
        %1841 = vmatprep.subr.mxu0 0.0
        %1842 = vmatpush1.msra.mxu0 0.0
        %1843 = vmatprep.mubr.f32.mxu0 0.0
        %1844 = vmatmul.mubr.f32.gmra.mrb[0].mxu0 %v1525
        %v1845 = vpop.f32.mrb[0].mxu0
        %v1846 = vadd.f32 0.0, %v1845
        %v1847 = vpop.f32.mrb[0].mxu0
        %1848 = vdwg.mxu0
        %v1849 = vadd.f32 %v1776, %v1846
        %v1850 = vadd.f32 %v1849, %v448
        %v1851 = vxor.u32 %v1850, 2147483648
        %v1852 = vmul.f32 %v1851, 1.442695
        %v1853 = vpow.pop %v1852
        %v1854 = vadd.f32 %v1853, 1.0
        %v1855 = vrcp.pop %v1854
        %v1856 = vmul.f32 1.0, %v1855
        %1857 = vrot.lane.b32.xlu0 %v1523, 32
        %v1858 = vpop.permute.xlu0 %1857
        %v1860 = vmul.f32 %v1856, %v1858
        %1862 = vrot.lane.b32.xlu0 %v1860, 96
        %v1863 = vpop.permute.xlu0 %1862
        %v1864 = vsel %vm477, %v1863, 0
        %1866 = vmatprep.subr.mxu0 0.0
        %1867 = vmatpush1.msra.mxu0 %v430
        %1868 = vmatprep.subr.mxu0 0.0
        %1869 = vmatpush1.msra.mxu0 %v431
        %1870 = vmatprep.subr.mxu0 0.0
        %1871 = vmatpush1.msra.mxu0 %v432
        %1872 = vmatprep.subr.mxu0 0.0
        %1873 = vmatpush1.msra.mxu0 %v433
        %1874 = vmatprep.subr.mxu0 0.0
        %1875 = vmatpush1.msra.mxu0 0.0
        %1876 = vmatprep.subr.mxu0 0.0
        %1877 = vmatpush1.msra.mxu0 0.0
        %1878 = vmatprep.subr.mxu0 0.0
        %1879 = vmatpush1.msra.mxu0 0.0
        %1880 = vmatprep.subr.mxu0 0.0
        %1881 = vmatpush1.msra.mxu0 0.0
        %1882 = vmatprep.subr.mxu0 0.0
        %1883 = vmatpush1.msra.mxu0 0.0
        %1884 = vmatprep.subr.mxu0 0.0
        %1885 = vmatpush1.msra.mxu0 0.0
        %1886 = vmatprep.subr.mxu0 0.0
        %1887 = vmatpush1.msra.mxu0 0.0
        %1888 = vmatprep.subr.mxu0 0.0
        %1889 = vmatpush1.msra.mxu0 0.0
        %1890 = vmatprep.subr.mxu0 0.0
        %1891 = vmatpush1.msra.mxu0 0.0
        %1892 = vmatprep.subr.mxu0 0.0
        %1893 = vmatpush1.msra.mxu0 0.0
        %1894 = vmatprep.subr.mxu0 0.0
        %1895 = vmatpush1.msra.mxu0 0.0
        %1896 = vmatprep.subr.mxu0 0.0
        %1897 = vmatpush1.msra.mxu0 0.0
        %1898 = vmatprep.subr.mxu0 0.0
        %1899 = vmatpush1.msra.mxu0 0.0
        %1900 = vmatprep.subr.mxu0 0.0
        %1901 = vmatpush1.msra.mxu0 0.0
        %1902 = vmatprep.subr.mxu0 0.0
        %1903 = vmatpush1.msra.mxu0 0.0
        %1904 = vmatprep.subr.mxu0 0.0
        %1905 = vmatpush1.msra.mxu0 0.0
        %1906 = vmatprep.subr.mxu0 0.0
        %1907 = vmatpush1.msra.mxu0 0.0
        %1908 = vmatprep.subr.mxu0 0.0
        %1909 = vmatpush1.msra.mxu0 0.0
        %1910 = vmatprep.subr.mxu0 0.0
        %1911 = vmatpush1.msra.mxu0 0.0
        %1912 = vmatprep.subr.mxu0 0.0
        %1913 = vmatpush1.msra.mxu0 0.0
        %1914 = vmatprep.subr.mxu0 0.0
        %1915 = vmatpush1.msra.mxu0 0.0
        %1916 = vmatprep.subr.mxu0 0.0
        %1917 = vmatpush1.msra.mxu0 0.0
        %1918 = vmatprep.subr.mxu0 0.0
        %1919 = vmatpush1.msra.mxu0 0.0
        %1920 = vmatprep.subr.mxu0 0.0
        %1921 = vmatpush1.msra.mxu0 0.0
        %1922 = vmatprep.subr.mxu0 0.0
        %1923 = vmatpush1.msra.mxu0 0.0
        %1924 = vmatprep.subr.mxu0 0.0
        %1925 = vmatpush1.msra.mxu0 0.0
        %1926 = vmatprep.subr.mxu0 0.0
        %1927 = vmatpush1.msra.mxu0 0.0
        %1928 = vmatprep.subr.mxu0 0.0
        %1929 = vmatpush1.msra.mxu0 0.0
        %1930 = vmatprep.mubr.f32.mxu0 0.0
        %1931 = vmatmul.mubr.f32.gmra.mrb[0].mxu0 %v1864
        %v1932 = vpop.f32.mrb[0].mxu0
        %v1933 = vadd.f32 0.0, %v1932
        %v1934 = vpop.f32.mrb[0].mxu0
        %1935 = vdwg.mxu0
        %1937 = vrot.lane.b32.xlu0 %v1933, 64
        %v1938 = vpop.permute.xlu0 %1937
        %v1940 = vadd.f32 %v1776, %v1938
        %v1941 = vadd.f32 %v1940, %v644
        %v1942 = vtanh.pop %v1941
        %v1943 = vmul.f32 %v1856, %v1523
        %v1944 = vsub.f32 1.0, %v1856
        %1946 = vrot.lane.b32.xlu0 %v1942, 64
        %v1947 = vpop.permute.xlu0 %1946
        %v1949 = vmul.f32 %v1944, %v1947
        %v1950 = vadd.f32 %v1943, %v1949
        %s1951 = scalar_select %p1778, 1, 0
        %v1952 = vstv %s1951
        %vm1953 = vcmp.eq.s32.totalorder %v1952, 1
        %v1954 = vsel %vm1953, %v1950, %v1523
        %v1956 = vsel %vm477, %v1954, 0
        %1958 = vmatprep.subr.mxu0 0.0
        %1959 = vmatpush1.msra.mxu0 %v439
        %1960 = vmatprep.subr.mxu0 0.0
        %1961 = vmatpush1.msra.mxu0 %v440
        %1962 = vmatprep.subr.mxu0 0.0
        %1963 = vmatpush1.msra.mxu0 %v441
        %1964 = vmatprep.subr.mxu0 0.0
        %1965 = vmatpush1.msra.mxu0 %v442
        %1966 = vmatprep.subr.mxu0 0.0
        %1967 = vmatpush1.msra.mxu0 0.0
        %1968 = vmatprep.subr.mxu0 0.0
        %1969 = vmatpush1.msra.mxu0 0.0
        %1970 = vmatprep.subr.mxu0 0.0
        %1971 = vmatpush1.msra.mxu0 0.0
        %1972 = vmatprep.subr.mxu0 0.0
        %1973 = vmatpush1.msra.mxu0 0.0
        %1974 = vmatprep.subr.mxu0 0.0
        %1975 = vmatpush1.msra.mxu0 0.0
        %1976 = vmatprep.subr.mxu0 0.0
        %1977 = vmatpush1.msra.mxu0 0.0
        %1978 = vmatprep.subr.mxu0 0.0
        %1979 = vmatpush1.msra.mxu0 0.0
        %1980 = vmatprep.subr.mxu0 0.0
        %1981 = vmatpush1.msra.mxu0 0.0
        %1982 = vmatprep.subr.mxu0 0.0
        %1983 = vmatpush1.msra.mxu0 0.0
        %1984 = vmatprep.subr.mxu0 0.0
        %1985 = vmatpush1.msra.mxu0 0.0
        %1986 = vmatprep.subr.mxu0 0.0
        %1987 = vmatpush1.msra.mxu0 0.0
        %1988 = vmatprep.subr.mxu0 0.0
        %1989 = vmatpush1.msra.mxu0 0.0
        %1990 = vmatprep.subr.mxu0 0.0
        %1991 = vmatpush1.msra.mxu0 0.0
        %1992 = vmatprep.subr.mxu0 0.0
        %1993 = vmatpush1.msra.mxu0 0.0
        %1994 = vmatprep.subr.mxu0 0.0
        %1995 = vmatpush1.msra.mxu0 0.0
        %1996 = vmatprep.subr.mxu0 0.0
        %1997 = vmatpush1.msra.mxu0 0.0
        %1998 = vmatprep.subr.mxu0 0.0
        %1999 = vmatpush1.msra.mxu0 0.0
        %2000 = vmatprep.subr.mxu0 0.0
        %2001 = vmatpush1.msra.mxu0 0.0
        %2002 = vmatprep.subr.mxu0 0.0
        %2003 = vmatpush1.msra.mxu0 0.0
        %2004 = vmatprep.subr.mxu0 0.0
        %2005 = vmatpush1.msra.mxu0 0.0
        %2006 = vmatprep.subr.mxu0 0.0
        %2007 = vmatpush1.msra.mxu0 0.0
        %2008 = vmatprep.subr.mxu0 0.0
        %2009 = vmatpush1.msra.mxu0 0.0
        %2010 = vmatprep.subr.mxu0 0.0
        %2011 = vmatpush1.msra.mxu0 0.0
        %2012 = vmatprep.subr.mxu0 0.0
        %2013 = vmatpush1.msra.mxu0 0.0
        %2014 = vmatprep.subr.mxu0 0.0
        %2015 = vmatpush1.msra.mxu0 0.0
        %2016 = vmatprep.subr.mxu0 0.0
        %2017 = vmatpush1.msra.mxu0 0.0
        %2018 = vmatprep.subr.mxu0 0.0
        %2019 = vmatpush1.msra.mxu0 0.0
        %2020 = vmatprep.subr.mxu0 0.0
        %2021 = vmatpush1.msra.mxu0 0.0
        %2022 = vmatprep.mubr.f32.mxu0 0.0
        %2023 = vmatmul.mubr.f32.gmra.mrb[0].mxu0 %v1956
        %v2024 = vpop.f32.mrb[0].mxu0
        %v2025 = vadd.f32 0.0, %v2024
        %v2026 = vpop.f32.mrb[0].mxu0
        %2027 = vdwg.mxu0
        %v2029 = vsel %vm477, %v1772, 0
        %2031 = vmatprep.subr.mxu0 0.0
        %2032 = vmatpush1.msra.mxu0 %v426
        %2033 = vmatprep.subr.mxu0 0.0
        %2034 = vmatpush1.msra.mxu0 %v427
        %2035 = vmatprep.subr.mxu0 0.0
        %2036 = vmatpush1.msra.mxu0 %v428
        %2037 = vmatprep.subr.mxu0 0.0
        %2038 = vmatpush1.msra.mxu0 %v429
        %2039 = vmatprep.subr.mxu0 0.0
        %2040 = vmatpush1.msra.mxu0 0.0
        %2041 = vmatprep.subr.mxu0 0.0
        %2042 = vmatpush1.msra.mxu0 0.0
        %2043 = vmatprep.subr.mxu0 0.0
        %2044 = vmatpush1.msra.mxu0 0.0
        %2045 = vmatprep.subr.mxu0 0.0
        %2046 = vmatpush1.msra.mxu0 0.0
        %2047 = vmatprep.subr.mxu0 0.0
        %2048 = vmatpush1.msra.mxu0 0.0
        %2049 = vmatprep.subr.mxu0 0.0
        %2050 = vmatpush1.msra.mxu0 0.0
        %2051 = vmatprep.subr.mxu0 0.0
        %2052 = vmatpush1.msra.mxu0 0.0
        %2053 = vmatprep.subr.mxu0 0.0
        %2054 = vmatpush1.msra.mxu0 0.0
        %2055 = vmatprep.subr.mxu0 0.0
        %2056 = vmatpush1.msra.mxu0 0.0
        %2057 = vmatprep.subr.mxu0 0.0
        %2058 = vmatpush1.msra.mxu0 0.0
        %2059 = vmatprep.subr.mxu0 0.0
        %2060 = vmatpush1.msra.mxu0 0.0
        %2061 = vmatprep.subr.mxu0 0.0
        %2062 = vmatpush1.msra.mxu0 0.0
        %2063 = vmatprep.subr.mxu0 0.0
        %2064 = vmatpush1.msra.mxu0 0.0
        %2065 = vmatprep.subr.mxu0 0.0
        %2066 = vmatpush1.msra.mxu0 0.0
        %2067 = vmatprep.subr.mxu0 0.0
        %2068 = vmatpush1.msra.mxu0 0.0
        %2069 = vmatprep.subr.mxu0 0.0
        %2070 = vmatpush1.msra.mxu0 0.0
        %2071 = vmatprep.subr.mxu0 0.0
        %2072 = vmatpush1.msra.mxu0 0.0
        %2073 = vmatprep.subr.mxu0 0.0
        %2074 = vmatpush1.msra.mxu0 0.0
        %2075 = vmatprep.subr.mxu0 0.0
        %2076 = vmatpush1.msra.mxu0 0.0
        %2077 = vmatprep.subr.mxu0 0.0
        %2078 = vmatpush1.msra.mxu0 0.0
        %2079 = vmatprep.subr.mxu0 0.0
        %2080 = vmatpush1.msra.mxu0 0.0
        %2081 = vmatprep.subr.mxu0 0.0
        %2082 = vmatpush1.msra.mxu0 0.0
        %2083 = vmatprep.subr.mxu0 0.0
        %2084 = vmatpush1.msra.mxu0 0.0
        %2085 = vmatprep.subr.mxu0 0.0
        %2086 = vmatpush1.msra.mxu0 0.0
        %2087 = vmatprep.subr.mxu0 0.0
        %2088 = vmatpush1.msra.mxu0 0.0
        %2089 = vmatprep.subr.mxu0 0.0
        %2090 = vmatpush1.msra.mxu0 0.0
        %2091 = vmatprep.subr.mxu0 0.0
        %2092 = vmatpush1.msra.mxu0 0.0
        %2093 = vmatprep.subr.mxu0 0.0
        %2094 = vmatpush1.msra.mxu0 0.0
        %2095 = vmatprep.mubr.f32.mxu0 0.0
        %2096 = vmatmul.mubr.f32.gmra.mrb[0].mxu0 %v2029
        %v2097 = vpop.f32.mrb[0].mxu0
        %v2098 = vadd.f32 0.0, %v2097
        %v2099 = vpop.f32.mrb[0].mxu0
        %2100 = vdwg.mxu0
        %v2101 = vadd.f32 %v2025, %v2098
        %v2102 = vadd.f32 %v2101, %v456
        %v2103 = vxor.u32 %v2102, 2147483648
        %v2104 = vmul.f32 %v2103, 1.442695
        %v2105 = vpow.pop %v2104
        %v2106 = vadd.f32 %v2105, 1.0
        %v2107 = vrcp.pop %v2106
        %v2108 = vmul.f32 1.0, %v2107
        %2109 = vrot.lane.b32.xlu0 %v1772, 32
        %v2110 = vpop.permute.xlu0 %2109
        %v2112 = vmul.f32 %v2108, %v2110
        %2114 = vrot.lane.b32.xlu0 %v2112, 96
        %v2115 = vpop.permute.xlu0 %2114
        %v2116 = vsel %vm477, %v2115, 0
        %2118 = vmatprep.subr.mxu0 0.0
        %2119 = vmatpush1.msra.mxu0 %v435
        %2120 = vmatprep.subr.mxu0 0.0
        %2121 = vmatpush1.msra.mxu0 %v436
        %2122 = vmatprep.subr.mxu0 0.0
        %2123 = vmatpush1.msra.mxu0 %v437
        %2124 = vmatprep.subr.mxu0 0.0
        %2125 = vmatpush1.msra.mxu0 %v438
        %2126 = vmatprep.subr.mxu0 0.0
        %2127 = vmatpush1.msra.mxu0 0.0
        %2128 = vmatprep.subr.mxu0 0.0
        %2129 = vmatpush1.msra.mxu0 0.0
        %2130 = vmatprep.subr.mxu0 0.0
        %2131 = vmatpush1.msra.mxu0 0.0
        %2132 = vmatprep.subr.mxu0 0.0
        %2133 = vmatpush1.msra.mxu0 0.0
        %2134 = vmatprep.subr.mxu0 0.0
        %2135 = vmatpush1.msra.mxu0 0.0
        %2136 = vmatprep.subr.mxu0 0.0
        %2137 = vmatpush1.msra.mxu0 0.0
        %2138 = vmatprep.subr.mxu0 0.0
        %2139 = vmatpush1.msra.mxu0 0.0
        %2140 = vmatprep.subr.mxu0 0.0
        %2141 = vmatpush1.msra.mxu0 0.0
        %2142 = vmatprep.subr.mxu0 0.0
        %2143 = vmatpush1.msra.mxu0 0.0
        %2144 = vmatprep.subr.mxu0 0.0
        %2145 = vmatpush1.msra.mxu0 0.0
        %2146 = vmatprep.subr.mxu0 0.0
        %2147 = vmatpush1.msra.mxu0 0.0
        %2148 = vmatprep.subr.mxu0 0.0
        %2149 = vmatpush1.msra.mxu0 0.0
        %2150 = vmatprep.subr.mxu0 0.0
        %2151 = vmatpush1.msra.mxu0 0.0
        %2152 = vmatprep.subr.mxu0 0.0
        %2153 = vmatpush1.msra.mxu0 0.0
        %2154 = vmatprep.subr.mxu0 0.0
        %2155 = vmatpush1.msra.mxu0 0.0
        %2156 = vmatprep.subr.mxu0 0.0
        %2157 = vmatpush1.msra.mxu0 0.0
        %2158 = vmatprep.subr.mxu0 0.0
        %2159 = vmatpush1.msra.mxu0 0.0
        %2160 = vmatprep.subr.mxu0 0.0
        %2161 = vmatpush1.msra.mxu0 0.0
        %2162 = vmatprep.subr.mxu0 0.0
        %2163 = vmatpush1.msra.mxu0 0.0
        %2164 = vmatprep.subr.mxu0 0.0
        %2165 = vmatpush1.msra.mxu0 0.0
        %2166 = vmatprep.subr.mxu0 0.0
        %2167 = vmatpush1.msra.mxu0 0.0
        %2168 = vmatprep.subr.mxu0 0.0
        %2169 = vmatpush1.msra.mxu0 0.0
        %2170 = vmatprep.subr.mxu0 0.0
        %2171 = vmatpush1.msra.mxu0 0.0
        %2172 = vmatprep.subr.mxu0 0.0
        %2173 = vmatpush1.msra.mxu0 0.0
        %2174 = vmatprep.subr.mxu0 0.0
        %2175 = vmatpush1.msra.mxu0 0.0
        %2176 = vmatprep.subr.mxu0 0.0
        %2177 = vmatpush1.msra.mxu0 0.0
        %2178 = vmatprep.subr.mxu0 0.0
        %2179 = vmatpush1.msra.mxu0 0.0
        %2180 = vmatprep.subr.mxu0 0.0
        %2181 = vmatpush1.msra.mxu0 0.0
        %2182 = vmatprep.mubr.f32.mxu0 0.0
        %2183 = vmatmul.mubr.f32.gmra.mrb[0].mxu0 %v2116
        %v2184 = vpop.f32.mrb[0].mxu0
        %v2185 = vadd.f32 0.0, %v2184
        %v2186 = vpop.f32.mrb[0].mxu0
        %2187 = vdwg.mxu0
        %2189 = vrot.lane.b32.xlu0 %v2185, 64
        %v2190 = vpop.permute.xlu0 %2189
        %v2192 = vadd.f32 %v2025, %v2190
        %v2193 = vadd.f32 %v2192, %v899
        %v2194 = vtanh.pop %v2193
        %v2195 = vmul.f32 %v2108, %v1772
        %v2196 = vsub.f32 1.0, %v2108
        %2198 = vrot.lane.b32.xlu0 %v2194, 64
        %v2199 = vpop.permute.xlu0 %2198
        %v2201 = vmul.f32 %v2196, %v2199
        %v2202 = vadd.f32 %v2195, %v2201
        %v2203 = vsel %vm1953, %v2202, %v1772
        %s2204 = scalar_lea.vmem %s407, 24 [#allocation11]
        %2205 = vst.msk [vmem:[%s2204] sm:$0xff] %vm477, %v2203
        %s2206 = scalar_lea.vmem %s361, 32 [#allocation2]
        %v2207 = vld [vmem:[%s2206] sm:$0xff]
        %s2208 = sadd.s32 %s475, 4
        %p2209 = scmp.lt.s32.totalorder %s2208, 24
        %2210 = vmatprep.subr.mxu0 0.0
        %2211 = vmatpush1.msra.mxu0 %v421
        %2212 = vmatprep.subr.mxu0 0.0
        %2213 = vmatpush1.msra.mxu0 %v422
        %2214 = vmatprep.subr.mxu0 0.0
        %2215 = vmatpush1.msra.mxu0 %v423
        %2216 = vmatprep.subr.mxu0 0.0
        %2217 = vmatpush1.msra.mxu0 %v424
        %2218 = vmatprep.subr.mxu0 0.0
        %2219 = vmatpush1.msra.mxu0 0.0
        %2220 = vmatprep.subr.mxu0 0.0
        %2221 = vmatpush1.msra.mxu0 0.0
        %2222 = vmatprep.subr.mxu0 0.0
        %2223 = vmatpush1.msra.mxu0 0.0
        %2224 = vmatprep.subr.mxu0 0.0
        %2225 = vmatpush1.msra.mxu0 0.0
        %2226 = vmatprep.subr.mxu0 0.0
        %2227 = vmatpush1.msra.mxu0 0.0
        %2228 = vmatprep.subr.mxu0 0.0
        %2229 = vmatpush1.msra.mxu0 0.0
        %2230 = vmatprep.subr.mxu0 0.0
        %2231 = vmatpush1.msra.mxu0 0.0
        %2232 = vmatprep.subr.mxu0 0.0
        %2233 = vmatpush1.msra.mxu0 0.0
        %2234 = vmatprep.subr.mxu0 0.0
        %2235 = vmatpush1.msra.mxu0 0.0
        %2236 = vmatprep.subr.mxu0 0.0
        %2237 = vmatpush1.msra.mxu0 0.0
        %2238 = vmatprep.subr.mxu0 0.0
        %2239 = vmatpush1.msra.mxu0 0.0
        %2240 = vmatprep.subr.mxu0 0.0
        %2241 = vmatpush1.msra.mxu0 0.0
        %2242 = vmatprep.subr.mxu0 0.0
        %2243 = vmatpush1.msra.mxu0 0.0
        %2244 = vmatprep.subr.mxu0 0.0
        %2245 = vmatpush1.msra.mxu0 0.0
        %2246 = vmatprep.subr.mxu0 0.0
        %2247 = vmatpush1.msra.mxu0 0.0
        %2248 = vmatprep.subr.mxu0 0.0
        %2249 = vmatpush1.msra.mxu0 0.0
        %2250 = vmatprep.subr.mxu0 0.0
        %2251 = vmatpush1.msra.mxu0 0.0
        %2252 = vmatprep.subr.mxu0 0.0
        %2253 = vmatpush1.msra.mxu0 0.0
        %2254 = vmatprep.subr.mxu0 0.0
        %2255 = vmatpush1.msra.mxu0 0.0
        %2256 = vmatprep.subr.mxu0 0.0
        %2257 = vmatpush1.msra.mxu0 0.0
        %2258 = vmatprep.subr.mxu0 0.0
        %2259 = vmatpush1.msra.mxu0 0.0
        %2260 = vmatprep.subr.mxu0 0.0
        %2261 = vmatpush1.msra.mxu0 0.0
        %2262 = vmatprep.subr.mxu0 0.0
        %2263 = vmatpush1.msra.mxu0 0.0
        %2264 = vmatprep.subr.mxu0 0.0
        %2265 = vmatpush1.msra.mxu0 0.0
        %2266 = vmatprep.subr.mxu0 0.0
        %2267 = vmatpush1.msra.mxu0 0.0
        %2268 = vmatprep.subr.mxu0 0.0
        %2269 = vmatpush1.msra.mxu0 0.0
        %2270 = vmatprep.subr.mxu0 0.0
        %2271 = vmatpush1.msra.mxu0 0.0
        %2272 = vmatprep.subr.mxu0 0.0
        %2273 = vmatpush1.msra.mxu0 0.0
        %2274 = vmatprep.mubr.f32.mxu0 0.0
        %2275 = vmatmul.mubr.f32.gmra.mrb[0].mxu0 %v1956
        %v2276 = vpop.f32.mrb[0].mxu0
        %v2277 = vadd.f32 0.0, %v2276
        %v2278 = vpop.f32.mrb[0].mxu0
        %2279 = vdwg.mxu0
        %v2280 = vadd.f32 %v2207, %v2277
        %v2281 = vadd.f32 %v2280, %v448
        %v2282 = vxor.u32 %v2281, 2147483648
        %v2283 = vmul.f32 %v2282, 1.442695
        %v2284 = vpow.pop %v2283
        %v2285 = vadd.f32 %v2284, 1.0
        %v2286 = vrcp.pop %v2285
        %v2287 = vmul.f32 1.0, %v2286
        %2288 = vrot.lane.b32.xlu0 %v1954, 32
        %v2289 = vpop.permute.xlu0 %2288
        %v2291 = vmul.f32 %v2287, %v2289
        %2293 = vrot.lane.b32.xlu0 %v2291, 96
        %v2294 = vpop.permute.xlu0 %2293
        %v2295 = vsel %vm477, %v2294, 0
        %2297 = vmatprep.subr.mxu0 0.0
        %2298 = vmatpush1.msra.mxu0 %v430
        %2299 = vmatprep.subr.mxu0 0.0
        %2300 = vmatpush1.msra.mxu0 %v431
        %2301 = vmatprep.subr.mxu0 0.0
        %2302 = vmatpush1.msra.mxu0 %v432
        %2303 = vmatprep.subr.mxu0 0.0
        %2304 = vmatpush1.msra.mxu0 %v433
        %2305 = vmatprep.subr.mxu0 0.0
        %2306 = vmatpush1.msra.mxu0 0.0
        %2307 = vmatprep.subr.mxu0 0.0
        %2308 = vmatpush1.msra.mxu0 0.0
        %2309 = vmatprep.subr.mxu0 0.0
        %2310 = vmatpush1.msra.mxu0 0.0
        %2311 = vmatprep.subr.mxu0 0.0
        %2312 = vmatpush1.msra.mxu0 0.0
        %2313 = vmatprep.subr.mxu0 0.0
        %2314 = vmatpush1.msra.mxu0 0.0
        %2315 = vmatprep.subr.mxu0 0.0
        %2316 = vmatpush1.msra.mxu0 0.0
        %2317 = vmatprep.subr.mxu0 0.0
        %2318 = vmatpush1.msra.mxu0 0.0
        %2319 = vmatprep.subr.mxu0 0.0
        %2320 = vmatpush1.msra.mxu0 0.0
        %2321 = vmatprep.subr.mxu0 0.0
        %2322 = vmatpush1.msra.mxu0 0.0
        %2323 = vmatprep.subr.mxu0 0.0
        %2324 = vmatpush1.msra.mxu0 0.0
        %2325 = vmatprep.subr.mxu0 0.0
        %2326 = vmatpush1.msra.mxu0 0.0
        %2327 = vmatprep.subr.mxu0 0.0
        %2328 = vmatpush1.msra.mxu0 0.0
        %2329 = vmatprep.subr.mxu0 0.0
        %2330 = vmatpush1.msra.mxu0 0.0
        %2331 = vmatprep.subr.mxu0 0.0
        %2332 = vmatpush1.msra.mxu0 0.0
        %2333 = vmatprep.subr.mxu0 0.0
        %2334 = vmatpush1.msra.mxu0 0.0
        %2335 = vmatprep.subr.mxu0 0.0
        %2336 = vmatpush1.msra.mxu0 0.0
        %2337 = vmatprep.subr.mxu0 0.0
        %2338 = vmatpush1.msra.mxu0 0.0
        %2339 = vmatprep.subr.mxu0 0.0
        %2340 = vmatpush1.msra.mxu0 0.0
        %2341 = vmatprep.subr.mxu0 0.0
        %2342 = vmatpush1.msra.mxu0 0.0
        %2343 = vmatprep.subr.mxu0 0.0
        %2344 = vmatpush1.msra.mxu0 0.0
        %2345 = vmatprep.subr.mxu0 0.0
        %2346 = vmatpush1.msra.mxu0 0.0
        %2347 = vmatprep.subr.mxu0 0.0
        %2348 = vmatpush1.msra.mxu0 0.0
        %2349 = vmatprep.subr.mxu0 0.0
        %2350 = vmatpush1.msra.mxu0 0.0
        %2351 = vmatprep.subr.mxu0 0.0
        %2352 = vmatpush1.msra.mxu0 0.0
        %2353 = vmatprep.subr.mxu0 0.0
        %2354 = vmatpush1.msra.mxu0 0.0
        %2355 = vmatprep.subr.mxu0 0.0
        %2356 = vmatpush1.msra.mxu0 0.0
        %2357 = vmatprep.subr.mxu0 0.0
        %2358 = vmatpush1.msra.mxu0 0.0
        %2359 = vmatprep.subr.mxu0 0.0
        %2360 = vmatpush1.msra.mxu0 0.0
        %2361 = vmatprep.mubr.f32.mxu0 0.0
        %2362 = vmatmul.mubr.f32.gmra.mrb[0].mxu0 %v2295
        %v2363 = vpop.f32.mrb[0].mxu0
        %v2364 = vadd.f32 0.0, %v2363
        %v2365 = vpop.f32.mrb[0].mxu0
        %2366 = vdwg.mxu0
        %2368 = vrot.lane.b32.xlu0 %v2364, 64
        %v2369 = vpop.permute.xlu0 %2368
        %v2371 = vadd.f32 %v2207, %v2369
        %v2372 = vadd.f32 %v2371, %v644
        %v2373 = vtanh.pop %v2372
        %v2374 = vmul.f32 %v2287, %v1954
        %v2375 = vsub.f32 1.0, %v2287
        %2377 = vrot.lane.b32.xlu0 %v2373, 64
        %v2378 = vpop.permute.xlu0 %2377
        %v2380 = vmul.f32 %v2375, %v2378
        %v2381 = vadd.f32 %v2374, %v2380
        %s2382 = scalar_select %p2209, 1, 0
        %v2383 = vstv %s2382
        %vm2384 = vcmp.eq.s32.totalorder %v2383, 1
        %v2385 = vsel %vm2384, %v2381, %v1954
        %v2387 = vsel %vm477, %v2385, 0
        %2389 = vmatprep.subr.mxu0 0.0
        %2390 = vmatpush1.msra.mxu0 %v439
        %2391 = vmatprep.subr.mxu0 0.0
        %2392 = vmatpush1.msra.mxu0 %v440
        %2393 = vmatprep.subr.mxu0 0.0
        %2394 = vmatpush1.msra.mxu0 %v441
        %2395 = vmatprep.subr.mxu0 0.0
        %2396 = vmatpush1.msra.mxu0 %v442
        %2397 = vmatprep.subr.mxu0 0.0
        %2398 = vmatpush1.msra.mxu0 0.0
        %2399 = vmatprep.subr.mxu0 0.0
        %2400 = vmatpush1.msra.mxu0 0.0
        %2401 = vmatprep.subr.mxu0 0.0
        %2402 = vmatpush1.msra.mxu0 0.0
        %2403 = vmatprep.subr.mxu0 0.0
        %2404 = vmatpush1.msra.mxu0 0.0
        %2405 = vmatprep.subr.mxu0 0.0
        %2406 = vmatpush1.msra.mxu0 0.0
        %2407 = vmatprep.subr.mxu0 0.0
        %2408 = vmatpush1.msra.mxu0 0.0
        %2409 = vmatprep.subr.mxu0 0.0
        %2410 = vmatpush1.msra.mxu0 0.0
        %2411 = vmatprep.subr.mxu0 0.0
        %2412 = vmatpush1.msra.mxu0 0.0
        %2413 = vmatprep.subr.mxu0 0.0
        %2414 = vmatpush1.msra.mxu0 0.0
        %2415 = vmatprep.subr.mxu0 0.0
        %2416 = vmatpush1.msra.mxu0 0.0
        %2417 = vmatprep.subr.mxu0 0.0
        %2418 = vmatpush1.msra.mxu0 0.0
        %2419 = vmatprep.subr.mxu0 0.0
        %2420 = vmatpush1.msra.mxu0 0.0
        %2421 = vmatprep.subr.mxu0 0.0
        %2422 = vmatpush1.msra.mxu0 0.0
        %2423 = vmatprep.subr.mxu0 0.0
        %2424 = vmatpush1.msra.mxu0 0.0
        %2425 = vmatprep.subr.mxu0 0.0
        %2426 = vmatpush1.msra.mxu0 0.0
        %2427 = vmatprep.subr.mxu0 0.0
        %2428 = vmatpush1.msra.mxu0 0.0
        %2429 = vmatprep.subr.mxu0 0.0
        %2430 = vmatpush1.msra.mxu0 0.0
        %2431 = vmatprep.subr.mxu0 0.0
        %2432 = vmatpush1.msra.mxu0 0.0
        %2433 = vmatprep.subr.mxu0 0.0
        %2434 = vmatpush1.msra.mxu0 0.0
        %2435 = vmatprep.subr.mxu0 0.0
        %2436 = vmatpush1.msra.mxu0 0.0
        %2437 = vmatprep.subr.mxu0 0.0
        %2438 = vmatpush1.msra.mxu0 0.0
        %2439 = vmatprep.subr.mxu0 0.0
        %2440 = vmatpush1.msra.mxu0 0.0
        %2441 = vmatprep.subr.mxu0 0.0
        %2442 = vmatpush1.msra.mxu0 0.0
        %2443 = vmatprep.subr.mxu0 0.0
        %2444 = vmatpush1.msra.mxu0 0.0
        %2445 = vmatprep.subr.mxu0 0.0
        %2446 = vmatpush1.msra.mxu0 0.0
        %2447 = vmatprep.subr.mxu0 0.0
        %2448 = vmatpush1.msra.mxu0 0.0
        %2449 = vmatprep.subr.mxu0 0.0
        %2450 = vmatpush1.msra.mxu0 0.0
        %2451 = vmatprep.subr.mxu0 0.0
        %2452 = vmatpush1.msra.mxu0 0.0
        %2453 = vmatprep.mubr.f32.mxu0 0.0
        %2454 = vmatmul.mubr.f32.gmra.mrb[0].mxu0 %v2387
        %v2455 = vpop.f32.mrb[0].mxu0
        %v2456 = vadd.f32 0.0, %v2455
        %v2457 = vpop.f32.mrb[0].mxu0
        %2458 = vdwg.mxu0
        %v2460 = vsel %vm477, %v2203, 0
        %2462 = vmatprep.subr.mxu0 0.0
        %2463 = vmatpush1.msra.mxu0 %v426
        %2464 = vmatprep.subr.mxu0 0.0
        %2465 = vmatpush1.msra.mxu0 %v427
        %2466 = vmatprep.subr.mxu0 0.0
        %2467 = vmatpush1.msra.mxu0 %v428
        %2468 = vmatprep.subr.mxu0 0.0
        %2469 = vmatpush1.msra.mxu0 %v429
        %2470 = vmatprep.subr.mxu0 0.0
        %2471 = vmatpush1.msra.mxu0 0.0
        %2472 = vmatprep.subr.mxu0 0.0
        %2473 = vmatpush1.msra.mxu0 0.0
        %2474 = vmatprep.subr.mxu0 0.0
        %2475 = vmatpush1.msra.mxu0 0.0
        %2476 = vmatprep.subr.mxu0 0.0
        %2477 = vmatpush1.msra.mxu0 0.0
        %2478 = vmatprep.subr.mxu0 0.0
        %2479 = vmatpush1.msra.mxu0 0.0
        %2480 = vmatprep.subr.mxu0 0.0
        %2481 = vmatpush1.msra.mxu0 0.0
        %2482 = vmatprep.subr.mxu0 0.0
        %2483 = vmatpush1.msra.mxu0 0.0
        %2484 = vmatprep.subr.mxu0 0.0
        %2485 = vmatpush1.msra.mxu0 0.0
        %2486 = vmatprep.subr.mxu0 0.0
        %2487 = vmatpush1.msra.mxu0 0.0
        %2488 = vmatprep.subr.mxu0 0.0
        %2489 = vmatpush1.msra.mxu0 0.0
        %2490 = vmatprep.subr.mxu0 0.0
        %2491 = vmatpush1.msra.mxu0 0.0
        %2492 = vmatprep.subr.mxu0 0.0
        %2493 = vmatpush1.msra.mxu0 0.0
        %2494 = vmatprep.subr.mxu0 0.0
        %2495 = vmatpush1.msra.mxu0 0.0
        %2496 = vmatprep.subr.mxu0 0.0
        %2497 = vmatpush1.msra.mxu0 0.0
        %2498 = vmatprep.subr.mxu0 0.0
        %2499 = vmatpush1.msra.mxu0 0.0
        %2500 = vmatprep.subr.mxu0 0.0
        %2501 = vmatpush1.msra.mxu0 0.0
        %2502 = vmatprep.subr.mxu0 0.0
        %2503 = vmatpush1.msra.mxu0 0.0
        %2504 = vmatprep.subr.mxu0 0.0
        %2505 = vmatpush1.msra.mxu0 0.0
        %2506 = vmatprep.subr.mxu0 0.0
        %2507 = vmatpush1.msra.mxu0 0.0
        %2508 = vmatprep.subr.mxu0 0.0
        %2509 = vmatpush1.msra.mxu0 0.0
        %2510 = vmatprep.subr.mxu0 0.0
        %2511 = vmatpush1.msra.mxu0 0.0
        %2512 = vmatprep.subr.mxu0 0.0
        %2513 = vmatpush1.msra.mxu0 0.0
        %2514 = vmatprep.subr.mxu0 0.0
        %2515 = vmatpush1.msra.mxu0 0.0
        %2516 = vmatprep.subr.mxu0 0.0
        %2517 = vmatpush1.msra.mxu0 0.0
        %2518 = vmatprep.subr.mxu0 0.0
        %2519 = vmatpush1.msra.mxu0 0.0
        %2520 = vmatprep.subr.mxu0 0.0
        %2521 = vmatpush1.msra.mxu0 0.0
        %2522 = vmatprep.subr.mxu0 0.0
        %2523 = vmatpush1.msra.mxu0 0.0
        %2524 = vmatprep.subr.mxu0 0.0
        %2525 = vmatpush1.msra.mxu0 0.0
        %2526 = vmatprep.mubr.f32.mxu0 0.0
        %2527 = vmatmul.mubr.f32.gmra.mrb[0].mxu0 %v2460
        %v2528 = vpop.f32.mrb[0].mxu0
        %v2529 = vadd.f32 0.0, %v2528
        %v2530 = vpop.f32.mrb[0].mxu0
        %2531 = vdwg.mxu0
        %v2532 = vadd.f32 %v2456, %v2529
        %v2533 = vadd.f32 %v2532, %v456
        %v2534 = vxor.u32 %v2533, 2147483648
        %v2535 = vmul.f32 %v2534, 1.442695
        %v2536 = vpow.pop %v2535
        %v2537 = vadd.f32 %v2536, 1.0
        %v2538 = vrcp.pop %v2537
        %v2539 = vmul.f32 1.0, %v2538
        %2540 = vrot.lane.b32.xlu0 %v2203, 32
        %v2541 = vpop.permute.xlu0 %2540
        %v2543 = vmul.f32 %v2539, %v2541
        %2545 = vrot.lane.b32.xlu0 %v2543, 96
        %v2546 = vpop.permute.xlu0 %2545
        %v2547 = vsel %vm477, %v2546, 0
        %2549 = vmatprep.subr.mxu0 0.0
        %2550 = vmatpush1.msra.mxu0 %v435
        %2551 = vmatprep.subr.mxu0 0.0
        %2552 = vmatpush1.msra.mxu0 %v436
        %2553 = vmatprep.subr.mxu0 0.0
        %2554 = vmatpush1.msra.mxu0 %v437
        %2555 = vmatprep.subr.mxu0 0.0
        %2556 = vmatpush1.msra.mxu0 %v438
        %2557 = vmatprep.subr.mxu0 0.0
        %2558 = vmatpush1.msra.mxu0 0.0
        %2559 = vmatprep.subr.mxu0 0.0
        %2560 = vmatpush1.msra.mxu0 0.0
        %2561 = vmatprep.subr.mxu0 0.0
        %2562 = vmatpush1.msra.mxu0 0.0
        %2563 = vmatprep.subr.mxu0 0.0
        %2564 = vmatpush1.msra.mxu0 0.0
        %2565 = vmatprep.subr.mxu0 0.0
        %2566 = vmatpush1.msra.mxu0 0.0
        %2567 = vmatprep.subr.mxu0 0.0
        %2568 = vmatpush1.msra.mxu0 0.0
        %2569 = vmatprep.subr.mxu0 0.0
        %2570 = vmatpush1.msra.mxu0 0.0
        %2571 = vmatprep.subr.mxu0 0.0
        %2572 = vmatpush1.msra.mxu0 0.0
        %2573 = vmatprep.subr.mxu0 0.0
        %2574 = vmatpush1.msra.mxu0 0.0
        %2575 = vmatprep.subr.mxu0 0.0
        %2576 = vmatpush1.msra.mxu0 0.0
        %2577 = vmatprep.subr.mxu0 0.0
        %2578 = vmatpush1.msra.mxu0 0.0
        %2579 = vmatprep.subr.mxu0 0.0
        %2580 = vmatpush1.msra.mxu0 0.0
        %2581 = vmatprep.subr.mxu0 0.0
        %2582 = vmatpush1.msra.mxu0 0.0
        %2583 = vmatprep.subr.mxu0 0.0
        %2584 = vmatpush1.msra.mxu0 0.0
        %2585 = vmatprep.subr.mxu0 0.0
        %2586 = vmatpush1.msra.mxu0 0.0
        %2587 = vmatprep.subr.mxu0 0.0
        %2588 = vmatpush1.msra.mxu0 0.0
        %2589 = vmatprep.subr.mxu0 0.0
        %2590 = vmatpush1.msra.mxu0 0.0
        %2591 = vmatprep.subr.mxu0 0.0
        %2592 = vmatpush1.msra.mxu0 0.0
        %2593 = vmatprep.subr.mxu0 0.0
        %2594 = vmatpush1.msra.mxu0 0.0
        %2595 = vmatprep.subr.mxu0 0.0
        %2596 = vmatpush1.msra.mxu0 0.0
        %2597 = vmatprep.subr.mxu0 0.0
        %2598 = vmatpush1.msra.mxu0 0.0
        %2599 = vmatprep.subr.mxu0 0.0
        %2600 = vmatpush1.msra.mxu0 0.0
        %2601 = vmatprep.subr.mxu0 0.0
        %2602 = vmatpush1.msra.mxu0 0.0
        %2603 = vmatprep.subr.mxu0 0.0
        %2604 = vmatpush1.msra.mxu0 0.0
        %2605 = vmatprep.subr.mxu0 0.0
        %2606 = vmatpush1.msra.mxu0 0.0
        %2607 = vmatprep.subr.mxu0 0.0
        %2608 = vmatpush1.msra.mxu0 0.0
        %2609 = vmatprep.subr.mxu0 0.0
        %2610 = vmatpush1.msra.mxu0 0.0
        %2611 = vmatprep.subr.mxu0 0.0
        %2612 = vmatpush1.msra.mxu0 0.0
        %2613 = vmatprep.mubr.f32.mxu0 0.0
        %2614 = vmatmul.mubr.f32.gmra.mrb[0].mxu0 %v2547
        %v2615 = vpop.f32.mrb[0].mxu0
        %v2616 = vadd.f32 0.0, %v2615
        %v2617 = vpop.f32.mrb[0].mxu0
        %2618 = vdwg.mxu0
        %2620 = vrot.lane.b32.xlu0 %v2616, 64
        %v2621 = vpop.permute.xlu0 %2620
        %v2623 = vadd.f32 %v2456, %v2621
        %v2624 = vadd.f32 %v2623, %v899
        %v2625 = vtanh.pop %v2624
        %v2626 = vmul.f32 %v2539, %v2203
        %v2627 = vsub.f32 1.0, %v2539
        %2629 = vrot.lane.b32.xlu0 %v2625, 64
        %v2630 = vpop.permute.xlu0 %2629
        %v2632 = vmul.f32 %v2627, %v2630
        %v2633 = vadd.f32 %v2626, %v2632
        %v2634 = vsel %vm2384, %v2633, %v2203
        %s2635 = scalar_lea.vmem %s407, 32 [#allocation11]
        %2636 = vst.msk [vmem:[%s2635] sm:$0xff] %vm477, %v2634
        %s2637 = scalar_lea.vmem %s361, 40 [#allocation2]
        %v2638 = vld [vmem:[%s2637] sm:$0xff]
        %s2639 = sadd.s32 %s475, 5
        %p2640 = scmp.lt.s32.totalorder %s2639, 24
        %2641 = vmatprep.subr.mxu0 0.0
        %2642 = vmatpush1.msra.mxu0 %v421
        %2643 = vmatprep.subr.mxu0 0.0
        %2644 = vmatpush1.msra.mxu0 %v422
        %2645 = vmatprep.subr.mxu0 0.0
        %2646 = vmatpush1.msra.mxu0 %v423
        %2647 = vmatprep.subr.mxu0 0.0
        %2648 = vmatpush1.msra.mxu0 %v424
        %2649 = vmatprep.subr.mxu0 0.0
        %2650 = vmatpush1.msra.mxu0 0.0
        %2651 = vmatprep.subr.mxu0 0.0
        %2652 = vmatpush1.msra.mxu0 0.0
        %2653 = vmatprep.subr.mxu0 0.0
        %2654 = vmatpush1.msra.mxu0 0.0
        %2655 = vmatprep.subr.mxu0 0.0
        %2656 = vmatpush1.msra.mxu0 0.0
        %2657 = vmatprep.subr.mxu0 0.0
        %2658 = vmatpush1.msra.mxu0 0.0
        %2659 = vmatprep.subr.mxu0 0.0
        %2660 = vmatpush1.msra.mxu0 0.0
        %2661 = vmatprep.subr.mxu0 0.0
        %2662 = vmatpush1.msra.mxu0 0.0
        %2663 = vmatprep.subr.mxu0 0.0
        %2664 = vmatpush1.msra.mxu0 0.0
        %2665 = vmatprep.subr.mxu0 0.0
        %2666 = vmatpush1.msra.mxu0 0.0
        %2667 = vmatprep.subr.mxu0 0.0
        %2668 = vmatpush1.msra.mxu0 0.0
        %2669 = vmatprep.subr.mxu0 0.0
        %2670 = vmatpush1.msra.mxu0 0.0
        %2671 = vmatprep.subr.mxu0 0.0
        %2672 = vmatpush1.msra.mxu0 0.0
        %2673 = vmatprep.subr.mxu0 0.0
        %2674 = vmatpush1.msra.mxu0 0.0
        %2675 = vmatprep.subr.mxu0 0.0
        %2676 = vmatpush1.msra.mxu0 0.0
        %2677 = vmatprep.subr.mxu0 0.0
        %2678 = vmatpush1.msra.mxu0 0.0
        %2679 = vmatprep.subr.mxu0 0.0
        %2680 = vmatpush1.msra.mxu0 0.0
        %2681 = vmatprep.subr.mxu0 0.0
        %2682 = vmatpush1.msra.mxu0 0.0
        %2683 = vmatprep.subr.mxu0 0.0
        %2684 = vmatpush1.msra.mxu0 0.0
        %2685 = vmatprep.subr.mxu0 0.0
        %2686 = vmatpush1.msra.mxu0 0.0
        %2687 = vmatprep.subr.mxu0 0.0
        %2688 = vmatpush1.msra.mxu0 0.0
        %2689 = vmatprep.subr.mxu0 0.0
        %2690 = vmatpush1.msra.mxu0 0.0
        %2691 = vmatprep.subr.mxu0 0.0
        %2692 = vmatpush1.msra.mxu0 0.0
        %2693 = vmatprep.subr.mxu0 0.0
        %2694 = vmatpush1.msra.mxu0 0.0
        %2695 = vmatprep.subr.mxu0 0.0
        %2696 = vmatpush1.msra.mxu0 0.0
        %2697 = vmatprep.subr.mxu0 0.0
        %2698 = vmatpush1.msra.mxu0 0.0
        %2699 = vmatprep.subr.mxu0 0.0
        %2700 = vmatpush1.msra.mxu0 0.0
        %2701 = vmatprep.subr.mxu0 0.0
        %2702 = vmatpush1.msra.mxu0 0.0
        %2703 = vmatprep.subr.mxu0 0.0
        %2704 = vmatpush1.msra.mxu0 0.0
        %2705 = vmatprep.mubr.f32.mxu0 0.0
        %2706 = vmatmul.mubr.f32.gmra.mrb[0].mxu0 %v2387
        %v2707 = vpop.f32.mrb[0].mxu0
        %v2708 = vadd.f32 0.0, %v2707
        %v2709 = vpop.f32.mrb[0].mxu0
        %2710 = vdwg.mxu0
        %v2711 = vadd.f32 %v2638, %v2708
        %v2712 = vadd.f32 %v2711, %v448
        %v2713 = vxor.u32 %v2712, 2147483648
        %v2714 = vmul.f32 %v2713, 1.442695
        %v2715 = vpow.pop %v2714
        %v2716 = vadd.f32 %v2715, 1.0
        %v2717 = vrcp.pop %v2716
        %v2718 = vmul.f32 1.0, %v2717
        %2719 = vrot.lane.b32.xlu0 %v2385, 32
        %v2720 = vpop.permute.xlu0 %2719
        %v2722 = vmul.f32 %v2718, %v2720
        %2724 = vrot.lane.b32.xlu0 %v2722, 96
        %v2725 = vpop.permute.xlu0 %2724
        %v2726 = vsel %vm477, %v2725, 0
        %2728 = vmatprep.subr.mxu0 0.0
        %2729 = vmatpush1.msra.mxu0 %v430
        %2730 = vmatprep.subr.mxu0 0.0
        %2731 = vmatpush1.msra.mxu0 %v431
        %2732 = vmatprep.subr.mxu0 0.0
        %2733 = vmatpush1.msra.mxu0 %v432
        %2734 = vmatprep.subr.mxu0 0.0
        %2735 = vmatpush1.msra.mxu0 %v433
        %2736 = vmatprep.subr.mxu0 0.0
        %2737 = vmatpush1.msra.mxu0 0.0
        %2738 = vmatprep.subr.mxu0 0.0
        %2739 = vmatpush1.msra.mxu0 0.0
        %2740 = vmatprep.subr.mxu0 0.0
        %2741 = vmatpush1.msra.mxu0 0.0
        %2742 = vmatprep.subr.mxu0 0.0
        %2743 = vmatpush1.msra.mxu0 0.0
        %2744 = vmatprep.subr.mxu0 0.0
        %2745 = vmatpush1.msra.mxu0 0.0
        %2746 = vmatprep.subr.mxu0 0.0
        %2747 = vmatpush1.msra.mxu0 0.0
        %2748 = vmatprep.subr.mxu0 0.0
        %2749 = vmatpush1.msra.mxu0 0.0
        %2750 = vmatprep.subr.mxu0 0.0
        %2751 = vmatpush1.msra.mxu0 0.0
        %2752 = vmatprep.subr.mxu0 0.0
        %2753 = vmatpush1.msra.mxu0 0.0
        %2754 = vmatprep.subr.mxu0 0.0
        %2755 = vmatpush1.msra.mxu0 0.0
        %2756 = vmatprep.subr.mxu0 0.0
        %2757 = vmatpush1.msra.mxu0 0.0
        %2758 = vmatprep.subr.mxu0 0.0
        %2759 = vmatpush1.msra.mxu0 0.0
        %2760 = vmatprep.subr.mxu0 0.0
        %2761 = vmatpush1.msra.mxu0 0.0
        %2762 = vmatprep.subr.mxu0 0.0
        %2763 = vmatpush1.msra.mxu0 0.0
        %2764 = vmatprep.subr.mxu0 0.0
        %2765 = vmatpush1.msra.mxu0 0.0
        %2766 = vmatprep.subr.mxu0 0.0
        %2767 = vmatpush1.msra.mxu0 0.0
        %2768 = vmatprep.subr.mxu0 0.0
        %2769 = vmatpush1.msra.mxu0 0.0
        %2770 = vmatprep.subr.mxu0 0.0
        %2771 = vmatpush1.msra.mxu0 0.0
        %2772 = vmatprep.subr.mxu0 0.0
        %2773 = vmatpush1.msra.mxu0 0.0
        %2774 = vmatprep.subr.mxu0 0.0
        %2775 = vmatpush1.msra.mxu0 0.0
        %2776 = vmatprep.subr.mxu0 0.0
        %2777 = vmatpush1.msra.mxu0 0.0
        %2778 = vmatprep.subr.mxu0 0.0
        %2779 = vmatpush1.msra.mxu0 0.0
        %2780 = vmatprep.subr.mxu0 0.0
        %2781 = vmatpush1.msra.mxu0 0.0
        %2782 = vmatprep.subr.mxu0 0.0
        %2783 = vmatpush1.msra.mxu0 0.0
        %2784 = vmatprep.subr.mxu0 0.0
        %2785 = vmatpush1.msra.mxu0 0.0
        %2786 = vmatprep.subr.mxu0 0.0
        %2787 = vmatpush1.msra.mxu0 0.0
        %2788 = vmatprep.subr.mxu0 0.0
        %2789 = vmatpush1.msra.mxu0 0.0
        %2790 = vmatprep.subr.mxu0 0.0
        %2791 = vmatpush1.msra.mxu0 0.0
        %2792 = vmatprep.mubr.f32.mxu0 0.0
        %2793 = vmatmul.mubr.f32.gmra.mrb[0].mxu0 %v2726
        %v2794 = vpop.f32.mrb[0].mxu0
        %v2795 = vadd.f32 0.0, %v2794
        %v2796 = vpop.f32.mrb[0].mxu0
        %2797 = vdwg.mxu0
        %2799 = vrot.lane.b32.xlu0 %v2795, 64
        %v2800 = vpop.permute.xlu0 %2799
        %v2802 = vadd.f32 %v2638, %v2800
        %v2803 = vadd.f32 %v2802, %v644
        %v2804 = vtanh.pop %v2803
        %v2805 = vmul.f32 %v2718, %v2385
        %v2806 = vsub.f32 1.0, %v2718
        %2808 = vrot.lane.b32.xlu0 %v2804, 64
        %v2809 = vpop.permute.xlu0 %2808
        %v2811 = vmul.f32 %v2806, %v2809
        %v2812 = vadd.f32 %v2805, %v2811
        %s2813 = scalar_select %p2640, 1, 0
        %v2814 = vstv %s2813
        %vm2815 = vcmp.eq.s32.totalorder %v2814, 1
        %v2816 = vsel %vm2815, %v2812, %v2385
        %v2818 = vsel %vm477, %v2816, 0
        %2820 = vmatprep.subr.mxu0 0.0
        %2821 = vmatpush1.msra.mxu0 %v439
        %2822 = vmatprep.subr.mxu0 0.0
        %2823 = vmatpush1.msra.mxu0 %v440
        %2824 = vmatprep.subr.mxu0 0.0
        %2825 = vmatpush1.msra.mxu0 %v441
        %2826 = vmatprep.subr.mxu0 0.0
        %2827 = vmatpush1.msra.mxu0 %v442
        %2828 = vmatprep.subr.mxu0 0.0
        %2829 = vmatpush1.msra.mxu0 0.0
        %2830 = vmatprep.subr.mxu0 0.0
        %2831 = vmatpush1.msra.mxu0 0.0
        %2832 = vmatprep.subr.mxu0 0.0
        %2833 = vmatpush1.msra.mxu0 0.0
        %2834 = vmatprep.subr.mxu0 0.0
        %2835 = vmatpush1.msra.mxu0 0.0
        %2836 = vmatprep.subr.mxu0 0.0
        %2837 = vmatpush1.msra.mxu0 0.0
        %2838 = vmatprep.subr.mxu0 0.0
        %2839 = vmatpush1.msra.mxu0 0.0
        %2840 = vmatprep.subr.mxu0 0.0
        %2841 = vmatpush1.msra.mxu0 0.0
        %2842 = vmatprep.subr.mxu0 0.0
        %2843 = vmatpush1.msra.mxu0 0.0
        %2844 = vmatprep.subr.mxu0 0.0
        %2845 = vmatpush1.msra.mxu0 0.0
        %2846 = vmatprep.subr.mxu0 0.0
        %2847 = vmatpush1.msra.mxu0 0.0
        %2848 = vmatprep.subr.mxu0 0.0
        %2849 = vmatpush1.msra.mxu0 0.0
        %2850 = vmatprep.subr.mxu0 0.0
        %2851 = vmatpush1.msra.mxu0 0.0
        %2852 = vmatprep.subr.mxu0 0.0
        %2853 = vmatpush1.msra.mxu0 0.0
        %2854 = vmatprep.subr.mxu0 0.0
        %2855 = vmatpush1.msra.mxu0 0.0
        %2856 = vmatprep.subr.mxu0 0.0
        %2857 = vmatpush1.msra.mxu0 0.0
        %2858 = vmatprep.subr.mxu0 0.0
        %2859 = vmatpush1.msra.mxu0 0.0
        %2860 = vmatprep.subr.mxu0 0.0
        %2861 = vmatpush1.msra.mxu0 0.0
        %2862 = vmatprep.subr.mxu0 0.0
        %2863 = vmatpush1.msra.mxu0 0.0
        %2864 = vmatprep.subr.mxu0 0.0
        %2865 = vmatpush1.msra.mxu0 0.0
        %2866 = vmatprep.subr.mxu0 0.0
        %2867 = vmatpush1.msra.mxu0 0.0
        %2868 = vmatprep.subr.mxu0 0.0
        %2869 = vmatpush1.msra.mxu0 0.0
        %2870 = vmatprep.subr.mxu0 0.0
        %2871 = vmatpush1.msra.mxu0 0.0
        %2872 = vmatprep.subr.mxu0 0.0
        %2873 = vmatpush1.msra.mxu0 0.0
        %2874 = vmatprep.subr.mxu0 0.0
        %2875 = vmatpush1.msra.mxu0 0.0
        %2876 = vmatprep.subr.mxu0 0.0
        %2877 = vmatpush1.msra.mxu0 0.0
        %2878 = vmatprep.subr.mxu0 0.0
        %2879 = vmatpush1.msra.mxu0 0.0
        %2880 = vmatprep.subr.mxu0 0.0
        %2881 = vmatpush1.msra.mxu0 0.0
        %2882 = vmatprep.subr.mxu0 0.0
        %2883 = vmatpush1.msra.mxu0 0.0
        %2884 = vmatprep.mubr.f32.mxu0 0.0
        %2885 = vmatmul.mubr.f32.gmra.mrb[0].mxu0 %v2818
        %v2886 = vpop.f32.mrb[0].mxu0
        %v2887 = vadd.f32 0.0, %v2886
        %v2888 = vpop.f32.mrb[0].mxu0
        %2889 = vdwg.mxu0
        %v2891 = vsel %vm477, %v2634, 0
        %2893 = vmatprep.subr.mxu0 0.0
        %2894 = vmatpush1.msra.mxu0 %v426
        %2895 = vmatprep.subr.mxu0 0.0
        %2896 = vmatpush1.msra.mxu0 %v427
        %2897 = vmatprep.subr.mxu0 0.0
        %2898 = vmatpush1.msra.mxu0 %v428
        %2899 = vmatprep.subr.mxu0 0.0
        %2900 = vmatpush1.msra.mxu0 %v429
        %2901 = vmatprep.subr.mxu0 0.0
        %2902 = vmatpush1.msra.mxu0 0.0
        %2903 = vmatprep.subr.mxu0 0.0
        %2904 = vmatpush1.msra.mxu0 0.0
        %2905 = vmatprep.subr.mxu0 0.0
        %2906 = vmatpush1.msra.mxu0 0.0
        %2907 = vmatprep.subr.mxu0 0.0
        %2908 = vmatpush1.msra.mxu0 0.0
        %2909 = vmatprep.subr.mxu0 0.0
        %2910 = vmatpush1.msra.mxu0 0.0
        %2911 = vmatprep.subr.mxu0 0.0
        %2912 = vmatpush1.msra.mxu0 0.0
        %2913 = vmatprep.subr.mxu0 0.0
        %2914 = vmatpush1.msra.mxu0 0.0
        %2915 = vmatprep.subr.mxu0 0.0
        %2916 = vmatpush1.msra.mxu0 0.0
        %2917 = vmatprep.subr.mxu0 0.0
        %2918 = vmatpush1.msra.mxu0 0.0
        %2919 = vmatprep.subr.mxu0 0.0
        %2920 = vmatpush1.msra.mxu0 0.0
        %2921 = vmatprep.subr.mxu0 0.0
        %2922 = vmatpush1.msra.mxu0 0.0
        %2923 = vmatprep.subr.mxu0 0.0
        %2924 = vmatpush1.msra.mxu0 0.0
        %2925 = vmatprep.subr.mxu0 0.0
        %2926 = vmatpush1.msra.mxu0 0.0
        %2927 = vmatprep.subr.mxu0 0.0
        %2928 = vmatpush1.msra.mxu0 0.0
        %2929 = vmatprep.subr.mxu0 0.0
        %2930 = vmatpush1.msra.mxu0 0.0
        %2931 = vmatprep.subr.mxu0 0.0
        %2932 = vmatpush1.msra.mxu0 0.0
        %2933 = vmatprep.subr.mxu0 0.0
        %2934 = vmatpush1.msra.mxu0 0.0
        %2935 = vmatprep.subr.mxu0 0.0
        %2936 = vmatpush1.msra.mxu0 0.0
        %2937 = vmatprep.subr.mxu0 0.0
        %2938 = vmatpush1.msra.mxu0 0.0
        %2939 = vmatprep.subr.mxu0 0.0
        %2940 = vmatpush1.msra.mxu0 0.0
        %2941 = vmatprep.subr.mxu0 0.0
        %2942 = vmatpush1.msra.mxu0 0.0
        %2943 = vmatprep.subr.mxu0 0.0
        %2944 = vmatpush1.msra.mxu0 0.0
        %2945 = vmatprep.subr.mxu0 0.0
        %2946 = vmatpush1.msra.mxu0 0.0
        %2947 = vmatprep.subr.mxu0 0.0
        %2948 = vmatpush1.msra.mxu0 0.0
        %2949 = vmatprep.subr.mxu0 0.0
        %2950 = vmatpush1.msra.mxu0 0.0
        %2951 = vmatprep.subr.mxu0 0.0
        %2952 = vmatpush1.msra.mxu0 0.0
        %2953 = vmatprep.subr.mxu0 0.0
        %2954 = vmatpush1.msra.mxu0 0.0
        %2955 = vmatprep.subr.mxu0 0.0
        %2956 = vmatpush1.msra.mxu0 0.0
        %2957 = vmatprep.mubr.f32.mxu0 0.0
        %2958 = vmatmul.mubr.f32.gmra.mrb[0].mxu0 %v2891
        %v2959 = vpop.f32.mrb[0].mxu0
        %v2960 = vadd.f32 0.0, %v2959
        %v2961 = vpop.f32.mrb[0].mxu0
        %2962 = vdwg.mxu0
        %v2963 = vadd.f32 %v2887, %v2960
        %v2964 = vadd.f32 %v2963, %v456
        %v2965 = vxor.u32 %v2964, 2147483648
        %v2966 = vmul.f32 %v2965, 1.442695
        %v2967 = vpow.pop %v2966
        %v2968 = vadd.f32 %v2967, 1.0
        %v2969 = vrcp.pop %v2968
        %v2970 = vmul.f32 1.0, %v2969
        %2971 = vrot.lane.b32.xlu0 %v2634, 32
        %v2972 = vpop.permute.xlu0 %2971
        %v2974 = vmul.f32 %v2970, %v2972
        %2976 = vrot.lane.b32.xlu0 %v2974, 96
        %v2977 = vpop.permute.xlu0 %2976
        %v2978 = vsel %vm477, %v2977, 0
        %2980 = vmatprep.subr.mxu0 0.0
        %2981 = vmatpush1.msra.mxu0 %v435
        %2982 = vmatprep.subr.mxu0 0.0
        %2983 = vmatpush1.msra.mxu0 %v436
        %2984 = vmatprep.subr.mxu0 0.0
        %2985 = vmatpush1.msra.mxu0 %v437
        %2986 = vmatprep.subr.mxu0 0.0
        %2987 = vmatpush1.msra.mxu0 %v438
        %2988 = vmatprep.subr.mxu0 0.0
        %2989 = vmatpush1.msra.mxu0 0.0
        %2990 = vmatprep.subr.mxu0 0.0
        %2991 = vmatpush1.msra.mxu0 0.0
        %2992 = vmatprep.subr.mxu0 0.0
        %2993 = vmatpush1.msra.mxu0 0.0
        %2994 = vmatprep.subr.mxu0 0.0
        %2995 = vmatpush1.msra.mxu0 0.0
        %2996 = vmatprep.subr.mxu0 0.0
        %2997 = vmatpush1.msra.mxu0 0.0
        %2998 = vmatprep.subr.mxu0 0.0
        %2999 = vmatpush1.msra.mxu0 0.0
        %3000 = vmatprep.subr.mxu0 0.0
        %3001 = vmatpush1.msra.mxu0 0.0
        %3002 = vmatprep.subr.mxu0 0.0
        %3003 = vmatpush1.msra.mxu0 0.0
        %3004 = vmatprep.subr.mxu0 0.0
        %3005 = vmatpush1.msra.mxu0 0.0
        %3006 = vmatprep.subr.mxu0 0.0
        %3007 = vmatpush1.msra.mxu0 0.0
        %3008 = vmatprep.subr.mxu0 0.0
        %3009 = vmatpush1.msra.mxu0 0.0
        %3010 = vmatprep.subr.mxu0 0.0
        %3011 = vmatpush1.msra.mxu0 0.0
        %3012 = vmatprep.subr.mxu0 0.0
        %3013 = vmatpush1.msra.mxu0 0.0
        %3014 = vmatprep.subr.mxu0 0.0
        %3015 = vmatpush1.msra.mxu0 0.0
        %3016 = vmatprep.subr.mxu0 0.0
        %3017 = vmatpush1.msra.mxu0 0.0
        %3018 = vmatprep.subr.mxu0 0.0
        %3019 = vmatpush1.msra.mxu0 0.0
        %3020 = vmatprep.subr.mxu0 0.0
        %3021 = vmatpush1.msra.mxu0 0.0
        %3022 = vmatprep.subr.mxu0 0.0
        %3023 = vmatpush1.msra.mxu0 0.0
        %3024 = vmatprep.subr.mxu0 0.0
        %3025 = vmatpush1.msra.mxu0 0.0
        %3026 = vmatprep.subr.mxu0 0.0
        %3027 = vmatpush1.msra.mxu0 0.0
        %3028 = vmatprep.subr.mxu0 0.0
        %3029 = vmatpush1.msra.mxu0 0.0
        %3030 = vmatprep.subr.mxu0 0.0
        %3031 = vmatpush1.msra.mxu0 0.0
        %3032 = vmatprep.subr.mxu0 0.0
        %3033 = vmatpush1.msra.mxu0 0.0
        %3034 = vmatprep.subr.mxu0 0.0
        %3035 = vmatpush1.msra.mxu0 0.0
        %3036 = vmatprep.subr.mxu0 0.0
        %3037 = vmatpush1.msra.mxu0 0.0
        %3038 = vmatprep.subr.mxu0 0.0
        %3039 = vmatpush1.msra.mxu0 0.0
        %3040 = vmatprep.subr.mxu0 0.0
        %3041 = vmatpush1.msra.mxu0 0.0
        %3042 = vmatprep.subr.mxu0 0.0
        %3043 = vmatpush1.msra.mxu0 0.0
        %3044 = vmatprep.mubr.f32.mxu0 0.0
        %3045 = vmatmul.mubr.f32.gmra.mrb[0].mxu0 %v2978
        %v3046 = vpop.f32.mrb[0].mxu0
        %v3047 = vadd.f32 0.0, %v3046
        %v3048 = vpop.f32.mrb[0].mxu0
        %3049 = vdwg.mxu0
        %3051 = vrot.lane.b32.xlu0 %v3047, 64
        %v3052 = vpop.permute.xlu0 %3051
        %v3054 = vadd.f32 %v2887, %v3052
        %v3055 = vadd.f32 %v3054, %v899
        %v3056 = vtanh.pop %v3055
        %v3057 = vmul.f32 %v2970, %v2634
        %v3058 = vsub.f32 1.0, %v2970
        %3060 = vrot.lane.b32.xlu0 %v3056, 64
        %v3061 = vpop.permute.xlu0 %3060
        %v3063 = vmul.f32 %v3058, %v3061
        %v3064 = vadd.f32 %v3057, %v3063
        %v3065 = vsel %vm2815, %v3064, %v2634
        %s3066 = scalar_lea.vmem %s407, 40 [#allocation11]
        %3067 = vst.msk [vmem:[%s3066] sm:$0xff] %vm477, %v3065
        %s3068 = scalar_lea.vmem %s361, 48 [#allocation2]
        %v3069 = vld [vmem:[%s3068] sm:$0xff]
        %s3070 = sadd.s32 %s475, 6
        %p3071 = scmp.lt.s32.totalorder %s3070, 24
        %3072 = vmatprep.subr.mxu0 0.0
        %3073 = vmatpush1.msra.mxu0 %v421
        %3074 = vmatprep.subr.mxu0 0.0
        %3075 = vmatpush1.msra.mxu0 %v422
        %3076 = vmatprep.subr.mxu0 0.0
        %3077 = vmatpush1.msra.mxu0 %v423
        %3078 = vmatprep.subr.mxu0 0.0
        %3079 = vmatpush1.msra.mxu0 %v424
        %3080 = vmatprep.subr.mxu0 0.0
        %3081 = vmatpush1.msra.mxu0 0.0
        %3082 = vmatprep.subr.mxu0 0.0
        %3083 = vmatpush1.msra.mxu0 0.0
        %3084 = vmatprep.subr.mxu0 0.0
        %3085 = vmatpush1.msra.mxu0 0.0
        %3086 = vmatprep.subr.mxu0 0.0
        %3087 = vmatpush1.msra.mxu0 0.0
        %3088 = vmatprep.subr.mxu0 0.0
        %3089 = vmatpush1.msra.mxu0 0.0
        %3090 = vmatprep.subr.mxu0 0.0
        %3091 = vmatpush1.msra.mxu0 0.0
        %3092 = vmatprep.subr.mxu0 0.0
        %3093 = vmatpush1.msra.mxu0 0.0
        %3094 = vmatprep.subr.mxu0 0.0
        %3095 = vmatpush1.msra.mxu0 0.0
        %3096 = vmatprep.subr.mxu0 0.0
        %3097 = vmatpush1.msra.mxu0 0.0
        %3098 = vmatprep.subr.mxu0 0.0
        %3099 = vmatpush1.msra.mxu0 0.0
        %3100 = vmatprep.subr.mxu0 0.0
        %3101 = vmatpush1.msra.mxu0 0.0
        %3102 = vmatprep.subr.mxu0 0.0
        %3103 = vmatpush1.msra.mxu0 0.0
        %3104 = vmatprep.subr.mxu0 0.0
        %3105 = vmatpush1.msra.mxu0 0.0
        %3106 = vmatprep.subr.mxu0 0.0
        %3107 = vmatpush1.msra.mxu0 0.0
        %3108 = vmatprep.subr.mxu0 0.0
        %3109 = vmatpush1.msra.mxu0 0.0
        %3110 = vmatprep.subr.mxu0 0.0
        %3111 = vmatpush1.msra.mxu0 0.0
        %3112 = vmatprep.subr.mxu0 0.0
        %3113 = vmatpush1.msra.mxu0 0.0
        %3114 = vmatprep.subr.mxu0 0.0
        %3115 = vmatpush1.msra.mxu0 0.0
        %3116 = vmatprep.subr.mxu0 0.0
        %3117 = vmatpush1.msra.mxu0 0.0
        %3118 = vmatprep.subr.mxu0 0.0
        %3119 = vmatpush1.msra.mxu0 0.0
        %3120 = vmatprep.subr.mxu0 0.0
        %3121 = vmatpush1.msra.mxu0 0.0
        %3122 = vmatprep.subr.mxu0 0.0
        %3123 = vmatpush1.msra.mxu0 0.0
        %3124 = vmatprep.subr.mxu0 0.0
        %3125 = vmatpush1.msra.mxu0 0.0
        %3126 = vmatprep.subr.mxu0 0.0
        %3127 = vmatpush1.msra.mxu0 0.0
        %3128 = vmatprep.subr.mxu0 0.0
        %3129 = vmatpush1.msra.mxu0 0.0
        %3130 = vmatprep.subr.mxu0 0.0
        %3131 = vmatpush1.msra.mxu0 0.0
        %3132 = vmatprep.subr.mxu0 0.0
        %3133 = vmatpush1.msra.mxu0 0.0
        %3134 = vmatprep.subr.mxu0 0.0
        %3135 = vmatpush1.msra.mxu0 0.0
        %3136 = vmatprep.mubr.f32.mxu0 0.0
        %3137 = vmatmul.mubr.f32.gmra.mrb[0].mxu0 %v2818
        %v3138 = vpop.f32.mrb[0].mxu0
        %v3139 = vadd.f32 0.0, %v3138
        %v3140 = vpop.f32.mrb[0].mxu0
        %3141 = vdwg.mxu0
        %v3142 = vadd.f32 %v3069, %v3139
        %v3143 = vadd.f32 %v3142, %v448
        %v3144 = vxor.u32 %v3143, 2147483648
        %v3145 = vmul.f32 %v3144, 1.442695
        %v3146 = vpow.pop %v3145
        %v3147 = vadd.f32 %v3146, 1.0
        %v3148 = vrcp.pop %v3147
        %v3149 = vmul.f32 1.0, %v3148
        %3150 = vrot.lane.b32.xlu0 %v2816, 32
        %v3151 = vpop.permute.xlu0 %3150
        %v3153 = vmul.f32 %v3149, %v3151
        %3155 = vrot.lane.b32.xlu0 %v3153, 96
        %v3156 = vpop.permute.xlu0 %3155
        %v3157 = vsel %vm477, %v3156, 0
        %3159 = vmatprep.subr.mxu0 0.0
        %3160 = vmatpush1.msra.mxu0 %v430
        %3161 = vmatprep.subr.mxu0 0.0
        %3162 = vmatpush1.msra.mxu0 %v431
        %3163 = vmatprep.subr.mxu0 0.0
        %3164 = vmatpush1.msra.mxu0 %v432
        %3165 = vmatprep.subr.mxu0 0.0
        %3166 = vmatpush1.msra.mxu0 %v433
        %3167 = vmatprep.subr.mxu0 0.0
        %3168 = vmatpush1.msra.mxu0 0.0
        %3169 = vmatprep.subr.mxu0 0.0
        %3170 = vmatpush1.msra.mxu0 0.0
        %3171 = vmatprep.subr.mxu0 0.0
        %3172 = vmatpush1.msra.mxu0 0.0
        %3173 = vmatprep.subr.mxu0 0.0
        %3174 = vmatpush1.msra.mxu0 0.0
        %3175 = vmatprep.subr.mxu0 0.0
        %3176 = vmatpush1.msra.mxu0 0.0
        %3177 = vmatprep.subr.mxu0 0.0
        %3178 = vmatpush1.msra.mxu0 0.0
        %3179 = vmatprep.subr.mxu0 0.0
        %3180 = vmatpush1.msra.mxu0 0.0
        %3181 = vmatprep.subr.mxu0 0.0
        %3182 = vmatpush1.msra.mxu0 0.0
        %3183 = vmatprep.subr.mxu0 0.0
        %3184 = vmatpush1.msra.mxu0 0.0
        %3185 = vmatprep.subr.mxu0 0.0
        %3186 = vmatpush1.msra.mxu0 0.0
        %3187 = vmatprep.subr.mxu0 0.0
        %3188 = vmatpush1.msra.mxu0 0.0
        %3189 = vmatprep.subr.mxu0 0.0
        %3190 = vmatpush1.msra.mxu0 0.0
        %3191 = vmatprep.subr.mxu0 0.0
        %3192 = vmatpush1.msra.mxu0 0.0
        %3193 = vmatprep.subr.mxu0 0.0
        %3194 = vmatpush1.msra.mxu0 0.0
        %3195 = vmatprep.subr.mxu0 0.0
        %3196 = vmatpush1.msra.mxu0 0.0
        %3197 = vmatprep.subr.mxu0 0.0
        %3198 = vmatpush1.msra.mxu0 0.0
        %3199 = vmatprep.subr.mxu0 0.0
        %3200 = vmatpush1.msra.mxu0 0.0
        %3201 = vmatprep.subr.mxu0 0.0
        %3202 = vmatpush1.msra.mxu0 0.0
        %3203 = vmatprep.subr.mxu0 0.0
        %3204 = vmatpush1.msra.mxu0 0.0
        %3205 = vmatprep.subr.mxu0 0.0
        %3206 = vmatpush1.msra.mxu0 0.0
        %3207 = vmatprep.subr.mxu0 0.0
        %3208 = vmatpush1.msra.mxu0 0.0
        %3209 = vmatprep.subr.mxu0 0.0
        %3210 = vmatpush1.msra.mxu0 0.0
        %3211 = vmatprep.subr.mxu0 0.0
        %3212 = vmatpush1.msra.mxu0 0.0
        %3213 = vmatprep.subr.mxu0 0.0
        %3214 = vmatpush1.msra.mxu0 0.0
        %3215 = vmatprep.subr.mxu0 0.0
        %3216 = vmatpush1.msra.mxu0 0.0
        %3217 = vmatprep.subr.mxu0 0.0
        %3218 = vmatpush1.msra.mxu0 0.0
        %3219 = vmatprep.subr.mxu0 0.0
        %3220 = vmatpush1.msra.mxu0 0.0
        %3221 = vmatprep.subr.mxu0 0.0
        %3222 = vmatpush1.msra.mxu0 0.0
        %3223 = vmatprep.mubr.f32.mxu0 0.0
        %3224 = vmatmul.mubr.f32.gmra.mrb[0].mxu0 %v3157
        %v3225 = vpop.f32.mrb[0].mxu0
        %v3226 = vadd.f32 0.0, %v3225
        %v3227 = vpop.f32.mrb[0].mxu0
        %3228 = vdwg.mxu0
        %3230 = vrot.lane.b32.xlu0 %v3226, 64
        %v3231 = vpop.permute.xlu0 %3230
        %v3233 = vadd.f32 %v3069, %v3231
        %v3234 = vadd.f32 %v3233, %v644
        %v3235 = vtanh.pop %v3234
        %v3236 = vmul.f32 %v3149, %v2816
        %v3237 = vsub.f32 1.0, %v3149
        %3239 = vrot.lane.b32.xlu0 %v3235, 64
        %v3240 = vpop.permute.xlu0 %3239
        %v3242 = vmul.f32 %v3237, %v3240
        %v3243 = vadd.f32 %v3236, %v3242
        %s3244 = scalar_select %p3071, 1, 0
        %v3245 = vstv %s3244
        %vm3246 = vcmp.eq.s32.totalorder %v3245, 1
        %v3247 = vsel %vm3246, %v3243, %v2816
        %v3249 = vsel %vm477, %v3247, 0
        %3251 = vmatprep.subr.mxu0 0.0
        %3252 = vmatpush1.msra.mxu0 %v439
        %3253 = vmatprep.subr.mxu0 0.0
        %3254 = vmatpush1.msra.mxu0 %v440
        %3255 = vmatprep.subr.mxu0 0.0
        %3256 = vmatpush1.msra.mxu0 %v441
        %3257 = vmatprep.subr.mxu0 0.0
        %3258 = vmatpush1.msra.mxu0 %v442
        %3259 = vmatprep.subr.mxu0 0.0
        %3260 = vmatpush1.msra.mxu0 0.0
        %3261 = vmatprep.subr.mxu0 0.0
        %3262 = vmatpush1.msra.mxu0 0.0
        %3263 = vmatprep.subr.mxu0 0.0
        %3264 = vmatpush1.msra.mxu0 0.0
        %3265 = vmatprep.subr.mxu0 0.0
        %3266 = vmatpush1.msra.mxu0 0.0
        %3267 = vmatprep.subr.mxu0 0.0
        %3268 = vmatpush1.msra.mxu0 0.0
        %3269 = vmatprep.subr.mxu0 0.0
        %3270 = vmatpush1.msra.mxu0 0.0
        %3271 = vmatprep.subr.mxu0 0.0
        %3272 = vmatpush1.msra.mxu0 0.0
        %3273 = vmatprep.subr.mxu0 0.0
        %3274 = vmatpush1.msra.mxu0 0.0
        %3275 = vmatprep.subr.mxu0 0.0
        %3276 = vmatpush1.msra.mxu0 0.0
        %3277 = vmatprep.subr.mxu0 0.0
        %3278 = vmatpush1.msra.mxu0 0.0
        %3279 = vmatprep.subr.mxu0 0.0
        %3280 = vmatpush1.msra.mxu0 0.0
        %3281 = vmatprep.subr.mxu0 0.0
        %3282 = vmatpush1.msra.mxu0 0.0
        %3283 = vmatprep.subr.mxu0 0.0
        %3284 = vmatpush1.msra.mxu0 0.0
        %3285 = vmatprep.subr.mxu0 0.0
        %3286 = vmatpush1.msra.mxu0 0.0
        %3287 = vmatprep.subr.mxu0 0.0
        %3288 = vmatpush1.msra.mxu0 0.0
        %3289 = vmatprep.subr.mxu0 0.0
        %3290 = vmatpush1.msra.mxu0 0.0
        %3291 = vmatprep.subr.mxu0 0.0
        %3292 = vmatpush1.msra.mxu0 0.0
        %3293 = vmatprep.subr.mxu0 0.0
        %3294 = vmatpush1.msra.mxu0 0.0
        %3295 = vmatprep.subr.mxu0 0.0
        %3296 = vmatpush1.msra.mxu0 0.0
        %3297 = vmatprep.subr.mxu0 0.0
        %3298 = vmatpush1.msra.mxu0 0.0
        %3299 = vmatprep.subr.mxu0 0.0
        %3300 = vmatpush1.msra.mxu0 0.0
        %3301 = vmatprep.subr.mxu0 0.0
        %3302 = vmatpush1.msra.mxu0 0.0
        %3303 = vmatprep.subr.mxu0 0.0
        %3304 = vmatpush1.msra.mxu0 0.0
        %3305 = vmatprep.subr.mxu0 0.0
        %3306 = vmatpush1.msra.mxu0 0.0
        %3307 = vmatprep.subr.mxu0 0.0
        %3308 = vmatpush1.msra.mxu0 0.0
        %3309 = vmatprep.subr.mxu0 0.0
        %3310 = vmatpush1.msra.mxu0 0.0
        %3311 = vmatprep.subr.mxu0 0.0
        %3312 = vmatpush1.msra.mxu0 0.0
        %3313 = vmatprep.subr.mxu0 0.0
        %3314 = vmatpush1.msra.mxu0 0.0
        %3315 = vmatprep.mubr.f32.mxu0 0.0
        %3316 = vmatmul.mubr.f32.gmra.mrb[0].mxu0 %v3249
        %v3317 = vpop.f32.mrb[0].mxu0
        %v3318 = vadd.f32 0.0, %v3317
        %v3319 = vpop.f32.mrb[0].mxu0
        %3320 = vdwg.mxu0
        %v3322 = vsel %vm477, %v3065, 0
        %3324 = vmatprep.subr.mxu0 0.0
        %3325 = vmatpush1.msra.mxu0 %v426
        %3326 = vmatprep.subr.mxu0 0.0
        %3327 = vmatpush1.msra.mxu0 %v427
        %3328 = vmatprep.subr.mxu0 0.0
        %3329 = vmatpush1.msra.mxu0 %v428
        %3330 = vmatprep.subr.mxu0 0.0
        %3331 = vmatpush1.msra.mxu0 %v429
        %3332 = vmatprep.subr.mxu0 0.0
        %3333 = vmatpush1.msra.mxu0 0.0
        %3334 = vmatprep.subr.mxu0 0.0
        %3335 = vmatpush1.msra.mxu0 0.0
        %3336 = vmatprep.subr.mxu0 0.0
        %3337 = vmatpush1.msra.mxu0 0.0
        %3338 = vmatprep.subr.mxu0 0.0
        %3339 = vmatpush1.msra.mxu0 0.0
        %3340 = vmatprep.subr.mxu0 0.0
        %3341 = vmatpush1.msra.mxu0 0.0
        %3342 = vmatprep.subr.mxu0 0.0
        %3343 = vmatpush1.msra.mxu0 0.0
        %3344 = vmatprep.subr.mxu0 0.0
        %3345 = vmatpush1.msra.mxu0 0.0
        %3346 = vmatprep.subr.mxu0 0.0
        %3347 = vmatpush1.msra.mxu0 0.0
        %3348 = vmatprep.subr.mxu0 0.0
        %3349 = vmatpush1.msra.mxu0 0.0
        %3350 = vmatprep.subr.mxu0 0.0
        %3351 = vmatpush1.msra.mxu0 0.0
        %3352 = vmatprep.subr.mxu0 0.0
        %3353 = vmatpush1.msra.mxu0 0.0
        %3354 = vmatprep.subr.mxu0 0.0
        %3355 = vmatpush1.msra.mxu0 0.0
        %3356 = vmatprep.subr.mxu0 0.0
        %3357 = vmatpush1.msra.mxu0 0.0
        %3358 = vmatprep.subr.mxu0 0.0
        %3359 = vmatpush1.msra.mxu0 0.0
        %3360 = vmatprep.subr.mxu0 0.0
        %3361 = vmatpush1.msra.mxu0 0.0
        %3362 = vmatprep.subr.mxu0 0.0
        %3363 = vmatpush1.msra.mxu0 0.0
        %3364 = vmatprep.subr.mxu0 0.0
        %3365 = vmatpush1.msra.mxu0 0.0
        %3366 = vmatprep.subr.mxu0 0.0
        %3367 = vmatpush1.msra.mxu0 0.0
        %3368 = vmatprep.subr.mxu0 0.0
        %3369 = vmatpush1.msra.mxu0 0.0
        %3370 = vmatprep.subr.mxu0 0.0
        %3371 = vmatpush1.msra.mxu0 0.0
        %3372 = vmatprep.subr.mxu0 0.0
        %3373 = vmatpush1.msra.mxu0 0.0
        %3374 = vmatprep.subr.mxu0 0.0
        %3375 = vmatpush1.msra.mxu0 0.0
        %3376 = vmatprep.subr.mxu0 0.0
        %3377 = vmatpush1.msra.mxu0 0.0
        %3378 = vmatprep.subr.mxu0 0.0
        %3379 = vmatpush1.msra.mxu0 0.0
        %3380 = vmatprep.subr.mxu0 0.0
        %3381 = vmatpush1.msra.mxu0 0.0
        %3382 = vmatprep.subr.mxu0 0.0
        %3383 = vmatpush1.msra.mxu0 0.0
        %3384 = vmatprep.subr.mxu0 0.0
        %3385 = vmatpush1.msra.mxu0 0.0
        %3386 = vmatprep.subr.mxu0 0.0
        %3387 = vmatpush1.msra.mxu0 0.0
        %3388 = vmatprep.mubr.f32.mxu0 0.0
        %3389 = vmatmul.mubr.f32.gmra.mrb[0].mxu0 %v3322
        %v3390 = vpop.f32.mrb[0].mxu0
        %v3391 = vadd.f32 0.0, %v3390
        %v3392 = vpop.f32.mrb[0].mxu0
        %3393 = vdwg.mxu0
        %v3394 = vadd.f32 %v3318, %v3391
        %v3395 = vadd.f32 %v3394, %v456
        %v3396 = vxor.u32 %v3395, 2147483648
        %v3397 = vmul.f32 %v3396, 1.442695
        %v3398 = vpow.pop %v3397
        %v3399 = vadd.f32 %v3398, 1.0
        %v3400 = vrcp.pop %v3399
        %v3401 = vmul.f32 1.0, %v3400
        %3402 = vrot.lane.b32.xlu0 %v3065, 32
        %v3403 = vpop.permute.xlu0 %3402
        %v3405 = vmul.f32 %v3401, %v3403
        %3407 = vrot.lane.b32.xlu0 %v3405, 96
        %v3408 = vpop.permute.xlu0 %3407
        %v3409 = vsel %vm477, %v3408, 0
        %3411 = vmatprep.subr.mxu0 0.0
        %3412 = vmatpush1.msra.mxu0 %v435
        %3413 = vmatprep.subr.mxu0 0.0
        %3414 = vmatpush1.msra.mxu0 %v436
        %3415 = vmatprep.subr.mxu0 0.0
        %3416 = vmatpush1.msra.mxu0 %v437
        %3417 = vmatprep.subr.mxu0 0.0
        %3418 = vmatpush1.msra.mxu0 %v438
        %3419 = vmatprep.subr.mxu0 0.0
        %3420 = vmatpush1.msra.mxu0 0.0
        %3421 = vmatprep.subr.mxu0 0.0
        %3422 = vmatpush1.msra.mxu0 0.0
        %3423 = vmatprep.subr.mxu0 0.0
        %3424 = vmatpush1.msra.mxu0 0.0
        %3425 = vmatprep.subr.mxu0 0.0
        %3426 = vmatpush1.msra.mxu0 0.0
        %3427 = vmatprep.subr.mxu0 0.0
        %3428 = vmatpush1.msra.mxu0 0.0
        %3429 = vmatprep.subr.mxu0 0.0
        %3430 = vmatpush1.msra.mxu0 0.0
        %3431 = vmatprep.subr.mxu0 0.0
        %3432 = vmatpush1.msra.mxu0 0.0
        %3433 = vmatprep.subr.mxu0 0.0
        %3434 = vmatpush1.msra.mxu0 0.0
        %3435 = vmatprep.subr.mxu0 0.0
        %3436 = vmatpush1.msra.mxu0 0.0
        %3437 = vmatprep.subr.mxu0 0.0
        %3438 = vmatpush1.msra.mxu0 0.0
        %3439 = vmatprep.subr.mxu0 0.0
        %3440 = vmatpush1.msra.mxu0 0.0
        %3441 = vmatprep.subr.mxu0 0.0
        %3442 = vmatpush1.msra.mxu0 0.0
        %3443 = vmatprep.subr.mxu0 0.0
        %3444 = vmatpush1.msra.mxu0 0.0
        %3445 = vmatprep.subr.mxu0 0.0
        %3446 = vmatpush1.msra.mxu0 0.0
        %3447 = vmatprep.subr.mxu0 0.0
        %3448 = vmatpush1.msra.mxu0 0.0
        %3449 = vmatprep.subr.mxu0 0.0
        %3450 = vmatpush1.msra.mxu0 0.0
        %3451 = vmatprep.subr.mxu0 0.0
        %3452 = vmatpush1.msra.mxu0 0.0
        %3453 = vmatprep.subr.mxu0 0.0
        %3454 = vmatpush1.msra.mxu0 0.0
        %3455 = vmatprep.subr.mxu0 0.0
        %3456 = vmatpush1.msra.mxu0 0.0
        %3457 = vmatprep.subr.mxu0 0.0
        %3458 = vmatpush1.msra.mxu0 0.0
        %3459 = vmatprep.subr.mxu0 0.0
        %3460 = vmatpush1.msra.mxu0 0.0
        %3461 = vmatprep.subr.mxu0 0.0
        %3462 = vmatpush1.msra.mxu0 0.0
        %3463 = vmatprep.subr.mxu0 0.0
        %3464 = vmatpush1.msra.mxu0 0.0
        %3465 = vmatprep.subr.mxu0 0.0
        %3466 = vmatpush1.msra.mxu0 0.0
        %3467 = vmatprep.subr.mxu0 0.0
        %3468 = vmatpush1.msra.mxu0 0.0
        %3469 = vmatprep.subr.mxu0 0.0
        %3470 = vmatpush1.msra.mxu0 0.0
        %3471 = vmatprep.subr.mxu0 0.0
        %3472 = vmatpush1.msra.mxu0 0.0
        %3473 = vmatprep.subr.mxu0 0.0
        %3474 = vmatpush1.msra.mxu0 0.0
        %3475 = vmatprep.mubr.f32.mxu0 0.0
        %3476 = vmatmul.mubr.f32.gmra.mrb[0].mxu0 %v3409
        %v3477 = vpop.f32.mrb[0].mxu0
        %v3478 = vadd.f32 0.0, %v3477
        %v3479 = vpop.f32.mrb[0].mxu0
        %3480 = vdwg.mxu0
        %3482 = vrot.lane.b32.xlu0 %v3478, 64
        %v3483 = vpop.permute.xlu0 %3482
        %v3485 = vadd.f32 %v3318, %v3483
        %v3486 = vadd.f32 %v3485, %v899
        %v3487 = vtanh.pop %v3486
        %v3488 = vmul.f32 %v3401, %v3065
        %v3489 = vsub.f32 1.0, %v3401
        %3491 = vrot.lane.b32.xlu0 %v3487, 64
        %v3492 = vpop.permute.xlu0 %3491
        %v3494 = vmul.f32 %v3489, %v3492
        %v3495 = vadd.f32 %v3488, %v3494
        %v3496 = vsel %vm3246, %v3495, %v3065
        %s3497 = scalar_lea.vmem %s407, 48 [#allocation11]
        %3498 = vst.msk [vmem:[%s3497] sm:$0xff] %vm477, %v3496
        %s3499 = scalar_lea.vmem %s361, 56 [#allocation2]
        %v3500 = vld [vmem:[%s3499] sm:$0xff]
        %s3501 = sadd.s32 %s475, 7
        %p3502 = scmp.lt.s32.totalorder %s3501, 24
        %3503 = vmatprep.subr.mxu0 0.0
        %3504 = vmatpush1.msra.mxu0 %v421
        %3505 = vmatprep.subr.mxu0 0.0
        %3506 = vmatpush1.msra.mxu0 %v422
        %3507 = vmatprep.subr.mxu0 0.0
        %3508 = vmatpush1.msra.mxu0 %v423
        %3509 = vmatprep.subr.mxu0 0.0
        %3510 = vmatpush1.msra.mxu0 %v424
        %3511 = vmatprep.subr.mxu0 0.0
        %3512 = vmatpush1.msra.mxu0 0.0
        %3513 = vmatprep.subr.mxu0 0.0
        %3514 = vmatpush1.msra.mxu0 0.0
        %3515 = vmatprep.subr.mxu0 0.0
        %3516 = vmatpush1.msra.mxu0 0.0
        %3517 = vmatprep.subr.mxu0 0.0
        %3518 = vmatpush1.msra.mxu0 0.0
        %3519 = vmatprep.subr.mxu0 0.0
        %3520 = vmatpush1.msra.mxu0 0.0
        %3521 = vmatprep.subr.mxu0 0.0
        %3522 = vmatpush1.msra.mxu0 0.0
        %3523 = vmatprep.subr.mxu0 0.0
        %3524 = vmatpush1.msra.mxu0 0.0
        %3525 = vmatprep.subr.mxu0 0.0
        %3526 = vmatpush1.msra.mxu0 0.0
        %3527 = vmatprep.subr.mxu0 0.0
        %3528 = vmatpush1.msra.mxu0 0.0
        %3529 = vmatprep.subr.mxu0 0.0
        %3530 = vmatpush1.msra.mxu0 0.0
        %3531 = vmatprep.subr.mxu0 0.0
        %3532 = vmatpush1.msra.mxu0 0.0
        %3533 = vmatprep.subr.mxu0 0.0
        %3534 = vmatpush1.msra.mxu0 0.0
        %3535 = vmatprep.subr.mxu0 0.0
        %3536 = vmatpush1.msra.mxu0 0.0
        %3537 = vmatprep.subr.mxu0 0.0
        %3538 = vmatpush1.msra.mxu0 0.0
        %3539 = vmatprep.subr.mxu0 0.0
        %3540 = vmatpush1.msra.mxu0 0.0
        %3541 = vmatprep.subr.mxu0 0.0
        %3542 = vmatpush1.msra.mxu0 0.0
        %3543 = vmatprep.subr.mxu0 0.0
        %3544 = vmatpush1.msra.mxu0 0.0
        %3545 = vmatprep.subr.mxu0 0.0
        %3546 = vmatpush1.msra.mxu0 0.0
        %3547 = vmatprep.subr.mxu0 0.0
        %3548 = vmatpush1.msra.mxu0 0.0
        %3549 = vmatprep.subr.mxu0 0.0
        %3550 = vmatpush1.msra.mxu0 0.0
        %3551 = vmatprep.subr.mxu0 0.0
        %3552 = vmatpush1.msra.mxu0 0.0
        %3553 = vmatprep.subr.mxu0 0.0
        %3554 = vmatpush1.msra.mxu0 0.0
        %3555 = vmatprep.subr.mxu0 0.0
        %3556 = vmatpush1.msra.mxu0 0.0
        %3557 = vmatprep.subr.mxu0 0.0
        %3558 = vmatpush1.msra.mxu0 0.0
        %3559 = vmatprep.subr.mxu0 0.0
        %3560 = vmatpush1.msra.mxu0 0.0
        %3561 = vmatprep.subr.mxu0 0.0
        %3562 = vmatpush1.msra.mxu0 0.0
        %3563 = vmatprep.subr.mxu0 0.0
        %3564 = vmatpush1.msra.mxu0 0.0
        %3565 = vmatprep.subr.mxu0 0.0
        %3566 = vmatpush1.msra.mxu0 0.0
        %3567 = vmatprep.mubr.f32.mxu0 0.0
        %3568 = vmatmul.mubr.f32.gmra.mrb[0].mxu0 %v3249
        %v3569 = vpop.f32.mrb[0].mxu0
        %v3570 = vadd.f32 0.0, %v3569
        %v3571 = vpop.f32.mrb[0].mxu0
        %3572 = vdwg.mxu0
        %v3573 = vadd.f32 %v3500, %v3570
        %v3574 = vadd.f32 %v3573, %v448
        %v3575 = vxor.u32 %v3574, 2147483648
        %v3576 = vmul.f32 %v3575, 1.442695
        %v3577 = vpow.pop %v3576
        %v3578 = vadd.f32 %v3577, 1.0
        %v3579 = vrcp.pop %v3578
        %v3580 = vmul.f32 1.0, %v3579
        %3581 = vrot.lane.b32.xlu0 %v3247, 32
        %v3582 = vpop.permute.xlu0 %3581
        %v3584 = vmul.f32 %v3580, %v3582
        %3586 = vrot.lane.b32.xlu0 %v3584, 96
        %v3587 = vpop.permute.xlu0 %3586
        %v3588 = vsel %vm477, %v3587, 0
        %3590 = vmatprep.subr.mxu0 0.0
        %3591 = vmatpush1.msra.mxu0 %v430
        %3592 = vmatprep.subr.mxu0 0.0
        %3593 = vmatpush1.msra.mxu0 %v431
        %3594 = vmatprep.subr.mxu0 0.0
        %3595 = vmatpush1.msra.mxu0 %v432
        %3596 = vmatprep.subr.mxu0 0.0
        %3597 = vmatpush1.msra.mxu0 %v433
        %3598 = vmatprep.subr.mxu0 0.0
        %3599 = vmatpush1.msra.mxu0 0.0
        %3600 = vmatprep.subr.mxu0 0.0
        %3601 = vmatpush1.msra.mxu0 0.0
        %3602 = vmatprep.subr.mxu0 0.0
        %3603 = vmatpush1.msra.mxu0 0.0
        %3604 = vmatprep.subr.mxu0 0.0
        %3605 = vmatpush1.msra.mxu0 0.0
        %3606 = vmatprep.subr.mxu0 0.0
        %3607 = vmatpush1.msra.mxu0 0.0
        %3608 = vmatprep.subr.mxu0 0.0
        %3609 = vmatpush1.msra.mxu0 0.0
        %3610 = vmatprep.subr.mxu0 0.0
        %3611 = vmatpush1.msra.mxu0 0.0
        %3612 = vmatprep.subr.mxu0 0.0
        %3613 = vmatpush1.msra.mxu0 0.0
        %3614 = vmatprep.subr.mxu0 0.0
        %3615 = vmatpush1.msra.mxu0 0.0
        %3616 = vmatprep.subr.mxu0 0.0
        %3617 = vmatpush1.msra.mxu0 0.0
        %3618 = vmatprep.subr.mxu0 0.0
        %3619 = vmatpush1.msra.mxu0 0.0
        %3620 = vmatprep.subr.mxu0 0.0
        %3621 = vmatpush1.msra.mxu0 0.0
        %3622 = vmatprep.subr.mxu0 0.0
        %3623 = vmatpush1.msra.mxu0 0.0
        %3624 = vmatprep.subr.mxu0 0.0
        %3625 = vmatpush1.msra.mxu0 0.0
        %3626 = vmatprep.subr.mxu0 0.0
        %3627 = vmatpush1.msra.mxu0 0.0
        %3628 = vmatprep.subr.mxu0 0.0
        %3629 = vmatpush1.msra.mxu0 0.0
        %3630 = vmatprep.subr.mxu0 0.0
        %3631 = vmatpush1.msra.mxu0 0.0
        %3632 = vmatprep.subr.mxu0 0.0
        %3633 = vmatpush1.msra.mxu0 0.0
        %3634 = vmatprep.subr.mxu0 0.0
        %3635 = vmatpush1.msra.mxu0 0.0
        %3636 = vmatprep.subr.mxu0 0.0
        %3637 = vmatpush1.msra.mxu0 0.0
        %3638 = vmatprep.subr.mxu0 0.0
        %3639 = vmatpush1.msra.mxu0 0.0
        %3640 = vmatprep.subr.mxu0 0.0
        %3641 = vmatpush1.msra.mxu0 0.0
        %3642 = vmatprep.subr.mxu0 0.0
        %3643 = vmatpush1.msra.mxu0 0.0
        %3644 = vmatprep.subr.mxu0 0.0
        %3645 = vmatpush1.msra.mxu0 0.0
        %3646 = vmatprep.subr.mxu0 0.0
        %3647 = vmatpush1.msra.mxu0 0.0
        %3648 = vmatprep.subr.mxu0 0.0
        %3649 = vmatpush1.msra.mxu0 0.0
        %3650 = vmatprep.subr.mxu0 0.0
        %3651 = vmatpush1.msra.mxu0 0.0
        %3652 = vmatprep.subr.mxu0 0.0
        %3653 = vmatpush1.msra.mxu0 0.0
        %3654 = vmatprep.mubr.f32.mxu0 0.0
        %3655 = vmatmul.mubr.f32.gmra.mrb[0].mxu0 %v3588
        %v3656 = vpop.f32.mrb[0].mxu0
        %v3657 = vadd.f32 0.0, %v3656
        %v3658 = vpop.f32.mrb[0].mxu0
        %3659 = vdwg.mxu0
        %3661 = vrot.lane.b32.xlu0 %v3657, 64
        %v3662 = vpop.permute.xlu0 %3661
        %v3664 = vadd.f32 %v3500, %v3662
        %v3665 = vadd.f32 %v3664, %v644
        %v3666 = vtanh.pop %v3665
        %v3667 = vmul.f32 %v3580, %v3247
        %v3668 = vsub.f32 1.0, %v3580
        %3670 = vrot.lane.b32.xlu0 %v3666, 64
        %v3671 = vpop.permute.xlu0 %3670
        %v3673 = vmul.f32 %v3668, %v3671
        %v3674 = vadd.f32 %v3667, %v3673
        %s3675 = scalar_select %p3502, 1, 0
        %v3676 = vstv %s3675
        %vm3677 = vcmp.eq.s32.totalorder %v3676, 1
        %v3678 = vsel %vm3677, %v3674, %v3247
        %v3680 = vsel %vm477, %v3678, 0
        %3682 = vmatprep.subr.mxu0 0.0
        %3683 = vmatpush1.msra.mxu0 %v439
        %3684 = vmatprep.subr.mxu0 0.0
        %3685 = vmatpush1.msra.mxu0 %v440
        %3686 = vmatprep.subr.mxu0 0.0
        %3687 = vmatpush1.msra.mxu0 %v441
        %3688 = vmatprep.subr.mxu0 0.0
        %3689 = vmatpush1.msra.mxu0 %v442
        %3690 = vmatprep.subr.mxu0 0.0
        %3691 = vmatpush1.msra.mxu0 0.0
        %3692 = vmatprep.subr.mxu0 0.0
        %3693 = vmatpush1.msra.mxu0 0.0
        %3694 = vmatprep.subr.mxu0 0.0
        %3695 = vmatpush1.msra.mxu0 0.0
        %3696 = vmatprep.subr.mxu0 0.0
        %3697 = vmatpush1.msra.mxu0 0.0
        %3698 = vmatprep.subr.mxu0 0.0
        %3699 = vmatpush1.msra.mxu0 0.0
        %3700 = vmatprep.subr.mxu0 0.0
        %3701 = vmatpush1.msra.mxu0 0.0
        %3702 = vmatprep.subr.mxu0 0.0
        %3703 = vmatpush1.msra.mxu0 0.0
        %3704 = vmatprep.subr.mxu0 0.0
        %3705 = vmatpush1.msra.mxu0 0.0
        %3706 = vmatprep.subr.mxu0 0.0
        %3707 = vmatpush1.msra.mxu0 0.0
        %3708 = vmatprep.subr.mxu0 0.0
        %3709 = vmatpush1.msra.mxu0 0.0
        %3710 = vmatprep.subr.mxu0 0.0
        %3711 = vmatpush1.msra.mxu0 0.0
        %3712 = vmatprep.subr.mxu0 0.0
        %3713 = vmatpush1.msra.mxu0 0.0
        %3714 = vmatprep.subr.mxu0 0.0
        %3715 = vmatpush1.msra.mxu0 0.0
        %3716 = vmatprep.subr.mxu0 0.0
        %3717 = vmatpush1.msra.mxu0 0.0
        %3718 = vmatprep.subr.mxu0 0.0
        %3719 = vmatpush1.msra.mxu0 0.0
        %3720 = vmatprep.subr.mxu0 0.0
        %3721 = vmatpush1.msra.mxu0 0.0
        %3722 = vmatprep.subr.mxu0 0.0
        %3723 = vmatpush1.msra.mxu0 0.0
        %3724 = vmatprep.subr.mxu0 0.0
        %3725 = vmatpush1.msra.mxu0 0.0
        %3726 = vmatprep.subr.mxu0 0.0
        %3727 = vmatpush1.msra.mxu0 0.0
        %3728 = vmatprep.subr.mxu0 0.0
        %3729 = vmatpush1.msra.mxu0 0.0
        %3730 = vmatprep.subr.mxu0 0.0
        %3731 = vmatpush1.msra.mxu0 0.0
        %3732 = vmatprep.subr.mxu0 0.0
        %3733 = vmatpush1.msra.mxu0 0.0
        %3734 = vmatprep.subr.mxu0 0.0
        %3735 = vmatpush1.msra.mxu0 0.0
        %3736 = vmatprep.subr.mxu0 0.0
        %3737 = vmatpush1.msra.mxu0 0.0
        %3738 = vmatprep.subr.mxu0 0.0
        %3739 = vmatpush1.msra.mxu0 0.0
        %3740 = vmatprep.subr.mxu0 0.0
        %3741 = vmatpush1.msra.mxu0 0.0
        %3742 = vmatprep.subr.mxu0 0.0
        %3743 = vmatpush1.msra.mxu0 0.0
        %3744 = vmatprep.subr.mxu0 0.0
        %3745 = vmatpush1.msra.mxu0 0.0
        %3746 = vmatprep.mubr.f32.mxu0 0.0
        %3747 = vmatmul.mubr.f32.gmra.mrb[0].mxu0 %v3680
        %v3748 = vpop.f32.mrb[0].mxu0
        %v3749 = vadd.f32 0.0, %v3748
        %v3750 = vpop.f32.mrb[0].mxu0
        %3751 = vdwg.mxu0
        %v3753 = vsel %vm477, %v3496, 0
        %3755 = vmatprep.subr.mxu0 0.0
        %3756 = vmatpush1.msra.mxu0 %v426
        %3757 = vmatprep.subr.mxu0 0.0
        %3758 = vmatpush1.msra.mxu0 %v427
        %3759 = vmatprep.subr.mxu0 0.0
        %3760 = vmatpush1.msra.mxu0 %v428
        %3761 = vmatprep.subr.mxu0 0.0
        %3762 = vmatpush1.msra.mxu0 %v429
        %3763 = vmatprep.subr.mxu0 0.0
        %3764 = vmatpush1.msra.mxu0 0.0
        %3765 = vmatprep.subr.mxu0 0.0
        %3766 = vmatpush1.msra.mxu0 0.0
        %3767 = vmatprep.subr.mxu0 0.0
        %3768 = vmatpush1.msra.mxu0 0.0
        %3769 = vmatprep.subr.mxu0 0.0
        %3770 = vmatpush1.msra.mxu0 0.0
        %3771 = vmatprep.subr.mxu0 0.0
        %3772 = vmatpush1.msra.mxu0 0.0
        %3773 = vmatprep.subr.mxu0 0.0
        %3774 = vmatpush1.msra.mxu0 0.0
        %3775 = vmatprep.subr.mxu0 0.0
        %3776 = vmatpush1.msra.mxu0 0.0
        %3777 = vmatprep.subr.mxu0 0.0
        %3778 = vmatpush1.msra.mxu0 0.0
        %3779 = vmatprep.subr.mxu0 0.0
        %3780 = vmatpush1.msra.mxu0 0.0
        %3781 = vmatprep.subr.mxu0 0.0
        %3782 = vmatpush1.msra.mxu0 0.0
        %3783 = vmatprep.subr.mxu0 0.0
        %3784 = vmatpush1.msra.mxu0 0.0
        %3785 = vmatprep.subr.mxu0 0.0
        %3786 = vmatpush1.msra.mxu0 0.0
        %3787 = vmatprep.subr.mxu0 0.0
        %3788 = vmatpush1.msra.mxu0 0.0
        %3789 = vmatprep.subr.mxu0 0.0
        %3790 = vmatpush1.msra.mxu0 0.0
        %3791 = vmatprep.subr.mxu0 0.0
        %3792 = vmatpush1.msra.mxu0 0.0
        %3793 = vmatprep.subr.mxu0 0.0
        %3794 = vmatpush1.msra.mxu0 0.0
        %3795 = vmatprep.subr.mxu0 0.0
        %3796 = vmatpush1.msra.mxu0 0.0
        %3797 = vmatprep.subr.mxu0 0.0
        %3798 = vmatpush1.msra.mxu0 0.0
        %3799 = vmatprep.subr.mxu0 0.0
        %3800 = vmatpush1.msra.mxu0 0.0
        %3801 = vmatprep.subr.mxu0 0.0
        %3802 = vmatpush1.msra.mxu0 0.0
        %3803 = vmatprep.subr.mxu0 0.0
        %3804 = vmatpush1.msra.mxu0 0.0
        %3805 = vmatprep.subr.mxu0 0.0
        %3806 = vmatpush1.msra.mxu0 0.0
        %3807 = vmatprep.subr.mxu0 0.0
        %3808 = vmatpush1.msra.mxu0 0.0
        %3809 = vmatprep.subr.mxu0 0.0
        %3810 = vmatpush1.msra.mxu0 0.0
        %3811 = vmatprep.subr.mxu0 0.0
        %3812 = vmatpush1.msra.mxu0 0.0
        %3813 = vmatprep.subr.mxu0 0.0
        %3814 = vmatpush1.msra.mxu0 0.0
        %3815 = vmatprep.subr.mxu0 0.0
        %3816 = vmatpush1.msra.mxu0 0.0
        %3817 = vmatprep.subr.mxu0 0.0
        %3818 = vmatpush1.msra.mxu0 0.0
        %3819 = vmatprep.mubr.f32.mxu0 0.0
        %3820 = vmatmul.mubr.f32.gmra.mrb[0].mxu0 %v3753
        %v3821 = vpop.f32.mrb[0].mxu0
        %v3822 = vadd.f32 0.0, %v3821
        %v3823 = vpop.f32.mrb[0].mxu0
        %3824 = vdwg.mxu0
        %v3825 = vadd.f32 %v3749, %v3822
        %v3826 = vadd.f32 %v3825, %v456
        %v3827 = vxor.u32 %v3826, 2147483648
        %v3828 = vmul.f32 %v3827, 1.442695
        %v3829 = vpow.pop %v3828
        %v3830 = vadd.f32 %v3829, 1.0
        %v3831 = vrcp.pop %v3830
        %v3832 = vmul.f32 1.0, %v3831
        %3833 = vrot.lane.b32.xlu0 %v3496, 32
        %v3834 = vpop.permute.xlu0 %3833
        %v3836 = vmul.f32 %v3832, %v3834
        %3838 = vrot.lane.b32.xlu0 %v3836, 96
        %v3839 = vpop.permute.xlu0 %3838
        %v3840 = vsel %vm477, %v3839, 0
        %3842 = vmatprep.subr.mxu0 0.0
        %3843 = vmatpush1.msra.mxu0 %v435
        %3844 = vmatprep.subr.mxu0 0.0
        %3845 = vmatpush1.msra.mxu0 %v436
        %3846 = vmatprep.subr.mxu0 0.0
        %3847 = vmatpush1.msra.mxu0 %v437
        %3848 = vmatprep.subr.mxu0 0.0
        %3849 = vmatpush1.msra.mxu0 %v438
        %3850 = vmatprep.subr.mxu0 0.0
        %3851 = vmatpush1.msra.mxu0 0.0
        %3852 = vmatprep.subr.mxu0 0.0
        %3853 = vmatpush1.msra.mxu0 0.0
        %3854 = vmatprep.subr.mxu0 0.0
        %3855 = vmatpush1.msra.mxu0 0.0
        %3856 = vmatprep.subr.mxu0 0.0
        %3857 = vmatpush1.msra.mxu0 0.0
        %3858 = vmatprep.subr.mxu0 0.0
        %3859 = vmatpush1.msra.mxu0 0.0
        %3860 = vmatprep.subr.mxu0 0.0
        %3861 = vmatpush1.msra.mxu0 0.0
        %3862 = vmatprep.subr.mxu0 0.0
        %3863 = vmatpush1.msra.mxu0 0.0
        %3864 = vmatprep.subr.mxu0 0.0
        %3865 = vmatpush1.msra.mxu0 0.0
        %3866 = vmatprep.subr.mxu0 0.0
        %3867 = vmatpush1.msra.mxu0 0.0
        %3868 = vmatprep.subr.mxu0 0.0
        %3869 = vmatpush1.msra.mxu0 0.0
        %3870 = vmatprep.subr.mxu0 0.0
        %3871 = vmatpush1.msra.mxu0 0.0
        %3872 = vmatprep.subr.mxu0 0.0
        %3873 = vmatpush1.msra.mxu0 0.0
        %3874 = vmatprep.subr.mxu0 0.0
        %3875 = vmatpush1.msra.mxu0 0.0
        %3876 = vmatprep.subr.mxu0 0.0
        %3877 = vmatpush1.msra.mxu0 0.0
        %3878 = vmatprep.subr.mxu0 0.0
        %3879 = vmatpush1.msra.mxu0 0.0
        %3880 = vmatprep.subr.mxu0 0.0
        %3881 = vmatpush1.msra.mxu0 0.0
        %3882 = vmatprep.subr.mxu0 0.0
        %3883 = vmatpush1.msra.mxu0 0.0
        %3884 = vmatprep.subr.mxu0 0.0
        %3885 = vmatpush1.msra.mxu0 0.0
        %3886 = vmatprep.subr.mxu0 0.0
        %3887 = vmatpush1.msra.mxu0 0.0
        %3888 = vmatprep.subr.mxu0 0.0
        %3889 = vmatpush1.msra.mxu0 0.0
        %3890 = vmatprep.subr.mxu0 0.0
        %3891 = vmatpush1.msra.mxu0 0.0
        %3892 = vmatprep.subr.mxu0 0.0
        %3893 = vmatpush1.msra.mxu0 0.0
        %3894 = vmatprep.subr.mxu0 0.0
        %3895 = vmatpush1.msra.mxu0 0.0
        %3896 = vmatprep.subr.mxu0 0.0
        %3897 = vmatpush1.msra.mxu0 0.0
        %3898 = vmatprep.subr.mxu0 0.0
        %3899 = vmatpush1.msra.mxu0 0.0
        %3900 = vmatprep.subr.mxu0 0.0
        %3901 = vmatpush1.msra.mxu0 0.0
        %3902 = vmatprep.subr.mxu0 0.0
        %3903 = vmatpush1.msra.mxu0 0.0
        %3904 = vmatprep.subr.mxu0 0.0
        %3905 = vmatpush1.msra.mxu0 0.0
        %3906 = vmatprep.mubr.f32.mxu0 0.0
        %3907 = vmatmul.mubr.f32.gmra.mrb[0].mxu0 %v3840
        %v3908 = vpop.f32.mrb[0].mxu0
        %v3909 = vadd.f32 0.0, %v3908
        %v3910 = vpop.f32.mrb[0].mxu0
        %3911 = vdwg.mxu0
        %3913 = vrot.lane.b32.xlu0 %v3909, 64
        %v3914 = vpop.permute.xlu0 %3913
        %v3916 = vadd.f32 %v3749, %v3914
        %v3917 = vadd.f32 %v3916, %v899
        %v3918 = vtanh.pop %v3917
        %v3919 = vmul.f32 %v3832, %v3496
        %v3920 = vsub.f32 1.0, %v3832
        %3922 = vrot.lane.b32.xlu0 %v3918, 64
        %v3923 = vpop.permute.xlu0 %3922
        %v3925 = vmul.f32 %v3920, %v3923
        %v3926 = vadd.f32 %v3919, %v3925
        %v3927 = vsel %vm3677, %v3926, %v3496
        %s3928 = scalar_lea.vmem %s407, 56 [#allocation11]
        %3929 = vst.msk [vmem:[%s3928] sm:$0xff] %vm477, %v3927
        %s3930 = scalar_lea.vmem %s361, 64 [#allocation2]
        %v3931 = vld [vmem:[%s3930] sm:$0xff]
        %s3932 = sadd.s32 %s475, 8
        %p3933 = scmp.lt.s32.totalorder %s3932, 24
        %3934 = vmatprep.subr.mxu0 0.0
        %3935 = vmatpush1.msra.mxu0 %v421
        %3936 = vmatprep.subr.mxu0 0.0
        %3937 = vmatpush1.msra.mxu0 %v422
        %3938 = vmatprep.subr.mxu0 0.0
        %3939 = vmatpush1.msra.mxu0 %v423
        %3940 = vmatprep.subr.mxu0 0.0
        %3941 = vmatpush1.msra.mxu0 %v424
        %3942 = vmatprep.subr.mxu0 0.0
        %3943 = vmatpush1.msra.mxu0 0.0
        %3944 = vmatprep.subr.mxu0 0.0
        %3945 = vmatpush1.msra.mxu0 0.0
        %3946 = vmatprep.subr.mxu0 0.0
        %3947 = vmatpush1.msra.mxu0 0.0
        %3948 = vmatprep.subr.mxu0 0.0
        %3949 = vmatpush1.msra.mxu0 0.0
        %3950 = vmatprep.subr.mxu0 0.0
        %3951 = vmatpush1.msra.mxu0 0.0
        %3952 = vmatprep.subr.mxu0 0.0
        %3953 = vmatpush1.msra.mxu0 0.0
        %3954 = vmatprep.subr.mxu0 0.0
        %3955 = vmatpush1.msra.mxu0 0.0
        %3956 = vmatprep.subr.mxu0 0.0
        %3957 = vmatpush1.msra.mxu0 0.0
        %3958 = vmatprep.subr.mxu0 0.0
        %3959 = vmatpush1.msra.mxu0 0.0
        %3960 = vmatprep.subr.mxu0 0.0
        %3961 = vmatpush1.msra.mxu0 0.0
        %3962 = vmatprep.subr.mxu0 0.0
        %3963 = vmatpush1.msra.mxu0 0.0
        %3964 = vmatprep.subr.mxu0 0.0
        %3965 = vmatpush1.msra.mxu0 0.0
        %3966 = vmatprep.subr.mxu0 0.0
        %3967 = vmatpush1.msra.mxu0 0.0
        %3968 = vmatprep.subr.mxu0 0.0
        %3969 = vmatpush1.msra.mxu0 0.0
        %3970 = vmatprep.subr.mxu0 0.0
        %3971 = vmatpush1.msra.mxu0 0.0
        %3972 = vmatprep.subr.mxu0 0.0
        %3973 = vmatpush1.msra.mxu0 0.0
        %3974 = vmatprep.subr.mxu0 0.0
        %3975 = vmatpush1.msra.mxu0 0.0
        %3976 = vmatprep.subr.mxu0 0.0
        %3977 = vmatpush1.msra.mxu0 0.0
        %3978 = vmatprep.subr.mxu0 0.0
        %3979 = vmatpush1.msra.mxu0 0.0
        %3980 = vmatprep.subr.mxu0 0.0
        %3981 = vmatpush1.msra.mxu0 0.0
        %3982 = vmatprep.subr.mxu0 0.0
        %3983 = vmatpush1.msra.mxu0 0.0
        %3984 = vmatprep.subr.mxu0 0.0
        %3985 = vmatpush1.msra.mxu0 0.0
        %3986 = vmatprep.subr.mxu0 0.0
        %3987 = vmatpush1.msra.mxu0 0.0
        %3988 = vmatprep.subr.mxu0 0.0
        %3989 = vmatpush1.msra.mxu0 0.0
        %3990 = vmatprep.subr.mxu0 0.0
        %3991 = vmatpush1.msra.mxu0 0.0
        %3992 = vmatprep.subr.mxu0 0.0
        %3993 = vmatpush1.msra.mxu0 0.0
        %3994 = vmatprep.subr.mxu0 0.0
        %3995 = vmatpush1.msra.mxu0 0.0
        %3996 = vmatprep.subr.mxu0 0.0
        %3997 = vmatpush1.msra.mxu0 0.0
        %3998 = vmatprep.mubr.f32.mxu0 0.0
        %3999 = vmatmul.mubr.f32.gmra.mrb[0].mxu0 %v3680
        %v4000 = vpop.f32.mrb[0].mxu0
        %v4001 = vadd.f32 0.0, %v4000
        %v4002 = vpop.f32.mrb[0].mxu0
        %4003 = vdwg.mxu0
        %v4004 = vadd.f32 %v3931, %v4001
        %v4005 = vadd.f32 %v4004, %v448
        %v4006 = vxor.u32 %v4005, 2147483648
        %v4007 = vmul.f32 %v4006, 1.442695
        %v4008 = vpow.pop %v4007
        %v4009 = vadd.f32 %v4008, 1.0
        %v4010 = vrcp.pop %v4009
        %v4011 = vmul.f32 1.0, %v4010
        %4012 = vrot.lane.b32.xlu0 %v3678, 32
        %v4013 = vpop.permute.xlu0 %4012
        %v4015 = vmul.f32 %v4011, %v4013
        %4017 = vrot.lane.b32.xlu0 %v4015, 96
        %v4018 = vpop.permute.xlu0 %4017
        %v4019 = vsel %vm477, %v4018, 0
        %4021 = vmatprep.subr.mxu0 0.0
        %4022 = vmatpush1.msra.mxu0 %v430
        %4023 = vmatprep.subr.mxu0 0.0
        %4024 = vmatpush1.msra.mxu0 %v431
        %4025 = vmatprep.subr.mxu0 0.0
        %4026 = vmatpush1.msra.mxu0 %v432
        %4027 = vmatprep.subr.mxu0 0.0
        %4028 = vmatpush1.msra.mxu0 %v433
        %4029 = vmatprep.subr.mxu0 0.0
        %4030 = vmatpush1.msra.mxu0 0.0
        %4031 = vmatprep.subr.mxu0 0.0
        %4032 = vmatpush1.msra.mxu0 0.0
        %4033 = vmatprep.subr.mxu0 0.0
        %4034 = vmatpush1.msra.mxu0 0.0
        %4035 = vmatprep.subr.mxu0 0.0
        %4036 = vmatpush1.msra.mxu0 0.0
        %4037 = vmatprep.subr.mxu0 0.0
        %4038 = vmatpush1.msra.mxu0 0.0
        %4039 = vmatprep.subr.mxu0 0.0
        %4040 = vmatpush1.msra.mxu0 0.0
        %4041 = vmatprep.subr.mxu0 0.0
        %4042 = vmatpush1.msra.mxu0 0.0
        %4043 = vmatprep.subr.mxu0 0.0
        %4044 = vmatpush1.msra.mxu0 0.0
        %4045 = vmatprep.subr.mxu0 0.0
        %4046 = vmatpush1.msra.mxu0 0.0
        %4047 = vmatprep.subr.mxu0 0.0
        %4048 = vmatpush1.msra.mxu0 0.0
        %4049 = vmatprep.subr.mxu0 0.0
        %4050 = vmatpush1.msra.mxu0 0.0
        %4051 = vmatprep.subr.mxu0 0.0
        %4052 = vmatpush1.msra.mxu0 0.0
        %4053 = vmatprep.subr.mxu0 0.0
        %4054 = vmatpush1.msra.mxu0 0.0
        %4055 = vmatprep.subr.mxu0 0.0
        %4056 = vmatpush1.msra.mxu0 0.0
        %4057 = vmatprep.subr.mxu0 0.0
        %4058 = vmatpush1.msra.mxu0 0.0
        %4059 = vmatprep.subr.mxu0 0.0
        %4060 = vmatpush1.msra.mxu0 0.0
        %4061 = vmatprep.subr.mxu0 0.0
        %4062 = vmatpush1.msra.mxu0 0.0
        %4063 = vmatprep.subr.mxu0 0.0
        %4064 = vmatpush1.msra.mxu0 0.0
        %4065 = vmatprep.subr.mxu0 0.0
        %4066 = vmatpush1.msra.mxu0 0.0
        %4067 = vmatprep.subr.mxu0 0.0
        %4068 = vmatpush1.msra.mxu0 0.0
        %4069 = vmatprep.subr.mxu0 0.0
        %4070 = vmatpush1.msra.mxu0 0.0
        %4071 = vmatprep.subr.mxu0 0.0
        %4072 = vmatpush1.msra.mxu0 0.0
        %4073 = vmatprep.subr.mxu0 0.0
        %4074 = vmatpush1.msra.mxu0 0.0
        %4075 = vmatprep.subr.mxu0 0.0
        %4076 = vmatpush1.msra.mxu0 0.0
        %4077 = vmatprep.subr.mxu0 0.0
        %4078 = vmatpush1.msra.mxu0 0.0
        %4079 = vmatprep.subr.mxu0 0.0
        %4080 = vmatpush1.msra.mxu0 0.0
        %4081 = vmatprep.subr.mxu0 0.0
        %4082 = vmatpush1.msra.mxu0 0.0
        %4083 = vmatprep.subr.mxu0 0.0
        %4084 = vmatpush1.msra.mxu0 0.0
        %4085 = vmatprep.mubr.f32.mxu0 0.0
        %4086 = vmatmul.mubr.f32.gmra.mrb[0].mxu0 %v4019
        %v4087 = vpop.f32.mrb[0].mxu0
        %v4088 = vadd.f32 0.0, %v4087
        %v4089 = vpop.f32.mrb[0].mxu0
        %4090 = vdwg.mxu0
        %4092 = vrot.lane.b32.xlu0 %v4088, 64
        %v4093 = vpop.permute.xlu0 %4092
        %v4095 = vadd.f32 %v3931, %v4093
        %v4096 = vadd.f32 %v4095, %v644
        %v4097 = vtanh.pop %v4096
        %v4098 = vmul.f32 %v4011, %v3678
        %v4099 = vsub.f32 1.0, %v4011
        %4101 = vrot.lane.b32.xlu0 %v4097, 64
        %v4102 = vpop.permute.xlu0 %4101
        %v4104 = vmul.f32 %v4099, %v4102
        %v4105 = vadd.f32 %v4098, %v4104
        %s4106 = scalar_select %p3933, 1, 0
        %v4107 = vstv %s4106
        %vm4108 = vcmp.eq.s32.totalorder %v4107, 1
        %v4109 = vsel %vm4108, %v4105, %v3678
        %v4111 = vsel %vm477, %v4109, 0
        %4113 = vmatprep.subr.mxu0 0.0
        %4114 = vmatpush1.msra.mxu0 %v439
        %4115 = vmatprep.subr.mxu0 0.0
        %4116 = vmatpush1.msra.mxu0 %v440
        %4117 = vmatprep.subr.mxu0 0.0
        %4118 = vmatpush1.msra.mxu0 %v441
        %4119 = vmatprep.subr.mxu0 0.0
        %4120 = vmatpush1.msra.mxu0 %v442
        %4121 = vmatprep.subr.mxu0 0.0
        %4122 = vmatpush1.msra.mxu0 0.0
        %4123 = vmatprep.subr.mxu0 0.0
        %4124 = vmatpush1.msra.mxu0 0.0
        %4125 = vmatprep.subr.mxu0 0.0
        %4126 = vmatpush1.msra.mxu0 0.0
        %4127 = vmatprep.subr.mxu0 0.0
        %4128 = vmatpush1.msra.mxu0 0.0
        %4129 = vmatprep.subr.mxu0 0.0
        %4130 = vmatpush1.msra.mxu0 0.0
        %4131 = vmatprep.subr.mxu0 0.0
        %4132 = vmatpush1.msra.mxu0 0.0
        %4133 = vmatprep.subr.mxu0 0.0
        %4134 = vmatpush1.msra.mxu0 0.0
        %4135 = vmatprep.subr.mxu0 0.0
        %4136 = vmatpush1.msra.mxu0 0.0
        %4137 = vmatprep.subr.mxu0 0.0
        %4138 = vmatpush1.msra.mxu0 0.0
        %4139 = vmatprep.subr.mxu0 0.0
        %4140 = vmatpush1.msra.mxu0 0.0
        %4141 = vmatprep.subr.mxu0 0.0
        %4142 = vmatpush1.msra.mxu0 0.0
        %4143 = vmatprep.subr.mxu0 0.0
        %4144 = vmatpush1.msra.mxu0 0.0
        %4145 = vmatprep.subr.mxu0 0.0
        %4146 = vmatpush1.msra.mxu0 0.0
        %4147 = vmatprep.subr.mxu0 0.0
        %4148 = vmatpush1.msra.mxu0 0.0
        %4149 = vmatprep.subr.mxu0 0.0
        %4150 = vmatpush1.msra.mxu0 0.0
        %4151 = vmatprep.subr.mxu0 0.0
        %4152 = vmatpush1.msra.mxu0 0.0
        %4153 = vmatprep.subr.mxu0 0.0
        %4154 = vmatpush1.msra.mxu0 0.0
        %4155 = vmatprep.subr.mxu0 0.0
        %4156 = vmatpush1.msra.mxu0 0.0
        %4157 = vmatprep.subr.mxu0 0.0
        %4158 = vmatpush1.msra.mxu0 0.0
        %4159 = vmatprep.subr.mxu0 0.0
        %4160 = vmatpush1.msra.mxu0 0.0
        %4161 = vmatprep.subr.mxu0 0.0
        %4162 = vmatpush1.msra.mxu0 0.0
        %4163 = vmatprep.subr.mxu0 0.0
        %4164 = vmatpush1.msra.mxu0 0.0
        %4165 = vmatprep.subr.mxu0 0.0
        %4166 = vmatpush1.msra.mxu0 0.0
        %4167 = vmatprep.subr.mxu0 0.0
        %4168 = vmatpush1.msra.mxu0 0.0
        %4169 = vmatprep.subr.mxu0 0.0
        %4170 = vmatpush1.msra.mxu0 0.0
        %4171 = vmatprep.subr.mxu0 0.0
        %4172 = vmatpush1.msra.mxu0 0.0
        %4173 = vmatprep.subr.mxu0 0.0
        %4174 = vmatpush1.msra.mxu0 0.0
        %4175 = vmatprep.subr.mxu0 0.0
        %4176 = vmatpush1.msra.mxu0 0.0
        %4177 = vmatprep.mubr.f32.mxu0 0.0
        %4178 = vmatmul.mubr.f32.gmra.mrb[0].mxu0 %v4111
        %v4179 = vpop.f32.mrb[0].mxu0
        %v4180 = vadd.f32 0.0, %v4179
        %v4181 = vpop.f32.mrb[0].mxu0
        %4182 = vdwg.mxu0
        %v4184 = vsel %vm477, %v3927, 0
        %4186 = vmatprep.subr.mxu0 0.0
        %4187 = vmatpush1.msra.mxu0 %v426
        %4188 = vmatprep.subr.mxu0 0.0
        %4189 = vmatpush1.msra.mxu0 %v427
        %4190 = vmatprep.subr.mxu0 0.0
        %4191 = vmatpush1.msra.mxu0 %v428
        %4192 = vmatprep.subr.mxu0 0.0
        %4193 = vmatpush1.msra.mxu0 %v429
        %4194 = vmatprep.subr.mxu0 0.0
        %4195 = vmatpush1.msra.mxu0 0.0
        %4196 = vmatprep.subr.mxu0 0.0
        %4197 = vmatpush1.msra.mxu0 0.0
        %4198 = vmatprep.subr.mxu0 0.0
        %4199 = vmatpush1.msra.mxu0 0.0
        %4200 = vmatprep.subr.mxu0 0.0
        %4201 = vmatpush1.msra.mxu0 0.0
        %4202 = vmatprep.subr.mxu0 0.0
        %4203 = vmatpush1.msra.mxu0 0.0
        %4204 = vmatprep.subr.mxu0 0.0
        %4205 = vmatpush1.msra.mxu0 0.0
        %4206 = vmatprep.subr.mxu0 0.0
        %4207 = vmatpush1.msra.mxu0 0.0
        %4208 = vmatprep.subr.mxu0 0.0
        %4209 = vmatpush1.msra.mxu0 0.0
        %4210 = vmatprep.subr.mxu0 0.0
        %4211 = vmatpush1.msra.mxu0 0.0
        %4212 = vmatprep.subr.mxu0 0.0
        %4213 = vmatpush1.msra.mxu0 0.0
        %4214 = vmatprep.subr.mxu0 0.0
        %4215 = vmatpush1.msra.mxu0 0.0
        %4216 = vmatprep.subr.mxu0 0.0
        %4217 = vmatpush1.msra.mxu0 0.0
        %4218 = vmatprep.subr.mxu0 0.0
        %4219 = vmatpush1.msra.mxu0 0.0
        %4220 = vmatprep.subr.mxu0 0.0
        %4221 = vmatpush1.msra.mxu0 0.0
        %4222 = vmatprep.subr.mxu0 0.0
        %4223 = vmatpush1.msra.mxu0 0.0
        %4224 = vmatprep.subr.mxu0 0.0
        %4225 = vmatpush1.msra.mxu0 0.0
        %4226 = vmatprep.subr.mxu0 0.0
        %4227 = vmatpush1.msra.mxu0 0.0
        %4228 = vmatprep.subr.mxu0 0.0
        %4229 = vmatpush1.msra.mxu0 0.0
        %4230 = vmatprep.subr.mxu0 0.0
        %4231 = vmatpush1.msra.mxu0 0.0
        %4232 = vmatprep.subr.mxu0 0.0
        %4233 = vmatpush1.msra.mxu0 0.0
        %4234 = vmatprep.subr.mxu0 0.0
        %4235 = vmatpush1.msra.mxu0 0.0
        %4236 = vmatprep.subr.mxu0 0.0
        %4237 = vmatpush1.msra.mxu0 0.0
        %4238 = vmatprep.subr.mxu0 0.0
        %4239 = vmatpush1.msra.mxu0 0.0
        %4240 = vmatprep.subr.mxu0 0.0
        %4241 = vmatpush1.msra.mxu0 0.0
        %4242 = vmatprep.subr.mxu0 0.0
        %4243 = vmatpush1.msra.mxu0 0.0
        %4244 = vmatprep.subr.mxu0 0.0
        %4245 = vmatpush1.msra.mxu0 0.0
        %4246 = vmatprep.subr.mxu0 0.0
        %4247 = vmatpush1.msra.mxu0 0.0
        %4248 = vmatprep.subr.mxu0 0.0
        %4249 = vmatpush1.msra.mxu0 0.0
        %4250 = vmatprep.mubr.f32.mxu0 0.0
        %4251 = vmatmul.mubr.f32.gmra.mrb[0].mxu0 %v4184
        %v4252 = vpop.f32.mrb[0].mxu0
        %v4253 = vadd.f32 0.0, %v4252
        %v4254 = vpop.f32.mrb[0].mxu0
        %4255 = vdwg.mxu0
        %v4256 = vadd.f32 %v4180, %v4253
        %v4257 = vadd.f32 %v4256, %v456
        %v4258 = vxor.u32 %v4257, 2147483648
        %v4259 = vmul.f32 %v4258, 1.442695
        %v4260 = vpow.pop %v4259
        %v4261 = vadd.f32 %v4260, 1.0
        %v4262 = vrcp.pop %v4261
        %v4263 = vmul.f32 1.0, %v4262
        %4264 = vrot.lane.b32.xlu0 %v3927, 32
        %v4265 = vpop.permute.xlu0 %4264
        %v4267 = vmul.f32 %v4263, %v4265
        %4269 = vrot.lane.b32.xlu0 %v4267, 96
        %v4270 = vpop.permute.xlu0 %4269
        %v4271 = vsel %vm477, %v4270, 0
        %4273 = vmatprep.subr.mxu0 0.0
        %4274 = vmatpush1.msra.mxu0 %v435
        %4275 = vmatprep.subr.mxu0 0.0
        %4276 = vmatpush1.msra.mxu0 %v436
        %4277 = vmatprep.subr.mxu0 0.0
        %4278 = vmatpush1.msra.mxu0 %v437
        %4279 = vmatprep.subr.mxu0 0.0
        %4280 = vmatpush1.msra.mxu0 %v438
        %4281 = vmatprep.subr.mxu0 0.0
        %4282 = vmatpush1.msra.mxu0 0.0
        %4283 = vmatprep.subr.mxu0 0.0
        %4284 = vmatpush1.msra.mxu0 0.0
        %4285 = vmatprep.subr.mxu0 0.0
        %4286 = vmatpush1.msra.mxu0 0.0
        %4287 = vmatprep.subr.mxu0 0.0
        %4288 = vmatpush1.msra.mxu0 0.0
        %4289 = vmatprep.subr.mxu0 0.0
        %4290 = vmatpush1.msra.mxu0 0.0
        %4291 = vmatprep.subr.mxu0 0.0
        %4292 = vmatpush1.msra.mxu0 0.0
        %4293 = vmatprep.subr.mxu0 0.0
        %4294 = vmatpush1.msra.mxu0 0.0
        %4295 = vmatprep.subr.mxu0 0.0
        %4296 = vmatpush1.msra.mxu0 0.0
        %4297 = vmatprep.subr.mxu0 0.0
        %4298 = vmatpush1.msra.mxu0 0.0
        %4299 = vmatprep.subr.mxu0 0.0
        %4300 = vmatpush1.msra.mxu0 0.0
        %4301 = vmatprep.subr.mxu0 0.0
        %4302 = vmatpush1.msra.mxu0 0.0
        %4303 = vmatprep.subr.mxu0 0.0
        %4304 = vmatpush1.msra.mxu0 0.0
        %4305 = vmatprep.subr.mxu0 0.0
        %4306 = vmatpush1.msra.mxu0 0.0
        %4307 = vmatprep.subr.mxu0 0.0
        %4308 = vmatpush1.msra.mxu0 0.0
        %4309 = vmatprep.subr.mxu0 0.0
        %4310 = vmatpush1.msra.mxu0 0.0
        %4311 = vmatprep.subr.mxu0 0.0
        %4312 = vmatpush1.msra.mxu0 0.0
        %4313 = vmatprep.subr.mxu0 0.0
        %4314 = vmatpush1.msra.mxu0 0.0
        %4315 = vmatprep.subr.mxu0 0.0
        %4316 = vmatpush1.msra.mxu0 0.0
        %4317 = vmatprep.subr.mxu0 0.0
        %4318 = vmatpush1.msra.mxu0 0.0
        %4319 = vmatprep.subr.mxu0 0.0
        %4320 = vmatpush1.msra.mxu0 0.0
        %4321 = vmatprep.subr.mxu0 0.0
        %4322 = vmatpush1.msra.mxu0 0.0
        %4323 = vmatprep.subr.mxu0 0.0
        %4324 = vmatpush1.msra.mxu0 0.0
        %4325 = vmatprep.subr.mxu0 0.0
        %4326 = vmatpush1.msra.mxu0 0.0
        %4327 = vmatprep.subr.mxu0 0.0
        %4328 = vmatpush1.msra.mxu0 0.0
        %4329 = vmatprep.subr.mxu0 0.0
        %4330 = vmatpush1.msra.mxu0 0.0
        %4331 = vmatprep.subr.mxu0 0.0
        %4332 = vmatpush1.msra.mxu0 0.0
        %4333 = vmatprep.subr.mxu0 0.0
        %4334 = vmatpush1.msra.mxu0 0.0
        %4335 = vmatprep.subr.mxu0 0.0
        %4336 = vmatpush1.msra.mxu0 0.0
        %4337 = vmatprep.mubr.f32.mxu0 0.0
        %4338 = vmatmul.mubr.f32.gmra.mrb[0].mxu0 %v4271
        %v4339 = vpop.f32.mrb[0].mxu0
        %v4340 = vadd.f32 0.0, %v4339
        %v4341 = vpop.f32.mrb[0].mxu0
        %4342 = vdwg.mxu0
        %4344 = vrot.lane.b32.xlu0 %v4340, 64
        %v4345 = vpop.permute.xlu0 %4344
        %v4347 = vadd.f32 %v4180, %v4345
        %v4348 = vadd.f32 %v4347, %v899
        %v4349 = vtanh.pop %v4348
        %v4350 = vmul.f32 %v4263, %v3927
        %v4351 = vsub.f32 1.0, %v4263
        %4353 = vrot.lane.b32.xlu0 %v4349, 64
        %v4354 = vpop.permute.xlu0 %4353
        %v4356 = vmul.f32 %v4351, %v4354
        %v4357 = vadd.f32 %v4350, %v4356
        %v4358 = vsel %vm4108, %v4357, %v3927
        %s4359 = scalar_lea.vmem %s407, 64 [#allocation11]
        %4360 = vst.msk [vmem:[%s4359] sm:$0xff] %vm477, %v4358
        %s4361 = scalar_lea.vmem %s361, 72 [#allocation2]
        %v4362 = vld [vmem:[%s4361] sm:$0xff]
        %s4363 = sadd.s32 %s475, 9
        %p4364 = scmp.lt.s32.totalorder %s4363, 24
        %4365 = vmatprep.subr.mxu0 0.0
        %4366 = vmatpush1.msra.mxu0 %v421
        %4367 = vmatprep.subr.mxu0 0.0
        %4368 = vmatpush1.msra.mxu0 %v422
        %4369 = vmatprep.subr.mxu0 0.0
        %4370 = vmatpush1.msra.mxu0 %v423
        %4371 = vmatprep.subr.mxu0 0.0
        %4372 = vmatpush1.msra.mxu0 %v424
        %4373 = vmatprep.subr.mxu0 0.0
        %4374 = vmatpush1.msra.mxu0 0.0
        %4375 = vmatprep.subr.mxu0 0.0
        %4376 = vmatpush1.msra.mxu0 0.0
        %4377 = vmatprep.subr.mxu0 0.0
        %4378 = vmatpush1.msra.mxu0 0.0
        %4379 = vmatprep.subr.mxu0 0.0
        %4380 = vmatpush1.msra.mxu0 0.0
        %4381 = vmatprep.subr.mxu0 0.0
        %4382 = vmatpush1.msra.mxu0 0.0
        %4383 = vmatprep.subr.mxu0 0.0
        %4384 = vmatpush1.msra.mxu0 0.0
        %4385 = vmatprep.subr.mxu0 0.0
        %4386 = vmatpush1.msra.mxu0 0.0
        %4387 = vmatprep.subr.mxu0 0.0
        %4388 = vmatpush1.msra.mxu0 0.0
        %4389 = vmatprep.subr.mxu0 0.0
        %4390 = vmatpush1.msra.mxu0 0.0
        %4391 = vmatprep.subr.mxu0 0.0
        %4392 = vmatpush1.msra.mxu0 0.0
        %4393 = vmatprep.subr.mxu0 0.0
        %4394 = vmatpush1.msra.mxu0 0.0
        %4395 = vmatprep.subr.mxu0 0.0
        %4396 = vmatpush1.msra.mxu0 0.0
        %4397 = vmatprep.subr.mxu0 0.0
        %4398 = vmatpush1.msra.mxu0 0.0
        %4399 = vmatprep.subr.mxu0 0.0
        %4400 = vmatpush1.msra.mxu0 0.0
        %4401 = vmatprep.subr.mxu0 0.0
        %4402 = vmatpush1.msra.mxu0 0.0
        %4403 = vmatprep.subr.mxu0 0.0
        %4404 = vmatpush1.msra.mxu0 0.0
        %4405 = vmatprep.subr.mxu0 0.0
        %4406 = vmatpush1.msra.mxu0 0.0
        %4407 = vmatprep.subr.mxu0 0.0
        %4408 = vmatpush1.msra.mxu0 0.0
        %4409 = vmatprep.subr.mxu0 0.0
        %4410 = vmatpush1.msra.mxu0 0.0
        %4411 = vmatprep.subr.mxu0 0.0
        %4412 = vmatpush1.msra.mxu0 0.0
        %4413 = vmatprep.subr.mxu0 0.0
        %4414 = vmatpush1.msra.mxu0 0.0
        %4415 = vmatprep.subr.mxu0 0.0
        %4416 = vmatpush1.msra.mxu0 0.0
        %4417 = vmatprep.subr.mxu0 0.0
        %4418 = vmatpush1.msra.mxu0 0.0
        %4419 = vmatprep.subr.mxu0 0.0
        %4420 = vmatpush1.msra.mxu0 0.0
        %4421 = vmatprep.subr.mxu0 0.0
        %4422 = vmatpush1.msra.mxu0 0.0
        %4423 = vmatprep.subr.mxu0 0.0
        %4424 = vmatpush1.msra.mxu0 0.0
        %4425 = vmatprep.subr.mxu0 0.0
        %4426 = vmatpush1.msra.mxu0 0.0
        %4427 = vmatprep.subr.mxu0 0.0
        %4428 = vmatpush1.msra.mxu0 0.0
        %4429 = vmatprep.mubr.f32.mxu0 0.0
        %4430 = vmatmul.mubr.f32.gmra.mrb[0].mxu0 %v4111
        %v4431 = vpop.f32.mrb[0].mxu0
        %v4432 = vadd.f32 0.0, %v4431
        %v4433 = vpop.f32.mrb[0].mxu0
        %4434 = vdwg.mxu0
        %v4435 = vadd.f32 %v4362, %v4432
        %v4436 = vadd.f32 %v4435, %v448
        %v4437 = vxor.u32 %v4436, 2147483648
        %v4438 = vmul.f32 %v4437, 1.442695
        %v4439 = vpow.pop %v4438
        %v4440 = vadd.f32 %v4439, 1.0
        %v4441 = vrcp.pop %v4440
        %v4442 = vmul.f32 1.0, %v4441
        %4443 = vrot.lane.b32.xlu0 %v4109, 32
        %v4444 = vpop.permute.xlu0 %4443
        %v4446 = vmul.f32 %v4442, %v4444
        %4448 = vrot.lane.b32.xlu0 %v4446, 96
        %v4449 = vpop.permute.xlu0 %4448
        %v4450 = vsel %vm477, %v4449, 0
        %4452 = vmatprep.subr.mxu0 0.0
        %4453 = vmatpush1.msra.mxu0 %v430
        %4454 = vmatprep.subr.mxu0 0.0
        %4455 = vmatpush1.msra.mxu0 %v431
        %4456 = vmatprep.subr.mxu0 0.0
        %4457 = vmatpush1.msra.mxu0 %v432
        %4458 = vmatprep.subr.mxu0 0.0
        %4459 = vmatpush1.msra.mxu0 %v433
        %4460 = vmatprep.subr.mxu0 0.0
        %4461 = vmatpush1.msra.mxu0 0.0
        %4462 = vmatprep.subr.mxu0 0.0
        %4463 = vmatpush1.msra.mxu0 0.0
        %4464 = vmatprep.subr.mxu0 0.0
        %4465 = vmatpush1.msra.mxu0 0.0
        %4466 = vmatprep.subr.mxu0 0.0
        %4467 = vmatpush1.msra.mxu0 0.0
        %4468 = vmatprep.subr.mxu0 0.0
        %4469 = vmatpush1.msra.mxu0 0.0
        %4470 = vmatprep.subr.mxu0 0.0
        %4471 = vmatpush1.msra.mxu0 0.0
        %4472 = vmatprep.subr.mxu0 0.0
        %4473 = vmatpush1.msra.mxu0 0.0
        %4474 = vmatprep.subr.mxu0 0.0
        %4475 = vmatpush1.msra.mxu0 0.0
        %4476 = vmatprep.subr.mxu0 0.0
        %4477 = vmatpush1.msra.mxu0 0.0
        %4478 = vmatprep.subr.mxu0 0.0
        %4479 = vmatpush1.msra.mxu0 0.0
        %4480 = vmatprep.subr.mxu0 0.0
        %4481 = vmatpush1.msra.mxu0 0.0
        %4482 = vmatprep.subr.mxu0 0.0
        %4483 = vmatpush1.msra.mxu0 0.0
        %4484 = vmatprep.subr.mxu0 0.0
        %4485 = vmatpush1.msra.mxu0 0.0
        %4486 = vmatprep.subr.mxu0 0.0
        %4487 = vmatpush1.msra.mxu0 0.0
        %4488 = vmatprep.subr.mxu0 0.0
        %4489 = vmatpush1.msra.mxu0 0.0
        %4490 = vmatprep.subr.mxu0 0.0
        %4491 = vmatpush1.msra.mxu0 0.0
        %4492 = vmatprep.subr.mxu0 0.0
        %4493 = vmatpush1.msra.mxu0 0.0
        %4494 = vmatprep.subr.mxu0 0.0
        %4495 = vmatpush1.msra.mxu0 0.0
        %4496 = vmatprep.subr.mxu0 0.0
        %4497 = vmatpush1.msra.mxu0 0.0
        %4498 = vmatprep.subr.mxu0 0.0
        %4499 = vmatpush1.msra.mxu0 0.0
        %4500 = vmatprep.subr.mxu0 0.0
        %4501 = vmatpush1.msra.mxu0 0.0
        %4502 = vmatprep.subr.mxu0 0.0
        %4503 = vmatpush1.msra.mxu0 0.0
        %4504 = vmatprep.subr.mxu0 0.0
        %4505 = vmatpush1.msra.mxu0 0.0
        %4506 = vmatprep.subr.mxu0 0.0
        %4507 = vmatpush1.msra.mxu0 0.0
        %4508 = vmatprep.subr.mxu0 0.0
        %4509 = vmatpush1.msra.mxu0 0.0
        %4510 = vmatprep.subr.mxu0 0.0
        %4511 = vmatpush1.msra.mxu0 0.0
        %4512 = vmatprep.subr.mxu0 0.0
        %4513 = vmatpush1.msra.mxu0 0.0
        %4514 = vmatprep.subr.mxu0 0.0
        %4515 = vmatpush1.msra.mxu0 0.0
        %4516 = vmatprep.mubr.f32.mxu0 0.0
        %4517 = vmatmul.mubr.f32.gmra.mrb[0].mxu0 %v4450
        %v4518 = vpop.f32.mrb[0].mxu0
        %v4519 = vadd.f32 0.0, %v4518
        %v4520 = vpop.f32.mrb[0].mxu0
        %4521 = vdwg.mxu0
        %4523 = vrot.lane.b32.xlu0 %v4519, 64
        %v4524 = vpop.permute.xlu0 %4523
        %v4526 = vadd.f32 %v4362, %v4524
        %v4527 = vadd.f32 %v4526, %v644
        %v4528 = vtanh.pop %v4527
        %v4529 = vmul.f32 %v4442, %v4109
        %v4530 = vsub.f32 1.0, %v4442
        %4532 = vrot.lane.b32.xlu0 %v4528, 64
        %v4533 = vpop.permute.xlu0 %4532
        %v4535 = vmul.f32 %v4530, %v4533
        %v4536 = vadd.f32 %v4529, %v4535
        %s4537 = scalar_select %p4364, 1, 0
        %v4538 = vstv %s4537
        %vm4539 = vcmp.eq.s32.totalorder %v4538, 1
        %v4540 = vsel %vm4539, %v4536, %v4109
        %v4542 = vsel %vm477, %v4540, 0
        %4544 = vmatprep.subr.mxu0 0.0
        %4545 = vmatpush1.msra.mxu0 %v439
        %4546 = vmatprep.subr.mxu0 0.0
        %4547 = vmatpush1.msra.mxu0 %v440
        %4548 = vmatprep.subr.mxu0 0.0
        %4549 = vmatpush1.msra.mxu0 %v441
        %4550 = vmatprep.subr.mxu0 0.0
        %4551 = vmatpush1.msra.mxu0 %v442
        %4552 = vmatprep.subr.mxu0 0.0
        %4553 = vmatpush1.msra.mxu0 0.0
        %4554 = vmatprep.subr.mxu0 0.0
        %4555 = vmatpush1.msra.mxu0 0.0
        %4556 = vmatprep.subr.mxu0 0.0
        %4557 = vmatpush1.msra.mxu0 0.0
        %4558 = vmatprep.subr.mxu0 0.0
        %4559 = vmatpush1.msra.mxu0 0.0
        %4560 = vmatprep.subr.mxu0 0.0
        %4561 = vmatpush1.msra.mxu0 0.0
        %4562 = vmatprep.subr.mxu0 0.0
        %4563 = vmatpush1.msra.mxu0 0.0
        %4564 = vmatprep.subr.mxu0 0.0
        %4565 = vmatpush1.msra.mxu0 0.0
        %4566 = vmatprep.subr.mxu0 0.0
        %4567 = vmatpush1.msra.mxu0 0.0
        %4568 = vmatprep.subr.mxu0 0.0
        %4569 = vmatpush1.msra.mxu0 0.0
        %4570 = vmatprep.subr.mxu0 0.0
        %4571 = vmatpush1.msra.mxu0 0.0
        %4572 = vmatprep.subr.mxu0 0.0
        %4573 = vmatpush1.msra.mxu0 0.0
        %4574 = vmatprep.subr.mxu0 0.0
        %4575 = vmatpush1.msra.mxu0 0.0
        %4576 = vmatprep.subr.mxu0 0.0
        %4577 = vmatpush1.msra.mxu0 0.0
        %4578 = vmatprep.subr.mxu0 0.0
        %4579 = vmatpush1.msra.mxu0 0.0
        %4580 = vmatprep.subr.mxu0 0.0
        %4581 = vmatpush1.msra.mxu0 0.0
        %4582 = vmatprep.subr.mxu0 0.0
        %4583 = vmatpush1.msra.mxu0 0.0
        %4584 = vmatprep.subr.mxu0 0.0
        %4585 = vmatpush1.msra.mxu0 0.0
        %4586 = vmatprep.subr.mxu0 0.0
        %4587 = vmatpush1.msra.mxu0 0.0
        %4588 = vmatprep.subr.mxu0 0.0
        %4589 = vmatpush1.msra.mxu0 0.0
        %4590 = vmatprep.subr.mxu0 0.0
        %4591 = vmatpush1.msra.mxu0 0.0
        %4592 = vmatprep.subr.mxu0 0.0
        %4593 = vmatpush1.msra.mxu0 0.0
        %4594 = vmatprep.subr.mxu0 0.0
        %4595 = vmatpush1.msra.mxu0 0.0
        %4596 = vmatprep.subr.mxu0 0.0
        %4597 = vmatpush1.msra.mxu0 0.0
        %4598 = vmatprep.subr.mxu0 0.0
        %4599 = vmatpush1.msra.mxu0 0.0
        %4600 = vmatprep.subr.mxu0 0.0
        %4601 = vmatpush1.msra.mxu0 0.0
        %4602 = vmatprep.subr.mxu0 0.0
        %4603 = vmatpush1.msra.mxu0 0.0
        %4604 = vmatprep.subr.mxu0 0.0
        %4605 = vmatpush1.msra.mxu0 0.0
        %4606 = vmatprep.subr.mxu0 0.0
        %4607 = vmatpush1.msra.mxu0 0.0
        %4608 = vmatprep.mubr.f32.mxu0 0.0
        %4609 = vmatmul.mubr.f32.gmra.mrb[0].mxu0 %v4542
        %v4610 = vpop.f32.mrb[0].mxu0
        %v4611 = vadd.f32 0.0, %v4610
        %v4612 = vpop.f32.mrb[0].mxu0
        %4613 = vdwg.mxu0
        %v4615 = vsel %vm477, %v4358, 0
        %4617 = vmatprep.subr.mxu0 0.0
        %4618 = vmatpush1.msra.mxu0 %v426
        %4619 = vmatprep.subr.mxu0 0.0
        %4620 = vmatpush1.msra.mxu0 %v427
        %4621 = vmatprep.subr.mxu0 0.0
        %4622 = vmatpush1.msra.mxu0 %v428
        %4623 = vmatprep.subr.mxu0 0.0
        %4624 = vmatpush1.msra.mxu0 %v429
        %4625 = vmatprep.subr.mxu0 0.0
        %4626 = vmatpush1.msra.mxu0 0.0
        %4627 = vmatprep.subr.mxu0 0.0
        %4628 = vmatpush1.msra.mxu0 0.0
        %4629 = vmatprep.subr.mxu0 0.0
        %4630 = vmatpush1.msra.mxu0 0.0
        %4631 = vmatprep.subr.mxu0 0.0
        %4632 = vmatpush1.msra.mxu0 0.0
        %4633 = vmatprep.subr.mxu0 0.0
        %4634 = vmatpush1.msra.mxu0 0.0
        %4635 = vmatprep.subr.mxu0 0.0
        %4636 = vmatpush1.msra.mxu0 0.0
        %4637 = vmatprep.subr.mxu0 0.0
        %4638 = vmatpush1.msra.mxu0 0.0
        %4639 = vmatprep.subr.mxu0 0.0
        %4640 = vmatpush1.msra.mxu0 0.0
        %4641 = vmatprep.subr.mxu0 0.0
        %4642 = vmatpush1.msra.mxu0 0.0
        %4643 = vmatprep.subr.mxu0 0.0
        %4644 = vmatpush1.msra.mxu0 0.0
        %4645 = vmatprep.subr.mxu0 0.0
        %4646 = vmatpush1.msra.mxu0 0.0
        %4647 = vmatprep.subr.mxu0 0.0
        %4648 = vmatpush1.msra.mxu0 0.0
        %4649 = vmatprep.subr.mxu0 0.0
        %4650 = vmatpush1.msra.mxu0 0.0
        %4651 = vmatprep.subr.mxu0 0.0
        %4652 = vmatpush1.msra.mxu0 0.0
        %4653 = vmatprep.subr.mxu0 0.0
        %4654 = vmatpush1.msra.mxu0 0.0
        %4655 = vmatprep.subr.mxu0 0.0
        %4656 = vmatpush1.msra.mxu0 0.0
        %4657 = vmatprep.subr.mxu0 0.0
        %4658 = vmatpush1.msra.mxu0 0.0
        %4659 = vmatprep.subr.mxu0 0.0
        %4660 = vmatpush1.msra.mxu0 0.0
        %4661 = vmatprep.subr.mxu0 0.0
        %4662 = vmatpush1.msra.mxu0 0.0
        %4663 = vmatprep.subr.mxu0 0.0
        %4664 = vmatpush1.msra.mxu0 0.0
        %4665 = vmatprep.subr.mxu0 0.0
        %4666 = vmatpush1.msra.mxu0 0.0
        %4667 = vmatprep.subr.mxu0 0.0
        %4668 = vmatpush1.msra.mxu0 0.0
        %4669 = vmatprep.subr.mxu0 0.0
        %4670 = vmatpush1.msra.mxu0 0.0
        %4671 = vmatprep.subr.mxu0 0.0
        %4672 = vmatpush1.msra.mxu0 0.0
        %4673 = vmatprep.subr.mxu0 0.0
        %4674 = vmatpush1.msra.mxu0 0.0
        %4675 = vmatprep.subr.mxu0 0.0
        %4676 = vmatpush1.msra.mxu0 0.0
        %4677 = vmatprep.subr.mxu0 0.0
        %4678 = vmatpush1.msra.mxu0 0.0
        %4679 = vmatprep.subr.mxu0 0.0
        %4680 = vmatpush1.msra.mxu0 0.0
        %4681 = vmatprep.mubr.f32.mxu0 0.0
        %4682 = vmatmul.mubr.f32.gmra.mrb[0].mxu0 %v4615
        %v4683 = vpop.f32.mrb[0].mxu0
        %v4684 = vadd.f32 0.0, %v4683
        %v4685 = vpop.f32.mrb[0].mxu0
        %4686 = vdwg.mxu0
        %v4687 = vadd.f32 %v4611, %v4684
        %v4688 = vadd.f32 %v4687, %v456
        %v4689 = vxor.u32 %v4688, 2147483648
        %v4690 = vmul.f32 %v4689, 1.442695
        %v4691 = vpow.pop %v4690
        %v4692 = vadd.f32 %v4691, 1.0
        %v4693 = vrcp.pop %v4692
        %v4694 = vmul.f32 1.0, %v4693
        %4695 = vrot.lane.b32.xlu0 %v4358, 32
        %v4696 = vpop.permute.xlu0 %4695
        %v4698 = vmul.f32 %v4694, %v4696
        %4700 = vrot.lane.b32.xlu0 %v4698, 96
        %v4701 = vpop.permute.xlu0 %4700
        %v4702 = vsel %vm477, %v4701, 0
        %4704 = vmatprep.subr.mxu0 0.0
        %4705 = vmatpush1.msra.mxu0 %v435
        %4706 = vmatprep.subr.mxu0 0.0
        %4707 = vmatpush1.msra.mxu0 %v436
        %4708 = vmatprep.subr.mxu0 0.0
        %4709 = vmatpush1.msra.mxu0 %v437
        %4710 = vmatprep.subr.mxu0 0.0
        %4711 = vmatpush1.msra.mxu0 %v438
        %4712 = vmatprep.subr.mxu0 0.0
        %4713 = vmatpush1.msra.mxu0 0.0
        %4714 = vmatprep.subr.mxu0 0.0
        %4715 = vmatpush1.msra.mxu0 0.0
        %4716 = vmatprep.subr.mxu0 0.0
        %4717 = vmatpush1.msra.mxu0 0.0
        %4718 = vmatprep.subr.mxu0 0.0
        %4719 = vmatpush1.msra.mxu0 0.0
        %4720 = vmatprep.subr.mxu0 0.0
        %4721 = vmatpush1.msra.mxu0 0.0
        %4722 = vmatprep.subr.mxu0 0.0
        %4723 = vmatpush1.msra.mxu0 0.0
        %4724 = vmatprep.subr.mxu0 0.0
        %4725 = vmatpush1.msra.mxu0 0.0
        %4726 = vmatprep.subr.mxu0 0.0
        %4727 = vmatpush1.msra.mxu0 0.0
        %4728 = vmatprep.subr.mxu0 0.0
        %4729 = vmatpush1.msra.mxu0 0.0
        %4730 = vmatprep.subr.mxu0 0.0
        %4731 = vmatpush1.msra.mxu0 0.0
        %4732 = vmatprep.subr.mxu0 0.0
        %4733 = vmatpush1.msra.mxu0 0.0
        %4734 = vmatprep.subr.mxu0 0.0
        %4735 = vmatpush1.msra.mxu0 0.0
        %4736 = vmatprep.subr.mxu0 0.0
        %4737 = vmatpush1.msra.mxu0 0.0
        %4738 = vmatprep.subr.mxu0 0.0
        %4739 = vmatpush1.msra.mxu0 0.0
        %4740 = vmatprep.subr.mxu0 0.0
        %4741 = vmatpush1.msra.mxu0 0.0
        %4742 = vmatprep.subr.mxu0 0.0
        %4743 = vmatpush1.msra.mxu0 0.0
        %4744 = vmatprep.subr.mxu0 0.0
        %4745 = vmatpush1.msra.mxu0 0.0
        %4746 = vmatprep.subr.mxu0 0.0
        %4747 = vmatpush1.msra.mxu0 0.0
        %4748 = vmatprep.subr.mxu0 0.0
        %4749 = vmatpush1.msra.mxu0 0.0
        %4750 = vmatprep.subr.mxu0 0.0
        %4751 = vmatpush1.msra.mxu0 0.0
        %4752 = vmatprep.subr.mxu0 0.0
        %4753 = vmatpush1.msra.mxu0 0.0
        %4754 = vmatprep.subr.mxu0 0.0
        %4755 = vmatpush1.msra.mxu0 0.0
        %4756 = vmatprep.subr.mxu0 0.0
        %4757 = vmatpush1.msra.mxu0 0.0
        %4758 = vmatprep.subr.mxu0 0.0
        %4759 = vmatpush1.msra.mxu0 0.0
        %4760 = vmatprep.subr.mxu0 0.0
        %4761 = vmatpush1.msra.mxu0 0.0
        %4762 = vmatprep.subr.mxu0 0.0
        %4763 = vmatpush1.msra.mxu0 0.0
        %4764 = vmatprep.subr.mxu0 0.0
        %4765 = vmatpush1.msra.mxu0 0.0
        %4766 = vmatprep.subr.mxu0 0.0
        %4767 = vmatpush1.msra.mxu0 0.0
        %4768 = vmatprep.mubr.f32.mxu0 0.0
        %4769 = vmatmul.mubr.f32.gmra.mrb[0].mxu0 %v4702
        %v4770 = vpop.f32.mrb[0].mxu0
        %v4771 = vadd.f32 0.0, %v4770
        %v4772 = vpop.f32.mrb[0].mxu0
        %4773 = vdwg.mxu0
        %4775 = vrot.lane.b32.xlu0 %v4771, 64
        %v4776 = vpop.permute.xlu0 %4775
        %v4778 = vadd.f32 %v4611, %v4776
        %v4779 = vadd.f32 %v4778, %v899
        %v4780 = vtanh.pop %v4779
        %v4781 = vmul.f32 %v4694, %v4358
        %v4782 = vsub.f32 1.0, %v4694
        %4784 = vrot.lane.b32.xlu0 %v4780, 64
        %v4785 = vpop.permute.xlu0 %4784
        %v4787 = vmul.f32 %v4782, %v4785
        %v4788 = vadd.f32 %v4781, %v4787
        %v4789 = vsel %vm4539, %v4788, %v4358
        %s4790 = scalar_lea.vmem %s407, 72 [#allocation11]
        %4791 = vst.msk [vmem:[%s4790] sm:$0xff] %vm477, %v4789
        %s4792 = scalar_lea.vmem %s361, 80 [#allocation2]
        %v4793 = vld [vmem:[%s4792] sm:$0xff]
        %s4794 = sadd.s32 %s475, 10
        %p4795 = scmp.lt.s32.totalorder %s4794, 24
        %4796 = vmatprep.subr.mxu0 0.0
        %4797 = vmatpush1.msra.mxu0 %v421
        %4798 = vmatprep.subr.mxu0 0.0
        %4799 = vmatpush1.msra.mxu0 %v422
        %4800 = vmatprep.subr.mxu0 0.0
        %4801 = vmatpush1.msra.mxu0 %v423
        %4802 = vmatprep.subr.mxu0 0.0
        %4803 = vmatpush1.msra.mxu0 %v424
        %4804 = vmatprep.subr.mxu0 0.0
        %4805 = vmatpush1.msra.mxu0 0.0
        %4806 = vmatprep.subr.mxu0 0.0
        %4807 = vmatpush1.msra.mxu0 0.0
        %4808 = vmatprep.subr.mxu0 0.0
        %4809 = vmatpush1.msra.mxu0 0.0
        %4810 = vmatprep.subr.mxu0 0.0
        %4811 = vmatpush1.msra.mxu0 0.0
        %4812 = vmatprep.subr.mxu0 0.0
        %4813 = vmatpush1.msra.mxu0 0.0
        %4814 = vmatprep.subr.mxu0 0.0
        %4815 = vmatpush1.msra.mxu0 0.0
        %4816 = vmatprep.subr.mxu0 0.0
        %4817 = vmatpush1.msra.mxu0 0.0
        %4818 = vmatprep.subr.mxu0 0.0
        %4819 = vmatpush1.msra.mxu0 0.0
        %4820 = vmatprep.subr.mxu0 0.0
        %4821 = vmatpush1.msra.mxu0 0.0
        %4822 = vmatprep.subr.mxu0 0.0
        %4823 = vmatpush1.msra.mxu0 0.0
        %4824 = vmatprep.subr.mxu0 0.0
        %4825 = vmatpush1.msra.mxu0 0.0
        %4826 = vmatprep.subr.mxu0 0.0
        %4827 = vmatpush1.msra.mxu0 0.0
        %4828 = vmatprep.subr.mxu0 0.0
        %4829 = vmatpush1.msra.mxu0 0.0
        %4830 = vmatprep.subr.mxu0 0.0
        %4831 = vmatpush1.msra.mxu0 0.0
        %4832 = vmatprep.subr.mxu0 0.0
        %4833 = vmatpush1.msra.mxu0 0.0
        %4834 = vmatprep.subr.mxu0 0.0
        %4835 = vmatpush1.msra.mxu0 0.0
        %4836 = vmatprep.subr.mxu0 0.0
        %4837 = vmatpush1.msra.mxu0 0.0
        %4838 = vmatprep.subr.mxu0 0.0
        %4839 = vmatpush1.msra.mxu0 0.0
        %4840 = vmatprep.subr.mxu0 0.0
        %4841 = vmatpush1.msra.mxu0 0.0
        %4842 = vmatprep.subr.mxu0 0.0
        %4843 = vmatpush1.msra.mxu0 0.0
        %4844 = vmatprep.subr.mxu0 0.0
        %4845 = vmatpush1.msra.mxu0 0.0
        %4846 = vmatprep.subr.mxu0 0.0
        %4847 = vmatpush1.msra.mxu0 0.0
        %4848 = vmatprep.subr.mxu0 0.0
        %4849 = vmatpush1.msra.mxu0 0.0
        %4850 = vmatprep.subr.mxu0 0.0
        %4851 = vmatpush1.msra.mxu0 0.0
        %4852 = vmatprep.subr.mxu0 0.0
        %4853 = vmatpush1.msra.mxu0 0.0
        %4854 = vmatprep.subr.mxu0 0.0
        %4855 = vmatpush1.msra.mxu0 0.0
        %4856 = vmatprep.subr.mxu0 0.0
        %4857 = vmatpush1.msra.mxu0 0.0
        %4858 = vmatprep.subr.mxu0 0.0
        %4859 = vmatpush1.msra.mxu0 0.0
        %4860 = vmatprep.mubr.f32.mxu0 0.0
        %4861 = vmatmul.mubr.f32.gmra.mrb[0].mxu0 %v4542
        %v4862 = vpop.f32.mrb[0].mxu0
        %v4863 = vadd.f32 0.0, %v4862
        %v4864 = vpop.f32.mrb[0].mxu0
        %4865 = vdwg.mxu0
        %v4866 = vadd.f32 %v4793, %v4863
        %v4867 = vadd.f32 %v4866, %v448
        %v4868 = vxor.u32 %v4867, 2147483648
        %v4869 = vmul.f32 %v4868, 1.442695
        %v4870 = vpow.pop %v4869
        %v4871 = vadd.f32 %v4870, 1.0
        %v4872 = vrcp.pop %v4871
        %v4873 = vmul.f32 1.0, %v4872
        %4874 = vrot.lane.b32.xlu0 %v4540, 32
        %v4875 = vpop.permute.xlu0 %4874
        %v4877 = vmul.f32 %v4873, %v4875
        %4879 = vrot.lane.b32.xlu0 %v4877, 96
        %v4880 = vpop.permute.xlu0 %4879
        %v4881 = vsel %vm477, %v4880, 0
        %4883 = vmatprep.subr.mxu0 0.0
        %4884 = vmatpush1.msra.mxu0 %v430
        %4885 = vmatprep.subr.mxu0 0.0
        %4886 = vmatpush1.msra.mxu0 %v431
        %4887 = vmatprep.subr.mxu0 0.0
        %4888 = vmatpush1.msra.mxu0 %v432
        %4889 = vmatprep.subr.mxu0 0.0
        %4890 = vmatpush1.msra.mxu0 %v433
        %4891 = vmatprep.subr.mxu0 0.0
        %4892 = vmatpush1.msra.mxu0 0.0
        %4893 = vmatprep.subr.mxu0 0.0
        %4894 = vmatpush1.msra.mxu0 0.0
        %4895 = vmatprep.subr.mxu0 0.0
        %4896 = vmatpush1.msra.mxu0 0.0
        %4897 = vmatprep.subr.mxu0 0.0
        %4898 = vmatpush1.msra.mxu0 0.0
        %4899 = vmatprep.subr.mxu0 0.0
        %4900 = vmatpush1.msra.mxu0 0.0
        %4901 = vmatprep.subr.mxu0 0.0
        %4902 = vmatpush1.msra.mxu0 0.0
        %4903 = vmatprep.subr.mxu0 0.0
        %4904 = vmatpush1.msra.mxu0 0.0
        %4905 = vmatprep.subr.mxu0 0.0
        %4906 = vmatpush1.msra.mxu0 0.0
        %4907 = vmatprep.subr.mxu0 0.0
        %4908 = vmatpush1.msra.mxu0 0.0
        %4909 = vmatprep.subr.mxu0 0.0
        %4910 = vmatpush1.msra.mxu0 0.0
        %4911 = vmatprep.subr.mxu0 0.0
        %4912 = vmatpush1.msra.mxu0 0.0
        %4913 = vmatprep.subr.mxu0 0.0
        %4914 = vmatpush1.msra.mxu0 0.0
        %4915 = vmatprep.subr.mxu0 0.0
        %4916 = vmatpush1.msra.mxu0 0.0
        %4917 = vmatprep.subr.mxu0 0.0
        %4918 = vmatpush1.msra.mxu0 0.0
        %4919 = vmatprep.subr.mxu0 0.0
        %4920 = vmatpush1.msra.mxu0 0.0
        %4921 = vmatprep.subr.mxu0 0.0
        %4922 = vmatpush1.msra.mxu0 0.0
        %4923 = vmatprep.subr.mxu0 0.0
        %4924 = vmatpush1.msra.mxu0 0.0
        %4925 = vmatprep.subr.mxu0 0.0
        %4926 = vmatpush1.msra.mxu0 0.0
        %4927 = vmatprep.subr.mxu0 0.0
        %4928 = vmatpush1.msra.mxu0 0.0
        %4929 = vmatprep.subr.mxu0 0.0
        %4930 = vmatpush1.msra.mxu0 0.0
        %4931 = vmatprep.subr.mxu0 0.0
        %4932 = vmatpush1.msra.mxu0 0.0
        %4933 = vmatprep.subr.mxu0 0.0
        %4934 = vmatpush1.msra.mxu0 0.0
        %4935 = vmatprep.subr.mxu0 0.0
        %4936 = vmatpush1.msra.mxu0 0.0
        %4937 = vmatprep.subr.mxu0 0.0
        %4938 = vmatpush1.msra.mxu0 0.0
        %4939 = vmatprep.subr.mxu0 0.0
        %4940 = vmatpush1.msra.mxu0 0.0
        %4941 = vmatprep.subr.mxu0 0.0
        %4942 = vmatpush1.msra.mxu0 0.0
        %4943 = vmatprep.subr.mxu0 0.0
        %4944 = vmatpush1.msra.mxu0 0.0
        %4945 = vmatprep.subr.mxu0 0.0
        %4946 = vmatpush1.msra.mxu0 0.0
        %4947 = vmatprep.mubr.f32.mxu0 0.0
        %4948 = vmatmul.mubr.f32.gmra.mrb[0].mxu0 %v4881
        %v4949 = vpop.f32.mrb[0].mxu0
        %v4950 = vadd.f32 0.0, %v4949
        %v4951 = vpop.f32.mrb[0].mxu0
        %4952 = vdwg.mxu0
        %4954 = vrot.lane.b32.xlu0 %v4950, 64
        %v4955 = vpop.permute.xlu0 %4954
        %v4957 = vadd.f32 %v4793, %v4955
        %v4958 = vadd.f32 %v4957, %v644
        %v4959 = vtanh.pop %v4958
        %v4960 = vmul.f32 %v4873, %v4540
        %v4961 = vsub.f32 1.0, %v4873
        %4963 = vrot.lane.b32.xlu0 %v4959, 64
        %v4964 = vpop.permute.xlu0 %4963
        %v4966 = vmul.f32 %v4961, %v4964
        %v4967 = vadd.f32 %v4960, %v4966
        %s4968 = scalar_select %p4795, 1, 0
        %v4969 = vstv %s4968
        %vm4970 = vcmp.eq.s32.totalorder %v4969, 1
        %v4971 = vsel %vm4970, %v4967, %v4540
        %v4973 = vsel %vm477, %v4971, 0
        %4975 = vmatprep.subr.mxu0 0.0
        %4976 = vmatpush1.msra.mxu0 %v439
        %4977 = vmatprep.subr.mxu0 0.0
        %4978 = vmatpush1.msra.mxu0 %v440
        %4979 = vmatprep.subr.mxu0 0.0
        %4980 = vmatpush1.msra.mxu0 %v441
        %4981 = vmatprep.subr.mxu0 0.0
        %4982 = vmatpush1.msra.mxu0 %v442
        %4983 = vmatprep.subr.mxu0 0.0
        %4984 = vmatpush1.msra.mxu0 0.0
        %4985 = vmatprep.subr.mxu0 0.0
        %4986 = vmatpush1.msra.mxu0 0.0
        %4987 = vmatprep.subr.mxu0 0.0
        %4988 = vmatpush1.msra.mxu0 0.0
        %4989 = vmatprep.subr.mxu0 0.0
        %4990 = vmatpush1.msra.mxu0 0.0
        %4991 = vmatprep.subr.mxu0 0.0
        %4992 = vmatpush1.msra.mxu0 0.0
        %4993 = vmatprep.subr.mxu0 0.0
        %4994 = vmatpush1.msra.mxu0 0.0
        %4995 = vmatprep.subr.mxu0 0.0
        %4996 = vmatpush1.msra.mxu0 0.0
        %4997 = vmatprep.subr.mxu0 0.0
        %4998 = vmatpush1.msra.mxu0 0.0
        %4999 = vmatprep.subr.mxu0 0.0
        %5000 = vmatpush1.msra.mxu0 0.0
        %5001 = vmatprep.subr.mxu0 0.0
        %5002 = vmatpush1.msra.mxu0 0.0
        %5003 = vmatprep.subr.mxu0 0.0
        %5004 = vmatpush1.msra.mxu0 0.0
        %5005 = vmatprep.subr.mxu0 0.0
        %5006 = vmatpush1.msra.mxu0 0.0
        %5007 = vmatprep.subr.mxu0 0.0
        %5008 = vmatpush1.msra.mxu0 0.0
        %5009 = vmatprep.subr.mxu0 0.0
        %5010 = vmatpush1.msra.mxu0 0.0
        %5011 = vmatprep.subr.mxu0 0.0
        %5012 = vmatpush1.msra.mxu0 0.0
        %5013 = vmatprep.subr.mxu0 0.0
        %5014 = vmatpush1.msra.mxu0 0.0
        %5015 = vmatprep.subr.mxu0 0.0
        %5016 = vmatpush1.msra.mxu0 0.0
        %5017 = vmatprep.subr.mxu0 0.0
        %5018 = vmatpush1.msra.mxu0 0.0
        %5019 = vmatprep.subr.mxu0 0.0
        %5020 = vmatpush1.msra.mxu0 0.0
        %5021 = vmatprep.subr.mxu0 0.0
        %5022 = vmatpush1.msra.mxu0 0.0
        %5023 = vmatprep.subr.mxu0 0.0
        %5024 = vmatpush1.msra.mxu0 0.0
        %5025 = vmatprep.subr.mxu0 0.0
        %5026 = vmatpush1.msra.mxu0 0.0
        %5027 = vmatprep.subr.mxu0 0.0
        %5028 = vmatpush1.msra.mxu0 0.0
        %5029 = vmatprep.subr.mxu0 0.0
        %5030 = vmatpush1.msra.mxu0 0.0
        %5031 = vmatprep.subr.mxu0 0.0
        %5032 = vmatpush1.msra.mxu0 0.0
        %5033 = vmatprep.subr.mxu0 0.0
        %5034 = vmatpush1.msra.mxu0 0.0
        %5035 = vmatprep.subr.mxu0 0.0
        %5036 = vmatpush1.msra.mxu0 0.0
        %5037 = vmatprep.subr.mxu0 0.0
        %5038 = vmatpush1.msra.mxu0 0.0
        %5039 = vmatprep.mubr.f32.mxu0 0.0
        %5040 = vmatmul.mubr.f32.gmra.mrb[0].mxu0 %v4973
        %v5041 = vpop.f32.mrb[0].mxu0
        %v5042 = vadd.f32 0.0, %v5041
        %v5043 = vpop.f32.mrb[0].mxu0
        %5044 = vdwg.mxu0
        %v5046 = vsel %vm477, %v4789, 0
        %5048 = vmatprep.subr.mxu0 0.0
        %5049 = vmatpush1.msra.mxu0 %v426
        %5050 = vmatprep.subr.mxu0 0.0
        %5051 = vmatpush1.msra.mxu0 %v427
        %5052 = vmatprep.subr.mxu0 0.0
        %5053 = vmatpush1.msra.mxu0 %v428
        %5054 = vmatprep.subr.mxu0 0.0
        %5055 = vmatpush1.msra.mxu0 %v429
        %5056 = vmatprep.subr.mxu0 0.0
        %5057 = vmatpush1.msra.mxu0 0.0
        %5058 = vmatprep.subr.mxu0 0.0
        %5059 = vmatpush1.msra.mxu0 0.0
        %5060 = vmatprep.subr.mxu0 0.0
        %5061 = vmatpush1.msra.mxu0 0.0
        %5062 = vmatprep.subr.mxu0 0.0
        %5063 = vmatpush1.msra.mxu0 0.0
        %5064 = vmatprep.subr.mxu0 0.0
        %5065 = vmatpush1.msra.mxu0 0.0
        %5066 = vmatprep.subr.mxu0 0.0
        %5067 = vmatpush1.msra.mxu0 0.0
        %5068 = vmatprep.subr.mxu0 0.0
        %5069 = vmatpush1.msra.mxu0 0.0
        %5070 = vmatprep.subr.mxu0 0.0
        %5071 = vmatpush1.msra.mxu0 0.0
        %5072 = vmatprep.subr.mxu0 0.0
        %5073 = vmatpush1.msra.mxu0 0.0
        %5074 = vmatprep.subr.mxu0 0.0
        %5075 = vmatpush1.msra.mxu0 0.0
        %5076 = vmatprep.subr.mxu0 0.0
        %5077 = vmatpush1.msra.mxu0 0.0
        %5078 = vmatprep.subr.mxu0 0.0
        %5079 = vmatpush1.msra.mxu0 0.0
        %5080 = vmatprep.subr.mxu0 0.0
        %5081 = vmatpush1.msra.mxu0 0.0
        %5082 = vmatprep.subr.mxu0 0.0
        %5083 = vmatpush1.msra.mxu0 0.0
        %5084 = vmatprep.subr.mxu0 0.0
        %5085 = vmatpush1.msra.mxu0 0.0
        %5086 = vmatprep.subr.mxu0 0.0
        %5087 = vmatpush1.msra.mxu0 0.0
        %5088 = vmatprep.subr.mxu0 0.0
        %5089 = vmatpush1.msra.mxu0 0.0
        %5090 = vmatprep.subr.mxu0 0.0
        %5091 = vmatpush1.msra.mxu0 0.0
        %5092 = vmatprep.subr.mxu0 0.0
        %5093 = vmatpush1.msra.mxu0 0.0
        %5094 = vmatprep.subr.mxu0 0.0
        %5095 = vmatpush1.msra.mxu0 0.0
        %5096 = vmatprep.subr.mxu0 0.0
        %5097 = vmatpush1.msra.mxu0 0.0
        %5098 = vmatprep.subr.mxu0 0.0
        %5099 = vmatpush1.msra.mxu0 0.0
        %5100 = vmatprep.subr.mxu0 0.0
        %5101 = vmatpush1.msra.mxu0 0.0
        %5102 = vmatprep.subr.mxu0 0.0
        %5103 = vmatpush1.msra.mxu0 0.0
        %5104 = vmatprep.subr.mxu0 0.0
        %5105 = vmatpush1.msra.mxu0 0.0
        %5106 = vmatprep.subr.mxu0 0.0
        %5107 = vmatpush1.msra.mxu0 0.0
        %5108 = vmatprep.subr.mxu0 0.0
        %5109 = vmatpush1.msra.mxu0 0.0
        %5110 = vmatprep.subr.mxu0 0.0
        %5111 = vmatpush1.msra.mxu0 0.0
        %5112 = vmatprep.mubr.f32.mxu0 0.0
        %5113 = vmatmul.mubr.f32.gmra.mrb[0].mxu0 %v5046
        %v5114 = vpop.f32.mrb[0].mxu0
        %v5115 = vadd.f32 0.0, %v5114
        %v5116 = vpop.f32.mrb[0].mxu0
        %5117 = vdwg.mxu0
        %v5118 = vadd.f32 %v5042, %v5115
        %v5119 = vadd.f32 %v5118, %v456
        %v5120 = vxor.u32 %v5119, 2147483648
        %v5121 = vmul.f32 %v5120, 1.442695
        %v5122 = vpow.pop %v5121
        %v5123 = vadd.f32 %v5122, 1.0
        %v5124 = vrcp.pop %v5123
        %v5125 = vmul.f32 1.0, %v5124
        %5126 = vrot.lane.b32.xlu0 %v4789, 32
        %v5127 = vpop.permute.xlu0 %5126
        %v5129 = vmul.f32 %v5125, %v5127
        %5131 = vrot.lane.b32.xlu0 %v5129, 96
        %v5132 = vpop.permute.xlu0 %5131
        %v5133 = vsel %vm477, %v5132, 0
        %5135 = vmatprep.subr.mxu0 0.0
        %5136 = vmatpush1.msra.mxu0 %v435
        %5137 = vmatprep.subr.mxu0 0.0
        %5138 = vmatpush1.msra.mxu0 %v436
        %5139 = vmatprep.subr.mxu0 0.0
        %5140 = vmatpush1.msra.mxu0 %v437
        %5141 = vmatprep.subr.mxu0 0.0
        %5142 = vmatpush1.msra.mxu0 %v438
        %5143 = vmatprep.subr.mxu0 0.0
        %5144 = vmatpush1.msra.mxu0 0.0
        %5145 = vmatprep.subr.mxu0 0.0
        %5146 = vmatpush1.msra.mxu0 0.0
        %5147 = vmatprep.subr.mxu0 0.0
        %5148 = vmatpush1.msra.mxu0 0.0
        %5149 = vmatprep.subr.mxu0 0.0
        %5150 = vmatpush1.msra.mxu0 0.0
        %5151 = vmatprep.subr.mxu0 0.0
        %5152 = vmatpush1.msra.mxu0 0.0
        %5153 = vmatprep.subr.mxu0 0.0
        %5154 = vmatpush1.msra.mxu0 0.0
        %5155 = vmatprep.subr.mxu0 0.0
        %5156 = vmatpush1.msra.mxu0 0.0
        %5157 = vmatprep.subr.mxu0 0.0
        %5158 = vmatpush1.msra.mxu0 0.0
        %5159 = vmatprep.subr.mxu0 0.0
        %5160 = vmatpush1.msra.mxu0 0.0
        %5161 = vmatprep.subr.mxu0 0.0
        %5162 = vmatpush1.msra.mxu0 0.0
        %5163 = vmatprep.subr.mxu0 0.0
        %5164 = vmatpush1.msra.mxu0 0.0
        %5165 = vmatprep.subr.mxu0 0.0
        %5166 = vmatpush1.msra.mxu0 0.0
        %5167 = vmatprep.subr.mxu0 0.0
        %5168 = vmatpush1.msra.mxu0 0.0
        %5169 = vmatprep.subr.mxu0 0.0
        %5170 = vmatpush1.msra.mxu0 0.0
        %5171 = vmatprep.subr.mxu0 0.0
        %5172 = vmatpush1.msra.mxu0 0.0
        %5173 = vmatprep.subr.mxu0 0.0
        %5174 = vmatpush1.msra.mxu0 0.0
        %5175 = vmatprep.subr.mxu0 0.0
        %5176 = vmatpush1.msra.mxu0 0.0
        %5177 = vmatprep.subr.mxu0 0.0
        %5178 = vmatpush1.msra.mxu0 0.0
        %5179 = vmatprep.subr.mxu0 0.0
        %5180 = vmatpush1.msra.mxu0 0.0
        %5181 = vmatprep.subr.mxu0 0.0
        %5182 = vmatpush1.msra.mxu0 0.0
        %5183 = vmatprep.subr.mxu0 0.0
        %5184 = vmatpush1.msra.mxu0 0.0
        %5185 = vmatprep.subr.mxu0 0.0
        %5186 = vmatpush1.msra.mxu0 0.0
        %5187 = vmatprep.subr.mxu0 0.0
        %5188 = vmatpush1.msra.mxu0 0.0
        %5189 = vmatprep.subr.mxu0 0.0
        %5190 = vmatpush1.msra.mxu0 0.0
        %5191 = vmatprep.subr.mxu0 0.0
        %5192 = vmatpush1.msra.mxu0 0.0
        %5193 = vmatprep.subr.mxu0 0.0
        %5194 = vmatpush1.msra.mxu0 0.0
        %5195 = vmatprep.subr.mxu0 0.0
        %5196 = vmatpush1.msra.mxu0 0.0
        %5197 = vmatprep.subr.mxu0 0.0
        %5198 = vmatpush1.msra.mxu0 0.0
        %5199 = vmatprep.mubr.f32.mxu0 0.0
        %5200 = vmatmul.mubr.f32.gmra.mrb[0].mxu0 %v5133
        %v5201 = vpop.f32.mrb[0].mxu0
        %v5202 = vadd.f32 0.0, %v5201
        %v5203 = vpop.f32.mrb[0].mxu0
        %5204 = vdwg.mxu0
        %5206 = vrot.lane.b32.xlu0 %v5202, 64
        %v5207 = vpop.permute.xlu0 %5206
        %v5209 = vadd.f32 %v5042, %v5207
        %v5210 = vadd.f32 %v5209, %v899
        %v5211 = vtanh.pop %v5210
        %v5212 = vmul.f32 %v5125, %v4789
        %v5213 = vsub.f32 1.0, %v5125
        %5215 = vrot.lane.b32.xlu0 %v5211, 64
        %v5216 = vpop.permute.xlu0 %5215
        %v5218 = vmul.f32 %v5213, %v5216
        %v5219 = vadd.f32 %v5212, %v5218
        %v5220 = vsel %vm4970, %v5219, %v4789
        %s5221 = scalar_lea.vmem %s407, 80 [#allocation11]
        %5222 = vst.msk [vmem:[%s5221] sm:$0xff] %vm477, %v5220
        %s5223 = scalar_lea.vmem %s361, 88 [#allocation2]
        %v5224 = vld [vmem:[%s5223] sm:$0xff]
        %s5225 = sadd.s32 %s475, 11
        %p5226 = scmp.lt.s32.totalorder %s5225, 24
        %5227 = vmatprep.subr.mxu0 0.0
        %5228 = vmatpush1.msra.mxu0 %v421
        %5229 = vmatprep.subr.mxu0 0.0
        %5230 = vmatpush1.msra.mxu0 %v422
        %5231 = vmatprep.subr.mxu0 0.0
        %5232 = vmatpush1.msra.mxu0 %v423
        %5233 = vmatprep.subr.mxu0 0.0
        %5234 = vmatpush1.msra.mxu0 %v424
        %5235 = vmatprep.subr.mxu0 0.0
        %5236 = vmatpush1.msra.mxu0 0.0
        %5237 = vmatprep.subr.mxu0 0.0
        %5238 = vmatpush1.msra.mxu0 0.0
        %5239 = vmatprep.subr.mxu0 0.0
        %5240 = vmatpush1.msra.mxu0 0.0
        %5241 = vmatprep.subr.mxu0 0.0
        %5242 = vmatpush1.msra.mxu0 0.0
        %5243 = vmatprep.subr.mxu0 0.0
        %5244 = vmatpush1.msra.mxu0 0.0
        %5245 = vmatprep.subr.mxu0 0.0
        %5246 = vmatpush1.msra.mxu0 0.0
        %5247 = vmatprep.subr.mxu0 0.0
        %5248 = vmatpush1.msra.mxu0 0.0
        %5249 = vmatprep.subr.mxu0 0.0
        %5250 = vmatpush1.msra.mxu0 0.0
        %5251 = vmatprep.subr.mxu0 0.0
        %5252 = vmatpush1.msra.mxu0 0.0
        %5253 = vmatprep.subr.mxu0 0.0
        %5254 = vmatpush1.msra.mxu0 0.0
        %5255 = vmatprep.subr.mxu0 0.0
        %5256 = vmatpush1.msra.mxu0 0.0
        %5257 = vmatprep.subr.mxu0 0.0
        %5258 = vmatpush1.msra.mxu0 0.0
        %5259 = vmatprep.subr.mxu0 0.0
        %5260 = vmatpush1.msra.mxu0 0.0
        %5261 = vmatprep.subr.mxu0 0.0
        %5262 = vmatpush1.msra.mxu0 0.0
        %5263 = vmatprep.subr.mxu0 0.0
        %5264 = vmatpush1.msra.mxu0 0.0
        %5265 = vmatprep.subr.mxu0 0.0
        %5266 = vmatpush1.msra.mxu0 0.0
        %5267 = vmatprep.subr.mxu0 0.0
        %5268 = vmatpush1.msra.mxu0 0.0
        %5269 = vmatprep.subr.mxu0 0.0
        %5270 = vmatpush1.msra.mxu0 0.0
        %5271 = vmatprep.subr.mxu0 0.0
        %5272 = vmatpush1.msra.mxu0 0.0
        %5273 = vmatprep.subr.mxu0 0.0
        %5274 = vmatpush1.msra.mxu0 0.0
        %5275 = vmatprep.subr.mxu0 0.0
        %5276 = vmatpush1.msra.mxu0 0.0
        %5277 = vmatprep.subr.mxu0 0.0
        %5278 = vmatpush1.msra.mxu0 0.0
        %5279 = vmatprep.subr.mxu0 0.0
        %5280 = vmatpush1.msra.mxu0 0.0
        %5281 = vmatprep.subr.mxu0 0.0
        %5282 = vmatpush1.msra.mxu0 0.0
        %5283 = vmatprep.subr.mxu0 0.0
        %5284 = vmatpush1.msra.mxu0 0.0
        %5285 = vmatprep.subr.mxu0 0.0
        %5286 = vmatpush1.msra.mxu0 0.0
        %5287 = vmatprep.subr.mxu0 0.0
        %5288 = vmatpush1.msra.mxu0 0.0
        %5289 = vmatprep.subr.mxu0 0.0
        %5290 = vmatpush1.msra.mxu0 0.0
        %5291 = vmatprep.mubr.f32.mxu0 0.0
        %5292 = vmatmul.mubr.f32.gmra.mrb[0].mxu0 %v4973
        %v5293 = vpop.f32.mrb[0].mxu0
        %v5294 = vadd.f32 0.0, %v5293
        %v5295 = vpop.f32.mrb[0].mxu0
        %5296 = vdwg.mxu0
        %v5297 = vadd.f32 %v5224, %v5294
        %v5298 = vadd.f32 %v5297, %v448
        %v5299 = vxor.u32 %v5298, 2147483648
        %v5300 = vmul.f32 %v5299, 1.442695
        %v5301 = vpow.pop %v5300
        %v5302 = vadd.f32 %v5301, 1.0
        %v5303 = vrcp.pop %v5302
        %v5304 = vmul.f32 1.0, %v5303
        %5305 = vrot.lane.b32.xlu0 %v4971, 32
        %v5306 = vpop.permute.xlu0 %5305
        %v5308 = vmul.f32 %v5304, %v5306
        %5310 = vrot.lane.b32.xlu0 %v5308, 96
        %v5311 = vpop.permute.xlu0 %5310
        %v5312 = vsel %vm477, %v5311, 0
        %5314 = vmatprep.subr.mxu0 0.0
        %5315 = vmatpush1.msra.mxu0 %v430
        %5316 = vmatprep.subr.mxu0 0.0
        %5317 = vmatpush1.msra.mxu0 %v431
        %5318 = vmatprep.subr.mxu0 0.0
        %5319 = vmatpush1.msra.mxu0 %v432
        %5320 = vmatprep.subr.mxu0 0.0
        %5321 = vmatpush1.msra.mxu0 %v433
        %5322 = vmatprep.subr.mxu0 0.0
        %5323 = vmatpush1.msra.mxu0 0.0
        %5324 = vmatprep.subr.mxu0 0.0
        %5325 = vmatpush1.msra.mxu0 0.0
        %5326 = vmatprep.subr.mxu0 0.0
        %5327 = vmatpush1.msra.mxu0 0.0
        %5328 = vmatprep.subr.mxu0 0.0
        %5329 = vmatpush1.msra.mxu0 0.0
        %5330 = vmatprep.subr.mxu0 0.0
        %5331 = vmatpush1.msra.mxu0 0.0
        %5332 = vmatprep.subr.mxu0 0.0
        %5333 = vmatpush1.msra.mxu0 0.0
        %5334 = vmatprep.subr.mxu0 0.0
        %5335 = vmatpush1.msra.mxu0 0.0
        %5336 = vmatprep.subr.mxu0 0.0
        %5337 = vmatpush1.msra.mxu0 0.0
        %5338 = vmatprep.subr.mxu0 0.0
        %5339 = vmatpush1.msra.mxu0 0.0
        %5340 = vmatprep.subr.mxu0 0.0
        %5341 = vmatpush1.msra.mxu0 0.0
        %5342 = vmatprep.subr.mxu0 0.0
        %5343 = vmatpush1.msra.mxu0 0.0
        %5344 = vmatprep.subr.mxu0 0.0
        %5345 = vmatpush1.msra.mxu0 0.0
        %5346 = vmatprep.subr.mxu0 0.0
        %5347 = vmatpush1.msra.mxu0 0.0
        %5348 = vmatprep.subr.mxu0 0.0
        %5349 = vmatpush1.msra.mxu0 0.0
        %5350 = vmatprep.subr.mxu0 0.0
        %5351 = vmatpush1.msra.mxu0 0.0
        %5352 = vmatprep.subr.mxu0 0.0
        %5353 = vmatpush1.msra.mxu0 0.0
        %5354 = vmatprep.subr.mxu0 0.0
        %5355 = vmatpush1.msra.mxu0 0.0
        %5356 = vmatprep.subr.mxu0 0.0
        %5357 = vmatpush1.msra.mxu0 0.0
        %5358 = vmatprep.subr.mxu0 0.0
        %5359 = vmatpush1.msra.mxu0 0.0
        %5360 = vmatprep.subr.mxu0 0.0
        %5361 = vmatpush1.msra.mxu0 0.0
        %5362 = vmatprep.subr.mxu0 0.0
        %5363 = vmatpush1.msra.mxu0 0.0
        %5364 = vmatprep.subr.mxu0 0.0
        %5365 = vmatpush1.msra.mxu0 0.0
        %5366 = vmatprep.subr.mxu0 0.0
        %5367 = vmatpush1.msra.mxu0 0.0
        %5368 = vmatprep.subr.mxu0 0.0
        %5369 = vmatpush1.msra.mxu0 0.0
        %5370 = vmatprep.subr.mxu0 0.0
        %5371 = vmatpush1.msra.mxu0 0.0
        %5372 = vmatprep.subr.mxu0 0.0
        %5373 = vmatpush1.msra.mxu0 0.0
        %5374 = vmatprep.subr.mxu0 0.0
        %5375 = vmatpush1.msra.mxu0 0.0
        %5376 = vmatprep.subr.mxu0 0.0
        %5377 = vmatpush1.msra.mxu0 0.0
        %5378 = vmatprep.mubr.f32.mxu0 0.0
        %5379 = vmatmul.mubr.f32.gmra.mrb[0].mxu0 %v5312
        %v5380 = vpop.f32.mrb[0].mxu0
        %v5381 = vadd.f32 0.0, %v5380
        %v5382 = vpop.f32.mrb[0].mxu0
        %5383 = vdwg.mxu0
        %5385 = vrot.lane.b32.xlu0 %v5381, 64
        %v5386 = vpop.permute.xlu0 %5385
        %v5388 = vadd.f32 %v5224, %v5386
        %v5389 = vadd.f32 %v5388, %v644
        %v5390 = vtanh.pop %v5389
        %v5391 = vmul.f32 %v5304, %v4971
        %v5392 = vsub.f32 1.0, %v5304
        %5394 = vrot.lane.b32.xlu0 %v5390, 64
        %v5395 = vpop.permute.xlu0 %5394
        %v5397 = vmul.f32 %v5392, %v5395
        %v5398 = vadd.f32 %v5391, %v5397
        %s5399 = scalar_select %p5226, 1, 0
        %v5400 = vstv %s5399
        %vm5401 = vcmp.eq.s32.totalorder %v5400, 1
        %v5402 = vsel %vm5401, %v5398, %v4971
        %v5404 = vsel %vm477, %v5402, 0
        %5406 = vmatprep.subr.mxu0 0.0
        %5407 = vmatpush1.msra.mxu0 %v439
        %5408 = vmatprep.subr.mxu0 0.0
        %5409 = vmatpush1.msra.mxu0 %v440
        %5410 = vmatprep.subr.mxu0 0.0
        %5411 = vmatpush1.msra.mxu0 %v441
        %5412 = vmatprep.subr.mxu0 0.0
        %5413 = vmatpush1.msra.mxu0 %v442
        %5414 = vmatprep.subr.mxu0 0.0
        %5415 = vmatpush1.msra.mxu0 0.0
        %5416 = vmatprep.subr.mxu0 0.0
        %5417 = vmatpush1.msra.mxu0 0.0
        %5418 = vmatprep.subr.mxu0 0.0
        %5419 = vmatpush1.msra.mxu0 0.0
        %5420 = vmatprep.subr.mxu0 0.0
        %5421 = vmatpush1.msra.mxu0 0.0
        %5422 = vmatprep.subr.mxu0 0.0
        %5423 = vmatpush1.msra.mxu0 0.0
        %5424 = vmatprep.subr.mxu0 0.0
        %5425 = vmatpush1.msra.mxu0 0.0
        %5426 = vmatprep.subr.mxu0 0.0
        %5427 = vmatpush1.msra.mxu0 0.0
        %5428 = vmatprep.subr.mxu0 0.0
        %5429 = vmatpush1.msra.mxu0 0.0
        %5430 = vmatprep.subr.mxu0 0.0
        %5431 = vmatpush1.msra.mxu0 0.0
        %5432 = vmatprep.subr.mxu0 0.0
        %5433 = vmatpush1.msra.mxu0 0.0
        %5434 = vmatprep.subr.mxu0 0.0
        %5435 = vmatpush1.msra.mxu0 0.0
        %5436 = vmatprep.subr.mxu0 0.0
        %5437 = vmatpush1.msra.mxu0 0.0
        %5438 = vmatprep.subr.mxu0 0.0
        %5439 = vmatpush1.msra.mxu0 0.0
        %5440 = vmatprep.subr.mxu0 0.0
        %5441 = vmatpush1.msra.mxu0 0.0
        %5442 = vmatprep.subr.mxu0 0.0
        %5443 = vmatpush1.msra.mxu0 0.0
        %5444 = vmatprep.subr.mxu0 0.0
        %5445 = vmatpush1.msra.mxu0 0.0
        %5446 = vmatprep.subr.mxu0 0.0
        %5447 = vmatpush1.msra.mxu0 0.0
        %5448 = vmatprep.subr.mxu0 0.0
        %5449 = vmatpush1.msra.mxu0 0.0
        %5450 = vmatprep.subr.mxu0 0.0
        %5451 = vmatpush1.msra.mxu0 0.0
        %5452 = vmatprep.subr.mxu0 0.0
        %5453 = vmatpush1.msra.mxu0 0.0
        %5454 = vmatprep.subr.mxu0 0.0
        %5455 = vmatpush1.msra.mxu0 0.0
        %5456 = vmatprep.subr.mxu0 0.0
        %5457 = vmatpush1.msra.mxu0 0.0
        %5458 = vmatprep.subr.mxu0 0.0
        %5459 = vmatpush1.msra.mxu0 0.0
        %5460 = vmatprep.subr.mxu0 0.0
        %5461 = vmatpush1.msra.mxu0 0.0
        %5462 = vmatprep.subr.mxu0 0.0
        %5463 = vmatpush1.msra.mxu0 0.0
        %5464 = vmatprep.subr.mxu0 0.0
        %5465 = vmatpush1.msra.mxu0 0.0
        %5466 = vmatprep.subr.mxu0 0.0
        %5467 = vmatpush1.msra.mxu0 0.0
        %5468 = vmatprep.subr.mxu0 0.0
        %5469 = vmatpush1.msra.mxu0 0.0
        %5470 = vmatprep.mubr.f32.mxu0 0.0
        %5471 = vmatmul.mubr.f32.gmra.mrb[0].mxu0 %v5404
        %v5472 = vpop.f32.mrb[0].mxu0
        %v5473 = vadd.f32 0.0, %v5472
        %v5474 = vpop.f32.mrb[0].mxu0
        %5475 = vdwg.mxu0
        %v5477 = vsel %vm477, %v5220, 0
        %5479 = vmatprep.subr.mxu0 0.0
        %5480 = vmatpush1.msra.mxu0 %v426
        %5481 = vmatprep.subr.mxu0 0.0
        %5482 = vmatpush1.msra.mxu0 %v427
        %5483 = vmatprep.subr.mxu0 0.0
        %5484 = vmatpush1.msra.mxu0 %v428
        %5485 = vmatprep.subr.mxu0 0.0
        %5486 = vmatpush1.msra.mxu0 %v429
        %5487 = vmatprep.subr.mxu0 0.0
        %5488 = vmatpush1.msra.mxu0 0.0
        %5489 = vmatprep.subr.mxu0 0.0
        %5490 = vmatpush1.msra.mxu0 0.0
        %5491 = vmatprep.subr.mxu0 0.0
        %5492 = vmatpush1.msra.mxu0 0.0
        %5493 = vmatprep.subr.mxu0 0.0
        %5494 = vmatpush1.msra.mxu0 0.0
        %5495 = vmatprep.subr.mxu0 0.0
        %5496 = vmatpush1.msra.mxu0 0.0
        %5497 = vmatprep.subr.mxu0 0.0
        %5498 = vmatpush1.msra.mxu0 0.0
        %5499 = vmatprep.subr.mxu0 0.0
        %5500 = vmatpush1.msra.mxu0 0.0
        %5501 = vmatprep.subr.mxu0 0.0
        %5502 = vmatpush1.msra.mxu0 0.0
        %5503 = vmatprep.subr.mxu0 0.0
        %5504 = vmatpush1.msra.mxu0 0.0
        %5505 = vmatprep.subr.mxu0 0.0
        %5506 = vmatpush1.msra.mxu0 0.0
        %5507 = vmatprep.subr.mxu0 0.0
        %5508 = vmatpush1.msra.mxu0 0.0
        %5509 = vmatprep.subr.mxu0 0.0
        %5510 = vmatpush1.msra.mxu0 0.0
        %5511 = vmatprep.subr.mxu0 0.0
        %5512 = vmatpush1.msra.mxu0 0.0
        %5513 = vmatprep.subr.mxu0 0.0
        %5514 = vmatpush1.msra.mxu0 0.0
        %5515 = vmatprep.subr.mxu0 0.0
        %5516 = vmatpush1.msra.mxu0 0.0
        %5517 = vmatprep.subr.mxu0 0.0
        %5518 = vmatpush1.msra.mxu0 0.0
        %5519 = vmatprep.subr.mxu0 0.0
        %5520 = vmatpush1.msra.mxu0 0.0
        %5521 = vmatprep.subr.mxu0 0.0
        %5522 = vmatpush1.msra.mxu0 0.0
        %5523 = vmatprep.subr.mxu0 0.0
        %5524 = vmatpush1.msra.mxu0 0.0
        %5525 = vmatprep.subr.mxu0 0.0
        %5526 = vmatpush1.msra.mxu0 0.0
        %5527 = vmatprep.subr.mxu0 0.0
        %5528 = vmatpush1.msra.mxu0 0.0
        %5529 = vmatprep.subr.mxu0 0.0
        %5530 = vmatpush1.msra.mxu0 0.0
        %5531 = vmatprep.subr.mxu0 0.0
        %5532 = vmatpush1.msra.mxu0 0.0
        %5533 = vmatprep.subr.mxu0 0.0
        %5534 = vmatpush1.msra.mxu0 0.0
        %5535 = vmatprep.subr.mxu0 0.0
        %5536 = vmatpush1.msra.mxu0 0.0
        %5537 = vmatprep.subr.mxu0 0.0
        %5538 = vmatpush1.msra.mxu0 0.0
        %5539 = vmatprep.subr.mxu0 0.0
        %5540 = vmatpush1.msra.mxu0 0.0
        %5541 = vmatprep.subr.mxu0 0.0
        %5542 = vmatpush1.msra.mxu0 0.0
        %5543 = vmatprep.mubr.f32.mxu0 0.0
        %5544 = vmatmul.mubr.f32.gmra.mrb[0].mxu0 %v5477
        %v5545 = vpop.f32.mrb[0].mxu0
        %v5546 = vadd.f32 0.0, %v5545
        %v5547 = vpop.f32.mrb[0].mxu0
        %5548 = vdwg.mxu0
        %v5549 = vadd.f32 %v5473, %v5546
        %v5550 = vadd.f32 %v5549, %v456
        %v5551 = vxor.u32 %v5550, 2147483648
        %v5552 = vmul.f32 %v5551, 1.442695
        %v5553 = vpow.pop %v5552
        %v5554 = vadd.f32 %v5553, 1.0
        %v5555 = vrcp.pop %v5554
        %v5556 = vmul.f32 1.0, %v5555
        %5557 = vrot.lane.b32.xlu0 %v5220, 32
        %v5558 = vpop.permute.xlu0 %5557
        %v5560 = vmul.f32 %v5556, %v5558
        %5562 = vrot.lane.b32.xlu0 %v5560, 96
        %v5563 = vpop.permute.xlu0 %5562
        %v5564 = vsel %vm477, %v5563, 0
        %5566 = vmatprep.subr.mxu0 0.0
        %5567 = vmatpush1.msra.mxu0 %v435
        %5568 = vmatprep.subr.mxu0 0.0
        %5569 = vmatpush1.msra.mxu0 %v436
        %5570 = vmatprep.subr.mxu0 0.0
        %5571 = vmatpush1.msra.mxu0 %v437
        %5572 = vmatprep.subr.mxu0 0.0
        %5573 = vmatpush1.msra.mxu0 %v438
        %5574 = vmatprep.subr.mxu0 0.0
        %5575 = vmatpush1.msra.mxu0 0.0
        %5576 = vmatprep.subr.mxu0 0.0
        %5577 = vmatpush1.msra.mxu0 0.0
        %5578 = vmatprep.subr.mxu0 0.0
        %5579 = vmatpush1.msra.mxu0 0.0
        %5580 = vmatprep.subr.mxu0 0.0
        %5581 = vmatpush1.msra.mxu0 0.0
        %5582 = vmatprep.subr.mxu0 0.0
        %5583 = vmatpush1.msra.mxu0 0.0
        %5584 = vmatprep.subr.mxu0 0.0
        %5585 = vmatpush1.msra.mxu0 0.0
        %5586 = vmatprep.subr.mxu0 0.0
        %5587 = vmatpush1.msra.mxu0 0.0
        %5588 = vmatprep.subr.mxu0 0.0
        %5589 = vmatpush1.msra.mxu0 0.0
        %5590 = vmatprep.subr.mxu0 0.0
        %5591 = vmatpush1.msra.mxu0 0.0
        %5592 = vmatprep.subr.mxu0 0.0
        %5593 = vmatpush1.msra.mxu0 0.0
        %5594 = vmatprep.subr.mxu0 0.0
        %5595 = vmatpush1.msra.mxu0 0.0
        %5596 = vmatprep.subr.mxu0 0.0
        %5597 = vmatpush1.msra.mxu0 0.0
        %5598 = vmatprep.subr.mxu0 0.0
        %5599 = vmatpush1.msra.mxu0 0.0
        %5600 = vmatprep.subr.mxu0 0.0
        %5601 = vmatpush1.msra.mxu0 0.0
        %5602 = vmatprep.subr.mxu0 0.0
        %5603 = vmatpush1.msra.mxu0 0.0
        %5604 = vmatprep.subr.mxu0 0.0
        %5605 = vmatpush1.msra.mxu0 0.0
        %5606 = vmatprep.subr.mxu0 0.0
        %5607 = vmatpush1.msra.mxu0 0.0
        %5608 = vmatprep.subr.mxu0 0.0
        %5609 = vmatpush1.msra.mxu0 0.0
        %5610 = vmatprep.subr.mxu0 0.0
        %5611 = vmatpush1.msra.mxu0 0.0
        %5612 = vmatprep.subr.mxu0 0.0
        %5613 = vmatpush1.msra.mxu0 0.0
        %5614 = vmatprep.subr.mxu0 0.0
        %5615 = vmatpush1.msra.mxu0 0.0
        %5616 = vmatprep.subr.mxu0 0.0
        %5617 = vmatpush1.msra.mxu0 0.0
        %5618 = vmatprep.subr.mxu0 0.0
        %5619 = vmatpush1.msra.mxu0 0.0
        %5620 = vmatprep.subr.mxu0 0.0
        %5621 = vmatpush1.msra.mxu0 0.0
        %5622 = vmatprep.subr.mxu0 0.0
        %5623 = vmatpush1.msra.mxu0 0.0
        %5624 = vmatprep.subr.mxu0 0.0
        %5625 = vmatpush1.msra.mxu0 0.0
        %5626 = vmatprep.subr.mxu0 0.0
        %5627 = vmatpush1.msra.mxu0 0.0
        %5628 = vmatprep.subr.mxu0 0.0
        %5629 = vmatpush1.msra.mxu0 0.0
        %5630 = vmatprep.mubr.f32.mxu0 0.0
        %5631 = vmatmul.mubr.f32.gmra.mrb[0].mxu0 %v5564
        %v5632 = vpop.f32.mrb[0].mxu0
        %v5633 = vadd.f32 0.0, %v5632
        %v5634 = vpop.f32.mrb[0].mxu0
        %5635 = vdwg.mxu0
        %5637 = vrot.lane.b32.xlu0 %v5633, 64
        %v5638 = vpop.permute.xlu0 %5637
        %v5640 = vadd.f32 %v5473, %v5638
        %v5641 = vadd.f32 %v5640, %v899
        %v5642 = vtanh.pop %v5641
        %v5643 = vmul.f32 %v5556, %v5220
        %v5644 = vsub.f32 1.0, %v5556
        %5646 = vrot.lane.b32.xlu0 %v5642, 64
        %v5647 = vpop.permute.xlu0 %5646
        %v5649 = vmul.f32 %v5644, %v5647
        %v5650 = vadd.f32 %v5643, %v5649
        %v5651 = vsel %vm5401, %v5650, %v5220
        %s5652 = scalar_lea.vmem %s407, 88 [#allocation11]
        %5653 = vst.msk [vmem:[%s5652] sm:$0xff] %vm477, %v5651
        %s5654 = scalar_lea.vmem %s361, 96 [#allocation2]
        %v5655 = vld [vmem:[%s5654] sm:$0xff]
        %s5656 = sadd.s32 %s475, 12
        %p5657 = scmp.lt.s32.totalorder %s5656, 24
        %5658 = vmatprep.subr.mxu0 0.0
        %5659 = vmatpush1.msra.mxu0 %v421
        %5660 = vmatprep.subr.mxu0 0.0
        %5661 = vmatpush1.msra.mxu0 %v422
        %5662 = vmatprep.subr.mxu0 0.0
        %5663 = vmatpush1.msra.mxu0 %v423
        %5664 = vmatprep.subr.mxu0 0.0
        %5665 = vmatpush1.msra.mxu0 %v424
        %5666 = vmatprep.subr.mxu0 0.0
        %5667 = vmatpush1.msra.mxu0 0.0
        %5668 = vmatprep.subr.mxu0 0.0
        %5669 = vmatpush1.msra.mxu0 0.0
        %5670 = vmatprep.subr.mxu0 0.0
        %5671 = vmatpush1.msra.mxu0 0.0
        %5672 = vmatprep.subr.mxu0 0.0
        %5673 = vmatpush1.msra.mxu0 0.0
        %5674 = vmatprep.subr.mxu0 0.0
        %5675 = vmatpush1.msra.mxu0 0.0
        %5676 = vmatprep.subr.mxu0 0.0
        %5677 = vmatpush1.msra.mxu0 0.0
        %5678 = vmatprep.subr.mxu0 0.0
        %5679 = vmatpush1.msra.mxu0 0.0
        %5680 = vmatprep.subr.mxu0 0.0
        %5681 = vmatpush1.msra.mxu0 0.0
        %5682 = vmatprep.subr.mxu0 0.0
        %5683 = vmatpush1.msra.mxu0 0.0
        %5684 = vmatprep.subr.mxu0 0.0
        %5685 = vmatpush1.msra.mxu0 0.0
        %5686 = vmatprep.subr.mxu0 0.0
        %5687 = vmatpush1.msra.mxu0 0.0
        %5688 = vmatprep.subr.mxu0 0.0
        %5689 = vmatpush1.msra.mxu0 0.0
        %5690 = vmatprep.subr.mxu0 0.0
        %5691 = vmatpush1.msra.mxu0 0.0
        %5692 = vmatprep.subr.mxu0 0.0
        %5693 = vmatpush1.msra.mxu0 0.0
        %5694 = vmatprep.subr.mxu0 0.0
        %5695 = vmatpush1.msra.mxu0 0.0
        %5696 = vmatprep.subr.mxu0 0.0
        %5697 = vmatpush1.msra.mxu0 0.0
        %5698 = vmatprep.subr.mxu0 0.0
        %5699 = vmatpush1.msra.mxu0 0.0
        %5700 = vmatprep.subr.mxu0 0.0
        %5701 = vmatpush1.msra.mxu0 0.0
        %5702 = vmatprep.subr.mxu0 0.0
        %5703 = vmatpush1.msra.mxu0 0.0
        %5704 = vmatprep.subr.mxu0 0.0
        %5705 = vmatpush1.msra.mxu0 0.0
        %5706 = vmatprep.subr.mxu0 0.0
        %5707 = vmatpush1.msra.mxu0 0.0
        %5708 = vmatprep.subr.mxu0 0.0
        %5709 = vmatpush1.msra.mxu0 0.0
        %5710 = vmatprep.subr.mxu0 0.0
        %5711 = vmatpush1.msra.mxu0 0.0
        %5712 = vmatprep.subr.mxu0 0.0
        %5713 = vmatpush1.msra.mxu0 0.0
        %5714 = vmatprep.subr.mxu0 0.0
        %5715 = vmatpush1.msra.mxu0 0.0
        %5716 = vmatprep.subr.mxu0 0.0
        %5717 = vmatpush1.msra.mxu0 0.0
        %5718 = vmatprep.subr.mxu0 0.0
        %5719 = vmatpush1.msra.mxu0 0.0
        %5720 = vmatprep.subr.mxu0 0.0
        %5721 = vmatpush1.msra.mxu0 0.0
        %5722 = vmatprep.mubr.f32.mxu0 0.0
        %5723 = vmatmul.mubr.f32.gmra.mrb[0].mxu0 %v5404
        %v5724 = vpop.f32.mrb[0].mxu0
        %v5725 = vadd.f32 0.0, %v5724
        %v5726 = vpop.f32.mrb[0].mxu0
        %5727 = vdwg.mxu0
        %v5728 = vadd.f32 %v5655, %v5725
        %v5729 = vadd.f32 %v5728, %v448
        %v5730 = vxor.u32 %v5729, 2147483648
        %v5731 = vmul.f32 %v5730, 1.442695
        %v5732 = vpow.pop %v5731
        %v5733 = vadd.f32 %v5732, 1.0
        %v5734 = vrcp.pop %v5733
        %v5735 = vmul.f32 1.0, %v5734
        %5736 = vrot.lane.b32.xlu0 %v5402, 32
        %v5737 = vpop.permute.xlu0 %5736
        %v5739 = vmul.f32 %v5735, %v5737
        %5741 = vrot.lane.b32.xlu0 %v5739, 96
        %v5742 = vpop.permute.xlu0 %5741
        %v5743 = vsel %vm477, %v5742, 0
        %5745 = vmatprep.subr.mxu0 0.0
        %5746 = vmatpush1.msra.mxu0 %v430
        %5747 = vmatprep.subr.mxu0 0.0
        %5748 = vmatpush1.msra.mxu0 %v431
        %5749 = vmatprep.subr.mxu0 0.0
        %5750 = vmatpush1.msra.mxu0 %v432
        %5751 = vmatprep.subr.mxu0 0.0
        %5752 = vmatpush1.msra.mxu0 %v433
        %5753 = vmatprep.subr.mxu0 0.0
        %5754 = vmatpush1.msra.mxu0 0.0
        %5755 = vmatprep.subr.mxu0 0.0
        %5756 = vmatpush1.msra.mxu0 0.0
        %5757 = vmatprep.subr.mxu0 0.0
        %5758 = vmatpush1.msra.mxu0 0.0
        %5759 = vmatprep.subr.mxu0 0.0
        %5760 = vmatpush1.msra.mxu0 0.0
        %5761 = vmatprep.subr.mxu0 0.0
        %5762 = vmatpush1.msra.mxu0 0.0
        %5763 = vmatprep.subr.mxu0 0.0
        %5764 = vmatpush1.msra.mxu0 0.0
        %5765 = vmatprep.subr.mxu0 0.0
        %5766 = vmatpush1.msra.mxu0 0.0
        %5767 = vmatprep.subr.mxu0 0.0
        %5768 = vmatpush1.msra.mxu0 0.0
        %5769 = vmatprep.subr.mxu0 0.0
        %5770 = vmatpush1.msra.mxu0 0.0
        %5771 = vmatprep.subr.mxu0 0.0
        %5772 = vmatpush1.msra.mxu0 0.0
        %5773 = vmatprep.subr.mxu0 0.0
        %5774 = vmatpush1.msra.mxu0 0.0
        %5775 = vmatprep.subr.mxu0 0.0
        %5776 = vmatpush1.msra.mxu0 0.0
        %5777 = vmatprep.subr.mxu0 0.0
        %5778 = vmatpush1.msra.mxu0 0.0
        %5779 = vmatprep.subr.mxu0 0.0
        %5780 = vmatpush1.msra.mxu0 0.0
        %5781 = vmatprep.subr.mxu0 0.0
        %5782 = vmatpush1.msra.mxu0 0.0
        %5783 = vmatprep.subr.mxu0 0.0
        %5784 = vmatpush1.msra.mxu0 0.0
        %5785 = vmatprep.subr.mxu0 0.0
        %5786 = vmatpush1.msra.mxu0 0.0
        %5787 = vmatprep.subr.mxu0 0.0
        %5788 = vmatpush1.msra.mxu0 0.0
        %5789 = vmatprep.subr.mxu0 0.0
        %5790 = vmatpush1.msra.mxu0 0.0
        %5791 = vmatprep.subr.mxu0 0.0
        %5792 = vmatpush1.msra.mxu0 0.0
        %5793 = vmatprep.subr.mxu0 0.0
        %5794 = vmatpush1.msra.mxu0 0.0
        %5795 = vmatprep.subr.mxu0 0.0
        %5796 = vmatpush1.msra.mxu0 0.0
        %5797 = vmatprep.subr.mxu0 0.0
        %5798 = vmatpush1.msra.mxu0 0.0
        %5799 = vmatprep.subr.mxu0 0.0
        %5800 = vmatpush1.msra.mxu0 0.0
        %5801 = vmatprep.subr.mxu0 0.0
        %5802 = vmatpush1.msra.mxu0 0.0
        %5803 = vmatprep.subr.mxu0 0.0
        %5804 = vmatpush1.msra.mxu0 0.0
        %5805 = vmatprep.subr.mxu0 0.0
        %5806 = vmatpush1.msra.mxu0 0.0
        %5807 = vmatprep.subr.mxu0 0.0
        %5808 = vmatpush1.msra.mxu0 0.0
        %5809 = vmatprep.mubr.f32.mxu0 0.0
        %5810 = vmatmul.mubr.f32.gmra.mrb[0].mxu0 %v5743
        %v5811 = vpop.f32.mrb[0].mxu0
        %v5812 = vadd.f32 0.0, %v5811
        %v5813 = vpop.f32.mrb[0].mxu0
        %5814 = vdwg.mxu0
        %5816 = vrot.lane.b32.xlu0 %v5812, 64
        %v5817 = vpop.permute.xlu0 %5816
        %v5819 = vadd.f32 %v5655, %v5817
        %v5820 = vadd.f32 %v5819, %v644
        %v5821 = vtanh.pop %v5820
        %v5822 = vmul.f32 %v5735, %v5402
        %v5823 = vsub.f32 1.0, %v5735
        %5825 = vrot.lane.b32.xlu0 %v5821, 64
        %v5826 = vpop.permute.xlu0 %5825
        %v5828 = vmul.f32 %v5823, %v5826
        %v5829 = vadd.f32 %v5822, %v5828
        %s5830 = scalar_select %p5657, 1, 0
        %v5831 = vstv %s5830
        %vm5832 = vcmp.eq.s32.totalorder %v5831, 1
        %v5833 = vsel %vm5832, %v5829, %v5402
        %v5835 = vsel %vm477, %v5833, 0
        %5837 = vmatprep.subr.mxu0 0.0
        %5838 = vmatpush1.msra.mxu0 %v439
        %5839 = vmatprep.subr.mxu0 0.0
        %5840 = vmatpush1.msra.mxu0 %v440
        %5841 = vmatprep.subr.mxu0 0.0
        %5842 = vmatpush1.msra.mxu0 %v441
        %5843 = vmatprep.subr.mxu0 0.0
        %5844 = vmatpush1.msra.mxu0 %v442
        %5845 = vmatprep.subr.mxu0 0.0
        %5846 = vmatpush1.msra.mxu0 0.0
        %5847 = vmatprep.subr.mxu0 0.0
        %5848 = vmatpush1.msra.mxu0 0.0
        %5849 = vmatprep.subr.mxu0 0.0
        %5850 = vmatpush1.msra.mxu0 0.0
        %5851 = vmatprep.subr.mxu0 0.0
        %5852 = vmatpush1.msra.mxu0 0.0
        %5853 = vmatprep.subr.mxu0 0.0
        %5854 = vmatpush1.msra.mxu0 0.0
        %5855 = vmatprep.subr.mxu0 0.0
        %5856 = vmatpush1.msra.mxu0 0.0
        %5857 = vmatprep.subr.mxu0 0.0
        %5858 = vmatpush1.msra.mxu0 0.0
        %5859 = vmatprep.subr.mxu0 0.0
        %5860 = vmatpush1.msra.mxu0 0.0
        %5861 = vmatprep.subr.mxu0 0.0
        %5862 = vmatpush1.msra.mxu0 0.0
        %5863 = vmatprep.subr.mxu0 0.0
        %5864 = vmatpush1.msra.mxu0 0.0
        %5865 = vmatprep.subr.mxu0 0.0
        %5866 = vmatpush1.msra.mxu0 0.0
        %5867 = vmatprep.subr.mxu0 0.0
        %5868 = vmatpush1.msra.mxu0 0.0
        %5869 = vmatprep.subr.mxu0 0.0
        %5870 = vmatpush1.msra.mxu0 0.0
        %5871 = vmatprep.subr.mxu0 0.0
        %5872 = vmatpush1.msra.mxu0 0.0
        %5873 = vmatprep.subr.mxu0 0.0
        %5874 = vmatpush1.msra.mxu0 0.0
        %5875 = vmatprep.subr.mxu0 0.0
        %5876 = vmatpush1.msra.mxu0 0.0
        %5877 = vmatprep.subr.mxu0 0.0
        %5878 = vmatpush1.msra.mxu0 0.0
        %5879 = vmatprep.subr.mxu0 0.0
        %5880 = vmatpush1.msra.mxu0 0.0
        %5881 = vmatprep.subr.mxu0 0.0
        %5882 = vmatpush1.msra.mxu0 0.0
        %5883 = vmatprep.subr.mxu0 0.0
        %5884 = vmatpush1.msra.mxu0 0.0
        %5885 = vmatprep.subr.mxu0 0.0
        %5886 = vmatpush1.msra.mxu0 0.0
        %5887 = vmatprep.subr.mxu0 0.0
        %5888 = vmatpush1.msra.mxu0 0.0
        %5889 = vmatprep.subr.mxu0 0.0
        %5890 = vmatpush1.msra.mxu0 0.0
        %5891 = vmatprep.subr.mxu0 0.0
        %5892 = vmatpush1.msra.mxu0 0.0
        %5893 = vmatprep.subr.mxu0 0.0
        %5894 = vmatpush1.msra.mxu0 0.0
        %5895 = vmatprep.subr.mxu0 0.0
        %5896 = vmatpush1.msra.mxu0 0.0
        %5897 = vmatprep.subr.mxu0 0.0
        %5898 = vmatpush1.msra.mxu0 0.0
        %5899 = vmatprep.subr.mxu0 0.0
        %5900 = vmatpush1.msra.mxu0 0.0
        %5901 = vmatprep.mubr.f32.mxu0 0.0
        %5902 = vmatmul.mubr.f32.gmra.mrb[0].mxu0 %v5835
        %v5903 = vpop.f32.mrb[0].mxu0
        %v5904 = vadd.f32 0.0, %v5903
        %v5905 = vpop.f32.mrb[0].mxu0
        %5906 = vdwg.mxu0
        %v5908 = vsel %vm477, %v5651, 0
        %5910 = vmatprep.subr.mxu0 0.0
        %5911 = vmatpush1.msra.mxu0 %v426
        %5912 = vmatprep.subr.mxu0 0.0
        %5913 = vmatpush1.msra.mxu0 %v427
        %5914 = vmatprep.subr.mxu0 0.0
        %5915 = vmatpush1.msra.mxu0 %v428
        %5916 = vmatprep.subr.mxu0 0.0
        %5917 = vmatpush1.msra.mxu0 %v429
        %5918 = vmatprep.subr.mxu0 0.0
        %5919 = vmatpush1.msra.mxu0 0.0
        %5920 = vmatprep.subr.mxu0 0.0
        %5921 = vmatpush1.msra.mxu0 0.0
        %5922 = vmatprep.subr.mxu0 0.0
        %5923 = vmatpush1.msra.mxu0 0.0
        %5924 = vmatprep.subr.mxu0 0.0
        %5925 = vmatpush1.msra.mxu0 0.0
        %5926 = vmatprep.subr.mxu0 0.0
        %5927 = vmatpush1.msra.mxu0 0.0
        %5928 = vmatprep.subr.mxu0 0.0
        %5929 = vmatpush1.msra.mxu0 0.0
        %5930 = vmatprep.subr.mxu0 0.0
        %5931 = vmatpush1.msra.mxu0 0.0
        %5932 = vmatprep.subr.mxu0 0.0
        %5933 = vmatpush1.msra.mxu0 0.0
        %5934 = vmatprep.subr.mxu0 0.0
        %5935 = vmatpush1.msra.mxu0 0.0
        %5936 = vmatprep.subr.mxu0 0.0
        %5937 = vmatpush1.msra.mxu0 0.0
        %5938 = vmatprep.subr.mxu0 0.0
        %5939 = vmatpush1.msra.mxu0 0.0
        %5940 = vmatprep.subr.mxu0 0.0
        %5941 = vmatpush1.msra.mxu0 0.0
        %5942 = vmatprep.subr.mxu0 0.0
        %5943 = vmatpush1.msra.mxu0 0.0
        %5944 = vmatprep.subr.mxu0 0.0
        %5945 = vmatpush1.msra.mxu0 0.0
        %5946 = vmatprep.subr.mxu0 0.0
        %5947 = vmatpush1.msra.mxu0 0.0
        %5948 = vmatprep.subr.mxu0 0.0
        %5949 = vmatpush1.msra.mxu0 0.0
        %5950 = vmatprep.subr.mxu0 0.0
        %5951 = vmatpush1.msra.mxu0 0.0
        %5952 = vmatprep.subr.mxu0 0.0
        %5953 = vmatpush1.msra.mxu0 0.0
        %5954 = vmatprep.subr.mxu0 0.0
        %5955 = vmatpush1.msra.mxu0 0.0
        %5956 = vmatprep.subr.mxu0 0.0
        %5957 = vmatpush1.msra.mxu0 0.0
        %5958 = vmatprep.subr.mxu0 0.0
        %5959 = vmatpush1.msra.mxu0 0.0
        %5960 = vmatprep.subr.mxu0 0.0
        %5961 = vmatpush1.msra.mxu0 0.0
        %5962 = vmatprep.subr.mxu0 0.0
        %5963 = vmatpush1.msra.mxu0 0.0
        %5964 = vmatprep.subr.mxu0 0.0
        %5965 = vmatpush1.msra.mxu0 0.0
        %5966 = vmatprep.subr.mxu0 0.0
        %5967 = vmatpush1.msra.mxu0 0.0
        %5968 = vmatprep.subr.mxu0 0.0
        %5969 = vmatpush1.msra.mxu0 0.0
        %5970 = vmatprep.subr.mxu0 0.0
        %5971 = vmatpush1.msra.mxu0 0.0
        %5972 = vmatprep.subr.mxu0 0.0
        %5973 = vmatpush1.msra.mxu0 0.0
        %5974 = vmatprep.mubr.f32.mxu0 0.0
        %5975 = vmatmul.mubr.f32.gmra.mrb[0].mxu0 %v5908
        %v5976 = vpop.f32.mrb[0].mxu0
        %v5977 = vadd.f32 0.0, %v5976
        %v5978 = vpop.f32.mrb[0].mxu0
        %5979 = vdwg.mxu0
        %v5980 = vadd.f32 %v5904, %v5977
        %v5981 = vadd.f32 %v5980, %v456
        %v5982 = vxor.u32 %v5981, 2147483648
        %v5983 = vmul.f32 %v5982, 1.442695
        %v5984 = vpow.pop %v5983
        %v5985 = vadd.f32 %v5984, 1.0
        %v5986 = vrcp.pop %v5985
        %v5987 = vmul.f32 1.0, %v5986
        %5988 = vrot.lane.b32.xlu0 %v5651, 32
        %v5989 = vpop.permute.xlu0 %5988
        %v5991 = vmul.f32 %v5987, %v5989
        %5993 = vrot.lane.b32.xlu0 %v5991, 96
        %v5994 = vpop.permute.xlu0 %5993
        %v5995 = vsel %vm477, %v5994, 0
        %5997 = vmatprep.subr.mxu0 0.0
        %5998 = vmatpush1.msra.mxu0 %v435
        %5999 = vmatprep.subr.mxu0 0.0
        %6000 = vmatpush1.msra.mxu0 %v436
        %6001 = vmatprep.subr.mxu0 0.0
        %6002 = vmatpush1.msra.mxu0 %v437
        %6003 = vmatprep.subr.mxu0 0.0
        %6004 = vmatpush1.msra.mxu0 %v438
        %6005 = vmatprep.subr.mxu0 0.0
        %6006 = vmatpush1.msra.mxu0 0.0
        %6007 = vmatprep.subr.mxu0 0.0
        %6008 = vmatpush1.msra.mxu0 0.0
        %6009 = vmatprep.subr.mxu0 0.0
        %6010 = vmatpush1.msra.mxu0 0.0
        %6011 = vmatprep.subr.mxu0 0.0
        %6012 = vmatpush1.msra.mxu0 0.0
        %6013 = vmatprep.subr.mxu0 0.0
        %6014 = vmatpush1.msra.mxu0 0.0
        %6015 = vmatprep.subr.mxu0 0.0
        %6016 = vmatpush1.msra.mxu0 0.0
        %6017 = vmatprep.subr.mxu0 0.0
        %6018 = vmatpush1.msra.mxu0 0.0
        %6019 = vmatprep.subr.mxu0 0.0
        %6020 = vmatpush1.msra.mxu0 0.0
        %6021 = vmatprep.subr.mxu0 0.0
        %6022 = vmatpush1.msra.mxu0 0.0
        %6023 = vmatprep.subr.mxu0 0.0
        %6024 = vmatpush1.msra.mxu0 0.0
        %6025 = vmatprep.subr.mxu0 0.0
        %6026 = vmatpush1.msra.mxu0 0.0
        %6027 = vmatprep.subr.mxu0 0.0
        %6028 = vmatpush1.msra.mxu0 0.0
        %6029 = vmatprep.subr.mxu0 0.0
        %6030 = vmatpush1.msra.mxu0 0.0
        %6031 = vmatprep.subr.mxu0 0.0
        %6032 = vmatpush1.msra.mxu0 0.0
        %6033 = vmatprep.subr.mxu0 0.0
        %6034 = vmatpush1.msra.mxu0 0.0
        %6035 = vmatprep.subr.mxu0 0.0
        %6036 = vmatpush1.msra.mxu0 0.0
        %6037 = vmatprep.subr.mxu0 0.0
        %6038 = vmatpush1.msra.mxu0 0.0
        %6039 = vmatprep.subr.mxu0 0.0
        %6040 = vmatpush1.msra.mxu0 0.0
        %6041 = vmatprep.subr.mxu0 0.0
        %6042 = vmatpush1.msra.mxu0 0.0
        %6043 = vmatprep.subr.mxu0 0.0
        %6044 = vmatpush1.msra.mxu0 0.0
        %6045 = vmatprep.subr.mxu0 0.0
        %6046 = vmatpush1.msra.mxu0 0.0
        %6047 = vmatprep.subr.mxu0 0.0
        %6048 = vmatpush1.msra.mxu0 0.0
        %6049 = vmatprep.subr.mxu0 0.0
        %6050 = vmatpush1.msra.mxu0 0.0
        %6051 = vmatprep.subr.mxu0 0.0
        %6052 = vmatpush1.msra.mxu0 0.0
        %6053 = vmatprep.subr.mxu0 0.0
        %6054 = vmatpush1.msra.mxu0 0.0
        %6055 = vmatprep.subr.mxu0 0.0
        %6056 = vmatpush1.msra.mxu0 0.0
        %6057 = vmatprep.subr.mxu0 0.0
        %6058 = vmatpush1.msra.mxu0 0.0
        %6059 = vmatprep.subr.mxu0 0.0
        %6060 = vmatpush1.msra.mxu0 0.0
        %6061 = vmatprep.mubr.f32.mxu0 0.0
        %6062 = vmatmul.mubr.f32.gmra.mrb[0].mxu0 %v5995
        %v6063 = vpop.f32.mrb[0].mxu0
        %v6064 = vadd.f32 0.0, %v6063
        %v6065 = vpop.f32.mrb[0].mxu0
        %6066 = vdwg.mxu0
        %6068 = vrot.lane.b32.xlu0 %v6064, 64
        %v6069 = vpop.permute.xlu0 %6068
        %v6071 = vadd.f32 %v5904, %v6069
        %v6072 = vadd.f32 %v6071, %v899
        %v6073 = vtanh.pop %v6072
        %v6074 = vmul.f32 %v5987, %v5651
        %v6075 = vsub.f32 1.0, %v5987
        %6077 = vrot.lane.b32.xlu0 %v6073, 64
        %v6078 = vpop.permute.xlu0 %6077
        %v6080 = vmul.f32 %v6075, %v6078
        %v6081 = vadd.f32 %v6074, %v6080
        %v6082 = vsel %vm5832, %v6081, %v5651
        %s6083 = scalar_lea.vmem %s407, 96 [#allocation11]
        %6084 = vst.msk [vmem:[%s6083] sm:$0xff] %vm477, %v6082
        %s6085 = scalar_lea.vmem %s361, 104 [#allocation2]
        %v6086 = vld [vmem:[%s6085] sm:$0xff]
        %s6087 = sadd.s32 %s475, 13
        %p6088 = scmp.lt.s32.totalorder %s6087, 24
        %6089 = vmatprep.subr.mxu0 0.0
        %6090 = vmatpush1.msra.mxu0 %v421
        %6091 = vmatprep.subr.mxu0 0.0
        %6092 = vmatpush1.msra.mxu0 %v422
        %6093 = vmatprep.subr.mxu0 0.0
        %6094 = vmatpush1.msra.mxu0 %v423
        %6095 = vmatprep.subr.mxu0 0.0
        %6096 = vmatpush1.msra.mxu0 %v424
        %6097 = vmatprep.subr.mxu0 0.0
        %6098 = vmatpush1.msra.mxu0 0.0
        %6099 = vmatprep.subr.mxu0 0.0
        %6100 = vmatpush1.msra.mxu0 0.0
        %6101 = vmatprep.subr.mxu0 0.0
        %6102 = vmatpush1.msra.mxu0 0.0
        %6103 = vmatprep.subr.mxu0 0.0
        %6104 = vmatpush1.msra.mxu0 0.0
        %6105 = vmatprep.subr.mxu0 0.0
        %6106 = vmatpush1.msra.mxu0 0.0
        %6107 = vmatprep.subr.mxu0 0.0
        %6108 = vmatpush1.msra.mxu0 0.0
        %6109 = vmatprep.subr.mxu0 0.0
        %6110 = vmatpush1.msra.mxu0 0.0
        %6111 = vmatprep.subr.mxu0 0.0
        %6112 = vmatpush1.msra.mxu0 0.0
        %6113 = vmatprep.subr.mxu0 0.0
        %6114 = vmatpush1.msra.mxu0 0.0
        %6115 = vmatprep.subr.mxu0 0.0
        %6116 = vmatpush1.msra.mxu0 0.0
        %6117 = vmatprep.subr.mxu0 0.0
        %6118 = vmatpush1.msra.mxu0 0.0
        %6119 = vmatprep.subr.mxu0 0.0
        %6120 = vmatpush1.msra.mxu0 0.0
        %6121 = vmatprep.subr.mxu0 0.0
        %6122 = vmatpush1.msra.mxu0 0.0
        %6123 = vmatprep.subr.mxu0 0.0
        %6124 = vmatpush1.msra.mxu0 0.0
        %6125 = vmatprep.subr.mxu0 0.0
        %6126 = vmatpush1.msra.mxu0 0.0
        %6127 = vmatprep.subr.mxu0 0.0
        %6128 = vmatpush1.msra.mxu0 0.0
        %6129 = vmatprep.subr.mxu0 0.0
        %6130 = vmatpush1.msra.mxu0 0.0
        %6131 = vmatprep.subr.mxu0 0.0
        %6132 = vmatpush1.msra.mxu0 0.0
        %6133 = vmatprep.subr.mxu0 0.0
        %6134 = vmatpush1.msra.mxu0 0.0
        %6135 = vmatprep.subr.mxu0 0.0
        %6136 = vmatpush1.msra.mxu0 0.0
        %6137 = vmatprep.subr.mxu0 0.0
        %6138 = vmatpush1.msra.mxu0 0.0
        %6139 = vmatprep.subr.mxu0 0.0
        %6140 = vmatpush1.msra.mxu0 0.0
        %6141 = vmatprep.subr.mxu0 0.0
        %6142 = vmatpush1.msra.mxu0 0.0
        %6143 = vmatprep.subr.mxu0 0.0
        %6144 = vmatpush1.msra.mxu0 0.0
        %6145 = vmatprep.subr.mxu0 0.0
        %6146 = vmatpush1.msra.mxu0 0.0
        %6147 = vmatprep.subr.mxu0 0.0
        %6148 = vmatpush1.msra.mxu0 0.0
        %6149 = vmatprep.subr.mxu0 0.0
        %6150 = vmatpush1.msra.mxu0 0.0
        %6151 = vmatprep.subr.mxu0 0.0
        %6152 = vmatpush1.msra.mxu0 0.0
        %6153 = vmatprep.mubr.f32.mxu0 0.0
        %6154 = vmatmul.mubr.f32.gmra.mrb[0].mxu0 %v5835
        %v6155 = vpop.f32.mrb[0].mxu0
        %v6156 = vadd.f32 0.0, %v6155
        %v6157 = vpop.f32.mrb[0].mxu0
        %6158 = vdwg.mxu0
        %v6159 = vadd.f32 %v6086, %v6156
        %v6160 = vadd.f32 %v6159, %v448
        %v6161 = vxor.u32 %v6160, 2147483648
        %v6162 = vmul.f32 %v6161, 1.442695
        %v6163 = vpow.pop %v6162
        %v6164 = vadd.f32 %v6163, 1.0
        %v6165 = vrcp.pop %v6164
        %v6166 = vmul.f32 1.0, %v6165
        %6167 = vrot.lane.b32.xlu0 %v5833, 32
        %v6168 = vpop.permute.xlu0 %6167
        %v6170 = vmul.f32 %v6166, %v6168
        %6172 = vrot.lane.b32.xlu0 %v6170, 96
        %v6173 = vpop.permute.xlu0 %6172
        %v6174 = vsel %vm477, %v6173, 0
        %6176 = vmatprep.subr.mxu0 0.0
        %6177 = vmatpush1.msra.mxu0 %v430
        %6178 = vmatprep.subr.mxu0 0.0
        %6179 = vmatpush1.msra.mxu0 %v431
        %6180 = vmatprep.subr.mxu0 0.0
        %6181 = vmatpush1.msra.mxu0 %v432
        %6182 = vmatprep.subr.mxu0 0.0
        %6183 = vmatpush1.msra.mxu0 %v433
        %6184 = vmatprep.subr.mxu0 0.0
        %6185 = vmatpush1.msra.mxu0 0.0
        %6186 = vmatprep.subr.mxu0 0.0
        %6187 = vmatpush1.msra.mxu0 0.0
        %6188 = vmatprep.subr.mxu0 0.0
        %6189 = vmatpush1.msra.mxu0 0.0
        %6190 = vmatprep.subr.mxu0 0.0
        %6191 = vmatpush1.msra.mxu0 0.0
        %6192 = vmatprep.subr.mxu0 0.0
        %6193 = vmatpush1.msra.mxu0 0.0
        %6194 = vmatprep.subr.mxu0 0.0
        %6195 = vmatpush1.msra.mxu0 0.0
        %6196 = vmatprep.subr.mxu0 0.0
        %6197 = vmatpush1.msra.mxu0 0.0
        %6198 = vmatprep.subr.mxu0 0.0
        %6199 = vmatpush1.msra.mxu0 0.0
        %6200 = vmatprep.subr.mxu0 0.0
        %6201 = vmatpush1.msra.mxu0 0.0
        %6202 = vmatprep.subr.mxu0 0.0
        %6203 = vmatpush1.msra.mxu0 0.0
        %6204 = vmatprep.subr.mxu0 0.0
        %6205 = vmatpush1.msra.mxu0 0.0
        %6206 = vmatprep.subr.mxu0 0.0
        %6207 = vmatpush1.msra.mxu0 0.0
        %6208 = vmatprep.subr.mxu0 0.0
        %6209 = vmatpush1.msra.mxu0 0.0
        %6210 = vmatprep.subr.mxu0 0.0
        %6211 = vmatpush1.msra.mxu0 0.0
        %6212 = vmatprep.subr.mxu0 0.0
        %6213 = vmatpush1.msra.mxu0 0.0
        %6214 = vmatprep.subr.mxu0 0.0
        %6215 = vmatpush1.msra.mxu0 0.0
        %6216 = vmatprep.subr.mxu0 0.0
        %6217 = vmatpush1.msra.mxu0 0.0
        %6218 = vmatprep.subr.mxu0 0.0
        %6219 = vmatpush1.msra.mxu0 0.0
        %6220 = vmatprep.subr.mxu0 0.0
        %6221 = vmatpush1.msra.mxu0 0.0
        %6222 = vmatprep.subr.mxu0 0.0
        %6223 = vmatpush1.msra.mxu0 0.0
        %6224 = vmatprep.subr.mxu0 0.0
        %6225 = vmatpush1.msra.mxu0 0.0
        %6226 = vmatprep.subr.mxu0 0.0
        %6227 = vmatpush1.msra.mxu0 0.0
        %6228 = vmatprep.subr.mxu0 0.0
        %6229 = vmatpush1.msra.mxu0 0.0
        %6230 = vmatprep.subr.mxu0 0.0
        %6231 = vmatpush1.msra.mxu0 0.0
        %6232 = vmatprep.subr.mxu0 0.0
        %6233 = vmatpush1.msra.mxu0 0.0
        %6234 = vmatprep.subr.mxu0 0.0
        %6235 = vmatpush1.msra.mxu0 0.0
        %6236 = vmatprep.subr.mxu0 0.0
        %6237 = vmatpush1.msra.mxu0 0.0
        %6238 = vmatprep.subr.mxu0 0.0
        %6239 = vmatpush1.msra.mxu0 0.0
        %6240 = vmatprep.mubr.f32.mxu0 0.0
        %6241 = vmatmul.mubr.f32.gmra.mrb[0].mxu0 %v6174
        %v6242 = vpop.f32.mrb[0].mxu0
        %v6243 = vadd.f32 0.0, %v6242
        %v6244 = vpop.f32.mrb[0].mxu0
        %6245 = vdwg.mxu0
        %6247 = vrot.lane.b32.xlu0 %v6243, 64
        %v6248 = vpop.permute.xlu0 %6247
        %v6250 = vadd.f32 %v6086, %v6248
        %v6251 = vadd.f32 %v6250, %v644
        %v6252 = vtanh.pop %v6251
        %v6253 = vmul.f32 %v6166, %v5833
        %v6254 = vsub.f32 1.0, %v6166
        %6256 = vrot.lane.b32.xlu0 %v6252, 64
        %v6257 = vpop.permute.xlu0 %6256
        %v6259 = vmul.f32 %v6254, %v6257
        %v6260 = vadd.f32 %v6253, %v6259
        %s6261 = scalar_select %p6088, 1, 0
        %v6262 = vstv %s6261
        %vm6263 = vcmp.eq.s32.totalorder %v6262, 1
        %v6264 = vsel %vm6263, %v6260, %v5833
        %v6266 = vsel %vm477, %v6264, 0
        %6268 = vmatprep.subr.mxu0 0.0
        %6269 = vmatpush1.msra.mxu0 %v439
        %6270 = vmatprep.subr.mxu0 0.0
        %6271 = vmatpush1.msra.mxu0 %v440
        %6272 = vmatprep.subr.mxu0 0.0
        %6273 = vmatpush1.msra.mxu0 %v441
        %6274 = vmatprep.subr.mxu0 0.0
        %6275 = vmatpush1.msra.mxu0 %v442
        %6276 = vmatprep.subr.mxu0 0.0
        %6277 = vmatpush1.msra.mxu0 0.0
        %6278 = vmatprep.subr.mxu0 0.0
        %6279 = vmatpush1.msra.mxu0 0.0
        %6280 = vmatprep.subr.mxu0 0.0
        %6281 = vmatpush1.msra.mxu0 0.0
        %6282 = vmatprep.subr.mxu0 0.0
        %6283 = vmatpush1.msra.mxu0 0.0
        %6284 = vmatprep.subr.mxu0 0.0
        %6285 = vmatpush1.msra.mxu0 0.0
        %6286 = vmatprep.subr.mxu0 0.0
        %6287 = vmatpush1.msra.mxu0 0.0
        %6288 = vmatprep.subr.mxu0 0.0
        %6289 = vmatpush1.msra.mxu0 0.0
        %6290 = vmatprep.subr.mxu0 0.0
        %6291 = vmatpush1.msra.mxu0 0.0
        %6292 = vmatprep.subr.mxu0 0.0
        %6293 = vmatpush1.msra.mxu0 0.0
        %6294 = vmatprep.subr.mxu0 0.0
        %6295 = vmatpush1.msra.mxu0 0.0
        %6296 = vmatprep.subr.mxu0 0.0
        %6297 = vmatpush1.msra.mxu0 0.0
        %6298 = vmatprep.subr.mxu0 0.0
        %6299 = vmatpush1.msra.mxu0 0.0
        %6300 = vmatprep.subr.mxu0 0.0
        %6301 = vmatpush1.msra.mxu0 0.0
        %6302 = vmatprep.subr.mxu0 0.0
        %6303 = vmatpush1.msra.mxu0 0.0
        %6304 = vmatprep.subr.mxu0 0.0
        %6305 = vmatpush1.msra.mxu0 0.0
        %6306 = vmatprep.subr.mxu0 0.0
        %6307 = vmatpush1.msra.mxu0 0.0
        %6308 = vmatprep.subr.mxu0 0.0
        %6309 = vmatpush1.msra.mxu0 0.0
        %6310 = vmatprep.subr.mxu0 0.0
        %6311 = vmatpush1.msra.mxu0 0.0
        %6312 = vmatprep.subr.mxu0 0.0
        %6313 = vmatpush1.msra.mxu0 0.0
        %6314 = vmatprep.subr.mxu0 0.0
        %6315 = vmatpush1.msra.mxu0 0.0
        %6316 = vmatprep.subr.mxu0 0.0
        %6317 = vmatpush1.msra.mxu0 0.0
        %6318 = vmatprep.subr.mxu0 0.0
        %6319 = vmatpush1.msra.mxu0 0.0
        %6320 = vmatprep.subr.mxu0 0.0
        %6321 = vmatpush1.msra.mxu0 0.0
        %6322 = vmatprep.subr.mxu0 0.0
        %6323 = vmatpush1.msra.mxu0 0.0
        %6324 = vmatprep.subr.mxu0 0.0
        %6325 = vmatpush1.msra.mxu0 0.0
        %6326 = vmatprep.subr.mxu0 0.0
        %6327 = vmatpush1.msra.mxu0 0.0
        %6328 = vmatprep.subr.mxu0 0.0
        %6329 = vmatpush1.msra.mxu0 0.0
        %6330 = vmatprep.subr.mxu0 0.0
        %6331 = vmatpush1.msra.mxu0 0.0
        %6332 = vmatprep.mubr.f32.mxu0 0.0
        %6333 = vmatmul.mubr.f32.gmra.mrb[0].mxu0 %v6266
        %v6334 = vpop.f32.mrb[0].mxu0
        %v6335 = vadd.f32 0.0, %v6334
        %v6336 = vpop.f32.mrb[0].mxu0
        %6337 = vdwg.mxu0
        %v6339 = vsel %vm477, %v6082, 0
        %6341 = vmatprep.subr.mxu0 0.0
        %6342 = vmatpush1.msra.mxu0 %v426
        %6343 = vmatprep.subr.mxu0 0.0
        %6344 = vmatpush1.msra.mxu0 %v427
        %6345 = vmatprep.subr.mxu0 0.0
        %6346 = vmatpush1.msra.mxu0 %v428
        %6347 = vmatprep.subr.mxu0 0.0
        %6348 = vmatpush1.msra.mxu0 %v429
        %6349 = vmatprep.subr.mxu0 0.0
        %6350 = vmatpush1.msra.mxu0 0.0
        %6351 = vmatprep.subr.mxu0 0.0
        %6352 = vmatpush1.msra.mxu0 0.0
        %6353 = vmatprep.subr.mxu0 0.0
        %6354 = vmatpush1.msra.mxu0 0.0
        %6355 = vmatprep.subr.mxu0 0.0
        %6356 = vmatpush1.msra.mxu0 0.0
        %6357 = vmatprep.subr.mxu0 0.0
        %6358 = vmatpush1.msra.mxu0 0.0
        %6359 = vmatprep.subr.mxu0 0.0
        %6360 = vmatpush1.msra.mxu0 0.0
        %6361 = vmatprep.subr.mxu0 0.0
        %6362 = vmatpush1.msra.mxu0 0.0
        %6363 = vmatprep.subr.mxu0 0.0
        %6364 = vmatpush1.msra.mxu0 0.0
        %6365 = vmatprep.subr.mxu0 0.0
        %6366 = vmatpush1.msra.mxu0 0.0
        %6367 = vmatprep.subr.mxu0 0.0
        %6368 = vmatpush1.msra.mxu0 0.0
        %6369 = vmatprep.subr.mxu0 0.0
        %6370 = vmatpush1.msra.mxu0 0.0
        %6371 = vmatprep.subr.mxu0 0.0
        %6372 = vmatpush1.msra.mxu0 0.0
        %6373 = vmatprep.subr.mxu0 0.0
        %6374 = vmatpush1.msra.mxu0 0.0
        %6375 = vmatprep.subr.mxu0 0.0
        %6376 = vmatpush1.msra.mxu0 0.0
        %6377 = vmatprep.subr.mxu0 0.0
        %6378 = vmatpush1.msra.mxu0 0.0
        %6379 = vmatprep.subr.mxu0 0.0
        %6380 = vmatpush1.msra.mxu0 0.0
        %6381 = vmatprep.subr.mxu0 0.0
        %6382 = vmatpush1.msra.mxu0 0.0
        %6383 = vmatprep.subr.mxu0 0.0
        %6384 = vmatpush1.msra.mxu0 0.0
        %6385 = vmatprep.subr.mxu0 0.0
        %6386 = vmatpush1.msra.mxu0 0.0
        %6387 = vmatprep.subr.mxu0 0.0
        %6388 = vmatpush1.msra.mxu0 0.0
        %6389 = vmatprep.subr.mxu0 0.0
        %6390 = vmatpush1.msra.mxu0 0.0
        %6391 = vmatprep.subr.mxu0 0.0
        %6392 = vmatpush1.msra.mxu0 0.0
        %6393 = vmatprep.subr.mxu0 0.0
        %6394 = vmatpush1.msra.mxu0 0.0
        %6395 = vmatprep.subr.mxu0 0.0
        %6396 = vmatpush1.msra.mxu0 0.0
        %6397 = vmatprep.subr.mxu0 0.0
        %6398 = vmatpush1.msra.mxu0 0.0
        %6399 = vmatprep.subr.mxu0 0.0
        %6400 = vmatpush1.msra.mxu0 0.0
        %6401 = vmatprep.subr.mxu0 0.0
        %6402 = vmatpush1.msra.mxu0 0.0
        %6403 = vmatprep.subr.mxu0 0.0
        %6404 = vmatpush1.msra.mxu0 0.0
        %6405 = vmatprep.mubr.f32.mxu0 0.0
        %6406 = vmatmul.mubr.f32.gmra.mrb[0].mxu0 %v6339
        %v6407 = vpop.f32.mrb[0].mxu0
        %v6408 = vadd.f32 0.0, %v6407
        %v6409 = vpop.f32.mrb[0].mxu0
        %6410 = vdwg.mxu0
        %v6411 = vadd.f32 %v6335, %v6408
        %v6412 = vadd.f32 %v6411, %v456
        %v6413 = vxor.u32 %v6412, 2147483648
        %v6414 = vmul.f32 %v6413, 1.442695
        %v6415 = vpow.pop %v6414
        %v6416 = vadd.f32 %v6415, 1.0
        %v6417 = vrcp.pop %v6416
        %v6418 = vmul.f32 1.0, %v6417
        %6419 = vrot.lane.b32.xlu0 %v6082, 32
        %v6420 = vpop.permute.xlu0 %6419
        %v6422 = vmul.f32 %v6418, %v6420
        %6424 = vrot.lane.b32.xlu0 %v6422, 96
        %v6425 = vpop.permute.xlu0 %6424
        %v6426 = vsel %vm477, %v6425, 0
        %6428 = vmatprep.subr.mxu0 0.0
        %6429 = vmatpush1.msra.mxu0 %v435
        %6430 = vmatprep.subr.mxu0 0.0
        %6431 = vmatpush1.msra.mxu0 %v436
        %6432 = vmatprep.subr.mxu0 0.0
        %6433 = vmatpush1.msra.mxu0 %v437
        %6434 = vmatprep.subr.mxu0 0.0
        %6435 = vmatpush1.msra.mxu0 %v438
        %6436 = vmatprep.subr.mxu0 0.0
        %6437 = vmatpush1.msra.mxu0 0.0
        %6438 = vmatprep.subr.mxu0 0.0
        %6439 = vmatpush1.msra.mxu0 0.0
        %6440 = vmatprep.subr.mxu0 0.0
        %6441 = vmatpush1.msra.mxu0 0.0
        %6442 = vmatprep.subr.mxu0 0.0
        %6443 = vmatpush1.msra.mxu0 0.0
        %6444 = vmatprep.subr.mxu0 0.0
        %6445 = vmatpush1.msra.mxu0 0.0
        %6446 = vmatprep.subr.mxu0 0.0
        %6447 = vmatpush1.msra.mxu0 0.0
        %6448 = vmatprep.subr.mxu0 0.0
        %6449 = vmatpush1.msra.mxu0 0.0
        %6450 = vmatprep.subr.mxu0 0.0
        %6451 = vmatpush1.msra.mxu0 0.0
        %6452 = vmatprep.subr.mxu0 0.0
        %6453 = vmatpush1.msra.mxu0 0.0
        %6454 = vmatprep.subr.mxu0 0.0
        %6455 = vmatpush1.msra.mxu0 0.0
        %6456 = vmatprep.subr.mxu0 0.0
        %6457 = vmatpush1.msra.mxu0 0.0
        %6458 = vmatprep.subr.mxu0 0.0
        %6459 = vmatpush1.msra.mxu0 0.0
        %6460 = vmatprep.subr.mxu0 0.0
        %6461 = vmatpush1.msra.mxu0 0.0
        %6462 = vmatprep.subr.mxu0 0.0
        %6463 = vmatpush1.msra.mxu0 0.0
        %6464 = vmatprep.subr.mxu0 0.0
        %6465 = vmatpush1.msra.mxu0 0.0
        %6466 = vmatprep.subr.mxu0 0.0
        %6467 = vmatpush1.msra.mxu0 0.0
        %6468 = vmatprep.subr.mxu0 0.0
        %6469 = vmatpush1.msra.mxu0 0.0
        %6470 = vmatprep.subr.mxu0 0.0
        %6471 = vmatpush1.msra.mxu0 0.0
        %6472 = vmatprep.subr.mxu0 0.0
        %6473 = vmatpush1.msra.mxu0 0.0
        %6474 = vmatprep.subr.mxu0 0.0
        %6475 = vmatpush1.msra.mxu0 0.0
        %6476 = vmatprep.subr.mxu0 0.0
        %6477 = vmatpush1.msra.mxu0 0.0
        %6478 = vmatprep.subr.mxu0 0.0
        %6479 = vmatpush1.msra.mxu0 0.0
        %6480 = vmatprep.subr.mxu0 0.0
        %6481 = vmatpush1.msra.mxu0 0.0
        %6482 = vmatprep.subr.mxu0 0.0
        %6483 = vmatpush1.msra.mxu0 0.0
        %6484 = vmatprep.subr.mxu0 0.0
        %6485 = vmatpush1.msra.mxu0 0.0
        %6486 = vmatprep.subr.mxu0 0.0
        %6487 = vmatpush1.msra.mxu0 0.0
        %6488 = vmatprep.subr.mxu0 0.0
        %6489 = vmatpush1.msra.mxu0 0.0
        %6490 = vmatprep.subr.mxu0 0.0
        %6491 = vmatpush1.msra.mxu0 0.0
        %6492 = vmatprep.mubr.f32.mxu0 0.0
        %6493 = vmatmul.mubr.f32.gmra.mrb[0].mxu0 %v6426
        %v6494 = vpop.f32.mrb[0].mxu0
        %v6495 = vadd.f32 0.0, %v6494
        %v6496 = vpop.f32.mrb[0].mxu0
        %6497 = vdwg.mxu0
        %6499 = vrot.lane.b32.xlu0 %v6495, 64
        %v6500 = vpop.permute.xlu0 %6499
        %v6502 = vadd.f32 %v6335, %v6500
        %v6503 = vadd.f32 %v6502, %v899
        %v6504 = vtanh.pop %v6503
        %v6505 = vmul.f32 %v6418, %v6082
        %v6506 = vsub.f32 1.0, %v6418
        %6508 = vrot.lane.b32.xlu0 %v6504, 64
        %v6509 = vpop.permute.xlu0 %6508
        %v6511 = vmul.f32 %v6506, %v6509
        %v6512 = vadd.f32 %v6505, %v6511
        %v6513 = vsel %vm6263, %v6512, %v6082
        %s6514 = scalar_lea.vmem %s407, 104 [#allocation11]
        %6515 = vst.msk [vmem:[%s6514] sm:$0xff] %vm477, %v6513
        %s6516 = scalar_lea.vmem %s361, 112 [#allocation2]
        %v6517 = vld [vmem:[%s6516] sm:$0xff]
        %s6518 = sadd.s32 %s475, 14
        %p6519 = scmp.lt.s32.totalorder %s6518, 24
        %6520 = vmatprep.subr.mxu0 0.0
        %6521 = vmatpush1.msra.mxu0 %v421
        %6522 = vmatprep.subr.mxu0 0.0
        %6523 = vmatpush1.msra.mxu0 %v422
        %6524 = vmatprep.subr.mxu0 0.0
        %6525 = vmatpush1.msra.mxu0 %v423
        %6526 = vmatprep.subr.mxu0 0.0
        %6527 = vmatpush1.msra.mxu0 %v424
        %6528 = vmatprep.subr.mxu0 0.0
        %6529 = vmatpush1.msra.mxu0 0.0
        %6530 = vmatprep.subr.mxu0 0.0
        %6531 = vmatpush1.msra.mxu0 0.0
        %6532 = vmatprep.subr.mxu0 0.0
        %6533 = vmatpush1.msra.mxu0 0.0
        %6534 = vmatprep.subr.mxu0 0.0
        %6535 = vmatpush1.msra.mxu0 0.0
        %6536 = vmatprep.subr.mxu0 0.0
        %6537 = vmatpush1.msra.mxu0 0.0
        %6538 = vmatprep.subr.mxu0 0.0
        %6539 = vmatpush1.msra.mxu0 0.0
        %6540 = vmatprep.subr.mxu0 0.0
        %6541 = vmatpush1.msra.mxu0 0.0
        %6542 = vmatprep.subr.mxu0 0.0
        %6543 = vmatpush1.msra.mxu0 0.0
        %6544 = vmatprep.subr.mxu0 0.0
        %6545 = vmatpush1.msra.mxu0 0.0
        %6546 = vmatprep.subr.mxu0 0.0
        %6547 = vmatpush1.msra.mxu0 0.0
        %6548 = vmatprep.subr.mxu0 0.0
        %6549 = vmatpush1.msra.mxu0 0.0
        %6550 = vmatprep.subr.mxu0 0.0
        %6551 = vmatpush1.msra.mxu0 0.0
        %6552 = vmatprep.subr.mxu0 0.0
        %6553 = vmatpush1.msra.mxu0 0.0
        %6554 = vmatprep.subr.mxu0 0.0
        %6555 = vmatpush1.msra.mxu0 0.0
        %6556 = vmatprep.subr.mxu0 0.0
        %6557 = vmatpush1.msra.mxu0 0.0
        %6558 = vmatprep.subr.mxu0 0.0
        %6559 = vmatpush1.msra.mxu0 0.0
        %6560 = vmatprep.subr.mxu0 0.0
        %6561 = vmatpush1.msra.mxu0 0.0
        %6562 = vmatprep.subr.mxu0 0.0
        %6563 = vmatpush1.msra.mxu0 0.0
        %6564 = vmatprep.subr.mxu0 0.0
        %6565 = vmatpush1.msra.mxu0 0.0
        %6566 = vmatprep.subr.mxu0 0.0
        %6567 = vmatpush1.msra.mxu0 0.0
        %6568 = vmatprep.subr.mxu0 0.0
        %6569 = vmatpush1.msra.mxu0 0.0
        %6570 = vmatprep.subr.mxu0 0.0
        %6571 = vmatpush1.msra.mxu0 0.0
        %6572 = vmatprep.subr.mxu0 0.0
        %6573 = vmatpush1.msra.mxu0 0.0
        %6574 = vmatprep.subr.mxu0 0.0
        %6575 = vmatpush1.msra.mxu0 0.0
        %6576 = vmatprep.subr.mxu0 0.0
        %6577 = vmatpush1.msra.mxu0 0.0
        %6578 = vmatprep.subr.mxu0 0.0
        %6579 = vmatpush1.msra.mxu0 0.0
        %6580 = vmatprep.subr.mxu0 0.0
        %6581 = vmatpush1.msra.mxu0 0.0
        %6582 = vmatprep.subr.mxu0 0.0
        %6583 = vmatpush1.msra.mxu0 0.0
        %6584 = vmatprep.mubr.f32.mxu0 0.0
        %6585 = vmatmul.mubr.f32.gmra.mrb[0].mxu0 %v6266
        %v6586 = vpop.f32.mrb[0].mxu0
        %v6587 = vadd.f32 0.0, %v6586
        %v6588 = vpop.f32.mrb[0].mxu0
        %6589 = vdwg.mxu0
        %v6590 = vadd.f32 %v6517, %v6587
        %v6591 = vadd.f32 %v6590, %v448
        %v6592 = vxor.u32 %v6591, 2147483648
        %v6593 = vmul.f32 %v6592, 1.442695
        %v6594 = vpow.pop %v6593
        %v6595 = vadd.f32 %v6594, 1.0
        %v6596 = vrcp.pop %v6595
        %v6597 = vmul.f32 1.0, %v6596
        %6598 = vrot.lane.b32.xlu0 %v6264, 32
        %v6599 = vpop.permute.xlu0 %6598
        %v6601 = vmul.f32 %v6597, %v6599
        %6603 = vrot.lane.b32.xlu0 %v6601, 96
        %v6604 = vpop.permute.xlu0 %6603
        %v6605 = vsel %vm477, %v6604, 0
        %6607 = vmatprep.subr.mxu0 0.0
        %6608 = vmatpush1.msra.mxu0 %v430
        %6609 = vmatprep.subr.mxu0 0.0
        %6610 = vmatpush1.msra.mxu0 %v431
        %6611 = vmatprep.subr.mxu0 0.0
        %6612 = vmatpush1.msra.mxu0 %v432
        %6613 = vmatprep.subr.mxu0 0.0
        %6614 = vmatpush1.msra.mxu0 %v433
        %6615 = vmatprep.subr.mxu0 0.0
        %6616 = vmatpush1.msra.mxu0 0.0
        %6617 = vmatprep.subr.mxu0 0.0
        %6618 = vmatpush1.msra.mxu0 0.0
        %6619 = vmatprep.subr.mxu0 0.0
        %6620 = vmatpush1.msra.mxu0 0.0
        %6621 = vmatprep.subr.mxu0 0.0
        %6622 = vmatpush1.msra.mxu0 0.0
        %6623 = vmatprep.subr.mxu0 0.0
        %6624 = vmatpush1.msra.mxu0 0.0
        %6625 = vmatprep.subr.mxu0 0.0
        %6626 = vmatpush1.msra.mxu0 0.0
        %6627 = vmatprep.subr.mxu0 0.0
        %6628 = vmatpush1.msra.mxu0 0.0
        %6629 = vmatprep.subr.mxu0 0.0
        %6630 = vmatpush1.msra.mxu0 0.0
        %6631 = vmatprep.subr.mxu0 0.0
        %6632 = vmatpush1.msra.mxu0 0.0
        %6633 = vmatprep.subr.mxu0 0.0
        %6634 = vmatpush1.msra.mxu0 0.0
        %6635 = vmatprep.subr.mxu0 0.0
        %6636 = vmatpush1.msra.mxu0 0.0
        %6637 = vmatprep.subr.mxu0 0.0
        %6638 = vmatpush1.msra.mxu0 0.0
        %6639 = vmatprep.subr.mxu0 0.0
        %6640 = vmatpush1.msra.mxu0 0.0
        %6641 = vmatprep.subr.mxu0 0.0
        %6642 = vmatpush1.msra.mxu0 0.0
        %6643 = vmatprep.subr.mxu0 0.0
        %6644 = vmatpush1.msra.mxu0 0.0
        %6645 = vmatprep.subr.mxu0 0.0
        %6646 = vmatpush1.msra.mxu0 0.0
        %6647 = vmatprep.subr.mxu0 0.0
        %6648 = vmatpush1.msra.mxu0 0.0
        %6649 = vmatprep.subr.mxu0 0.0
        %6650 = vmatpush1.msra.mxu0 0.0
        %6651 = vmatprep.subr.mxu0 0.0
        %6652 = vmatpush1.msra.mxu0 0.0
        %6653 = vmatprep.subr.mxu0 0.0
        %6654 = vmatpush1.msra.mxu0 0.0
        %6655 = vmatprep.subr.mxu0 0.0
        %6656 = vmatpush1.msra.mxu0 0.0
        %6657 = vmatprep.subr.mxu0 0.0
        %6658 = vmatpush1.msra.mxu0 0.0
        %6659 = vmatprep.subr.mxu0 0.0
        %6660 = vmatpush1.msra.mxu0 0.0
        %6661 = vmatprep.subr.mxu0 0.0
        %6662 = vmatpush1.msra.mxu0 0.0
        %6663 = vmatprep.subr.mxu0 0.0
        %6664 = vmatpush1.msra.mxu0 0.0
        %6665 = vmatprep.subr.mxu0 0.0
        %6666 = vmatpush1.msra.mxu0 0.0
        %6667 = vmatprep.subr.mxu0 0.0
        %6668 = vmatpush1.msra.mxu0 0.0
        %6669 = vmatprep.subr.mxu0 0.0
        %6670 = vmatpush1.msra.mxu0 0.0
        %6671 = vmatprep.mubr.f32.mxu0 0.0
        %6672 = vmatmul.mubr.f32.gmra.mrb[0].mxu0 %v6605
        %v6673 = vpop.f32.mrb[0].mxu0
        %v6674 = vadd.f32 0.0, %v6673
        %v6675 = vpop.f32.mrb[0].mxu0
        %6676 = vdwg.mxu0
        %6678 = vrot.lane.b32.xlu0 %v6674, 64
        %v6679 = vpop.permute.xlu0 %6678
        %v6681 = vadd.f32 %v6517, %v6679
        %v6682 = vadd.f32 %v6681, %v644
        %v6683 = vtanh.pop %v6682
        %v6684 = vmul.f32 %v6597, %v6264
        %v6685 = vsub.f32 1.0, %v6597
        %6687 = vrot.lane.b32.xlu0 %v6683, 64
        %v6688 = vpop.permute.xlu0 %6687
        %v6690 = vmul.f32 %v6685, %v6688
        %v6691 = vadd.f32 %v6684, %v6690
        %s6692 = scalar_select %p6519, 1, 0
        %v6693 = vstv %s6692
        %vm6694 = vcmp.eq.s32.totalorder %v6693, 1
        %v6695 = vsel %vm6694, %v6691, %v6264
        %v6697 = vsel %vm477, %v6695, 0
        %6699 = vmatprep.subr.mxu0 0.0
        %6700 = vmatpush1.msra.mxu0 %v439
        %6701 = vmatprep.subr.mxu0 0.0
        %6702 = vmatpush1.msra.mxu0 %v440
        %6703 = vmatprep.subr.mxu0 0.0
        %6704 = vmatpush1.msra.mxu0 %v441
        %6705 = vmatprep.subr.mxu0 0.0
        %6706 = vmatpush1.msra.mxu0 %v442
        %6707 = vmatprep.subr.mxu0 0.0
        %6708 = vmatpush1.msra.mxu0 0.0
        %6709 = vmatprep.subr.mxu0 0.0
        %6710 = vmatpush1.msra.mxu0 0.0
        %6711 = vmatprep.subr.mxu0 0.0
        %6712 = vmatpush1.msra.mxu0 0.0
        %6713 = vmatprep.subr.mxu0 0.0
        %6714 = vmatpush1.msra.mxu0 0.0
        %6715 = vmatprep.subr.mxu0 0.0
        %6716 = vmatpush1.msra.mxu0 0.0
        %6717 = vmatprep.subr.mxu0 0.0
        %6718 = vmatpush1.msra.mxu0 0.0
        %6719 = vmatprep.subr.mxu0 0.0
        %6720 = vmatpush1.msra.mxu0 0.0
        %6721 = vmatprep.subr.mxu0 0.0
        %6722 = vmatpush1.msra.mxu0 0.0
        %6723 = vmatprep.subr.mxu0 0.0
        %6724 = vmatpush1.msra.mxu0 0.0
        %6725 = vmatprep.subr.mxu0 0.0
        %6726 = vmatpush1.msra.mxu0 0.0
        %6727 = vmatprep.subr.mxu0 0.0
        %6728 = vmatpush1.msra.mxu0 0.0
        %6729 = vmatprep.subr.mxu0 0.0
        %6730 = vmatpush1.msra.mxu0 0.0
        %6731 = vmatprep.subr.mxu0 0.0
        %6732 = vmatpush1.msra.mxu0 0.0
        %6733 = vmatprep.subr.mxu0 0.0
        %6734 = vmatpush1.msra.mxu0 0.0
        %6735 = vmatprep.subr.mxu0 0.0
        %6736 = vmatpush1.msra.mxu0 0.0
        %6737 = vmatprep.subr.mxu0 0.0
        %6738 = vmatpush1.msra.mxu0 0.0
        %6739 = vmatprep.subr.mxu0 0.0
        %6740 = vmatpush1.msra.mxu0 0.0
        %6741 = vmatprep.subr.mxu0 0.0
        %6742 = vmatpush1.msra.mxu0 0.0
        %6743 = vmatprep.subr.mxu0 0.0
        %6744 = vmatpush1.msra.mxu0 0.0
        %6745 = vmatprep.subr.mxu0 0.0
        %6746 = vmatpush1.msra.mxu0 0.0
        %6747 = vmatprep.subr.mxu0 0.0
        %6748 = vmatpush1.msra.mxu0 0.0
        %6749 = vmatprep.subr.mxu0 0.0
        %6750 = vmatpush1.msra.mxu0 0.0
        %6751 = vmatprep.subr.mxu0 0.0
        %6752 = vmatpush1.msra.mxu0 0.0
        %6753 = vmatprep.subr.mxu0 0.0
        %6754 = vmatpush1.msra.mxu0 0.0
        %6755 = vmatprep.subr.mxu0 0.0
        %6756 = vmatpush1.msra.mxu0 0.0
        %6757 = vmatprep.subr.mxu0 0.0
        %6758 = vmatpush1.msra.mxu0 0.0
        %6759 = vmatprep.subr.mxu0 0.0
        %6760 = vmatpush1.msra.mxu0 0.0
        %6761 = vmatprep.subr.mxu0 0.0
        %6762 = vmatpush1.msra.mxu0 0.0
        %6763 = vmatprep.mubr.f32.mxu0 0.0
        %6764 = vmatmul.mubr.f32.gmra.mrb[0].mxu0 %v6697
        %v6765 = vpop.f32.mrb[0].mxu0
        %v6766 = vadd.f32 0.0, %v6765
        %v6767 = vpop.f32.mrb[0].mxu0
        %6768 = vdwg.mxu0
        %v6770 = vsel %vm477, %v6513, 0
        %6772 = vmatprep.subr.mxu0 0.0
        %6773 = vmatpush1.msra.mxu0 %v426
        %6774 = vmatprep.subr.mxu0 0.0
        %6775 = vmatpush1.msra.mxu0 %v427
        %6776 = vmatprep.subr.mxu0 0.0
        %6777 = vmatpush1.msra.mxu0 %v428
        %6778 = vmatprep.subr.mxu0 0.0
        %6779 = vmatpush1.msra.mxu0 %v429
        %6780 = vmatprep.subr.mxu0 0.0
        %6781 = vmatpush1.msra.mxu0 0.0
        %6782 = vmatprep.subr.mxu0 0.0
        %6783 = vmatpush1.msra.mxu0 0.0
        %6784 = vmatprep.subr.mxu0 0.0
        %6785 = vmatpush1.msra.mxu0 0.0
        %6786 = vmatprep.subr.mxu0 0.0
        %6787 = vmatpush1.msra.mxu0 0.0
        %6788 = vmatprep.subr.mxu0 0.0
        %6789 = vmatpush1.msra.mxu0 0.0
        %6790 = vmatprep.subr.mxu0 0.0
        %6791 = vmatpush1.msra.mxu0 0.0
        %6792 = vmatprep.subr.mxu0 0.0
        %6793 = vmatpush1.msra.mxu0 0.0
        %6794 = vmatprep.subr.mxu0 0.0
        %6795 = vmatpush1.msra.mxu0 0.0
        %6796 = vmatprep.subr.mxu0 0.0
        %6797 = vmatpush1.msra.mxu0 0.0
        %6798 = vmatprep.subr.mxu0 0.0
        %6799 = vmatpush1.msra.mxu0 0.0
        %6800 = vmatprep.subr.mxu0 0.0
        %6801 = vmatpush1.msra.mxu0 0.0
        %6802 = vmatprep.subr.mxu0 0.0
        %6803 = vmatpush1.msra.mxu0 0.0
        %6804 = vmatprep.subr.mxu0 0.0
        %6805 = vmatpush1.msra.mxu0 0.0
        %6806 = vmatprep.subr.mxu0 0.0
        %6807 = vmatpush1.msra.mxu0 0.0
        %6808 = vmatprep.subr.mxu0 0.0
        %6809 = vmatpush1.msra.mxu0 0.0
        %6810 = vmatprep.subr.mxu0 0.0
        %6811 = vmatpush1.msra.mxu0 0.0
        %6812 = vmatprep.subr.mxu0 0.0
        %6813 = vmatpush1.msra.mxu0 0.0
        %6814 = vmatprep.subr.mxu0 0.0
        %6815 = vmatpush1.msra.mxu0 0.0
        %6816 = vmatprep.subr.mxu0 0.0
        %6817 = vmatpush1.msra.mxu0 0.0
        %6818 = vmatprep.subr.mxu0 0.0
        %6819 = vmatpush1.msra.mxu0 0.0
        %6820 = vmatprep.subr.mxu0 0.0
        %6821 = vmatpush1.msra.mxu0 0.0
        %6822 = vmatprep.subr.mxu0 0.0
        %6823 = vmatpush1.msra.mxu0 0.0
        %6824 = vmatprep.subr.mxu0 0.0
        %6825 = vmatpush1.msra.mxu0 0.0
        %6826 = vmatprep.subr.mxu0 0.0
        %6827 = vmatpush1.msra.mxu0 0.0
        %6828 = vmatprep.subr.mxu0 0.0
        %6829 = vmatpush1.msra.mxu0 0.0
        %6830 = vmatprep.subr.mxu0 0.0
        %6831 = vmatpush1.msra.mxu0 0.0
        %6832 = vmatprep.subr.mxu0 0.0
        %6833 = vmatpush1.msra.mxu0 0.0
        %6834 = vmatprep.subr.mxu0 0.0
        %6835 = vmatpush1.msra.mxu0 0.0
        %6836 = vmatprep.mubr.f32.mxu0 0.0
        %6837 = vmatmul.mubr.f32.gmra.mrb[0].mxu0 %v6770
        %v6838 = vpop.f32.mrb[0].mxu0
        %v6839 = vadd.f32 0.0, %v6838
        %v6840 = vpop.f32.mrb[0].mxu0
        %6841 = vdwg.mxu0
        %v6842 = vadd.f32 %v6766, %v6839
        %v6843 = vadd.f32 %v6842, %v456
        %v6844 = vxor.u32 %v6843, 2147483648
        %v6845 = vmul.f32 %v6844, 1.442695
        %v6846 = vpow.pop %v6845
        %v6847 = vadd.f32 %v6846, 1.0
        %v6848 = vrcp.pop %v6847
        %v6849 = vmul.f32 1.0, %v6848
        %6850 = vrot.lane.b32.xlu0 %v6513, 32
        %v6851 = vpop.permute.xlu0 %6850
        %v6853 = vmul.f32 %v6849, %v6851
        %6855 = vrot.lane.b32.xlu0 %v6853, 96
        %v6856 = vpop.permute.xlu0 %6855
        %v6857 = vsel %vm477, %v6856, 0
        %6859 = vmatprep.subr.mxu0 0.0
        %6860 = vmatpush1.msra.mxu0 %v435
        %6861 = vmatprep.subr.mxu0 0.0
        %6862 = vmatpush1.msra.mxu0 %v436
        %6863 = vmatprep.subr.mxu0 0.0
        %6864 = vmatpush1.msra.mxu0 %v437
        %6865 = vmatprep.subr.mxu0 0.0
        %6866 = vmatpush1.msra.mxu0 %v438
        %6867 = vmatprep.subr.mxu0 0.0
        %6868 = vmatpush1.msra.mxu0 0.0
        %6869 = vmatprep.subr.mxu0 0.0
        %6870 = vmatpush1.msra.mxu0 0.0
        %6871 = vmatprep.subr.mxu0 0.0
        %6872 = vmatpush1.msra.mxu0 0.0
        %6873 = vmatprep.subr.mxu0 0.0
        %6874 = vmatpush1.msra.mxu0 0.0
        %6875 = vmatprep.subr.mxu0 0.0
        %6876 = vmatpush1.msra.mxu0 0.0
        %6877 = vmatprep.subr.mxu0 0.0
        %6878 = vmatpush1.msra.mxu0 0.0
        %6879 = vmatprep.subr.mxu0 0.0
        %6880 = vmatpush1.msra.mxu0 0.0
        %6881 = vmatprep.subr.mxu0 0.0
        %6882 = vmatpush1.msra.mxu0 0.0
        %6883 = vmatprep.subr.mxu0 0.0
        %6884 = vmatpush1.msra.mxu0 0.0
        %6885 = vmatprep.subr.mxu0 0.0
        %6886 = vmatpush1.msra.mxu0 0.0
        %6887 = vmatprep.subr.mxu0 0.0
        %6888 = vmatpush1.msra.mxu0 0.0
        %6889 = vmatprep.subr.mxu0 0.0
        %6890 = vmatpush1.msra.mxu0 0.0
        %6891 = vmatprep.subr.mxu0 0.0
        %6892 = vmatpush1.msra.mxu0 0.0
        %6893 = vmatprep.subr.mxu0 0.0
        %6894 = vmatpush1.msra.mxu0 0.0
        %6895 = vmatprep.subr.mxu0 0.0
        %6896 = vmatpush1.msra.mxu0 0.0
        %6897 = vmatprep.subr.mxu0 0.0
        %6898 = vmatpush1.msra.mxu0 0.0
        %6899 = vmatprep.subr.mxu0 0.0
        %6900 = vmatpush1.msra.mxu0 0.0
        %6901 = vmatprep.subr.mxu0 0.0
        %6902 = vmatpush1.msra.mxu0 0.0
        %6903 = vmatprep.subr.mxu0 0.0
        %6904 = vmatpush1.msra.mxu0 0.0
        %6905 = vmatprep.subr.mxu0 0.0
        %6906 = vmatpush1.msra.mxu0 0.0
        %6907 = vmatprep.subr.mxu0 0.0
        %6908 = vmatpush1.msra.mxu0 0.0
        %6909 = vmatprep.subr.mxu0 0.0
        %6910 = vmatpush1.msra.mxu0 0.0
        %6911 = vmatprep.subr.mxu0 0.0
        %6912 = vmatpush1.msra.mxu0 0.0
        %6913 = vmatprep.subr.mxu0 0.0
        %6914 = vmatpush1.msra.mxu0 0.0
        %6915 = vmatprep.subr.mxu0 0.0
        %6916 = vmatpush1.msra.mxu0 0.0
        %6917 = vmatprep.subr.mxu0 0.0
        %6918 = vmatpush1.msra.mxu0 0.0
        %6919 = vmatprep.subr.mxu0 0.0
        %6920 = vmatpush1.msra.mxu0 0.0
        %6921 = vmatprep.subr.mxu0 0.0
        %6922 = vmatpush1.msra.mxu0 0.0
        %6923 = vmatprep.mubr.f32.mxu0 0.0
        %6924 = vmatmul.mubr.f32.gmra.mrb[0].mxu0 %v6857
        %v6925 = vpop.f32.mrb[0].mxu0
        %v6926 = vadd.f32 0.0, %v6925
        %v6927 = vpop.f32.mrb[0].mxu0
        %6928 = vdwg.mxu0
        %6930 = vrot.lane.b32.xlu0 %v6926, 64
        %v6931 = vpop.permute.xlu0 %6930
        %v6933 = vadd.f32 %v6766, %v6931
        %v6934 = vadd.f32 %v6933, %v899
        %v6935 = vtanh.pop %v6934
        %v6936 = vmul.f32 %v6849, %v6513
        %v6937 = vsub.f32 1.0, %v6849
        %6939 = vrot.lane.b32.xlu0 %v6935, 64
        %v6940 = vpop.permute.xlu0 %6939
        %v6942 = vmul.f32 %v6937, %v6940
        %v6943 = vadd.f32 %v6936, %v6942
        %v6944 = vsel %vm6694, %v6943, %v6513
        %s6945 = scalar_lea.vmem %s407, 112 [#allocation11]
        %6946 = vst.msk [vmem:[%s6945] sm:$0xff] %vm477, %v6944
        %s6947 = scalar_lea.vmem %s361, 120 [#allocation2]
        %v6948 = vld [vmem:[%s6947] sm:$0xff]
        %s6949 = sadd.s32 %s475, 15
        %p6950 = scmp.lt.s32.totalorder %s6949, 24
        %6951 = vmatprep.subr.mxu0 0.0
        %6952 = vmatpush1.msra.mxu0 %v421
        %6953 = vmatprep.subr.mxu0 0.0
        %6954 = vmatpush1.msra.mxu0 %v422
        %6955 = vmatprep.subr.mxu0 0.0
        %6956 = vmatpush1.msra.mxu0 %v423
        %6957 = vmatprep.subr.mxu0 0.0
        %6958 = vmatpush1.msra.mxu0 %v424
        %6959 = vmatprep.subr.mxu0 0.0
        %6960 = vmatpush1.msra.mxu0 0.0
        %6961 = vmatprep.subr.mxu0 0.0
        %6962 = vmatpush1.msra.mxu0 0.0
        %6963 = vmatprep.subr.mxu0 0.0
        %6964 = vmatpush1.msra.mxu0 0.0
        %6965 = vmatprep.subr.mxu0 0.0
        %6966 = vmatpush1.msra.mxu0 0.0
        %6967 = vmatprep.subr.mxu0 0.0
        %6968 = vmatpush1.msra.mxu0 0.0
        %6969 = vmatprep.subr.mxu0 0.0
        %6970 = vmatpush1.msra.mxu0 0.0
        %6971 = vmatprep.subr.mxu0 0.0
        %6972 = vmatpush1.msra.mxu0 0.0
        %6973 = vmatprep.subr.mxu0 0.0
        %6974 = vmatpush1.msra.mxu0 0.0
        %6975 = vmatprep.subr.mxu0 0.0
        %6976 = vmatpush1.msra.mxu0 0.0
        %6977 = vmatprep.subr.mxu0 0.0
        %6978 = vmatpush1.msra.mxu0 0.0
        %6979 = vmatprep.subr.mxu0 0.0
        %6980 = vmatpush1.msra.mxu0 0.0
        %6981 = vmatprep.subr.mxu0 0.0
        %6982 = vmatpush1.msra.mxu0 0.0
        %6983 = vmatprep.subr.mxu0 0.0
        %6984 = vmatpush1.msra.mxu0 0.0
        %6985 = vmatprep.subr.mxu0 0.0
        %6986 = vmatpush1.msra.mxu0 0.0
        %6987 = vmatprep.subr.mxu0 0.0
        %6988 = vmatpush1.msra.mxu0 0.0
        %6989 = vmatprep.subr.mxu0 0.0
        %6990 = vmatpush1.msra.mxu0 0.0
        %6991 = vmatprep.subr.mxu0 0.0
        %6992 = vmatpush1.msra.mxu0 0.0
        %6993 = vmatprep.subr.mxu0 0.0
        %6994 = vmatpush1.msra.mxu0 0.0
        %6995 = vmatprep.subr.mxu0 0.0
        %6996 = vmatpush1.msra.mxu0 0.0
        %6997 = vmatprep.subr.mxu0 0.0
        %6998 = vmatpush1.msra.mxu0 0.0
        %6999 = vmatprep.subr.mxu0 0.0
        %7000 = vmatpush1.msra.mxu0 0.0
        %7001 = vmatprep.subr.mxu0 0.0
        %7002 = vmatpush1.msra.mxu0 0.0
        %7003 = vmatprep.subr.mxu0 0.0
        %7004 = vmatpush1.msra.mxu0 0.0
        %7005 = vmatprep.subr.mxu0 0.0
        %7006 = vmatpush1.msra.mxu0 0.0
        %7007 = vmatprep.subr.mxu0 0.0
        %7008 = vmatpush1.msra.mxu0 0.0
        %7009 = vmatprep.subr.mxu0 0.0
        %7010 = vmatpush1.msra.mxu0 0.0
        %7011 = vmatprep.subr.mxu0 0.0
        %7012 = vmatpush1.msra.mxu0 0.0
        %7013 = vmatprep.subr.mxu0 0.0
        %7014 = vmatpush1.msra.mxu0 0.0
        %7015 = vmatprep.mubr.f32.mxu0 0.0
        %7016 = vmatmul.mubr.f32.gmra.mrb[0].mxu0 %v6697
        %v7017 = vpop.f32.mrb[0].mxu0
        %v7018 = vadd.f32 0.0, %v7017
        %v7019 = vpop.f32.mrb[0].mxu0
        %7020 = vdwg.mxu0
        %v7021 = vadd.f32 %v6948, %v7018
        %v7022 = vadd.f32 %v7021, %v448
        %v7023 = vxor.u32 %v7022, 2147483648
        %v7024 = vmul.f32 %v7023, 1.442695
        %v7025 = vpow.pop %v7024
        %v7026 = vadd.f32 %v7025, 1.0
        %v7027 = vrcp.pop %v7026
        %v7028 = vmul.f32 1.0, %v7027
        %7029 = vrot.lane.b32.xlu0 %v6695, 32
        %v7030 = vpop.permute.xlu0 %7029
        %v7032 = vmul.f32 %v7028, %v7030
        %7034 = vrot.lane.b32.xlu0 %v7032, 96
        %v7035 = vpop.permute.xlu0 %7034
        %v7036 = vsel %vm477, %v7035, 0
        %7038 = vmatprep.subr.mxu0 0.0
        %7039 = vmatpush1.msra.mxu0 %v430
        %7040 = vmatprep.subr.mxu0 0.0
        %7041 = vmatpush1.msra.mxu0 %v431
        %7042 = vmatprep.subr.mxu0 0.0
        %7043 = vmatpush1.msra.mxu0 %v432
        %7044 = vmatprep.subr.mxu0 0.0
        %7045 = vmatpush1.msra.mxu0 %v433
        %7046 = vmatprep.subr.mxu0 0.0
        %7047 = vmatpush1.msra.mxu0 0.0
        %7048 = vmatprep.subr.mxu0 0.0
        %7049 = vmatpush1.msra.mxu0 0.0
        %7050 = vmatprep.subr.mxu0 0.0
        %7051 = vmatpush1.msra.mxu0 0.0
        %7052 = vmatprep.subr.mxu0 0.0
        %7053 = vmatpush1.msra.mxu0 0.0
        %7054 = vmatprep.subr.mxu0 0.0
        %7055 = vmatpush1.msra.mxu0 0.0
        %7056 = vmatprep.subr.mxu0 0.0
        %7057 = vmatpush1.msra.mxu0 0.0
        %7058 = vmatprep.subr.mxu0 0.0
        %7059 = vmatpush1.msra.mxu0 0.0
        %7060 = vmatprep.subr.mxu0 0.0
        %7061 = vmatpush1.msra.mxu0 0.0
        %7062 = vmatprep.subr.mxu0 0.0
        %7063 = vmatpush1.msra.mxu0 0.0
        %7064 = vmatprep.subr.mxu0 0.0
        %7065 = vmatpush1.msra.mxu0 0.0
        %7066 = vmatprep.subr.mxu0 0.0
        %7067 = vmatpush1.msra.mxu0 0.0
        %7068 = vmatprep.subr.mxu0 0.0
        %7069 = vmatpush1.msra.mxu0 0.0
        %7070 = vmatprep.subr.mxu0 0.0
        %7071 = vmatpush1.msra.mxu0 0.0
        %7072 = vmatprep.subr.mxu0 0.0
        %7073 = vmatpush1.msra.mxu0 0.0
        %7074 = vmatprep.subr.mxu0 0.0
        %7075 = vmatpush1.msra.mxu0 0.0
        %7076 = vmatprep.subr.mxu0 0.0
        %7077 = vmatpush1.msra.mxu0 0.0
        %7078 = vmatprep.subr.mxu0 0.0
        %7079 = vmatpush1.msra.mxu0 0.0
        %7080 = vmatprep.subr.mxu0 0.0
        %7081 = vmatpush1.msra.mxu0 0.0
        %7082 = vmatprep.subr.mxu0 0.0
        %7083 = vmatpush1.msra.mxu0 0.0
        %7084 = vmatprep.subr.mxu0 0.0
        %7085 = vmatpush1.msra.mxu0 0.0
        %7086 = vmatprep.subr.mxu0 0.0
        %7087 = vmatpush1.msra.mxu0 0.0
        %7088 = vmatprep.subr.mxu0 0.0
        %7089 = vmatpush1.msra.mxu0 0.0
        %7090 = vmatprep.subr.mxu0 0.0
        %7091 = vmatpush1.msra.mxu0 0.0
        %7092 = vmatprep.subr.mxu0 0.0
        %7093 = vmatpush1.msra.mxu0 0.0
        %7094 = vmatprep.subr.mxu0 0.0
        %7095 = vmatpush1.msra.mxu0 0.0
        %7096 = vmatprep.subr.mxu0 0.0
        %7097 = vmatpush1.msra.mxu0 0.0
        %7098 = vmatprep.subr.mxu0 0.0
        %7099 = vmatpush1.msra.mxu0 0.0
        %7100 = vmatprep.subr.mxu0 0.0
        %7101 = vmatpush1.msra.mxu0 0.0
        %7102 = vmatprep.mubr.f32.mxu0 0.0
        %7103 = vmatmul.mubr.f32.gmra.mrb[0].mxu0 %v7036
        %v7104 = vpop.f32.mrb[0].mxu0
        %v7105 = vadd.f32 0.0, %v7104
        %v7106 = vpop.f32.mrb[0].mxu0
        %7107 = vdwg.mxu0
        %7109 = vrot.lane.b32.xlu0 %v7105, 64
        %v7110 = vpop.permute.xlu0 %7109
        %v7112 = vadd.f32 %v6948, %v7110
        %v7113 = vadd.f32 %v7112, %v644
        %v7114 = vtanh.pop %v7113
        %v7115 = vmul.f32 %v7028, %v6695
        %v7116 = vsub.f32 1.0, %v7028
        %7118 = vrot.lane.b32.xlu0 %v7114, 64
        %v7119 = vpop.permute.xlu0 %7118
        %v7121 = vmul.f32 %v7116, %v7119
        %v7122 = vadd.f32 %v7115, %v7121
        %s7123 = scalar_select %p6950, 1, 0
        %v7124 = vstv %s7123
        %vm7125 = vcmp.eq.s32.totalorder %v7124, 1
        %v7126 = vsel %vm7125, %v7122, %v6695
        %v7128 = vsel %vm477, %v7126, 0
        %7130 = vmatprep.subr.mxu0 0.0
        %7131 = vmatpush1.msra.mxu0 %v439
        %7132 = vmatprep.subr.mxu0 0.0
        %7133 = vmatpush1.msra.mxu0 %v440
        %7134 = vmatprep.subr.mxu0 0.0
        %7135 = vmatpush1.msra.mxu0 %v441
        %7136 = vmatprep.subr.mxu0 0.0
        %7137 = vmatpush1.msra.mxu0 %v442
        %7138 = vmatprep.subr.mxu0 0.0
        %7139 = vmatpush1.msra.mxu0 0.0
        %7140 = vmatprep.subr.mxu0 0.0
        %7141 = vmatpush1.msra.mxu0 0.0
        %7142 = vmatprep.subr.mxu0 0.0
        %7143 = vmatpush1.msra.mxu0 0.0
        %7144 = vmatprep.subr.mxu0 0.0
        %7145 = vmatpush1.msra.mxu0 0.0
        %7146 = vmatprep.subr.mxu0 0.0
        %7147 = vmatpush1.msra.mxu0 0.0
        %7148 = vmatprep.subr.mxu0 0.0
        %7149 = vmatpush1.msra.mxu0 0.0
        %7150 = vmatprep.subr.mxu0 0.0
        %7151 = vmatpush1.msra.mxu0 0.0
        %7152 = vmatprep.subr.mxu0 0.0
        %7153 = vmatpush1.msra.mxu0 0.0
        %7154 = vmatprep.subr.mxu0 0.0
        %7155 = vmatpush1.msra.mxu0 0.0
        %7156 = vmatprep.subr.mxu0 0.0
        %7157 = vmatpush1.msra.mxu0 0.0
        %7158 = vmatprep.subr.mxu0 0.0
        %7159 = vmatpush1.msra.mxu0 0.0
        %7160 = vmatprep.subr.mxu0 0.0
        %7161 = vmatpush1.msra.mxu0 0.0
        %7162 = vmatprep.subr.mxu0 0.0
        %7163 = vmatpush1.msra.mxu0 0.0
        %7164 = vmatprep.subr.mxu0 0.0
        %7165 = vmatpush1.msra.mxu0 0.0
        %7166 = vmatprep.subr.mxu0 0.0
        %7167 = vmatpush1.msra.mxu0 0.0
        %7168 = vmatprep.subr.mxu0 0.0
        %7169 = vmatpush1.msra.mxu0 0.0
        %7170 = vmatprep.subr.mxu0 0.0
        %7171 = vmatpush1.msra.mxu0 0.0
        %7172 = vmatprep.subr.mxu0 0.0
        %7173 = vmatpush1.msra.mxu0 0.0
        %7174 = vmatprep.subr.mxu0 0.0
        %7175 = vmatpush1.msra.mxu0 0.0
        %7176 = vmatprep.subr.mxu0 0.0
        %7177 = vmatpush1.msra.mxu0 0.0
        %7178 = vmatprep.subr.mxu0 0.0
        %7179 = vmatpush1.msra.mxu0 0.0
        %7180 = vmatprep.subr.mxu0 0.0
        %7181 = vmatpush1.msra.mxu0 0.0
        %7182 = vmatprep.subr.mxu0 0.0
        %7183 = vmatpush1.msra.mxu0 0.0
        %7184 = vmatprep.subr.mxu0 0.0
        %7185 = vmatpush1.msra.mxu0 0.0
        %7186 = vmatprep.subr.mxu0 0.0
        %7187 = vmatpush1.msra.mxu0 0.0
        %7188 = vmatprep.subr.mxu0 0.0
        %7189 = vmatpush1.msra.mxu0 0.0
        %7190 = vmatprep.subr.mxu0 0.0
        %7191 = vmatpush1.msra.mxu0 0.0
        %7192 = vmatprep.subr.mxu0 0.0
        %7193 = vmatpush1.msra.mxu0 0.0
        %7194 = vmatprep.mubr.f32.mxu0 0.0
        %7195 = vmatmul.mubr.f32.gmra.mrb[0].mxu0 %v7128
        %v7196 = vpop.f32.mrb[0].mxu0
        %v7197 = vadd.f32 0.0, %v7196
        %v7198 = vpop.f32.mrb[0].mxu0
        %7199 = vdwg.mxu0
        %v7201 = vsel %vm477, %v6944, 0
        %7203 = vmatprep.subr.mxu0 0.0
        %7204 = vmatpush1.msra.mxu0 %v426
        %7205 = vmatprep.subr.mxu0 0.0
        %7206 = vmatpush1.msra.mxu0 %v427
        %7207 = vmatprep.subr.mxu0 0.0
        %7208 = vmatpush1.msra.mxu0 %v428
        %7209 = vmatprep.subr.mxu0 0.0
        %7210 = vmatpush1.msra.mxu0 %v429
        %7211 = vmatprep.subr.mxu0 0.0
        %7212 = vmatpush1.msra.mxu0 0.0
        %7213 = vmatprep.subr.mxu0 0.0
        %7214 = vmatpush1.msra.mxu0 0.0
        %7215 = vmatprep.subr.mxu0 0.0
        %7216 = vmatpush1.msra.mxu0 0.0
        %7217 = vmatprep.subr.mxu0 0.0
        %7218 = vmatpush1.msra.mxu0 0.0
        %7219 = vmatprep.subr.mxu0 0.0
        %7220 = vmatpush1.msra.mxu0 0.0
        %7221 = vmatprep.subr.mxu0 0.0
        %7222 = vmatpush1.msra.mxu0 0.0
        %7223 = vmatprep.subr.mxu0 0.0
        %7224 = vmatpush1.msra.mxu0 0.0
        %7225 = vmatprep.subr.mxu0 0.0
        %7226 = vmatpush1.msra.mxu0 0.0
        %7227 = vmatprep.subr.mxu0 0.0
        %7228 = vmatpush1.msra.mxu0 0.0
        %7229 = vmatprep.subr.mxu0 0.0
        %7230 = vmatpush1.msra.mxu0 0.0
        %7231 = vmatprep.subr.mxu0 0.0
        %7232 = vmatpush1.msra.mxu0 0.0
        %7233 = vmatprep.subr.mxu0 0.0
        %7234 = vmatpush1.msra.mxu0 0.0
        %7235 = vmatprep.subr.mxu0 0.0
        %7236 = vmatpush1.msra.mxu0 0.0
        %7237 = vmatprep.subr.mxu0 0.0
        %7238 = vmatpush1.msra.mxu0 0.0
        %7239 = vmatprep.subr.mxu0 0.0
        %7240 = vmatpush1.msra.mxu0 0.0
        %7241 = vmatprep.subr.mxu0 0.0
        %7242 = vmatpush1.msra.mxu0 0.0
        %7243 = vmatprep.subr.mxu0 0.0
        %7244 = vmatpush1.msra.mxu0 0.0
        %7245 = vmatprep.subr.mxu0 0.0
        %7246 = vmatpush1.msra.mxu0 0.0
        %7247 = vmatprep.subr.mxu0 0.0
        %7248 = vmatpush1.msra.mxu0 0.0
        %7249 = vmatprep.subr.mxu0 0.0
        %7250 = vmatpush1.msra.mxu0 0.0
        %7251 = vmatprep.subr.mxu0 0.0
        %7252 = vmatpush1.msra.mxu0 0.0
        %7253 = vmatprep.subr.mxu0 0.0
        %7254 = vmatpush1.msra.mxu0 0.0
        %7255 = vmatprep.subr.mxu0 0.0
        %7256 = vmatpush1.msra.mxu0 0.0
        %7257 = vmatprep.subr.mxu0 0.0
        %7258 = vmatpush1.msra.mxu0 0.0
        %7259 = vmatprep.subr.mxu0 0.0
        %7260 = vmatpush1.msra.mxu0 0.0
        %7261 = vmatprep.subr.mxu0 0.0
        %7262 = vmatpush1.msra.mxu0 0.0
        %7263 = vmatprep.subr.mxu0 0.0
        %7264 = vmatpush1.msra.mxu0 0.0
        %7265 = vmatprep.subr.mxu0 0.0
        %7266 = vmatpush1.msra.mxu0 0.0
        %7267 = vmatprep.mubr.f32.mxu0 0.0
        %7268 = vmatmul.mubr.f32.gmra.mrb[0].mxu0 %v7201
        %v7269 = vpop.f32.mrb[0].mxu0
        %v7270 = vadd.f32 0.0, %v7269
        %v7271 = vpop.f32.mrb[0].mxu0
        %7272 = vdwg.mxu0
        %v7273 = vadd.f32 %v7197, %v7270
        %v7274 = vadd.f32 %v7273, %v456
        %v7275 = vxor.u32 %v7274, 2147483648
        %v7276 = vmul.f32 %v7275, 1.442695
        %v7277 = vpow.pop %v7276
        %v7278 = vadd.f32 %v7277, 1.0
        %v7279 = vrcp.pop %v7278
        %v7280 = vmul.f32 1.0, %v7279
        %7281 = vrot.lane.b32.xlu0 %v6944, 32
        %v7282 = vpop.permute.xlu0 %7281
        %v7284 = vmul.f32 %v7280, %v7282
        %7286 = vrot.lane.b32.xlu0 %v7284, 96
        %v7287 = vpop.permute.xlu0 %7286
        %v7288 = vsel %vm477, %v7287, 0
        %7290 = vmatprep.subr.mxu0 0.0
        %7291 = vmatpush1.msra.mxu0 %v435
        %7292 = vmatprep.subr.mxu0 0.0
        %7293 = vmatpush1.msra.mxu0 %v436
        %7294 = vmatprep.subr.mxu0 0.0
        %7295 = vmatpush1.msra.mxu0 %v437
        %7296 = vmatprep.subr.mxu0 0.0
        %7297 = vmatpush1.msra.mxu0 %v438
        %7298 = vmatprep.subr.mxu0 0.0
        %7299 = vmatpush1.msra.mxu0 0.0
        %7300 = vmatprep.subr.mxu0 0.0
        %7301 = vmatpush1.msra.mxu0 0.0
        %7302 = vmatprep.subr.mxu0 0.0
        %7303 = vmatpush1.msra.mxu0 0.0
        %7304 = vmatprep.subr.mxu0 0.0
        %7305 = vmatpush1.msra.mxu0 0.0
        %7306 = vmatprep.subr.mxu0 0.0
        %7307 = vmatpush1.msra.mxu0 0.0
        %7308 = vmatprep.subr.mxu0 0.0
        %7309 = vmatpush1.msra.mxu0 0.0
        %7310 = vmatprep.subr.mxu0 0.0
        %7311 = vmatpush1.msra.mxu0 0.0
        %7312 = vmatprep.subr.mxu0 0.0
        %7313 = vmatpush1.msra.mxu0 0.0
        %7314 = vmatprep.subr.mxu0 0.0
        %7315 = vmatpush1.msra.mxu0 0.0
        %7316 = vmatprep.subr.mxu0 0.0
        %7317 = vmatpush1.msra.mxu0 0.0
        %7318 = vmatprep.subr.mxu0 0.0
        %7319 = vmatpush1.msra.mxu0 0.0
        %7320 = vmatprep.subr.mxu0 0.0
        %7321 = vmatpush1.msra.mxu0 0.0
        %7322 = vmatprep.subr.mxu0 0.0
        %7323 = vmatpush1.msra.mxu0 0.0
        %7324 = vmatprep.subr.mxu0 0.0
        %7325 = vmatpush1.msra.mxu0 0.0
        %7326 = vmatprep.subr.mxu0 0.0
        %7327 = vmatpush1.msra.mxu0 0.0
        %7328 = vmatprep.subr.mxu0 0.0
        %7329 = vmatpush1.msra.mxu0 0.0
        %7330 = vmatprep.subr.mxu0 0.0
        %7331 = vmatpush1.msra.mxu0 0.0
        %7332 = vmatprep.subr.mxu0 0.0
        %7333 = vmatpush1.msra.mxu0 0.0
        %7334 = vmatprep.subr.mxu0 0.0
        %7335 = vmatpush1.msra.mxu0 0.0
        %7336 = vmatprep.subr.mxu0 0.0
        %7337 = vmatpush1.msra.mxu0 0.0
        %7338 = vmatprep.subr.mxu0 0.0
        %7339 = vmatpush1.msra.mxu0 0.0
        %7340 = vmatprep.subr.mxu0 0.0
        %7341 = vmatpush1.msra.mxu0 0.0
        %7342 = vmatprep.subr.mxu0 0.0
        %7343 = vmatpush1.msra.mxu0 0.0
        %7344 = vmatprep.subr.mxu0 0.0
        %7345 = vmatpush1.msra.mxu0 0.0
        %7346 = vmatprep.subr.mxu0 0.0
        %7347 = vmatpush1.msra.mxu0 0.0
        %7348 = vmatprep.subr.mxu0 0.0
        %7349 = vmatpush1.msra.mxu0 0.0
        %7350 = vmatprep.subr.mxu0 0.0
        %7351 = vmatpush1.msra.mxu0 0.0
        %7352 = vmatprep.subr.mxu0 0.0
        %7353 = vmatpush1.msra.mxu0 0.0
        %7354 = vmatprep.mubr.f32.mxu0 0.0
        %7355 = vmatmul.mubr.f32.gmra.mrb[0].mxu0 %v7288
        %v7356 = vpop.f32.mrb[0].mxu0
        %v7357 = vadd.f32 0.0, %v7356
        %v7358 = vpop.f32.mrb[0].mxu0
        %7359 = vdwg.mxu0
        %7361 = vrot.lane.b32.xlu0 %v7357, 64
        %v7362 = vpop.permute.xlu0 %7361
        %v7364 = vadd.f32 %v7197, %v7362
        %v7365 = vadd.f32 %v7364, %v899
        %v7366 = vtanh.pop %v7365
        %v7367 = vmul.f32 %v7280, %v6944
        %v7368 = vsub.f32 1.0, %v7280
        %7370 = vrot.lane.b32.xlu0 %v7366, 64
        %v7371 = vpop.permute.xlu0 %7370
        %v7373 = vmul.f32 %v7368, %v7371
        %v7374 = vadd.f32 %v7367, %v7373
        %v7375 = vsel %vm7125, %v7374, %v6944
        %s7376 = scalar_lea.vmem %s407, 120 [#allocation11]
        %7377 = vst.msk [vmem:[%s7376] sm:$0xff] %vm477, %v7375
        %7378 = vst.msk [vmem:[#allocation12] sm:$0xff] %vm477, %v7126
        %7379 = vst.msk [vmem:[%s472] sm:$0xff] %vm477, %v7375
        %s7380 = sand.u32 %s210, 1
        %s7381 = scalar_lea.sflag [#allocation4], %s7380
        %s7382 = sand.u32 %s210, 1
        %s7383 = smul.addr %s7382, 128
        %s7384 = scalar_lea.vmem [#allocation11], %s7383
        // Predicated region
        $region73: #{tpu_custom_call.1} parent=47 // pred_check
          %p7385 = pneg %p220
        $region74: #{tpu_custom_call.1} parent=47 // pred_check_branch
          %7387 = sbr.rel (%p7385) target = $region76
        $region75: #{tpu_custom_call.1} parent=47 // pred_region
          %s7388 = smul.u32 16, %s34
          %s7390 = ssub.s32 2048, 2048
          %7391 = vsyncadd %s7381, %s7390
          %s7392 = sadd.s32 %s33, %s7388
          %s7393 = smul.addr %s7392, 128
          %s7394 = scalar_lea.hbm %s7, %s7393
          %s7395 = sshll.u32 %s7384, 4
          %s7396 = int_to_ptr.vmem [resolvable:$true] %s7395
          %7401 = dma.vmem_to_hbm [thread:$0]  %s7396, 2048, %s7394, %s7381, 128, 128, 8
        $region76: #{tpu_custom_call.1} parent=47 // pred_fallthru
          _
        // Predicated region
        $region77: #{tpu_custom_call.1} parent=47 // pred_check
          %p7402 = pneg %p246
        $region78: #{tpu_custom_call.1} parent=47 // pred_check_branch
          %7404 = sbr.rel (%p7402) target = $region80
        $region79: #{tpu_custom_call.1} parent=47 // pred_region
          %s7406 = ssub.s32 256, 256
          %7407 = vsyncadd [#allocation13], %s7406
          %s7408 = smul.addr %s33, 128
          %s7409 = scalar_lea.hbm %s8, %s7408
          %s7410 = sshll.u32 [#allocation12], 4
          %s7411 = int_to_ptr.vmem [resolvable:$true] %s7410
          %7416 = dma.vmem_to_hbm [thread:$0]  %s7411, 256, %s7409, [#allocation13], 128, 128, 8
        $region80: #{tpu_custom_call.1} parent=47 // pred_fallthru
          _
        // Predicated region
        $region81: #{tpu_custom_call.1} parent=47 // pred_check
          %p7417 = pneg %p246
        $region82: #{tpu_custom_call.1} parent=47 // pred_check_branch
          %7419 = sbr.rel (%p7417) target = $region84
        $region83: #{tpu_custom_call.1} parent=47 // pred_region
          %7420 = dma.done [#allocation13], 256
        $region84: #{tpu_custom_call.1} parent=47 // pred_fallthru
          _
      $region48: #{tpu_custom_call.1} parent=5 // pred_fallthru
        _
      %p7421 = scmp.le.s32.totalorder 2, %s24
      // Predicated region
      $region85: #{tpu_custom_call.1} parent=5 // pred_check
        %p7422 = pneg %p7421
      $region86: #{tpu_custom_call.1} parent=5 // pred_check_branch
        %7424 = sbr.rel (%p7422) target = $region88
      $region87: #{tpu_custom_call.1} parent=5 // pred_region
        %s7425 = ssub.s32 %s24, 2
        // Predicated region
        $region89: #{tpu_custom_call.1} parent=87 // pred_check
          %p7426 = pneg %p226
        $region90: #{tpu_custom_call.1} parent=87 // pred_check_branch
          %7428 = sbr.rel (%p7426) target = $region92
        $region91: #{tpu_custom_call.1} parent=87 // pred_region
          %s7429 = sand.u32 %s211, 1
          %s7430 = scalar_lea.sflag [#allocation4], %s7429
          %s7431 = sand.u32 %s211, 1
          %s7432 = smul.addr %s7431, 128
          %s7433 = scalar_lea.vmem [#allocation11], %s7432
          %7434 = dma.done %s7430, 2048
        $region92: #{tpu_custom_call.1} parent=87 // pred_fallthru
          _
      $region88: #{tpu_custom_call.1} parent=5 // pred_fallthru
        _
    $region6: #{tpu_custom_call.1} parent=1 // loop_footer
      %s28 = sadd.s32 1, %s24
    $region7: #{tpu_custom_call.1} parent=1 // loop_footer_branch
      %23 = sbr.rel target = $region3
    $region8: #{tpu_custom_call.1} parent=1 // loop_exit
      _
    %7435 = vsyncpa [#allocation3], 1
    %s7436 = scalar_lea.sflag [#allocation3], 1
    %7437 = vsyncpa %s7436, 1
    %7438 = vsyncpa [#allocation6], 1
    %7439 = vsyncpa [#allocation9], 1
    %7440 = vsyncpa [#allocation4], 1
    %s7441 = scalar_lea.sflag [#allocation4], 1
    %7442 = vsyncpa %s7441, 1
    %7443 = vsyncpa [#allocation13], 1

</llo_original>
